<compile_context>
chip_gen: v5e
topology: v5e:2x2
jax: 0.10.0
libtpu: 0.0.40
codegen_flags: <defaults>
</compile_context>

<pallas_src>
import jax
import jax.numpy as jnp
from jax import lax
from jax.experimental import pallas as pl
from jax.experimental.pallas import tpu as pltpu


# ----------------------------------------------------------------------------
# Kernel
# ----------------------------------------------------------------------------
def _value_net_kernel(p1_ref, w1_ref, b1_ref, w2_ref, b2_ref, w3_ref, b3_ref,
                      w4_ref, b4_ref, w5_ref, b5_ref, out_ref):
    f32 = jnp.float32
    bf16 = jnp.bfloat16

    w1 = w1_ref[...]            # (128, 256) bf16 (rows >= 68 are zero)
    b1 = b1_ref[...]            # (1, 256)   f32

    # conv1: 9 output positions, each a (TB, 128) @ (128, 256) matmul.
    # p1 is position-major (9, TB, 128); p1_ref[pos] is a clean slab view.
    h1 = []
    for pos in range(9):
        h = jnp.dot(p1_ref[pos], w1, preferred_element_type=f32) + b1
        h1.append(jnp.maximum(h, 0.0).astype(bf16))          # (TB, 256)

    # conv2: 4 accumulating tap matmuls per output position (no im2col).
    b2 = b2_ref[...]            # (1, 512)
    y2 = []                     # position-major list of (TB, 512)
    for oh in range(2):
        for ow in range(2):
            acc = b2
            for kh in range(2):
                for kw in range(2):
                    pos = (oh + kh) * 3 + (ow + kw)
                    acc = acc + jnp.dot(h1[pos], w2_ref[kh * 2 + kw],
                                        preferred_element_type=f32)
            y2.append(jnp.maximum(acc, 0.0).astype(bf16))

    # fc1 as 4 K-chunk matmuls (one per conv2 output position).  PyTorch's
    # channel-major Flatten ordering is folded into the w3 chunk permutation.
    y3 = b3_ref[...]            # (1, 1024)
    for p in range(4):
        y3 = y3 + jnp.dot(y2[p], w3_ref[p], preferred_element_type=f32)
    y3 = jnp.maximum(y3, 0.0).astype(bf16)                    # (TB, 1024)

    # fc2
    y4 = jnp.maximum(
        jnp.dot(y3, w4_ref[...], preferred_element_type=f32) + b4_ref[...],
        0.0).astype(bf16)                                     # (TB, 256)

    # fc3: w5 zero-padded to 128 output columns -> lane-dense store.
    out_ref[...] = (jnp.dot(y4, w5_ref[...], preferred_element_type=f32)
                    + b5_ref[...])                            # (TB, 128)


# ----------------------------------------------------------------------------
# One-time parameter preparation (hoisted out of the per-call path)
# ----------------------------------------------------------------------------
def prepare_params(params):
    """Permute PyTorch-layout weights into kernel layout, cast to bf16."""
    (w1, b1, w2, b2, w3, b3, w4, b4, w5, b5) = params
    bf16, f32 = jnp.bfloat16, jnp.float32

    # conv1: (O=256, I=17, kh, kw) -> row = (kh*2+kw)*17+I, col = O.
    # Rows zero-padded 68 -> 128 so the activation slab is lane-dense.
    w1m = jnp.transpose(w1, (2, 3, 1, 0)).reshape(68, 256)
    w1m = jnp.pad(w1m, ((0, 60), (0, 0))).astype(bf16)                  # (128, 256)
    # conv2 taps: (4, 256, 512), tap index = kh*2+kw
    w2t = jnp.transpose(w2, (2, 3, 1, 0)).reshape(4, 256, 512).astype(bf16)
    # fc1 K-chunks: PyTorch flatten index = c*4 + (oh*2+ow)  ->  (4, 512, 1024)
    w3t = jnp.transpose(w3.reshape(1024, 512, 4), (2, 1, 0)).astype(bf16)
    w4m = jnp.transpose(w4).astype(bf16)                                # (1024, 256)
    w5m = jnp.pad(jnp.transpose(w5), ((0, 0), (0, 127))).astype(bf16)   # (256, 128)

    b1m = b1.reshape(1, 256).astype(f32)
    b2m = b2.reshape(1, 512).astype(f32)
    b3m = b3.reshape(1, 1024).astype(f32)
    b4m = b4.reshape(1, 256).astype(f32)
    b5m = jnp.pad(b5, (0, 127)).reshape(1, 128).astype(f32)
    return (w1m, b1m, w2t, b2m, w3t, b3m, w4m, b4m, w5m, b5m)


# ----------------------------------------------------------------------------
# Forward wrapper
# ----------------------------------------------------------------------------
def _round_up(n, m):
    return ((n + m - 1) // m) * m


def _resident_spec(a):
    """Full-array block with constant index_map -> DMA'd once, VMEM-resident."""
    zeros = (0,) * a.ndim
    return pl.BlockSpec(a.shape, lambda i, z=zeros: z)


def value_net_forward(x, prep):
    """x: (B, 17, 4, 4) float32, NCHW.  prep: prepare_params(params).
    Returns (B,) afterstate values (== .squeeze())."""
    B = x.shape[0]
    TB = min(128, _round_up(B, 16))        # batch tile per grid step
    B_pad = _round_up(B, TB)
    nb = B_pad // TB

    # Activation im2col for conv1, position-major: (9, B_pad, 128), bf16.
    # (K padded 68 -> 128 with zeros; matching w1 rows are zero.)
    x_nhwc = jnp.transpose(x, (0, 2, 3, 1))                           # (B,4,4,17)
    parts = [x_nhwc[:, kh:kh + 3, kw:kw + 3, :]
             for kh in range(2) for kw in range(2)]                   # (B,3,3,17)
    patches = jnp.concatenate(parts, axis=-1)                         # (B,3,3,68)
    p1 = jnp.transpose(patches, (1, 2, 0, 3)).reshape(9, B, 68)
    p1 = jnp.pad(p1, ((0, 0), (0, B_pad - B), (0, 128 - 68)))
    p1 = p1.astype(jnp.bfloat16)                                      # (9,B_pad,128)

    in_specs = [pl.BlockSpec((9, TB, 128), lambda i: (0, i, 0))]
    in_specs += [_resident_spec(a) for a in prep]
    out_spec = pl.BlockSpec((TB, 128), lambda i: (i, 0))

    out = pl.pallas_call(
        _value_net_kernel,
        out_shape=jax.ShapeDtypeStruct((B_pad, 128), jnp.float32),
        grid_spec=pltpu.PrefetchScalarGridSpec(
            num_scalar_prefetch=0,
            grid=(nb,),
            in_specs=in_specs,
            out_specs=out_spec,
        ),
        compiler_params=pltpu.CompilerParams(
            dimension_semantics=("parallel",),
            vmem_limit_bytes=24 << 20,
        ),
    )(p1, *prep)
    return out[:B, 0]


# ----------------------------------------------------------------------------
# Synthetic init + references
# ----------------------------------------------------------------------------
def init_params(key):
    """Deterministic synthetic init with PyTorch-native weight shapes."""
    ks = jax.random.split(key, 10)

    def u(k, shape, fan_in):
        bound = 1.0 / jnp.sqrt(jnp.float32(fan_in))
        return jax.random.uniform(k, shape, jnp.float32, -bound, bound)

    w1 = u(ks[0], (256, 17, 2, 2), 17 * 4);   b1 = u(ks[1], (256,), 17 * 4)
    w2 = u(ks[2], (512, 256, 2, 2), 256 * 4); b2 = u(ks[3], (512,), 256 * 4)
    w3 = u(ks[4], (1024, 2048), 2048);        b3 = u(ks[5], (1024,), 2048)
    w4 = u(ks[6], (256, 1024), 1024);         b4 = u(ks[7], (256,), 1024)
    w5 = u(ks[8], (1, 256), 256);             b5 = u(ks[9], (1,), 256)
    return (w1, b1, w2, b2, w3, b3, w4, b4, w5, b5)


def reference_forward(x, params):
    """Pure-f32 JAX reference replicating the PyTorch Sequential exactly."""
    (w1, b1, w2, b2, w3, b3, w4, b4, w5, b5) = params
    dn = ('NCHW', 'OIHW', 'NCHW')
    h = lax.conv_general_dilated(x, w1, (1, 1), 'VALID', dimension_numbers=dn)
    h = jax.nn.relu(h + b1[None, :, None, None])
    h = lax.conv_general_dilated(h, w2, (1, 1), 'VALID', dimension_numbers=dn)
    h = jax.nn.relu(h + b2[None, :, None, None])
    h = h.reshape(x.shape[0], -1)                     # PyTorch Flatten: (cout, oh, ow)
    h = jax.nn.relu(h @ w3.T + b3)
    h = jax.nn.relu(h @ w4.T + b4)
    return (h @ w5.T + b5)[:, 0]


def reference_forward_bf16(x, params):
    """Reference modelling the kernel's numerics: bf16 GEMM operands, f32 accum."""
    (w1, b1, w2, b2, w3, b3, w4, b4, w5, b5) = params
    f32, c = jnp.float32, (lambda a: a.astype(jnp.bfloat16))
    dn = ('NCHW', 'OIHW', 'NCHW')
    h = lax.conv_general_dilated(c(x), c(w1), (1, 1), 'VALID',
                                 dimension_numbers=dn, preferred_element_type=f32)
    h = jax.nn.relu(h + b1[None, :, None, None])
    h = lax.conv_general_dilated(c(h), c(w2), (1, 1), 'VALID',
                                 dimension_numbers=dn, preferred_element_type=f32)
    h = jax.nn.relu(h + b2[None, :, None, None])
    h = h.reshape(x.shape[0], -1)
    h = jax.nn.relu(jnp.dot(c(h), c(w3.T), preferred_element_type=f32) + b3)
    h = jax.nn.relu(jnp.dot(c(h), c(w4.T), preferred_element_type=f32) + b4)
    return (jnp.dot(c(h), c(w5.T), preferred_element_type=f32) + b5)[:, 0]


# TODO(synk): the board-game move logic (up/right/down/left), epsilon-greedy
# action selection and the None-masking in compute_next_state_values are
# host-side Python control flow, not kernel work; only self.model() is kernelized.

if __name__ == "__main__":
    key = jax.random.PRNGKey(0)
    k_params, k_x = jax.random.split(key)

    params = init_params(k_params)
    prep = prepare_params(params)          # one-time, outside the per-call path

    # batch of 4 afterstates (as produced by ValueNet.act), NCHW (4, 17, 4, 4)
    x = jax.random.uniform(k_x, (4, 17, 4, 4), jnp.float32)

    fwd = jax.jit(value_net_forward)
    out = jax.block_until_ready(fwd(x, prep))

    ref_bf16 = reference_forward_bf16(x, params)   # same bf16-GEMM numerics
    ref_f32 = reference_forward(x, params)         # PyTorch-faithful f32

    assert out.shape == (4,)
    assert jnp.allclose(out, ref_bf16, atol=5e-4, rtol=1e-2), (out, ref_bf16)
    assert jnp.allclose(out, ref_f32, atol=1e-2, rtol=1e-1), (out, ref_f32)
    print("KERNEL_OK")
</pallas_src>

<mosaic_0001>
module attributes {stable_mosaic.version = 11 : i64} {
  func.func @_value_net_kernel(%arg0: i32, %arg1: memref<9x16x128xbf16, #tpu.memory_space<vmem>>, %arg2: memref<128x256xbf16, #tpu.memory_space<vmem>>, %arg3: memref<1x256xf32, #tpu.memory_space<vmem>>, %arg4: memref<4x256x512xbf16, #tpu.memory_space<vmem>>, %arg5: memref<1x512xf32, #tpu.memory_space<vmem>>, %arg6: memref<4x512x1024xbf16, #tpu.memory_space<vmem>>, %arg7: memref<1x1024xf32, #tpu.memory_space<vmem>>, %arg8: memref<1024x256xbf16, #tpu.memory_space<vmem>>, %arg9: memref<1x256xf32, #tpu.memory_space<vmem>>, %arg10: memref<256x128xbf16, #tpu.memory_space<vmem>>, %arg11: memref<1x128xf32, #tpu.memory_space<vmem>>, %arg12: memref<16x128xf32, #tpu.memory_space<vmem>>) attributes {dimension_semantics = [#tpu.dimension_semantics<parallel>], iteration_bounds = array<i64: 1>, scalar_prefetch = 0 : i64, scratch_operands = 0 : i64, tpu.core_type = #tpu.core_type<tc>, window_params = [{transform_indices = @transform_0, window_bounds = array<i64: 9, 16, 128>}, {pipeline_mode = #tpu.pipeline_mode<synchronous>, transform_indices = @transform_1, window_bounds = array<i64: 128, 256>}, {pipeline_mode = #tpu.pipeline_mode<synchronous>, transform_indices = @transform_2, window_bounds = array<i64: 1, 256>}, {pipeline_mode = #tpu.pipeline_mode<synchronous>, transform_indices = @transform_3, window_bounds = array<i64: 4, 256, 512>}, {pipeline_mode = #tpu.pipeline_mode<synchronous>, transform_indices = @transform_4, window_bounds = array<i64: 1, 512>}, {pipeline_mode = #tpu.pipeline_mode<synchronous>, transform_indices = @transform_5, window_bounds = array<i64: 4, 512, 1024>}, {pipeline_mode = #tpu.pipeline_mode<synchronous>, transform_indices = @transform_6, window_bounds = array<i64: 1, 1024>}, {pipeline_mode = #tpu.pipeline_mode<synchronous>, transform_indices = @transform_7, window_bounds = array<i64: 1024, 256>}, {pipeline_mode = #tpu.pipeline_mode<synchronous>, transform_indices = @transform_8, window_bounds = array<i64: 1, 256>}, {pipeline_mode = #tpu.pipeline_mode<synchronous>, transform_indices = @transform_9, window_bounds = array<i64: 256, 128>}, {pipeline_mode = #tpu.pipeline_mode<synchronous>, transform_indices = @transform_10, window_bounds = array<i64: 1, 128>}, {transform_indices = @transform_11, window_bounds = array<i64: 16, 128>}]} {
    %c0 = arith.constant 0 : index
    %c0_0 = arith.constant 0 : index
    %0 = vector.load %arg2[%c0, %c0_0] : memref<128x256xbf16, #tpu.memory_space<vmem>>, vector<128x256xbf16>
    %c0_1 = arith.constant 0 : index
    %c0_2 = arith.constant 0 : index
    %1 = vector.load %arg3[%c0_1, %c0_2] : memref<1x256xf32, #tpu.memory_space<vmem>>, vector<1x256xf32>
    %c0_3 = arith.constant 0 : index
    %c0_4 = arith.constant 0 : index
    %c0_5 = arith.constant 0 : index
    %2 = vector.load %arg1[%c0_3, %c0_4, %c0_5] : memref<9x16x128xbf16, #tpu.memory_space<vmem>>, vector<1x16x128xbf16>
    %3 = vector.shape_cast %2 : vector<1x16x128xbf16> to vector<16x128xbf16>
    %cst = arith.constant dense<0.000000e+00> : vector<16x256xf32>
    %4 = tpu.matmul %3, %0, %cst {dimension_numbers = #tpu.dot_dimension_numbers<[1], [0], [0], [1], [0, 0, 1, 1], [], []>} : vector<16x128xbf16>, vector<128x256xbf16>, vector<16x256xf32> -> vector<16x256xf32>
    %5 = vector.broadcast %1 : vector<1x256xf32> to vector<16x256xf32>
    %6 = arith.addf %4, %5 : vector<16x256xf32>
    %cst_6 = arith.constant 0.000000e+00 : f32
    %7 = vector.broadcast %cst_6 : f32 to vector<16x256xf32>
    %8 = arith.maximumf %6, %7 : vector<16x256xf32>
    %9 = arith.truncf %8 : vector<16x256xf32> to vector<16x256xbf16>
    %c1 = arith.constant 1 : index
    %c0_7 = arith.constant 0 : index
    %c0_8 = arith.constant 0 : index
    %10 = vector.load %arg1[%c1, %c0_7, %c0_8] : memref<9x16x128xbf16, #tpu.memory_space<vmem>>, vector<1x16x128xbf16>
    %11 = vector.shape_cast %10 : vector<1x16x128xbf16> to vector<16x128xbf16>
    %cst_9 = arith.constant dense<0.000000e+00> : vector<16x256xf32>
    %12 = tpu.matmul %11, %0, %cst_9 {dimension_numbers = #tpu.dot_dimension_numbers<[1], [0], [0], [1], [0, 0, 1, 1], [], []>} : vector<16x128xbf16>, vector<128x256xbf16>, vector<16x256xf32> -> vector<16x256xf32>
    %13 = vector.broadcast %1 : vector<1x256xf32> to vector<16x256xf32>
    %14 = arith.addf %12, %13 : vector<16x256xf32>
    %cst_10 = arith.constant 0.000000e+00 : f32
    %15 = vector.broadcast %cst_10 : f32 to vector<16x256xf32>
    %16 = arith.maximumf %14, %15 : vector<16x256xf32>
    %17 = arith.truncf %16 : vector<16x256xf32> to vector<16x256xbf16>
    %c2 = arith.constant 2 : index
    %c0_11 = arith.constant 0 : index
    %c0_12 = arith.constant 0 : index
    %18 = vector.load %arg1[%c2, %c0_11, %c0_12] : memref<9x16x128xbf16, #tpu.memory_space<vmem>>, vector<1x16x128xbf16>
    %19 = vector.shape_cast %18 : vector<1x16x128xbf16> to vector<16x128xbf16>
    %cst_13 = arith.constant dense<0.000000e+00> : vector<16x256xf32>
    %20 = tpu.matmul %19, %0, %cst_13 {dimension_numbers = #tpu.dot_dimension_numbers<[1], [0], [0], [1], [0, 0, 1, 1], [], []>} : vector<16x128xbf16>, vector<128x256xbf16>, vector<16x256xf32> -> vector<16x256xf32>
    %21 = vector.broadcast %1 : vector<1x256xf32> to vector<16x256xf32>
    %22 = arith.addf %20, %21 : vector<16x256xf32>
    %cst_14 = arith.constant 0.000000e+00 : f32
    %23 = vector.broadcast %cst_14 : f32 to vector<16x256xf32>
    %24 = arith.maximumf %22, %23 : vector<16x256xf32>
    %25 = arith.truncf %24 : vector<16x256xf32> to vector<16x256xbf16>
    %c3 = arith.constant 3 : index
    %c0_15 = arith.constant 0 : index
    %c0_16 = arith.constant 0 : index
    %26 = vector.load %arg1[%c3, %c0_15, %c0_16] : memref<9x16x128xbf16, #tpu.memory_space<vmem>>, vector<1x16x128xbf16>
    %27 = vector.shape_cast %26 : vector<1x16x128xbf16> to vector<16x128xbf16>
    %cst_17 = arith.constant dense<0.000000e+00> : vector<16x256xf32>
    %28 = tpu.matmul %27, %0, %cst_17 {dimension_numbers = #tpu.dot_dimension_numbers<[1], [0], [0], [1], [0, 0, 1, 1], [], []>} : vector<16x128xbf16>, vector<128x256xbf16>, vector<16x256xf32> -> vector<16x256xf32>
    %29 = vector.broadcast %1 : vector<1x256xf32> to vector<16x256xf32>
    %30 = arith.addf %28, %29 : vector<16x256xf32>
    %cst_18 = arith.constant 0.000000e+00 : f32
    %31 = vector.broadcast %cst_18 : f32 to vector<16x256xf32>
    %32 = arith.maximumf %30, %31 : vector<16x256xf32>
    %33 = arith.truncf %32 : vector<16x256xf32> to vector<16x256xbf16>
    %c4 = arith.constant 4 : index
    %c0_19 = arith.constant 0 : index
    %c0_20 = arith.constant 0 : index
    %34 = vector.load %arg1[%c4, %c0_19, %c0_20] : memref<9x16x128xbf16, #tpu.memory_space<vmem>>, vector<1x16x128xbf16>
    %35 = vector.shape_cast %34 : vector<1x16x128xbf16> to vector<16x128xbf16>
    %cst_21 = arith.constant dense<0.000000e+00> : vector<16x256xf32>
    %36 = tpu.matmul %35, %0, %cst_21 {dimension_numbers = #tpu.dot_dimension_numbers<[1], [0], [0], [1], [0, 0, 1, 1], [], []>} : vector<16x128xbf16>, vector<128x256xbf16>, vector<16x256xf32> -> vector<16x256xf32>
    %37 = vector.broadcast %1 : vector<1x256xf32> to vector<16x256xf32>
    %38 = arith.addf %36, %37 : vector<16x256xf32>
    %cst_22 = arith.constant 0.000000e+00 : f32
    %39 = vector.broadcast %cst_22 : f32 to vector<16x256xf32>
    %40 = arith.maximumf %38, %39 : vector<16x256xf32>
    %41 = arith.truncf %40 : vector<16x256xf32> to vector<16x256xbf16>
    %c5 = arith.constant 5 : index
    %c0_23 = arith.constant 0 : index
    %c0_24 = arith.constant 0 : index
    %42 = vector.load %arg1[%c5, %c0_23, %c0_24] : memref<9x16x128xbf16, #tpu.memory_space<vmem>>, vector<1x16x128xbf16>
    %43 = vector.shape_cast %42 : vector<1x16x128xbf16> to vector<16x128xbf16>
    %cst_25 = arith.constant dense<0.000000e+00> : vector<16x256xf32>
    %44 = tpu.matmul %43, %0, %cst_25 {dimension_numbers = #tpu.dot_dimension_numbers<[1], [0], [0], [1], [0, 0, 1, 1], [], []>} : vector<16x128xbf16>, vector<128x256xbf16>, vector<16x256xf32> -> vector<16x256xf32>
    %45 = vector.broadcast %1 : vector<1x256xf32> to vector<16x256xf32>
    %46 = arith.addf %44, %45 : vector<16x256xf32>
    %cst_26 = arith.constant 0.000000e+00 : f32
    %47 = vector.broadcast %cst_26 : f32 to vector<16x256xf32>
    %48 = arith.maximumf %46, %47 : vector<16x256xf32>
    %49 = arith.truncf %48 : vector<16x256xf32> to vector<16x256xbf16>
    %c6 = arith.constant 6 : index
    %c0_27 = arith.constant 0 : index
    %c0_28 = arith.constant 0 : index
    %50 = vector.load %arg1[%c6, %c0_27, %c0_28] : memref<9x16x128xbf16, #tpu.memory_space<vmem>>, vector<1x16x128xbf16>
    %51 = vector.shape_cast %50 : vector<1x16x128xbf16> to vector<16x128xbf16>
    %cst_29 = arith.constant dense<0.000000e+00> : vector<16x256xf32>
    %52 = tpu.matmul %51, %0, %cst_29 {dimension_numbers = #tpu.dot_dimension_numbers<[1], [0], [0], [1], [0, 0, 1, 1], [], []>} : vector<16x128xbf16>, vector<128x256xbf16>, vector<16x256xf32> -> vector<16x256xf32>
    %53 = vector.broadcast %1 : vector<1x256xf32> to vector<16x256xf32>
    %54 = arith.addf %52, %53 : vector<16x256xf32>
    %cst_30 = arith.constant 0.000000e+00 : f32
    %55 = vector.broadcast %cst_30 : f32 to vector<16x256xf32>
    %56 = arith.maximumf %54, %55 : vector<16x256xf32>
    %57 = arith.truncf %56 : vector<16x256xf32> to vector<16x256xbf16>
    %c7 = arith.constant 7 : index
    %c0_31 = arith.constant 0 : index
    %c0_32 = arith.constant 0 : index
    %58 = vector.load %arg1[%c7, %c0_31, %c0_32] : memref<9x16x128xbf16, #tpu.memory_space<vmem>>, vector<1x16x128xbf16>
    %59 = vector.shape_cast %58 : vector<1x16x128xbf16> to vector<16x128xbf16>
    %cst_33 = arith.constant dense<0.000000e+00> : vector<16x256xf32>
    %60 = tpu.matmul %59, %0, %cst_33 {dimension_numbers = #tpu.dot_dimension_numbers<[1], [0], [0], [1], [0, 0, 1, 1], [], []>} : vector<16x128xbf16>, vector<128x256xbf16>, vector<16x256xf32> -> vector<16x256xf32>
    %61 = vector.broadcast %1 : vector<1x256xf32> to vector<16x256xf32>
    %62 = arith.addf %60, %61 : vector<16x256xf32>
    %cst_34 = arith.constant 0.000000e+00 : f32
    %63 = vector.broadcast %cst_34 : f32 to vector<16x256xf32>
    %64 = arith.maximumf %62, %63 : vector<16x256xf32>
    %65 = arith.truncf %64 : vector<16x256xf32> to vector<16x256xbf16>
    %c8 = arith.constant 8 : index
    %c0_35 = arith.constant 0 : index
    %c0_36 = arith.constant 0 : index
    %66 = vector.load %arg1[%c8, %c0_35, %c0_36] : memref<9x16x128xbf16, #tpu.memory_space<vmem>>, vector<1x16x128xbf16>
    %67 = vector.shape_cast %66 : vector<1x16x128xbf16> to vector<16x128xbf16>
    %cst_37 = arith.constant dense<0.000000e+00> : vector<16x256xf32>
    %68 = tpu.matmul %67, %0, %cst_37 {dimension_numbers = #tpu.dot_dimension_numbers<[1], [0], [0], [1], [0, 0, 1, 1], [], []>} : vector<16x128xbf16>, vector<128x256xbf16>, vector<16x256xf32> -> vector<16x256xf32>
    %69 = vector.broadcast %1 : vector<1x256xf32> to vector<16x256xf32>
    %70 = arith.addf %68, %69 : vector<16x256xf32>
    %cst_38 = arith.constant 0.000000e+00 : f32
    %71 = vector.broadcast %cst_38 : f32 to vector<16x256xf32>
    %72 = arith.maximumf %70, %71 : vector<16x256xf32>
    %73 = arith.truncf %72 : vector<16x256xf32> to vector<16x256xbf16>
    %c0_39 = arith.constant 0 : index
    %c0_40 = arith.constant 0 : index
    %74 = vector.load %arg5[%c0_39, %c0_40] : memref<1x512xf32, #tpu.memory_space<vmem>>, vector<1x512xf32>
    %c0_41 = arith.constant 0 : index
    %c0_42 = arith.constant 0 : index
    %c0_43 = arith.constant 0 : index
    %75 = vector.load %arg4[%c0_41, %c0_42, %c0_43] : memref<4x256x512xbf16, #tpu.memory_space<vmem>>, vector<1x256x512xbf16>
    %76 = vector.shape_cast %75 : vector<1x256x512xbf16> to vector<256x512xbf16>
    %cst_44 = arith.constant dense<0.000000e+00> : vector<16x512xf32>
    %77 = tpu.matmul %9, %76, %cst_44 {dimension_numbers = #tpu.dot_dimension_numbers<[1], [0], [0], [1], [0, 0, 1, 1], [], []>} : vector<16x256xbf16>, vector<256x512xbf16>, vector<16x512xf32> -> vector<16x512xf32>
    %78 = vector.broadcast %74 : vector<1x512xf32> to vector<16x512xf32>
    %79 = arith.addf %78, %77 : vector<16x512xf32>
    %c1_45 = arith.constant 1 : index
    %c0_46 = arith.constant 0 : index
    %c0_47 = arith.constant 0 : index
    %80 = vector.load %arg4[%c1_45, %c0_46, %c0_47] : memref<4x256x512xbf16, #tpu.memory_space<vmem>>, vector<1x256x512xbf16>
    %81 = vector.shape_cast %80 : vector<1x256x512xbf16> to vector<256x512xbf16>
    %cst_48 = arith.constant dense<0.000000e+00> : vector<16x512xf32>
    %82 = tpu.matmul %17, %81, %cst_48 {dimension_numbers = #tpu.dot_dimension_numbers<[1], [0], [0], [1], [0, 0, 1, 1], [], []>} : vector<16x256xbf16>, vector<256x512xbf16>, vector<16x512xf32> -> vector<16x512xf32>
    %83 = arith.addf %79, %82 : vector<16x512xf32>
    %c2_49 = arith.constant 2 : index
    %c0_50 = arith.constant 0 : index
    %c0_51 = arith.constant 0 : index
    %84 = vector.load %arg4[%c2_49, %c0_50, %c0_51] : memref<4x256x512xbf16, #tpu.memory_space<vmem>>, vector<1x256x512xbf16>
    %85 = vector.shape_cast %84 : vector<1x256x512xbf16> to vector<256x512xbf16>
    %cst_52 = arith.constant dense<0.000000e+00> : vector<16x512xf32>
    %86 = tpu.matmul %33, %85, %cst_52 {dimension_numbers = #tpu.dot_dimension_numbers<[1], [0], [0], [1], [0, 0, 1, 1], [], []>} : vector<16x256xbf16>, vector<256x512xbf16>, vector<16x512xf32> -> vector<16x512xf32>
    %87 = arith.addf %83, %86 : vector<16x512xf32>
    %c3_53 = arith.constant 3 : index
    %c0_54 = arith.constant 0 : index
    %c0_55 = arith.constant 0 : index
    %88 = vector.load %arg4[%c3_53, %c0_54, %c0_55] : memref<4x256x512xbf16, #tpu.memory_space<vmem>>, vector<1x256x512xbf16>
    %89 = vector.shape_cast %88 : vector<1x256x512xbf16> to vector<256x512xbf16>
    %cst_56 = arith.constant dense<0.000000e+00> : vector<16x512xf32>
    %90 = tpu.matmul %41, %89, %cst_56 {dimension_numbers = #tpu.dot_dimension_numbers<[1], [0], [0], [1], [0, 0, 1, 1], [], []>} : vector<16x256xbf16>, vector<256x512xbf16>, vector<16x512xf32> -> vector<16x512xf32>
    %91 = arith.addf %87, %90 : vector<16x512xf32>
    %cst_57 = arith.constant 0.000000e+00 : f32
    %92 = vector.broadcast %cst_57 : f32 to vector<16x512xf32>
    %93 = arith.maximumf %91, %92 : vector<16x512xf32>
    %94 = arith.truncf %93 : vector<16x512xf32> to vector<16x512xbf16>
    %c0_58 = arith.constant 0 : index
    %c0_59 = arith.constant 0 : index
    %c0_60 = arith.constant 0 : index
    %95 = vector.load %arg4[%c0_58, %c0_59, %c0_60] : memref<4x256x512xbf16, #tpu.memory_space<vmem>>, vector<1x256x512xbf16>
    %96 = vector.shape_cast %95 : vector<1x256x512xbf16> to vector<256x512xbf16>
    %cst_61 = arith.constant dense<0.000000e+00> : vector<16x512xf32>
    %97 = tpu.matmul %17, %96, %cst_61 {dimension_numbers = #tpu.dot_dimension_numbers<[1], [0], [0], [1], [0, 0, 1, 1], [], []>} : vector<16x256xbf16>, vector<256x512xbf16>, vector<16x512xf32> -> vector<16x512xf32>
    %98 = vector.broadcast %74 : vector<1x512xf32> to vector<16x512xf32>
    %99 = arith.addf %98, %97 : vector<16x512xf32>
    %c1_62 = arith.constant 1 : index
    %c0_63 = arith.constant 0 : index
    %c0_64 = arith.constant 0 : index
    %100 = vector.load %arg4[%c1_62, %c0_63, %c0_64] : memref<4x256x512xbf16, #tpu.memory_space<vmem>>, vector<1x256x512xbf16>
    %101 = vector.shape_cast %100 : vector<1x256x512xbf16> to vector<256x512xbf16>
    %cst_65 = arith.constant dense<0.000000e+00> : vector<16x512xf32>
    %102 = tpu.matmul %25, %101, %cst_65 {dimension_numbers = #tpu.dot_dimension_numbers<[1], [0], [0], [1], [0, 0, 1, 1], [], []>} : vector<16x256xbf16>, vector<256x512xbf16>, vector<16x512xf32> -> vector<16x512xf32>
    %103 = arith.addf %99, %102 : vector<16x512xf32>
    %c2_66 = arith.constant 2 : index
    %c0_67 = arith.constant 0 : index
    %c0_68 = arith.constant 0 : index
    %104 = vector.load %arg4[%c2_66, %c0_67, %c0_68] : memref<4x256x512xbf16, #tpu.memory_space<vmem>>, vector<1x256x512xbf16>
    %105 = vector.shape_cast %104 : vector<1x256x512xbf16> to vector<256x512xbf16>
    %cst_69 = arith.constant dense<0.000000e+00> : vector<16x512xf32>
    %106 = tpu.matmul %41, %105, %cst_69 {dimension_numbers = #tpu.dot_dimension_numbers<[1], [0], [0], [1], [0, 0, 1, 1], [], []>} : vector<16x256xbf16>, vector<256x512xbf16>, vector<16x512xf32> -> vector<16x512xf32>
    %107 = arith.addf %103, %106 : vector<16x512xf32>
    %c3_70 = arith.constant 3 : index
    %c0_71 = arith.constant 0 : index
    %c0_72 = arith.constant 0 : index
    %108 = vector.load %arg4[%c3_70, %c0_71, %c0_72] : memref<4x256x512xbf16, #tpu.memory_space<vmem>>, vector<1x256x512xbf16>
    %109 = vector.shape_cast %108 : vector<1x256x512xbf16> to vector<256x512xbf16>
    %cst_73 = arith.constant dense<0.000000e+00> : vector<16x512xf32>
    %110 = tpu.matmul %49, %109, %cst_73 {dimension_numbers = #tpu.dot_dimension_numbers<[1], [0], [0], [1], [0, 0, 1, 1], [], []>} : vector<16x256xbf16>, vector<256x512xbf16>, vector<16x512xf32> -> vector<16x512xf32>
    %111 = arith.addf %107, %110 : vector<16x512xf32>
    %cst_74 = arith.constant 0.000000e+00 : f32
    %112 = vector.broadcast %cst_74 : f32 to vector<16x512xf32>
    %113 = arith.maximumf %111, %112 : vector<16x512xf32>
    %114 = arith.truncf %113 : vector<16x512xf32> to vector<16x512xbf16>
    %c0_75 = arith.constant 0 : index
    %c0_76 = arith.constant 0 : index
    %c0_77 = arith.constant 0 : index
    %115 = vector.load %arg4[%c0_75, %c0_76, %c0_77] : memref<4x256x512xbf16, #tpu.memory_space<vmem>>, vector<1x256x512xbf16>
    %116 = vector.shape_cast %115 : vector<1x256x512xbf16> to vector<256x512xbf16>
    %cst_78 = arith.constant dense<0.000000e+00> : vector<16x512xf32>
    %117 = tpu.matmul %33, %116, %cst_78 {dimension_numbers = #tpu.dot_dimension_numbers<[1], [0], [0], [1], [0, 0, 1, 1], [], []>} : vector<16x256xbf16>, vector<256x512xbf16>, vector<16x512xf32> -> vector<16x512xf32>
    %118 = vector.broadcast %74 : vector<1x512xf32> to vector<16x512xf32>
    %119 = arith.addf %118, %117 : vector<16x512xf32>
    %c1_79 = arith.constant 1 : index
    %c0_80 = arith.constant 0 : index
    %c0_81 = arith.constant 0 : index
    %120 = vector.load %arg4[%c1_79, %c0_80, %c0_81] : memref<4x256x512xbf16, #tpu.memory_space<vmem>>, vector<1x256x512xbf16>
    %121 = vector.shape_cast %120 : vector<1x256x512xbf16> to vector<256x512xbf16>
    %cst_82 = arith.constant dense<0.000000e+00> : vector<16x512xf32>
    %122 = tpu.matmul %41, %121, %cst_82 {dimension_numbers = #tpu.dot_dimension_numbers<[1], [0], [0], [1], [0, 0, 1, 1], [], []>} : vector<16x256xbf16>, vector<256x512xbf16>, vector<16x512xf32> -> vector<16x512xf32>
    %123 = arith.addf %119, %122 : vector<16x512xf32>
    %c2_83 = arith.constant 2 : index
    %c0_84 = arith.constant 0 : index
    %c0_85 = arith.constant 0 : index
    %124 = vector.load %arg4[%c2_83, %c0_84, %c0_85] : memref<4x256x512xbf16, #tpu.memory_space<vmem>>, vector<1x256x512xbf16>
    %125 = vector.shape_cast %124 : vector<1x256x512xbf16> to vector<256x512xbf16>
    %cst_86 = arith.constant dense<0.000000e+00> : vector<16x512xf32>
    %126 = tpu.matmul %57, %125, %cst_86 {dimension_numbers = #tpu.dot_dimension_numbers<[1], [0], [0], [1], [0, 0, 1, 1], [], []>} : vector<16x256xbf16>, vector<256x512xbf16>, vector<16x512xf32> -> vector<16x512xf32>
    %127 = arith.addf %123, %126 : vector<16x512xf32>
    %c3_87 = arith.constant 3 : index
    %c0_88 = arith.constant 0 : index
    %c0_89 = arith.constant 0 : index
    %128 = vector.load %arg4[%c3_87, %c0_88, %c0_89] : memref<4x256x512xbf16, #tpu.memory_space<vmem>>, vector<1x256x512xbf16>
    %129 = vector.shape_cast %128 : vector<1x256x512xbf16> to vector<256x512xbf16>
    %cst_90 = arith.constant dense<0.000000e+00> : vector<16x512xf32>
    %130 = tpu.matmul %65, %129, %cst_90 {dimension_numbers = #tpu.dot_dimension_numbers<[1], [0], [0], [1], [0, 0, 1, 1], [], []>} : vector<16x256xbf16>, vector<256x512xbf16>, vector<16x512xf32> -> vector<16x512xf32>
    %131 = arith.addf %127, %130 : vector<16x512xf32>
    %cst_91 = arith.constant 0.000000e+00 : f32
    %132 = vector.broadcast %cst_91 : f32 to vector<16x512xf32>
    %133 = arith.maximumf %131, %132 : vector<16x512xf32>
    %134 = arith.truncf %133 : vector<16x512xf32> to vector<16x512xbf16>
    %c0_92 = arith.constant 0 : index
    %c0_93 = arith.constant 0 : index
    %c0_94 = arith.constant 0 : index
    %135 = vector.load %arg4[%c0_92, %c0_93, %c0_94] : memref<4x256x512xbf16, #tpu.memory_space<vmem>>, vector<1x256x512xbf16>
    %136 = vector.shape_cast %135 : vector<1x256x512xbf16> to vector<256x512xbf16>
    %cst_95 = arith.constant dense<0.000000e+00> : vector<16x512xf32>
    %137 = tpu.matmul %41, %136, %cst_95 {dimension_numbers = #tpu.dot_dimension_numbers<[1], [0], [0], [1], [0, 0, 1, 1], [], []>} : vector<16x256xbf16>, vector<256x512xbf16>, vector<16x512xf32> -> vector<16x512xf32>
    %138 = vector.broadcast %74 : vector<1x512xf32> to vector<16x512xf32>
    %139 = arith.addf %138, %137 : vector<16x512xf32>
    %c1_96 = arith.constant 1 : index
    %c0_97 = arith.constant 0 : index
    %c0_98 = arith.constant 0 : index
    %140 = vector.load %arg4[%c1_96, %c0_97, %c0_98] : memref<4x256x512xbf16, #tpu.memory_space<vmem>>, vector<1x256x512xbf16>
    %141 = vector.shape_cast %140 : vector<1x256x512xbf16> to vector<256x512xbf16>
    %cst_99 = arith.constant dense<0.000000e+00> : vector<16x512xf32>
    %142 = tpu.matmul %49, %141, %cst_99 {dimension_numbers = #tpu.dot_dimension_numbers<[1], [0], [0], [1], [0, 0, 1, 1], [], []>} : vector<16x256xbf16>, vector<256x512xbf16>, vector<16x512xf32> -> vector<16x512xf32>
    %143 = arith.addf %139, %142 : vector<16x512xf32>
    %c2_100 = arith.constant 2 : index
    %c0_101 = arith.constant 0 : index
    %c0_102 = arith.constant 0 : index
    %144 = vector.load %arg4[%c2_100, %c0_101, %c0_102] : memref<4x256x512xbf16, #tpu.memory_space<vmem>>, vector<1x256x512xbf16>
    %145 = vector.shape_cast %144 : vector<1x256x512xbf16> to vector<256x512xbf16>
    %cst_103 = arith.constant dense<0.000000e+00> : vector<16x512xf32>
    %146 = tpu.matmul %65, %145, %cst_103 {dimension_numbers = #tpu.dot_dimension_numbers<[1], [0], [0], [1], [0, 0, 1, 1], [], []>} : vector<16x256xbf16>, vector<256x512xbf16>, vector<16x512xf32> -> vector<16x512xf32>
    %147 = arith.addf %143, %146 : vector<16x512xf32>
    %c3_104 = arith.constant 3 : index
    %c0_105 = arith.constant 0 : index
    %c0_106 = arith.constant 0 : index
    %148 = vector.load %arg4[%c3_104, %c0_105, %c0_106] : memref<4x256x512xbf16, #tpu.memory_space<vmem>>, vector<1x256x512xbf16>
    %149 = vector.shape_cast %148 : vector<1x256x512xbf16> to vector<256x512xbf16>
    %cst_107 = arith.constant dense<0.000000e+00> : vector<16x512xf32>
    %150 = tpu.matmul %73, %149, %cst_107 {dimension_numbers = #tpu.dot_dimension_numbers<[1], [0], [0], [1], [0, 0, 1, 1], [], []>} : vector<16x256xbf16>, vector<256x512xbf16>, vector<16x512xf32> -> vector<16x512xf32>
    %151 = arith.addf %147, %150 : vector<16x512xf32>
    %cst_108 = arith.constant 0.000000e+00 : f32
    %152 = vector.broadcast %cst_108 : f32 to vector<16x512xf32>
    %153 = arith.maximumf %151, %152 : vector<16x512xf32>
    %154 = arith.truncf %153 : vector<16x512xf32> to vector<16x512xbf16>
    %c0_109 = arith.constant 0 : index
    %c0_110 = arith.constant 0 : index
    %155 = vector.load %arg7[%c0_109, %c0_110] : memref<1x1024xf32, #tpu.memory_space<vmem>>, vector<1x1024xf32>
    %c0_111 = arith.constant 0 : index
    %c0_112 = arith.constant 0 : index
    %c0_113 = arith.constant 0 : index
    %156 = vector.load %arg6[%c0_111, %c0_112, %c0_113] : memref<4x512x1024xbf16, #tpu.memory_space<vmem>>, vector<1x512x1024xbf16>
    %157 = vector.shape_cast %156 : vector<1x512x1024xbf16> to vector<512x1024xbf16>
    %cst_114 = arith.constant dense<0.000000e+00> : vector<16x1024xf32>
    %158 = tpu.matmul %94, %157, %cst_114 {dimension_numbers = #tpu.dot_dimension_numbers<[1], [0], [0], [1], [0, 0, 1, 1], [], []>} : vector<16x512xbf16>, vector<512x1024xbf16>, vector<16x1024xf32> -> vector<16x1024xf32>
    %159 = vector.broadcast %155 : vector<1x1024xf32> to vector<16x1024xf32>
    %160 = arith.addf %159, %158 : vector<16x1024xf32>
    %c1_115 = arith.constant 1 : index
    %c0_116 = arith.constant 0 : index
    %c0_117 = arith.constant 0 : index
    %161 = vector.load %arg6[%c1_115, %c0_116, %c0_117] : memref<4x512x1024xbf16, #tpu.memory_space<vmem>>, vector<1x512x1024xbf16>
    %162 = vector.shape_cast %161 : vector<1x512x1024xbf16> to vector<512x1024xbf16>
    %cst_118 = arith.constant dense<0.000000e+00> : vector<16x1024xf32>
    %163 = tpu.matmul %114, %162, %cst_118 {dimension_numbers = #tpu.dot_dimension_numbers<[1], [0], [0], [1], [0, 0, 1, 1], [], []>} : vector<16x512xbf16>, vector<512x1024xbf16>, vector<16x1024xf32> -> vector<16x1024xf32>
    %164 = arith.addf %160, %163 : vector<16x1024xf32>
    %c2_119 = arith.constant 2 : index
    %c0_120 = arith.constant 0 : index
    %c0_121 = arith.constant 0 : index
    %165 = vector.load %arg6[%c2_119, %c0_120, %c0_121] : memref<4x512x1024xbf16, #tpu.memory_space<vmem>>, vector<1x512x1024xbf16>
    %166 = vector.shape_cast %165 : vector<1x512x1024xbf16> to vector<512x1024xbf16>
    %cst_122 = arith.constant dense<0.000000e+00> : vector<16x1024xf32>
    %167 = tpu.matmul %134, %166, %cst_122 {dimension_numbers = #tpu.dot_dimension_numbers<[1], [0], [0], [1], [0, 0, 1, 1], [], []>} : vector<16x512xbf16>, vector<512x1024xbf16>, vector<16x1024xf32> -> vector<16x1024xf32>
    %168 = arith.addf %164, %167 : vector<16x1024xf32>
    %c3_123 = arith.constant 3 : index
    %c0_124 = arith.constant 0 : index
    %c0_125 = arith.constant 0 : index
    %169 = vector.load %arg6[%c3_123, %c0_124, %c0_125] : memref<4x512x1024xbf16, #tpu.memory_space<vmem>>, vector<1x512x1024xbf16>
    %170 = vector.shape_cast %169 : vector<1x512x1024xbf16> to vector<512x1024xbf16>
    %cst_126 = arith.constant dense<0.000000e+00> : vector<16x1024xf32>
    %171 = tpu.matmul %154, %170, %cst_126 {dimension_numbers = #tpu.dot_dimension_numbers<[1], [0], [0], [1], [0, 0, 1, 1], [], []>} : vector<16x512xbf16>, vector<512x1024xbf16>, vector<16x1024xf32> -> vector<16x1024xf32>
    %172 = arith.addf %168, %171 : vector<16x1024xf32>
    %cst_127 = arith.constant 0.000000e+00 : f32
    %173 = vector.broadcast %cst_127 : f32 to vector<16x1024xf32>
    %174 = arith.maximumf %172, %173 : vector<16x1024xf32>
    %175 = arith.truncf %174 : vector<16x1024xf32> to vector<16x1024xbf16>
    %c0_128 = arith.constant 0 : index
    %c0_129 = arith.constant 0 : index
    %176 = vector.load %arg8[%c0_128, %c0_129] : memref<1024x256xbf16, #tpu.memory_space<vmem>>, vector<1024x256xbf16>
    %cst_130 = arith.constant dense<0.000000e+00> : vector<16x256xf32>
    %177 = tpu.matmul %175, %176, %cst_130 {dimension_numbers = #tpu.dot_dimension_numbers<[1], [0], [0], [1], [0, 0, 1, 1], [], []>} : vector<16x1024xbf16>, vector<1024x256xbf16>, vector<16x256xf32> -> vector<16x256xf32>
    %c0_131 = arith.constant 0 : index
    %c0_132 = arith.constant 0 : index
    %178 = vector.load %arg9[%c0_131, %c0_132] : memref<1x256xf32, #tpu.memory_space<vmem>>, vector<1x256xf32>
    %179 = vector.broadcast %178 : vector<1x256xf32> to vector<16x256xf32>
    %180 = arith.addf %177, %179 : vector<16x256xf32>
    %cst_133 = arith.constant 0.000000e+00 : f32
    %181 = vector.broadcast %cst_133 : f32 to vector<16x256xf32>
    %182 = arith.maximumf %180, %181 : vector<16x256xf32>
    %183 = arith.truncf %182 : vector<16x256xf32> to vector<16x256xbf16>
    %c0_134 = arith.constant 0 : index
    %c0_135 = arith.constant 0 : index
    %184 = vector.load %arg10[%c0_134, %c0_135] : memref<256x128xbf16, #tpu.memory_space<vmem>>, vector<256x128xbf16>
    %cst_136 = arith.constant dense<0.000000e+00> : vector<16x128xf32>
    %185 = tpu.matmul %183, %184, %cst_136 {dimension_numbers = #tpu.dot_dimension_numbers<[1], [0], [0], [1], [0, 0, 1, 1], [], []>} : vector<16x256xbf16>, vector<256x128xbf16>, vector<16x128xf32> -> vector<16x128xf32>
    %c0_137 = arith.constant 0 : index
    %c0_138 = arith.constant 0 : index
    %186 = vector.load %arg11[%c0_137, %c0_138] : memref<1x128xf32, #tpu.memory_space<vmem>>, vector<1x128xf32>
    %187 = vector.broadcast %186 : vector<1x128xf32> to vector<16x128xf32>
    %188 = arith.addf %185, %187 : vector<16x128xf32>
    %c0_139 = arith.constant 0 : index
    %c0_140 = arith.constant 0 : index
    %189 = vector.load %arg12[%c0_139, %c0_140] : memref<16x128xf32, #tpu.memory_space<vmem>>, vector<16x128xf32>
    tpu.vector_store %arg12[%c0_139, %c0_140], %188 {strides = array<i32>} : memref<16x128xf32, #tpu.memory_space<vmem>>, vector<16x128xf32>,
    return
  }
  func.func @transform_0(%arg0: i32) -> (i32, i32, i32) {
    %c0_i32 = arith.constant 0 : i32
    %c0_i32_0 = arith.constant 0 : i32
    %c0_i32_1 = arith.constant 0 : i32
    return %c0_i32, %arg0, %c0_i32_0 : i32, i32, i32
  }
  func.func @transform_1(%arg0: i32) -> (i32, i32) {
    %c0_i32 = arith.constant 0 : i32
    %c0_i32_0 = arith.constant 0 : i32
    %c0_i32_1 = arith.constant 0 : i32
    return %c0_i32, %c0_i32_0 : i32, i32
  }
  func.func @transform_2(%arg0: i32) -> (i32, i32) {
    %c0_i32 = arith.constant 0 : i32
    %c0_i32_0 = arith.constant 0 : i32
    %c0_i32_1 = arith.constant 0 : i32
    return %c0_i32, %c0_i32_0 : i32, i32
  }
  func.func @transform_3(%arg0: i32) -> (i32, i32, i32) {
    %c0_i32 = arith.constant 0 : i32
    %c0_i32_0 = arith.constant 0 : i32
    %c0_i32_1 = arith.constant 0 : i32
    %c0_i32_2 = arith.constant 0 : i32
    return %c0_i32, %c0_i32_0, %c0_i32_1 : i32, i32, i32
  }
  func.func @transform_4(%arg0: i32) -> (i32, i32) {
    %c0_i32 = arith.constant 0 : i32
    %c0_i32_0 = arith.constant 0 : i32
    %c0_i32_1 = arith.constant 0 : i32
    return %c0_i32, %c0_i32_0 : i32, i32
  }
  func.func @transform_5(%arg0: i32) -> (i32, i32, i32) {
    %c0_i32 = arith.constant 0 : i32
    %c0_i32_0 = arith.constant 0 : i32
    %c0_i32_1 = arith.constant 0 : i32
    %c0_i32_2 = arith.constant 0 : i32
    return %c0_i32, %c0_i32_0, %c0_i32_1 : i32, i32, i32
  }
  func.func @transform_6(%arg0: i32) -> (i32, i32) {
    %c0_i32 = arith.constant 0 : i32
    %c0_i32_0 = arith.constant 0 : i32
    %c0_i32_1 = arith.constant 0 : i32
    return %c0_i32, %c0_i32_0 : i32, i32
  }
  func.func @transform_7(%arg0: i32) -> (i32, i32) {
    %c0_i32 = arith.constant 0 : i32
    %c0_i32_0 = arith.constant 0 : i32
    %c0_i32_1 = arith.constant 0 : i32
    return %c0_i32, %c0_i32_0 : i32, i32
  }
  func.func @transform_8(%arg0: i32) -> (i32, i32) {
    %c0_i32 = arith.constant 0 : i32
    %c0_i32_0 = arith.constant 0 : i32
    %c0_i32_1 = arith.constant 0 : i32
    return %c0_i32, %c0_i32_0 : i32, i32
  }
  func.func @transform_9(%arg0: i32) -> (i32, i32) {
    %c0_i32 = arith.constant 0 : i32
    %c0_i32_0 = arith.constant 0 : i32
    %c0_i32_1 = arith.constant 0 : i32
    return %c0_i32, %c0_i32_0 : i32, i32
  }
  func.func @transform_10(%arg0: i32) -> (i32, i32) {
    %c0_i32 = arith.constant 0 : i32
    %c0_i32_0 = arith.constant 0 : i32
    %c0_i32_1 = arith.constant 0 : i32
    return %c0_i32, %c0_i32_0 : i32, i32
  }
  func.func @transform_11(%arg0: i32) -> (i32, i32) {
    %c0_i32 = arith.constant 0 : i32
    %c0_i32_0 = arith.constant 0 : i32
    return %arg0, %c0_i32 : i32, i32
  }
}

</mosaic_0001>

<llo_original>
// kernel: value_net_forward.1
$region0: #{value_net_forward.1}
  #allocation0 [shape = 'u32[]', space=smem, size = 0x4, offset = 0x4, fixed_abs, tag = 'smem constant byte address 0x4 - core index']
  #allocation1 [shape = 'u32[72,128]{1,0:T(1,128)}', space=vmem, size = 0x9000, scoped, tag = 'internal scratch']
  %s0 = inlined_call_operand.vmem [shape: bf16[9,16,128], index: 0, kind: input, shape index: {}]
  %s1 = inlined_call_operand.hbm [shape: bf16[128,256], index: 1, kind: input, shape index: {}]
  %s2 = inlined_call_operand.hbm [shape: f32[1,256], index: 2, kind: input, shape index: {}]
  %s3 = inlined_call_operand.hbm [shape: bf16[4,256,512], index: 3, kind: input, shape index: {}]
  %s4 = inlined_call_operand.hbm [shape: f32[1,512], index: 4, kind: input, shape index: {}]
  %s5 = inlined_call_operand.hbm [shape: bf16[4,512,1024], index: 5, kind: input, shape index: {}]
  %s6 = inlined_call_operand.hbm [shape: f32[1,1024], index: 6, kind: input, shape index: {}]
  %s7 = inlined_call_operand.hbm [shape: bf16[1024,256], index: 7, kind: input, shape index: {}]
  %s8 = inlined_call_operand.hbm [shape: f32[1,256], index: 8, kind: input, shape index: {}]
  %s9 = inlined_call_operand.hbm [shape: bf16[256,128], index: 9, kind: input, shape index: {}]
  %s10 = inlined_call_operand.hbm [shape: f32[1,128], index: 10, kind: input, shape index: {}]
  %s11 = inlined_call_operand.vmem [shape: f32[16,128], index: 11, kind: output, shape index: {}]
  %s12 = sld [smem:[#allocation0]]
  $region94: #{value_net_forward.1} parent=0
    _
  %s14 = ssub.s32 1, %s12
  %s15 = scalar_select 0, %s14, %s12
  $region1: #{value_net_forward.1} parent=0
    #allocation2 [shape = 'u8[65536]{0}', space=vmem, size = 0x10000, scoped, tag = 'input window, operand 1, single buffered']
    #allocation3 [shape = 's32[1]{0}', space=sflag, size = 0x4, scoped, tag = 'scoped memory for value_net_forward.1']
    #allocation4 [shape = 'u8[1024]{0}', space=vmem, size = 0x400, scoped, tag = 'input window, operand 2, single buffered']
    #allocation5 [shape = 's32[1]{0}', space=sflag, size = 0x4, scoped, tag = 'scoped memory for value_net_forward.1']
    #allocation6 [shape = 'u8[1048576]{0}', space=vmem, size = 0x100000, scoped, tag = 'input window, operand 3, single buffered']
    #allocation7 [shape = 'u8[2048]{0}', space=vmem, size = 0x800, scoped, tag = 'input window, operand 4, single buffered']
    #allocation8 [shape = 's32[1]{0}', space=sflag, size = 0x4, scoped, tag = 'scoped memory for value_net_forward.1']
    #allocation9 [shape = 'u8[4194304]{0}', space=vmem, size = 0x400000, scoped, tag = 'input window, operand 5, single buffered']
    #allocation10 [shape = 'u8[4096]{0}', space=vmem, size = 0x1000, scoped, tag = 'input window, operand 6, single buffered']
    #allocation11 [shape = 's32[1]{0}', space=sflag, size = 0x4, scoped, tag = 'scoped memory for value_net_forward.1']
    #allocation12 [shape = 'u8[524288]{0}', space=vmem, size = 0x80000, scoped, tag = 'input window, operand 7, single buffered']
    #allocation13 [shape = 'u8[1024]{0}', space=vmem, size = 0x400, scoped, tag = 'input window, operand 8, single buffered']
    #allocation14 [shape = 's32[1]{0}', space=sflag, size = 0x4, scoped, tag = 'scoped memory for value_net_forward.1']
    #allocation15 [shape = 'u8[65536]{0}', space=vmem, size = 0x10000, scoped, tag = 'input window, operand 9, single buffered']
    #allocation16 [shape = 'u8[512]{0}', space=vmem, size = 0x400, scoped, tag = 'input window, operand 10, single buffered']
    #allocation17 [shape = 's32[1]{0}', space=sflag, size = 0x4, scoped, tag = 'scoped memory for value_net_forward.1']
    %16 = vsyncpa [#allocation3], 0
    %17 = vsyncpa [#allocation5], 0
    %18 = vsyncpa [#allocation8], 0
    %19 = vsyncpa [#allocation11], 0
    %20 = vsyncpa [#allocation14], 0
    %21 = vsyncpa [#allocation17], 0
    // Predicated region
    $region2: #{value_net_forward.1} parent=1 // pred_check
      _
    $region3: #{value_net_forward.1} parent=1 // pred_check_branch
      %23 = sbr.rel (0) target = $region5
    $region4: #{value_net_forward.1} parent=1 // pred_region
      _
    $region5: #{value_net_forward.1} parent=1 // pred_fallthru
      _
    // Predicated region
    $region6: #{value_net_forward.1} parent=1 // pred_check
      _
    $region7: #{value_net_forward.1} parent=1 // pred_check_branch
      %25 = sbr.rel (0) target = $region9
    $region8: #{value_net_forward.1} parent=1 // pred_region
      %27 = vsyncadd [#allocation3], 0
      %s28 = sshll.u32 %s1, 4
      %s29 = int_to_ptr.hbm [resolvable:$true] %s28
      %s30 = sshll.u32 [#allocation2], 4
      %s31 = int_to_ptr.vmem [resolvable:$true] %s30
      %36 = dma.hbm_to_vmem [thread:$0]  %s29, 2048, %s31, [#allocation3], 128, 128, 8
    $region9: #{value_net_forward.1} parent=1 // pred_fallthru
      _
    // Predicated region
    $region10: #{value_net_forward.1} parent=1 // pred_check
      _
    $region11: #{value_net_forward.1} parent=1 // pred_check_branch
      %38 = sbr.rel (0) target = $region13
    $region12: #{value_net_forward.1} parent=1 // pred_region
      %40 = vsyncadd [#allocation5], 0
      %s42 = sshll.u32 %s2, 4
      %s43 = int_to_ptr.hbm [resolvable:$true] %s42
      %s44 = sshll.u32 [#allocation4], 4
      %s45 = int_to_ptr.vmem [resolvable:$true] %s44
      %47 = dma.hbm_to_vmem [thread:$0]  %s43, 32, %s45, [#allocation5]
    $region13: #{value_net_forward.1} parent=1 // pred_fallthru
      _
    // Predicated region
    $region14: #{value_net_forward.1} parent=1 // pred_check
      _
    $region15: #{value_net_forward.1} parent=1 // pred_check_branch
      %49 = sbr.rel (0) target = $region17
    $region16: #{value_net_forward.1} parent=1 // pred_region
      %51 = vsyncadd [#allocation5], 0
      %s52 = sshll.u32 %s3, 4
      %s53 = int_to_ptr.hbm [resolvable:$true] %s52
      %s54 = sshll.u32 [#allocation6], 4
      %s55 = int_to_ptr.vmem [resolvable:$true] %s54
      %60 = dma.hbm_to_vmem [thread:$0]  %s53, 32768, %s55, [#allocation5], 256, 256, 16
    $region17: #{value_net_forward.1} parent=1 // pred_fallthru
      _
    // Predicated region
    $region18: #{value_net_forward.1} parent=1 // pred_check
      _
    $region19: #{value_net_forward.1} parent=1 // pred_check_branch
      %62 = sbr.rel (0) target = $region21
    $region20: #{value_net_forward.1} parent=1 // pred_region
      %64 = vsyncadd [#allocation8], 0
      %s66 = sshll.u32 %s4, 4
      %s67 = int_to_ptr.hbm [resolvable:$true] %s66
      %s68 = sshll.u32 [#allocation7], 4
      %s69 = int_to_ptr.vmem [resolvable:$true] %s68
      %71 = dma.hbm_to_vmem [thread:$0]  %s67, 64, %s69, [#allocation8]
    $region21: #{value_net_forward.1} parent=1 // pred_fallthru
      _
    // Predicated region
    $region22: #{value_net_forward.1} parent=1 // pred_check
      _
    $region23: #{value_net_forward.1} parent=1 // pred_check_branch
      %73 = sbr.rel (0) target = $region25
    $region24: #{value_net_forward.1} parent=1 // pred_region
      %75 = vsyncadd [#allocation8], 0
      %s76 = sshll.u32 %s5, 4
      %s77 = int_to_ptr.hbm [resolvable:$true] %s76
      %s78 = sshll.u32 [#allocation9], 4
      %s79 = int_to_ptr.vmem [resolvable:$true] %s78
      %84 = dma.hbm_to_vmem [thread:$0]  %s77, 131072, %s79, [#allocation8], 512, 512, 32
    $region25: #{value_net_forward.1} parent=1 // pred_fallthru
      _
    // Predicated region
    $region26: #{value_net_forward.1} parent=1 // pred_check
      _
    $region27: #{value_net_forward.1} parent=1 // pred_check_branch
      %86 = sbr.rel (0) target = $region29
    $region28: #{value_net_forward.1} parent=1 // pred_region
      %88 = vsyncadd [#allocation11], 0
      %s90 = sshll.u32 %s6, 4
      %s91 = int_to_ptr.hbm [resolvable:$true] %s90
      %s92 = sshll.u32 [#allocation10], 4
      %s93 = int_to_ptr.vmem [resolvable:$true] %s92
      %95 = dma.hbm_to_vmem [thread:$0]  %s91, 128, %s93, [#allocation11]
    $region29: #{value_net_forward.1} parent=1 // pred_fallthru
      _
    // Predicated region
    $region30: #{value_net_forward.1} parent=1 // pred_check
      _
    $region31: #{value_net_forward.1} parent=1 // pred_check_branch
      %97 = sbr.rel (0) target = $region33
    $region32: #{value_net_forward.1} parent=1 // pred_region
      %99 = vsyncadd [#allocation11], 0
      %s100 = sshll.u32 %s7, 4
      %s101 = int_to_ptr.hbm [resolvable:$true] %s100
      %s102 = sshll.u32 [#allocation12], 4
      %s103 = int_to_ptr.vmem [resolvable:$true] %s102
      %108 = dma.hbm_to_vmem [thread:$0]  %s101, 16384, %s103, [#allocation11], 128, 128, 8
    $region33: #{value_net_forward.1} parent=1 // pred_fallthru
      _
    // Predicated region
    $region34: #{value_net_forward.1} parent=1 // pred_check
      _
    $region35: #{value_net_forward.1} parent=1 // pred_check_branch
      %110 = sbr.rel (0) target = $region37
    $region36: #{value_net_forward.1} parent=1 // pred_region
      %112 = vsyncadd [#allocation14], 0
      %s114 = sshll.u32 %s8, 4
      %s115 = int_to_ptr.hbm [resolvable:$true] %s114
      %s116 = sshll.u32 [#allocation13], 4
      %s117 = int_to_ptr.vmem [resolvable:$true] %s116
      %119 = dma.hbm_to_vmem [thread:$0]  %s115, 32, %s117, [#allocation14]
    $region37: #{value_net_forward.1} parent=1 // pred_fallthru
      _
    // Predicated region
    $region38: #{value_net_forward.1} parent=1 // pred_check
      _
    $region39: #{value_net_forward.1} parent=1 // pred_check_branch
      %121 = sbr.rel (0) target = $region41
    $region40: #{value_net_forward.1} parent=1 // pred_region
      %123 = vsyncadd [#allocation14], 0
      %s124 = sshll.u32 %s9, 4
      %s125 = int_to_ptr.hbm [resolvable:$true] %s124
      %s126 = sshll.u32 [#allocation15], 4
      %s127 = int_to_ptr.vmem [resolvable:$true] %s126
      %132 = dma.hbm_to_vmem [thread:$0]  %s125, 2048, %s127, [#allocation14], 64, 64, 4
    $region41: #{value_net_forward.1} parent=1 // pred_fallthru
      _
    // Predicated region
    $region42: #{value_net_forward.1} parent=1 // pred_check
      _
    $region43: #{value_net_forward.1} parent=1 // pred_check_branch
      %134 = sbr.rel (0) target = $region45
    $region44: #{value_net_forward.1} parent=1 // pred_region
      %136 = vsyncadd [#allocation17], 0
      %s138 = sshll.u32 %s10, 4
      %s139 = int_to_ptr.hbm [resolvable:$true] %s138
      %s140 = sshll.u32 [#allocation16], 4
      %s141 = int_to_ptr.vmem [resolvable:$true] %s140
      %143 = dma.hbm_to_vmem [thread:$0]  %s139, 16, %s141, [#allocation17]
    $region45: #{value_net_forward.1} parent=1 // pred_fallthru
      _
    // Predicated region
    $region46: #{value_net_forward.1} parent=1 // pred_check
      _
    $region47: #{value_net_forward.1} parent=1 // pred_check_branch
      %145 = sbr.rel (0) target = $region49
    $region48: #{value_net_forward.1} parent=1 // pred_region
      %147 = dma.done [#allocation3], 2048
    $region49: #{value_net_forward.1} parent=1 // pred_fallthru
      _
    // Predicated region
    $region50: #{value_net_forward.1} parent=1 // pred_check
      _
    $region51: #{value_net_forward.1} parent=1 // pred_check_branch
      %149 = sbr.rel (0) target = $region53
    $region52: #{value_net_forward.1} parent=1 // pred_region
      %151 = dma.done [#allocation5], 32
    $region53: #{value_net_forward.1} parent=1 // pred_fallthru
      _
    // Predicated region
    $region54: #{value_net_forward.1} parent=1 // pred_check
      _
    $region55: #{value_net_forward.1} parent=1 // pred_check_branch
      %153 = sbr.rel (0) target = $region57
    $region56: #{value_net_forward.1} parent=1 // pred_region
      %155 = dma.done [#allocation5], 32768
    $region57: #{value_net_forward.1} parent=1 // pred_fallthru
      _
    // Predicated region
    $region58: #{value_net_forward.1} parent=1 // pred_check
      _
    $region59: #{value_net_forward.1} parent=1 // pred_check_branch
      %157 = sbr.rel (0) target = $region61
    $region60: #{value_net_forward.1} parent=1 // pred_region
      %159 = dma.done [#allocation8], 64
    $region61: #{value_net_forward.1} parent=1 // pred_fallthru
      _
    // Predicated region
    $region62: #{value_net_forward.1} parent=1 // pred_check
      _
    $region63: #{value_net_forward.1} parent=1 // pred_check_branch
      %161 = sbr.rel (0) target = $region65
    $region64: #{value_net_forward.1} parent=1 // pred_region
      %163 = dma.done [#allocation8], 131072
    $region65: #{value_net_forward.1} parent=1 // pred_fallthru
      _
    // Predicated region
    $region66: #{value_net_forward.1} parent=1 // pred_check
      _
    $region67: #{value_net_forward.1} parent=1 // pred_check_branch
      %165 = sbr.rel (0) target = $region69
    $region68: #{value_net_forward.1} parent=1 // pred_region
      %167 = dma.done [#allocation11], 128
    $region69: #{value_net_forward.1} parent=1 // pred_fallthru
      _
    // Predicated region
    $region70: #{value_net_forward.1} parent=1 // pred_check
      _
    $region71: #{value_net_forward.1} parent=1 // pred_check_branch
      %169 = sbr.rel (0) target = $region73
    $region72: #{value_net_forward.1} parent=1 // pred_region
      %171 = dma.done [#allocation11], 16384
    $region73: #{value_net_forward.1} parent=1 // pred_fallthru
      _
    // Predicated region
    $region74: #{value_net_forward.1} parent=1 // pred_check
      _
    $region75: #{value_net_forward.1} parent=1 // pred_check_branch
      %173 = sbr.rel (0) target = $region77
    $region76: #{value_net_forward.1} parent=1 // pred_region
      %175 = dma.done [#allocation14], 32
    $region77: #{value_net_forward.1} parent=1 // pred_fallthru
      _
    // Predicated region
    $region78: #{value_net_forward.1} parent=1 // pred_check
      _
    $region79: #{value_net_forward.1} parent=1 // pred_check_branch
      %177 = sbr.rel (0) target = $region81
    $region80: #{value_net_forward.1} parent=1 // pred_region
      %179 = dma.done [#allocation14], 2048
    $region81: #{value_net_forward.1} parent=1 // pred_fallthru
      _
    // Predicated region
    $region82: #{value_net_forward.1} parent=1 // pred_check
      _
    $region83: #{value_net_forward.1} parent=1 // pred_check_branch
      %181 = sbr.rel (0) target = $region85
    $region84: #{value_net_forward.1} parent=1 // pred_region
      %183 = dma.done [#allocation17], 16
    $region85: #{value_net_forward.1} parent=1 // pred_fallthru
      _
    %v184 = vld [vmem:[#allocation2] sm:$0xff]
    %v185 = vld [vmem:[#allocation2 + $0x8] sm:$0xff]
    %v186 = vld [vmem:[#allocation2 + $0x10] sm:$0xff]
    %v187 = vld [vmem:[#allocation2 + $0x18] sm:$0xff]
    %v188 = vld [vmem:[#allocation2 + $0x20] sm:$0xff]
    %v189 = vld [vmem:[#allocation2 + $0x28] sm:$0xff]
    %v190 = vld [vmem:[#allocation2 + $0x30] sm:$0xff]
    %v191 = vld [vmem:[#allocation2 + $0x38] sm:$0xff]
    %v192 = vld [vmem:[#allocation2 + $0x40] sm:$0xff]
    %v193 = vld [vmem:[#allocation2 + $0x48] sm:$0xff]
    %v194 = vld [vmem:[#allocation2 + $0x50] sm:$0xff]
    %v195 = vld [vmem:[#allocation2 + $0x58] sm:$0xff]
    %v196 = vld [vmem:[#allocation2 + $0x60] sm:$0xff]
    %v197 = vld [vmem:[#allocation2 + $0x68] sm:$0xff]
    %v198 = vld [vmem:[#allocation2 + $0x70] sm:$0xff]
    %v199 = vld [vmem:[#allocation2 + $0x78] sm:$0xff]
    %v200 = vld [vmem:[#allocation4] sm:$0x3]
    %v201 = vld [vmem:[%s0] sm:$0xf]
    %v202 = vld [vmem:[%s0 + $0x4] sm:$0xf]
    %v204 = vperm.slane %v200, 0
    %v205 = vperm.slane %v200, 1
    %v210 = vunpack.c.l.b16 %v201
    %v211 = vunpack.c.l.b16 %v202
    %v212 = vpack.c.b16 %v211, %v210
    %v230 = vunpack.c.l.b16 %v184
    %v231 = vunpack.c.h.b16 %v184
    %v232 = vunpack.c.l.b16 %v185
    %v233 = vunpack.c.h.b16 %v185
    %v234 = vunpack.c.l.b16 %v186
    %v235 = vunpack.c.h.b16 %v186
    %v236 = vunpack.c.l.b16 %v187
    %v237 = vunpack.c.h.b16 %v187
    %v238 = vunpack.c.l.b16 %v188
    %v239 = vunpack.c.h.b16 %v188
    %v240 = vunpack.c.l.b16 %v189
    %v241 = vunpack.c.h.b16 %v189
    %v242 = vunpack.c.l.b16 %v190
    %v243 = vunpack.c.h.b16 %v190
    %v244 = vunpack.c.l.b16 %v191
    %v245 = vunpack.c.h.b16 %v191
    %v246 = vunpack.c.l.b16 %v192
    %v247 = vunpack.c.h.b16 %v192
    %v248 = vunpack.c.l.b16 %v193
    %v249 = vunpack.c.h.b16 %v193
    %v250 = vunpack.c.l.b16 %v194
    %v251 = vunpack.c.h.b16 %v194
    %v252 = vunpack.c.l.b16 %v195
    %v253 = vunpack.c.h.b16 %v195
    %v254 = vunpack.c.l.b16 %v196
    %v255 = vunpack.c.h.b16 %v196
    %v256 = vunpack.c.l.b16 %v197
    %v257 = vunpack.c.h.b16 %v197
    %v258 = vunpack.c.l.b16 %v198
    %v259 = vunpack.c.h.b16 %v198
    %v260 = vunpack.c.l.b16 %v199
    %v261 = vunpack.c.h.b16 %v199
    %v262 = vpack.c.b16 %v232, %v230
    %v263 = vpack.c.b16 %v233, %v231
    %v264 = vpack.c.b16 %v236, %v234
    %v265 = vpack.c.b16 %v237, %v235
    %v266 = vpack.c.b16 %v240, %v238
    %v267 = vpack.c.b16 %v241, %v239
    %v268 = vpack.c.b16 %v244, %v242
    %v269 = vpack.c.b16 %v245, %v243
    %v270 = vpack.c.b16 %v248, %v246
    %v271 = vpack.c.b16 %v249, %v247
    %v272 = vpack.c.b16 %v252, %v250
    %v273 = vpack.c.b16 %v253, %v251
    %v274 = vpack.c.b16 %v256, %v254
    %v275 = vpack.c.b16 %v257, %v255
    %v276 = vpack.c.b16 %v260, %v258
    %v277 = vpack.c.b16 %v261, %v259
    %294 = vmatpush.bf16.msra.mxu0 %v276
    %295 = vmatpush.bf16.msra.mxu0 %v274
    %296 = vmatpush.bf16.msra.mxu0 %v272
    %297 = vmatpush.bf16.msra.mxu0 %v270
    %298 = vmatpush.bf16.msra.mxu0 %v268
    %299 = vmatpush.bf16.msra.mxu0 %v266
    %300 = vmatpush.bf16.msra.mxu0 %v264
    %301 = vmatpush.bf16.msra.mxu0 %v262
    %302 = vmatmul.bf16.gmra.mxu0 %v212
    %v303 = vpop.f32.mrf.mxu0
    %v304 = vadd.f32 %v204, %v303
    %v305 = vpop.f32.mrf.mxu0
    %v306 = vadd.f32 %v204, %v305
    %307 = vdwg.mxu0
    %308 = vmatpush.bf16.msra.mxu0 %v277
    %309 = vmatpush.bf16.msra.mxu0 %v275
    %310 = vmatpush.bf16.msra.mxu0 %v273
    %311 = vmatpush.bf16.msra.mxu0 %v271
    %312 = vmatpush.bf16.msra.mxu0 %v269
    %313 = vmatpush.bf16.msra.mxu0 %v267
    %314 = vmatpush.bf16.msra.mxu0 %v265
    %315 = vmatpush.bf16.msra.mxu0 %v263
    %316 = vmatmul.bf16.gmra.mxu0 %v212
    %v317 = vpop.f32.mrf.mxu0
    %v318 = vadd.f32 %v205, %v317
    %v319 = vpop.f32.mrf.mxu0
    %v320 = vadd.f32 %v205, %v319
    %321 = vdwg.mxu0
    %v322 = vmax.f32 %v304, 0.0
    %v323 = vmax.f32 %v318, 0.0
    %v324 = vmax.f32 %v306, 0.0
    %v325 = vmax.f32 %v320, 0.0
    %v326 = vpack.c.bf16 %v324, %v322
    %v327 = vpack.c.bf16 %v325, %v323
    %s328 = scalar_lea.vmem %s0, 8
    %v329 = vld [vmem:[%s328] sm:$0xf]
    %v330 = vld [vmem:[%s328 + $0x4] sm:$0xf]
    %v333 = vunpack.c.l.b16 %v329
    %v334 = vunpack.c.l.b16 %v330
    %v335 = vpack.c.b16 %v334, %v333
    %337 = vmatpush.bf16.msra.mxu0 %v276
    %338 = vmatpush.bf16.msra.mxu0 %v274
    %339 = vmatpush.bf16.msra.mxu0 %v272
    %340 = vmatpush.bf16.msra.mxu0 %v270
    %341 = vmatpush.bf16.msra.mxu0 %v268
    %342 = vmatpush.bf16.msra.mxu0 %v266
    %343 = vmatpush.bf16.msra.mxu0 %v264
    %344 = vmatpush.bf16.msra.mxu0 %v262
    %345 = vmatmul.bf16.gmra.mxu0 %v335
    %v346 = vpop.f32.mrf.mxu0
    %v347 = vadd.f32 %v204, %v346
    %v348 = vpop.f32.mrf.mxu0
    %v349 = vadd.f32 %v204, %v348
    %350 = vdwg.mxu0
    %351 = vmatpush.bf16.msra.mxu0 %v277
    %352 = vmatpush.bf16.msra.mxu0 %v275
    %353 = vmatpush.bf16.msra.mxu0 %v273
    %354 = vmatpush.bf16.msra.mxu0 %v271
    %355 = vmatpush.bf16.msra.mxu0 %v269
    %356 = vmatpush.bf16.msra.mxu0 %v267
    %357 = vmatpush.bf16.msra.mxu0 %v265
    %358 = vmatpush.bf16.msra.mxu0 %v263
    %359 = vmatmul.bf16.gmra.mxu0 %v335
    %v360 = vpop.f32.mrf.mxu0
    %v361 = vadd.f32 %v205, %v360
    %v362 = vpop.f32.mrf.mxu0
    %v363 = vadd.f32 %v205, %v362
    %364 = vdwg.mxu0
    %v365 = vmax.f32 %v347, 0.0
    %v366 = vmax.f32 %v361, 0.0
    %v367 = vmax.f32 %v349, 0.0
    %v368 = vmax.f32 %v363, 0.0
    %v369 = vpack.c.bf16 %v367, %v365
    %v370 = vpack.c.bf16 %v368, %v366
    %s371 = scalar_lea.vmem %s0, 16
    %v372 = vld [vmem:[%s371] sm:$0xf]
    %v373 = vld [vmem:[%s371 + $0x4] sm:$0xf]
    %v376 = vunpack.c.l.b16 %v372
    %v377 = vunpack.c.l.b16 %v373
    %v378 = vpack.c.b16 %v377, %v376
    %380 = vmatpush.bf16.msra.mxu0 %v276
    %381 = vmatpush.bf16.msra.mxu0 %v274
    %382 = vmatpush.bf16.msra.mxu0 %v272
    %383 = vmatpush.bf16.msra.mxu0 %v270
    %384 = vmatpush.bf16.msra.mxu0 %v268
    %385 = vmatpush.bf16.msra.mxu0 %v266
    %386 = vmatpush.bf16.msra.mxu0 %v264
    %387 = vmatpush.bf16.msra.mxu0 %v262
    %388 = vmatmul.bf16.gmra.mxu0 %v378
    %v389 = vpop.f32.mrf.mxu0
    %v390 = vadd.f32 %v204, %v389
    %v391 = vpop.f32.mrf.mxu0
    %v392 = vadd.f32 %v204, %v391
    %393 = vdwg.mxu0
    %394 = vmatpush.bf16.msra.mxu0 %v277
    %395 = vmatpush.bf16.msra.mxu0 %v275
    %396 = vmatpush.bf16.msra.mxu0 %v273
    %397 = vmatpush.bf16.msra.mxu0 %v271
    %398 = vmatpush.bf16.msra.mxu0 %v269
    %399 = vmatpush.bf16.msra.mxu0 %v267
    %400 = vmatpush.bf16.msra.mxu0 %v265
    %401 = vmatpush.bf16.msra.mxu0 %v263
    %402 = vmatmul.bf16.gmra.mxu0 %v378
    %v403 = vpop.f32.mrf.mxu0
    %v404 = vadd.f32 %v205, %v403
    %v405 = vpop.f32.mrf.mxu0
    %v406 = vadd.f32 %v205, %v405
    %407 = vdwg.mxu0
    %v408 = vmax.f32 %v390, 0.0
    %v409 = vmax.f32 %v404, 0.0
    %v410 = vmax.f32 %v392, 0.0
    %v411 = vmax.f32 %v406, 0.0
    %v412 = vpack.c.bf16 %v410, %v408
    %v413 = vpack.c.bf16 %v411, %v409
    %s414 = scalar_lea.vmem %s0, 24
    %v415 = vld [vmem:[%s414] sm:$0xf]
    %v416 = vld [vmem:[%s414 + $0x4] sm:$0xf]
    %v419 = vunpack.c.l.b16 %v415
    %v420 = vunpack.c.l.b16 %v416
    %v421 = vpack.c.b16 %v420, %v419
    %423 = vmatpush.bf16.msra.mxu0 %v276
    %424 = vmatpush.bf16.msra.mxu0 %v274
    %425 = vmatpush.bf16.msra.mxu0 %v272
    %426 = vmatpush.bf16.msra.mxu0 %v270
    %427 = vmatpush.bf16.msra.mxu0 %v268
    %428 = vmatpush.bf16.msra.mxu0 %v266
    %429 = vmatpush.bf16.msra.mxu0 %v264
    %430 = vmatpush.bf16.msra.mxu0 %v262
    %431 = vmatmul.bf16.gmra.mxu0 %v421
    %v432 = vpop.f32.mrf.mxu0
    %v433 = vadd.f32 %v204, %v432
    %v434 = vpop.f32.mrf.mxu0
    %v435 = vadd.f32 %v204, %v434
    %436 = vdwg.mxu0
    %437 = vmatpush.bf16.msra.mxu0 %v277
    %438 = vmatpush.bf16.msra.mxu0 %v275
    %439 = vmatpush.bf16.msra.mxu0 %v273
    %440 = vmatpush.bf16.msra.mxu0 %v271
    %441 = vmatpush.bf16.msra.mxu0 %v269
    %442 = vmatpush.bf16.msra.mxu0 %v267
    %443 = vmatpush.bf16.msra.mxu0 %v265
    %444 = vmatpush.bf16.msra.mxu0 %v263
    %445 = vmatmul.bf16.gmra.mxu0 %v421
    %v446 = vpop.f32.mrf.mxu0
    %v447 = vadd.f32 %v205, %v446
    %v448 = vpop.f32.mrf.mxu0
    %v449 = vadd.f32 %v205, %v448
    %450 = vdwg.mxu0
    %v451 = vmax.f32 %v433, 0.0
    %v452 = vmax.f32 %v447, 0.0
    %v453 = vmax.f32 %v435, 0.0
    %v454 = vmax.f32 %v449, 0.0
    %v455 = vpack.c.bf16 %v453, %v451
    %v456 = vpack.c.bf16 %v454, %v452
    %s457 = scalar_lea.vmem %s0, 32
    %v458 = vld [vmem:[%s457] sm:$0xf]
    %v459 = vld [vmem:[%s457 + $0x4] sm:$0xf]
    %v462 = vunpack.c.l.b16 %v458
    %v463 = vunpack.c.l.b16 %v459
    %v464 = vpack.c.b16 %v463, %v462
    %466 = vmatpush.bf16.msra.mxu0 %v276
    %467 = vmatpush.bf16.msra.mxu0 %v274
    %468 = vmatpush.bf16.msra.mxu0 %v272
    %469 = vmatpush.bf16.msra.mxu0 %v270
    %470 = vmatpush.bf16.msra.mxu0 %v268
    %471 = vmatpush.bf16.msra.mxu0 %v266
    %472 = vmatpush.bf16.msra.mxu0 %v264
    %473 = vmatpush.bf16.msra.mxu0 %v262
    %474 = vmatmul.bf16.gmra.mxu0 %v464
    %v475 = vpop.f32.mrf.mxu0
    %v476 = vadd.f32 %v204, %v475
    %v477 = vpop.f32.mrf.mxu0
    %v478 = vadd.f32 %v204, %v477
    %479 = vdwg.mxu0
    %480 = vmatpush.bf16.msra.mxu0 %v277
    %481 = vmatpush.bf16.msra.mxu0 %v275
    %482 = vmatpush.bf16.msra.mxu0 %v273
    %483 = vmatpush.bf16.msra.mxu0 %v271
    %484 = vmatpush.bf16.msra.mxu0 %v269
    %485 = vmatpush.bf16.msra.mxu0 %v267
    %486 = vmatpush.bf16.msra.mxu0 %v265
    %487 = vmatpush.bf16.msra.mxu0 %v263
    %488 = vmatmul.bf16.gmra.mxu0 %v464
    %v489 = vpop.f32.mrf.mxu0
    %v490 = vadd.f32 %v205, %v489
    %v491 = vpop.f32.mrf.mxu0
    %v492 = vadd.f32 %v205, %v491
    %493 = vdwg.mxu0
    %v494 = vmax.f32 %v476, 0.0
    %v495 = vmax.f32 %v490, 0.0
    %v496 = vmax.f32 %v478, 0.0
    %v497 = vmax.f32 %v492, 0.0
    %v498 = vpack.c.bf16 %v496, %v494
    %v499 = vpack.c.bf16 %v497, %v495
    %s500 = scalar_lea.vmem %s0, 40
    %v501 = vld [vmem:[%s500] sm:$0xf]
    %v502 = vld [vmem:[%s500 + $0x4] sm:$0xf]
    %v505 = vunpack.c.l.b16 %v501
    %v506 = vunpack.c.l.b16 %v502
    %v507 = vpack.c.b16 %v506, %v505
    %509 = vmatpush.bf16.msra.mxu0 %v276
    %510 = vmatpush.bf16.msra.mxu0 %v274
    %511 = vmatpush.bf16.msra.mxu0 %v272
    %512 = vmatpush.bf16.msra.mxu0 %v270
    %513 = vmatpush.bf16.msra.mxu0 %v268
    %514 = vmatpush.bf16.msra.mxu0 %v266
    %515 = vmatpush.bf16.msra.mxu0 %v264
    %516 = vmatpush.bf16.msra.mxu0 %v262
    %517 = vmatmul.bf16.gmra.mxu0 %v507
    %v518 = vpop.f32.mrf.mxu0
    %v519 = vadd.f32 %v204, %v518
    %v520 = vpop.f32.mrf.mxu0
    %v521 = vadd.f32 %v204, %v520
    %522 = vdwg.mxu0
    %523 = vmatpush.bf16.msra.mxu0 %v277
    %524 = vmatpush.bf16.msra.mxu0 %v275
    %525 = vmatpush.bf16.msra.mxu0 %v273
    %526 = vmatpush.bf16.msra.mxu0 %v271
    %527 = vmatpush.bf16.msra.mxu0 %v269
    %528 = vmatpush.bf16.msra.mxu0 %v267
    %529 = vmatpush.bf16.msra.mxu0 %v265
    %530 = vmatpush.bf16.msra.mxu0 %v263
    %531 = vmatmul.bf16.gmra.mxu0 %v507
    %v532 = vpop.f32.mrf.mxu0
    %v533 = vadd.f32 %v205, %v532
    %v534 = vpop.f32.mrf.mxu0
    %v535 = vadd.f32 %v205, %v534
    %536 = vdwg.mxu0
    %v537 = vmax.f32 %v519, 0.0
    %v538 = vmax.f32 %v533, 0.0
    %v539 = vmax.f32 %v521, 0.0
    %v540 = vmax.f32 %v535, 0.0
    %v541 = vpack.c.bf16 %v539, %v537
    %v542 = vpack.c.bf16 %v540, %v538
    %s543 = scalar_lea.vmem %s0, 48
    %v544 = vld [vmem:[%s543] sm:$0xf]
    %v545 = vld [vmem:[%s543 + $0x4] sm:$0xf]
    %v548 = vunpack.c.l.b16 %v544
    %v549 = vunpack.c.l.b16 %v545
    %v550 = vpack.c.b16 %v549, %v548
    %552 = vmatpush.bf16.msra.mxu0 %v276
    %553 = vmatpush.bf16.msra.mxu0 %v274
    %554 = vmatpush.bf16.msra.mxu0 %v272
    %555 = vmatpush.bf16.msra.mxu0 %v270
    %556 = vmatpush.bf16.msra.mxu0 %v268
    %557 = vmatpush.bf16.msra.mxu0 %v266
    %558 = vmatpush.bf16.msra.mxu0 %v264
    %559 = vmatpush.bf16.msra.mxu0 %v262
    %560 = vmatmul.bf16.gmra.mxu0 %v550
    %v561 = vpop.f32.mrf.mxu0
    %v562 = vadd.f32 %v204, %v561
    %v563 = vpop.f32.mrf.mxu0
    %v564 = vadd.f32 %v204, %v563
    %565 = vdwg.mxu0
    %566 = vmatpush.bf16.msra.mxu0 %v277
    %567 = vmatpush.bf16.msra.mxu0 %v275
    %568 = vmatpush.bf16.msra.mxu0 %v273
    %569 = vmatpush.bf16.msra.mxu0 %v271
    %570 = vmatpush.bf16.msra.mxu0 %v269
    %571 = vmatpush.bf16.msra.mxu0 %v267
    %572 = vmatpush.bf16.msra.mxu0 %v265
    %573 = vmatpush.bf16.msra.mxu0 %v263
    %574 = vmatmul.bf16.gmra.mxu0 %v550
    %v575 = vpop.f32.mrf.mxu0
    %v576 = vadd.f32 %v205, %v575
    %v577 = vpop.f32.mrf.mxu0
    %v578 = vadd.f32 %v205, %v577
    %579 = vdwg.mxu0
    %v580 = vmax.f32 %v562, 0.0
    %v581 = vmax.f32 %v576, 0.0
    %v582 = vmax.f32 %v564, 0.0
    %v583 = vmax.f32 %v578, 0.0
    %v584 = vpack.c.bf16 %v582, %v580
    %v585 = vpack.c.bf16 %v583, %v581
    %s586 = scalar_lea.vmem %s0, 56
    %v587 = vld [vmem:[%s586] sm:$0xf]
    %v588 = vld [vmem:[%s586 + $0x4] sm:$0xf]
    %v591 = vunpack.c.l.b16 %v587
    %v592 = vunpack.c.l.b16 %v588
    %v593 = vpack.c.b16 %v592, %v591
    %595 = vmatpush.bf16.msra.mxu0 %v276
    %596 = vmatpush.bf16.msra.mxu0 %v274
    %597 = vmatpush.bf16.msra.mxu0 %v272
    %598 = vmatpush.bf16.msra.mxu0 %v270
    %599 = vmatpush.bf16.msra.mxu0 %v268
    %600 = vmatpush.bf16.msra.mxu0 %v266
    %601 = vmatpush.bf16.msra.mxu0 %v264
    %602 = vmatpush.bf16.msra.mxu0 %v262
    %603 = vmatmul.bf16.gmra.mxu0 %v593
    %v604 = vpop.f32.mrf.mxu0
    %v605 = vadd.f32 %v204, %v604
    %v606 = vpop.f32.mrf.mxu0
    %v607 = vadd.f32 %v204, %v606
    %608 = vdwg.mxu0
    %609 = vmatpush.bf16.msra.mxu0 %v277
    %610 = vmatpush.bf16.msra.mxu0 %v275
    %611 = vmatpush.bf16.msra.mxu0 %v273
    %612 = vmatpush.bf16.msra.mxu0 %v271
    %613 = vmatpush.bf16.msra.mxu0 %v269
    %614 = vmatpush.bf16.msra.mxu0 %v267
    %615 = vmatpush.bf16.msra.mxu0 %v265
    %616 = vmatpush.bf16.msra.mxu0 %v263
    %617 = vmatmul.bf16.gmra.mxu0 %v593
    %v618 = vpop.f32.mrf.mxu0
    %v619 = vadd.f32 %v205, %v618
    %v620 = vpop.f32.mrf.mxu0
    %v621 = vadd.f32 %v205, %v620
    %622 = vdwg.mxu0
    %v623 = vmax.f32 %v605, 0.0
    %v624 = vmax.f32 %v619, 0.0
    %v625 = vmax.f32 %v607, 0.0
    %v626 = vmax.f32 %v621, 0.0
    %v627 = vpack.c.bf16 %v625, %v623
    %v628 = vpack.c.bf16 %v626, %v624
    %s629 = scalar_lea.vmem %s0, 64
    %v630 = vld [vmem:[%s629] sm:$0xf]
    %v631 = vld [vmem:[%s629 + $0x4] sm:$0xf]
    %v634 = vunpack.c.l.b16 %v630
    %v635 = vunpack.c.l.b16 %v631
    %v636 = vpack.c.b16 %v635, %v634
    %638 = vmatpush.bf16.msra.mxu0 %v276
    %639 = vmatpush.bf16.msra.mxu0 %v274
    %640 = vmatpush.bf16.msra.mxu0 %v272
    %641 = vmatpush.bf16.msra.mxu0 %v270
    %642 = vmatpush.bf16.msra.mxu0 %v268
    %643 = vmatpush.bf16.msra.mxu0 %v266
    %644 = vmatpush.bf16.msra.mxu0 %v264
    %645 = vmatpush.bf16.msra.mxu0 %v262
    %646 = vmatmul.bf16.gmra.mxu0 %v636
    %v647 = vpop.f32.mrf.mxu0
    %v648 = vadd.f32 %v204, %v647
    %v649 = vpop.f32.mrf.mxu0
    %v650 = vadd.f32 %v204, %v649
    %651 = vdwg.mxu0
    %652 = vmatpush.bf16.msra.mxu0 %v277
    %653 = vmatpush.bf16.msra.mxu0 %v275
    %654 = vmatpush.bf16.msra.mxu0 %v273
    %655 = vmatpush.bf16.msra.mxu0 %v271
    %656 = vmatpush.bf16.msra.mxu0 %v269
    %657 = vmatpush.bf16.msra.mxu0 %v267
    %658 = vmatpush.bf16.msra.mxu0 %v265
    %659 = vmatpush.bf16.msra.mxu0 %v263
    %660 = vmatmul.bf16.gmra.mxu0 %v636
    %v661 = vpop.f32.mrf.mxu0
    %v662 = vadd.f32 %v205, %v661
    %v663 = vpop.f32.mrf.mxu0
    %v664 = vadd.f32 %v205, %v663
    %665 = vdwg.mxu0
    %v666 = vmax.f32 %v648, 0.0
    %v667 = vmax.f32 %v662, 0.0
    %v668 = vmax.f32 %v650, 0.0
    %v669 = vmax.f32 %v664, 0.0
    %v670 = vpack.c.bf16 %v668, %v666
    %v671 = vpack.c.bf16 %v669, %v667
    %v672 = vld [vmem:[#allocation7] sm:$0xf]
    %v673 = vld [vmem:[#allocation6] sm:$0xff]
    %v674 = vld [vmem:[#allocation6 + $0x8] sm:$0xff]
    %v675 = vld [vmem:[#allocation6 + $0x10] sm:$0xff]
    %v676 = vld [vmem:[#allocation6 + $0x18] sm:$0xff]
    %v677 = vld [vmem:[#allocation6 + $0x20] sm:$0xff]
    %v678 = vld [vmem:[#allocation6 + $0x28] sm:$0xff]
    %v679 = vld [vmem:[#allocation6 + $0x30] sm:$0xff]
    %v680 = vld [vmem:[#allocation6 + $0x38] sm:$0xff]
    %v681 = vld [vmem:[#allocation6 + $0x40] sm:$0xff]
    %v682 = vld [vmem:[#allocation6 + $0x48] sm:$0xff]
    %v683 = vld [vmem:[#allocation6 + $0x50] sm:$0xff]
    %v684 = vld [vmem:[#allocation6 + $0x58] sm:$0xff]
    %v685 = vld [vmem:[#allocation6 + $0x60] sm:$0xff]
    %v686 = vld [vmem:[#allocation6 + $0x68] sm:$0xff]
    %v687 = vld [vmem:[#allocation6 + $0x70] sm:$0xff]
    %v688 = vld [vmem:[#allocation6 + $0x78] sm:$0xff]
    %v689 = vld [vmem:[#allocation6 + $0x80] sm:$0xff]
    %v690 = vld [vmem:[#allocation6 + $0x88] sm:$0xff]
    %v691 = vld [vmem:[#allocation6 + $0x90] sm:$0xff]
    %v692 = vld [vmem:[#allocation6 + $0x98] sm:$0xff]
    %v693 = vld [vmem:[#allocation6 + $0xa0] sm:$0xff]
    %v694 = vld [vmem:[#allocation6 + $0xa8] sm:$0xff]
    %v695 = vld [vmem:[#allocation6 + $0xb0] sm:$0xff]
    %v696 = vld [vmem:[#allocation6 + $0xb8] sm:$0xff]
    %v697 = vld [vmem:[#allocation6 + $0xc0] sm:$0xff]
    %v698 = vld [vmem:[#allocation6 + $0xc8] sm:$0xff]
    %v699 = vld [vmem:[#allocation6 + $0xd0] sm:$0xff]
    %v700 = vld [vmem:[#allocation6 + $0xd8] sm:$0xff]
    %v701 = vld [vmem:[#allocation6 + $0xe0] sm:$0xff]
    %v702 = vld [vmem:[#allocation6 + $0xe8] sm:$0xff]
    %v703 = vld [vmem:[#allocation6 + $0xf0] sm:$0xff]
    %v704 = vld [vmem:[#allocation6 + $0xf8] sm:$0xff]
    %v705 = vld [vmem:[#allocation6 + $0x100] sm:$0xff]
    %v706 = vld [vmem:[#allocation6 + $0x108] sm:$0xff]
    %v707 = vld [vmem:[#allocation6 + $0x110] sm:$0xff]
    %v708 = vld [vmem:[#allocation6 + $0x118] sm:$0xff]
    %v709 = vld [vmem:[#allocation6 + $0x120] sm:$0xff]
    %v710 = vld [vmem:[#allocation6 + $0x128] sm:$0xff]
    %v711 = vld [vmem:[#allocation6 + $0x130] sm:$0xff]
    %v712 = vld [vmem:[#allocation6 + $0x138] sm:$0xff]
    %v713 = vld [vmem:[#allocation6 + $0x140] sm:$0xff]
    %v714 = vld [vmem:[#allocation6 + $0x148] sm:$0xff]
    %v715 = vld [vmem:[#allocation6 + $0x150] sm:$0xff]
    %v716 = vld [vmem:[#allocation6 + $0x158] sm:$0xff]
    %v717 = vld [vmem:[#allocation6 + $0x160] sm:$0xff]
    %v718 = vld [vmem:[#allocation6 + $0x168] sm:$0xff]
    %v719 = vld [vmem:[#allocation6 + $0x170] sm:$0xff]
    %v720 = vld [vmem:[#allocation6 + $0x178] sm:$0xff]
    %v721 = vld [vmem:[#allocation6 + $0x180] sm:$0xff]
    %v722 = vld [vmem:[#allocation6 + $0x188] sm:$0xff]
    %v723 = vld [vmem:[#allocation6 + $0x190] sm:$0xff]
    %v724 = vld [vmem:[#allocation6 + $0x198] sm:$0xff]
    %v725 = vld [vmem:[#allocation6 + $0x1a0] sm:$0xff]
    %v726 = vld [vmem:[#allocation6 + $0x1a8] sm:$0xff]
    %v727 = vld [vmem:[#allocation6 + $0x1b0] sm:$0xff]
    %v728 = vld [vmem:[#allocation6 + $0x1b8] sm:$0xff]
    %v729 = vld [vmem:[#allocation6 + $0x1c0] sm:$0xff]
    %v730 = vld [vmem:[#allocation6 + $0x1c8] sm:$0xff]
    %v731 = vld [vmem:[#allocation6 + $0x1d0] sm:$0xff]
    %v732 = vld [vmem:[#allocation6 + $0x1d8] sm:$0xff]
    %v733 = vld [vmem:[#allocation6 + $0x1e0] sm:$0xff]
    %v734 = vld [vmem:[#allocation6 + $0x1e8] sm:$0xff]
    %v735 = vld [vmem:[#allocation6 + $0x1f0] sm:$0xff]
    %v736 = vld [vmem:[#allocation6 + $0x1f8] sm:$0xff]
    %v801 = vunpack.c.l.b16 %v673
    %v802 = vunpack.c.h.b16 %v673
    %v803 = vunpack.c.l.b16 %v674
    %v804 = vunpack.c.h.b16 %v674
    %v805 = vunpack.c.l.b16 %v675
    %v806 = vunpack.c.h.b16 %v675
    %v807 = vunpack.c.l.b16 %v676
    %v808 = vunpack.c.h.b16 %v676
    %v809 = vunpack.c.l.b16 %v677
    %v810 = vunpack.c.h.b16 %v677
    %v811 = vunpack.c.l.b16 %v678
    %v812 = vunpack.c.h.b16 %v678
    %v813 = vunpack.c.l.b16 %v679
    %v814 = vunpack.c.h.b16 %v679
    %v815 = vunpack.c.l.b16 %v680
    %v816 = vunpack.c.h.b16 %v680
    %v817 = vunpack.c.l.b16 %v681
    %v818 = vunpack.c.h.b16 %v681
    %v819 = vunpack.c.l.b16 %v682
    %v820 = vunpack.c.h.b16 %v682
    %v821 = vunpack.c.l.b16 %v683
    %v822 = vunpack.c.h.b16 %v683
    %v823 = vunpack.c.l.b16 %v684
    %v824 = vunpack.c.h.b16 %v684
    %v825 = vunpack.c.l.b16 %v685
    %v826 = vunpack.c.h.b16 %v685
    %v827 = vunpack.c.l.b16 %v686
    %v828 = vunpack.c.h.b16 %v686
    %v829 = vunpack.c.l.b16 %v687
    %v830 = vunpack.c.h.b16 %v687
    %v831 = vunpack.c.l.b16 %v688
    %v832 = vunpack.c.h.b16 %v688
    %v833 = vunpack.c.l.b16 %v689
    %v834 = vunpack.c.h.b16 %v689
    %v835 = vunpack.c.l.b16 %v690
    %v836 = vunpack.c.h.b16 %v690
    %v837 = vunpack.c.l.b16 %v691
    %v838 = vunpack.c.h.b16 %v691
    %v839 = vunpack.c.l.b16 %v692
    %v840 = vunpack.c.h.b16 %v692
    %v841 = vunpack.c.l.b16 %v693
    %v842 = vunpack.c.h.b16 %v693
    %v843 = vunpack.c.l.b16 %v694
    %v844 = vunpack.c.h.b16 %v694
    %v845 = vunpack.c.l.b16 %v695
    %v846 = vunpack.c.h.b16 %v695
    %v847 = vunpack.c.l.b16 %v696
    %v848 = vunpack.c.h.b16 %v696
    %v849 = vunpack.c.l.b16 %v697
    %v850 = vunpack.c.h.b16 %v697
    %v851 = vunpack.c.l.b16 %v698
    %v852 = vunpack.c.h.b16 %v698
    %v853 = vunpack.c.l.b16 %v699
    %v854 = vunpack.c.h.b16 %v699
    %v855 = vunpack.c.l.b16 %v700
    %v856 = vunpack.c.h.b16 %v700
    %v857 = vunpack.c.l.b16 %v701
    %v858 = vunpack.c.h.b16 %v701
    %v859 = vunpack.c.l.b16 %v702
    %v860 = vunpack.c.h.b16 %v702
    %v861 = vunpack.c.l.b16 %v703
    %v862 = vunpack.c.h.b16 %v703
    %v863 = vunpack.c.l.b16 %v704
    %v864 = vunpack.c.h.b16 %v704
    %v865 = vunpack.c.l.b16 %v705
    %v866 = vunpack.c.h.b16 %v705
    %v867 = vunpack.c.l.b16 %v706
    %v868 = vunpack.c.h.b16 %v706
    %v869 = vunpack.c.l.b16 %v707
    %v870 = vunpack.c.h.b16 %v707
    %v871 = vunpack.c.l.b16 %v708
    %v872 = vunpack.c.h.b16 %v708
    %v873 = vunpack.c.l.b16 %v709
    %v874 = vunpack.c.h.b16 %v709
    %v875 = vunpack.c.l.b16 %v710
    %v876 = vunpack.c.h.b16 %v710
    %v877 = vunpack.c.l.b16 %v711
    %v878 = vunpack.c.h.b16 %v711
    %v879 = vunpack.c.l.b16 %v712
    %v880 = vunpack.c.h.b16 %v712
    %v881 = vunpack.c.l.b16 %v713
    %v882 = vunpack.c.h.b16 %v713
    %v883 = vunpack.c.l.b16 %v714
    %v884 = vunpack.c.h.b16 %v714
    %v885 = vunpack.c.l.b16 %v715
    %v886 = vunpack.c.h.b16 %v715
    %v887 = vunpack.c.l.b16 %v716
    %v888 = vunpack.c.h.b16 %v716
    %v889 = vunpack.c.l.b16 %v717
    %v890 = vunpack.c.h.b16 %v717
    %v891 = vunpack.c.l.b16 %v718
    %v892 = vunpack.c.h.b16 %v718
    %v893 = vunpack.c.l.b16 %v719
    %v894 = vunpack.c.h.b16 %v719
    %v895 = vunpack.c.l.b16 %v720
    %v896 = vunpack.c.h.b16 %v720
    %v897 = vunpack.c.l.b16 %v721
    %v898 = vunpack.c.h.b16 %v721
    %v899 = vunpack.c.l.b16 %v722
    %v900 = vunpack.c.h.b16 %v722
    %v901 = vunpack.c.l.b16 %v723
    %v902 = vunpack.c.h.b16 %v723
    %v903 = vunpack.c.l.b16 %v724
    %v904 = vunpack.c.h.b16 %v724
    %v905 = vunpack.c.l.b16 %v725
    %v906 = vunpack.c.h.b16 %v725
    %v907 = vunpack.c.l.b16 %v726
    %v908 = vunpack.c.h.b16 %v726
    %v909 = vunpack.c.l.b16 %v727
    %v910 = vunpack.c.h.b16 %v727
    %v911 = vunpack.c.l.b16 %v728
    %v912 = vunpack.c.h.b16 %v728
    %v913 = vunpack.c.l.b16 %v729
    %v914 = vunpack.c.h.b16 %v729
    %v915 = vunpack.c.l.b16 %v730
    %v916 = vunpack.c.h.b16 %v730
    %v917 = vunpack.c.l.b16 %v731
    %v918 = vunpack.c.h.b16 %v731
    %v919 = vunpack.c.l.b16 %v732
    %v920 = vunpack.c.h.b16 %v732
    %v921 = vunpack.c.l.b16 %v733
    %v922 = vunpack.c.h.b16 %v733
    %v923 = vunpack.c.l.b16 %v734
    %v924 = vunpack.c.h.b16 %v734
    %v925 = vunpack.c.l.b16 %v735
    %v926 = vunpack.c.h.b16 %v735
    %v927 = vunpack.c.l.b16 %v736
    %v928 = vunpack.c.h.b16 %v736
    %v929 = vpack.c.b16 %v805, %v801
    %v930 = vpack.c.b16 %v806, %v802
    %v931 = vpack.c.b16 %v807, %v803
    %v932 = vpack.c.b16 %v808, %v804
    %v933 = vpack.c.b16 %v813, %v809
    %v934 = vpack.c.b16 %v814, %v810
    %v935 = vpack.c.b16 %v815, %v811
    %v936 = vpack.c.b16 %v816, %v812
    %v937 = vpack.c.b16 %v821, %v817
    %v938 = vpack.c.b16 %v822, %v818
    %v939 = vpack.c.b16 %v823, %v819
    %v940 = vpack.c.b16 %v824, %v820
    %v941 = vpack.c.b16 %v829, %v825
    %v942 = vpack.c.b16 %v830, %v826
    %v943 = vpack.c.b16 %v831, %v827
    %v944 = vpack.c.b16 %v832, %v828
    %v945 = vpack.c.b16 %v837, %v833
    %v946 = vpack.c.b16 %v838, %v834
    %v947 = vpack.c.b16 %v839, %v835
    %v948 = vpack.c.b16 %v840, %v836
    %v949 = vpack.c.b16 %v845, %v841
    %v950 = vpack.c.b16 %v846, %v842
    %v951 = vpack.c.b16 %v847, %v843
    %v952 = vpack.c.b16 %v848, %v844
    %v953 = vpack.c.b16 %v853, %v849
    %v954 = vpack.c.b16 %v854, %v850
    %v955 = vpack.c.b16 %v855, %v851
    %v956 = vpack.c.b16 %v856, %v852
    %v957 = vpack.c.b16 %v861, %v857
    %v958 = vpack.c.b16 %v862, %v858
    %v959 = vpack.c.b16 %v863, %v859
    %v960 = vpack.c.b16 %v864, %v860
    %v961 = vpack.c.b16 %v869, %v865
    %v962 = vpack.c.b16 %v870, %v866
    %v963 = vpack.c.b16 %v871, %v867
    %v964 = vpack.c.b16 %v872, %v868
    %v965 = vpack.c.b16 %v877, %v873
    %v966 = vpack.c.b16 %v878, %v874
    %v967 = vpack.c.b16 %v879, %v875
    %v968 = vpack.c.b16 %v880, %v876
    %v969 = vpack.c.b16 %v885, %v881
    %v970 = vpack.c.b16 %v886, %v882
    %v971 = vpack.c.b16 %v887, %v883
    %v972 = vpack.c.b16 %v888, %v884
    %v973 = vpack.c.b16 %v893, %v889
    %v974 = vpack.c.b16 %v894, %v890
    %v975 = vpack.c.b16 %v895, %v891
    %v976 = vpack.c.b16 %v896, %v892
    %v977 = vpack.c.b16 %v901, %v897
    %v978 = vpack.c.b16 %v902, %v898
    %v979 = vpack.c.b16 %v903, %v899
    %v980 = vpack.c.b16 %v904, %v900
    %v981 = vpack.c.b16 %v909, %v905
    %v982 = vpack.c.b16 %v910, %v906
    %v983 = vpack.c.b16 %v911, %v907
    %v984 = vpack.c.b16 %v912, %v908
    %v985 = vpack.c.b16 %v917, %v913
    %v986 = vpack.c.b16 %v918, %v914
    %v987 = vpack.c.b16 %v919, %v915
    %v988 = vpack.c.b16 %v920, %v916
    %v989 = vpack.c.b16 %v925, %v921
    %v990 = vpack.c.b16 %v926, %v922
    %v991 = vpack.c.b16 %v927, %v923
    %v992 = vpack.c.b16 %v928, %v924
    %1057 = vmatpush.bf16.msra.mxu0 %v957
    %1058 = vmatpush.bf16.msra.mxu0 %v953
    %1059 = vmatpush.bf16.msra.mxu0 %v949
    %1060 = vmatpush.bf16.msra.mxu0 %v945
    %1061 = vmatpush.bf16.msra.mxu0 %v941
    %1062 = vmatpush.bf16.msra.mxu0 %v937
    %1063 = vmatpush.bf16.msra.mxu0 %v933
    %1064 = vmatpush.bf16.msra.mxu0 %v929
    %1065 = vmatmul.bf16.gmra.mxu0 %v326
    %v1066 = vpop.f32.mrf.mxu0
    %v1067 = vadd.f32 0.0, %v1066
    %v1068 = vpop.f32.mrf.mxu0
    %v1069 = vadd.f32 0.0, %v1068
    %1070 = vdwg.mxu0
    %1071 = vmatpush.bf16.msra.mxu0 %v989
    %1072 = vmatpush.bf16.msra.mxu0 %v985
    %1073 = vmatpush.bf16.msra.mxu0 %v981
    %1074 = vmatpush.bf16.msra.mxu0 %v977
    %1075 = vmatpush.bf16.msra.mxu0 %v973
    %1076 = vmatpush.bf16.msra.mxu0 %v969
    %1077 = vmatpush.bf16.msra.mxu0 %v965
    %1078 = vmatpush.bf16.msra.mxu0 %v961
    %1079 = vmatmul.bf16.gmra.mxu0 %v327
    %v1080 = vpop.f32.mrf.mxu0
    %v1081 = vadd.f32 %v1067, %v1080
    %v1082 = vpop.f32.mrf.mxu0
    %v1083 = vadd.f32 %v1069, %v1082
    %1084 = vdwg.mxu0
    %1085 = vmatpush.bf16.msra.mxu0 %v958
    %1086 = vmatpush.bf16.msra.mxu0 %v954
    %1087 = vmatpush.bf16.msra.mxu0 %v950
    %1088 = vmatpush.bf16.msra.mxu0 %v946
    %1089 = vmatpush.bf16.msra.mxu0 %v942
    %1090 = vmatpush.bf16.msra.mxu0 %v938
    %1091 = vmatpush.bf16.msra.mxu0 %v934
    %1092 = vmatpush.bf16.msra.mxu0 %v930
    %1093 = vmatmul.bf16.gmra.mxu0 %v326
    %v1094 = vpop.f32.mrf.mxu0
    %v1095 = vadd.f32 0.0, %v1094
    %v1096 = vpop.f32.mrf.mxu0
    %v1097 = vadd.f32 0.0, %v1096
    %1098 = vdwg.mxu0
    %1099 = vmatpush.bf16.msra.mxu0 %v990
    %1100 = vmatpush.bf16.msra.mxu0 %v986
    %1101 = vmatpush.bf16.msra.mxu0 %v982
    %1102 = vmatpush.bf16.msra.mxu0 %v978
    %1103 = vmatpush.bf16.msra.mxu0 %v974
    %1104 = vmatpush.bf16.msra.mxu0 %v970
    %1105 = vmatpush.bf16.msra.mxu0 %v966
    %1106 = vmatpush.bf16.msra.mxu0 %v962
    %1107 = vmatmul.bf16.gmra.mxu0 %v327
    %v1108 = vpop.f32.mrf.mxu0
    %v1109 = vadd.f32 %v1095, %v1108
    %v1110 = vpop.f32.mrf.mxu0
    %v1111 = vadd.f32 %v1097, %v1110
    %1112 = vdwg.mxu0
    %1113 = vmatpush.bf16.msra.mxu0 %v959
    %1114 = vmatpush.bf16.msra.mxu0 %v955
    %1115 = vmatpush.bf16.msra.mxu0 %v951
    %1116 = vmatpush.bf16.msra.mxu0 %v947
    %1117 = vmatpush.bf16.msra.mxu0 %v943
    %1118 = vmatpush.bf16.msra.mxu0 %v939
    %1119 = vmatpush.bf16.msra.mxu0 %v935
    %1120 = vmatpush.bf16.msra.mxu0 %v931
    %1121 = vmatmul.bf16.gmra.mxu0 %v326
    %v1122 = vpop.f32.mrf.mxu0
    %v1123 = vadd.f32 0.0, %v1122
    %v1124 = vpop.f32.mrf.mxu0
    %v1125 = vadd.f32 0.0, %v1124
    %1126 = vdwg.mxu0
    %1127 = vmatpush.bf16.msra.mxu0 %v991
    %1128 = vmatpush.bf16.msra.mxu0 %v987
    %1129 = vmatpush.bf16.msra.mxu0 %v983
    %1130 = vmatpush.bf16.msra.mxu0 %v979
    %1131 = vmatpush.bf16.msra.mxu0 %v975
    %1132 = vmatpush.bf16.msra.mxu0 %v971
    %1133 = vmatpush.bf16.msra.mxu0 %v967
    %1134 = vmatpush.bf16.msra.mxu0 %v963
    %1135 = vmatmul.bf16.gmra.mxu0 %v327
    %v1136 = vpop.f32.mrf.mxu0
    %v1137 = vadd.f32 %v1123, %v1136
    %v1138 = vpop.f32.mrf.mxu0
    %v1139 = vadd.f32 %v1125, %v1138
    %1140 = vdwg.mxu0
    %1141 = vmatpush.bf16.msra.mxu0 %v960
    %1142 = vmatpush.bf16.msra.mxu0 %v956
    %1143 = vmatpush.bf16.msra.mxu0 %v952
    %1144 = vmatpush.bf16.msra.mxu0 %v948
    %1145 = vmatpush.bf16.msra.mxu0 %v944
    %1146 = vmatpush.bf16.msra.mxu0 %v940
    %1147 = vmatpush.bf16.msra.mxu0 %v936
    %1148 = vmatpush.bf16.msra.mxu0 %v932
    %1149 = vmatmul.bf16.gmra.mxu0 %v326
    %v1150 = vpop.f32.mrf.mxu0
    %v1151 = vadd.f32 0.0, %v1150
    %v1152 = vpop.f32.mrf.mxu0
    %v1153 = vadd.f32 0.0, %v1152
    %1154 = vdwg.mxu0
    %1155 = vmatpush.bf16.msra.mxu0 %v992
    %1156 = vmatpush.bf16.msra.mxu0 %v988
    %1157 = vmatpush.bf16.msra.mxu0 %v984
    %1158 = vmatpush.bf16.msra.mxu0 %v980
    %1159 = vmatpush.bf16.msra.mxu0 %v976
    %1160 = vmatpush.bf16.msra.mxu0 %v972
    %1161 = vmatpush.bf16.msra.mxu0 %v968
    %1162 = vmatpush.bf16.msra.mxu0 %v964
    %1163 = vmatmul.bf16.gmra.mxu0 %v327
    %v1164 = vpop.f32.mrf.mxu0
    %v1165 = vadd.f32 %v1151, %v1164
    %v1166 = vpop.f32.mrf.mxu0
    %v1167 = vadd.f32 %v1153, %v1166
    %1168 = vdwg.mxu0
    %v1170 = vperm.slane %v672, 0
    %v1171 = vperm.slane %v672, 1
    %v1172 = vperm.slane %v672, 2
    %v1173 = vperm.slane %v672, 3
    %v1178 = vadd.f32 %v1170, %v1081
    %v1179 = vadd.f32 %v1171, %v1109
    %v1180 = vadd.f32 %v1172, %v1137
    %v1181 = vadd.f32 %v1173, %v1165
    %v1182 = vadd.f32 %v1170, %v1083
    %v1183 = vadd.f32 %v1171, %v1111
    %v1184 = vadd.f32 %v1172, %v1139
    %v1185 = vadd.f32 %v1173, %v1167
    %s1186 = scalar_lea.vmem [#allocation6], 512
    %v1187 = vld [vmem:[%s1186] sm:$0xff]
    %v1188 = vld [vmem:[%s1186 + $0x8] sm:$0xff]
    %v1189 = vld [vmem:[%s1186 + $0x10] sm:$0xff]
    %v1190 = vld [vmem:[%s1186 + $0x18] sm:$0xff]
    %v1191 = vld [vmem:[%s1186 + $0x20] sm:$0xff]
    %v1192 = vld [vmem:[%s1186 + $0x28] sm:$0xff]
    %v1193 = vld [vmem:[%s1186 + $0x30] sm:$0xff]
    %v1194 = vld [vmem:[%s1186 + $0x38] sm:$0xff]
    %v1195 = vld [vmem:[%s1186 + $0x40] sm:$0xff]
    %v1196 = vld [vmem:[%s1186 + $0x48] sm:$0xff]
    %v1197 = vld [vmem:[%s1186 + $0x50] sm:$0xff]
    %v1198 = vld [vmem:[%s1186 + $0x58] sm:$0xff]
    %v1199 = vld [vmem:[%s1186 + $0x60] sm:$0xff]
    %v1200 = vld [vmem:[%s1186 + $0x68] sm:$0xff]
    %v1201 = vld [vmem:[%s1186 + $0x70] sm:$0xff]
    %v1202 = vld [vmem:[%s1186 + $0x78] sm:$0xff]
    %v1203 = vld [vmem:[%s1186 + $0x80] sm:$0xff]
    %v1204 = vld [vmem:[%s1186 + $0x88] sm:$0xff]
    %v1205 = vld [vmem:[%s1186 + $0x90] sm:$0xff]
    %v1206 = vld [vmem:[%s1186 + $0x98] sm:$0xff]
    %v1207 = vld [vmem:[%s1186 + $0xa0] sm:$0xff]
    %v1208 = vld [vmem:[%s1186 + $0xa8] sm:$0xff]
    %v1209 = vld [vmem:[%s1186 + $0xb0] sm:$0xff]
    %v1210 = vld [vmem:[%s1186 + $0xb8] sm:$0xff]
    %v1211 = vld [vmem:[%s1186 + $0xc0] sm:$0xff]
    %v1212 = vld [vmem:[%s1186 + $0xc8] sm:$0xff]
    %v1213 = vld [vmem:[%s1186 + $0xd0] sm:$0xff]
    %v1214 = vld [vmem:[%s1186 + $0xd8] sm:$0xff]
    %v1215 = vld [vmem:[%s1186 + $0xe0] sm:$0xff]
    %v1216 = vld [vmem:[%s1186 + $0xe8] sm:$0xff]
    %v1217 = vld [vmem:[%s1186 + $0xf0] sm:$0xff]
    %v1218 = vld [vmem:[%s1186 + $0xf8] sm:$0xff]
    %v1219 = vld [vmem:[%s1186 + $0x100] sm:$0xff]
    %v1220 = vld [vmem:[%s1186 + $0x108] sm:$0xff]
    %v1221 = vld [vmem:[%s1186 + $0x110] sm:$0xff]
    %v1222 = vld [vmem:[%s1186 + $0x118] sm:$0xff]
    %v1223 = vld [vmem:[%s1186 + $0x120] sm:$0xff]
    %v1224 = vld [vmem:[%s1186 + $0x128] sm:$0xff]
    %v1225 = vld [vmem:[%s1186 + $0x130] sm:$0xff]
    %v1226 = vld [vmem:[%s1186 + $0x138] sm:$0xff]
    %v1227 = vld [vmem:[%s1186 + $0x140] sm:$0xff]
    %v1228 = vld [vmem:[%s1186 + $0x148] sm:$0xff]
    %v1229 = vld [vmem:[%s1186 + $0x150] sm:$0xff]
    %v1230 = vld [vmem:[%s1186 + $0x158] sm:$0xff]
    %v1231 = vld [vmem:[%s1186 + $0x160] sm:$0xff]
    %v1232 = vld [vmem:[%s1186 + $0x168] sm:$0xff]
    %v1233 = vld [vmem:[%s1186 + $0x170] sm:$0xff]
    %v1234 = vld [vmem:[%s1186 + $0x178] sm:$0xff]
    %v1235 = vld [vmem:[%s1186 + $0x180] sm:$0xff]
    %v1236 = vld [vmem:[%s1186 + $0x188] sm:$0xff]
    %v1237 = vld [vmem:[%s1186 + $0x190] sm:$0xff]
    %v1238 = vld [vmem:[%s1186 + $0x198] sm:$0xff]
    %v1239 = vld [vmem:[%s1186 + $0x1a0] sm:$0xff]
    %v1240 = vld [vmem:[%s1186 + $0x1a8] sm:$0xff]
    %v1241 = vld [vmem:[%s1186 + $0x1b0] sm:$0xff]
    %v1242 = vld [vmem:[%s1186 + $0x1b8] sm:$0xff]
    %v1243 = vld [vmem:[%s1186 + $0x1c0] sm:$0xff]
    %v1244 = vld [vmem:[%s1186 + $0x1c8] sm:$0xff]
    %v1245 = vld [vmem:[%s1186 + $0x1d0] sm:$0xff]
    %v1246 = vld [vmem:[%s1186 + $0x1d8] sm:$0xff]
    %v1247 = vld [vmem:[%s1186 + $0x1e0] sm:$0xff]
    %v1248 = vld [vmem:[%s1186 + $0x1e8] sm:$0xff]
    %v1249 = vld [vmem:[%s1186 + $0x1f0] sm:$0xff]
    %v1250 = vld [vmem:[%s1186 + $0x1f8] sm:$0xff]
    %v1315 = vunpack.c.l.b16 %v1187
    %v1316 = vunpack.c.h.b16 %v1187
    %v1317 = vunpack.c.l.b16 %v1188
    %v1318 = vunpack.c.h.b16 %v1188
    %v1319 = vunpack.c.l.b16 %v1189
    %v1320 = vunpack.c.h.b16 %v1189
    %v1321 = vunpack.c.l.b16 %v1190
    %v1322 = vunpack.c.h.b16 %v1190
    %v1323 = vunpack.c.l.b16 %v1191
    %v1324 = vunpack.c.h.b16 %v1191
    %v1325 = vunpack.c.l.b16 %v1192
    %v1326 = vunpack.c.h.b16 %v1192
    %v1327 = vunpack.c.l.b16 %v1193
    %v1328 = vunpack.c.h.b16 %v1193
    %v1329 = vunpack.c.l.b16 %v1194
    %v1330 = vunpack.c.h.b16 %v1194
    %v1331 = vunpack.c.l.b16 %v1195
    %v1332 = vunpack.c.h.b16 %v1195
    %v1333 = vunpack.c.l.b16 %v1196
    %v1334 = vunpack.c.h.b16 %v1196
    %v1335 = vunpack.c.l.b16 %v1197
    %v1336 = vunpack.c.h.b16 %v1197
    %v1337 = vunpack.c.l.b16 %v1198
    %v1338 = vunpack.c.h.b16 %v1198
    %v1339 = vunpack.c.l.b16 %v1199
    %v1340 = vunpack.c.h.b16 %v1199
    %v1341 = vunpack.c.l.b16 %v1200
    %v1342 = vunpack.c.h.b16 %v1200
    %v1343 = vunpack.c.l.b16 %v1201
    %v1344 = vunpack.c.h.b16 %v1201
    %v1345 = vunpack.c.l.b16 %v1202
    %v1346 = vunpack.c.h.b16 %v1202
    %v1347 = vunpack.c.l.b16 %v1203
    %v1348 = vunpack.c.h.b16 %v1203
    %v1349 = vunpack.c.l.b16 %v1204
    %v1350 = vunpack.c.h.b16 %v1204
    %v1351 = vunpack.c.l.b16 %v1205
    %v1352 = vunpack.c.h.b16 %v1205
    %v1353 = vunpack.c.l.b16 %v1206
    %v1354 = vunpack.c.h.b16 %v1206
    %v1355 = vunpack.c.l.b16 %v1207
    %v1356 = vunpack.c.h.b16 %v1207
    %v1357 = vunpack.c.l.b16 %v1208
    %v1358 = vunpack.c.h.b16 %v1208
    %v1359 = vunpack.c.l.b16 %v1209
    %v1360 = vunpack.c.h.b16 %v1209
    %v1361 = vunpack.c.l.b16 %v1210
    %v1362 = vunpack.c.h.b16 %v1210
    %v1363 = vunpack.c.l.b16 %v1211
    %v1364 = vunpack.c.h.b16 %v1211
    %v1365 = vunpack.c.l.b16 %v1212
    %v1366 = vunpack.c.h.b16 %v1212
    %v1367 = vunpack.c.l.b16 %v1213
    %v1368 = vunpack.c.h.b16 %v1213
    %v1369 = vunpack.c.l.b16 %v1214
    %v1370 = vunpack.c.h.b16 %v1214
    %v1371 = vunpack.c.l.b16 %v1215
    %v1372 = vunpack.c.h.b16 %v1215
    %v1373 = vunpack.c.l.b16 %v1216
    %v1374 = vunpack.c.h.b16 %v1216
    %v1375 = vunpack.c.l.b16 %v1217
    %v1376 = vunpack.c.h.b16 %v1217
    %v1377 = vunpack.c.l.b16 %v1218
    %v1378 = vunpack.c.h.b16 %v1218
    %v1379 = vunpack.c.l.b16 %v1219
    %v1380 = vunpack.c.h.b16 %v1219
    %v1381 = vunpack.c.l.b16 %v1220
    %v1382 = vunpack.c.h.b16 %v1220
    %v1383 = vunpack.c.l.b16 %v1221
    %v1384 = vunpack.c.h.b16 %v1221
    %v1385 = vunpack.c.l.b16 %v1222
    %v1386 = vunpack.c.h.b16 %v1222
    %v1387 = vunpack.c.l.b16 %v1223
    %v1388 = vunpack.c.h.b16 %v1223
    %v1389 = vunpack.c.l.b16 %v1224
    %v1390 = vunpack.c.h.b16 %v1224
    %v1391 = vunpack.c.l.b16 %v1225
    %v1392 = vunpack.c.h.b16 %v1225
    %v1393 = vunpack.c.l.b16 %v1226
    %v1394 = vunpack.c.h.b16 %v1226
    %v1395 = vunpack.c.l.b16 %v1227
    %v1396 = vunpack.c.h.b16 %v1227
    %v1397 = vunpack.c.l.b16 %v1228
    %v1398 = vunpack.c.h.b16 %v1228
    %v1399 = vunpack.c.l.b16 %v1229
    %v1400 = vunpack.c.h.b16 %v1229
    %v1401 = vunpack.c.l.b16 %v1230
    %v1402 = vunpack.c.h.b16 %v1230
    %v1403 = vunpack.c.l.b16 %v1231
    %v1404 = vunpack.c.h.b16 %v1231
    %v1405 = vunpack.c.l.b16 %v1232
    %v1406 = vunpack.c.h.b16 %v1232
    %v1407 = vunpack.c.l.b16 %v1233
    %v1408 = vunpack.c.h.b16 %v1233
    %v1409 = vunpack.c.l.b16 %v1234
    %v1410 = vunpack.c.h.b16 %v1234
    %v1411 = vunpack.c.l.b16 %v1235
    %v1412 = vunpack.c.h.b16 %v1235
    %v1413 = vunpack.c.l.b16 %v1236
    %v1414 = vunpack.c.h.b16 %v1236
    %v1415 = vunpack.c.l.b16 %v1237
    %v1416 = vunpack.c.h.b16 %v1237
    %v1417 = vunpack.c.l.b16 %v1238
    %v1418 = vunpack.c.h.b16 %v1238
    %v1419 = vunpack.c.l.b16 %v1239
    %v1420 = vunpack.c.h.b16 %v1239
    %v1421 = vunpack.c.l.b16 %v1240
    %v1422 = vunpack.c.h.b16 %v1240
    %v1423 = vunpack.c.l.b16 %v1241
    %v1424 = vunpack.c.h.b16 %v1241
    %v1425 = vunpack.c.l.b16 %v1242
    %v1426 = vunpack.c.h.b16 %v1242
    %v1427 = vunpack.c.l.b16 %v1243
    %v1428 = vunpack.c.h.b16 %v1243
    %v1429 = vunpack.c.l.b16 %v1244
    %v1430 = vunpack.c.h.b16 %v1244
    %v1431 = vunpack.c.l.b16 %v1245
    %v1432 = vunpack.c.h.b16 %v1245
    %v1433 = vunpack.c.l.b16 %v1246
    %v1434 = vunpack.c.h.b16 %v1246
    %v1435 = vunpack.c.l.b16 %v1247
    %v1436 = vunpack.c.h.b16 %v1247
    %v1437 = vunpack.c.l.b16 %v1248
    %v1438 = vunpack.c.h.b16 %v1248
    %v1439 = vunpack.c.l.b16 %v1249
    %v1440 = vunpack.c.h.b16 %v1249
    %v1441 = vunpack.c.l.b16 %v1250
    %v1442 = vunpack.c.h.b16 %v1250
    %v1443 = vpack.c.b16 %v1319, %v1315
    %v1444 = vpack.c.b16 %v1320, %v1316
    %v1445 = vpack.c.b16 %v1321, %v1317
    %v1446 = vpack.c.b16 %v1322, %v1318
    %v1447 = vpack.c.b16 %v1327, %v1323
    %v1448 = vpack.c.b16 %v1328, %v1324
    %v1449 = vpack.c.b16 %v1329, %v1325
    %v1450 = vpack.c.b16 %v1330, %v1326
    %v1451 = vpack.c.b16 %v1335, %v1331
    %v1452 = vpack.c.b16 %v1336, %v1332
    %v1453 = vpack.c.b16 %v1337, %v1333
    %v1454 = vpack.c.b16 %v1338, %v1334
    %v1455 = vpack.c.b16 %v1343, %v1339
    %v1456 = vpack.c.b16 %v1344, %v1340
    %v1457 = vpack.c.b16 %v1345, %v1341
    %v1458 = vpack.c.b16 %v1346, %v1342
    %v1459 = vpack.c.b16 %v1351, %v1347
    %v1460 = vpack.c.b16 %v1352, %v1348
    %v1461 = vpack.c.b16 %v1353, %v1349
    %v1462 = vpack.c.b16 %v1354, %v1350
    %v1463 = vpack.c.b16 %v1359, %v1355
    %v1464 = vpack.c.b16 %v1360, %v1356
    %v1465 = vpack.c.b16 %v1361, %v1357
    %v1466 = vpack.c.b16 %v1362, %v1358
    %v1467 = vpack.c.b16 %v1367, %v1363
    %v1468 = vpack.c.b16 %v1368, %v1364
    %v1469 = vpack.c.b16 %v1369, %v1365
    %v1470 = vpack.c.b16 %v1370, %v1366
    %v1471 = vpack.c.b16 %v1375, %v1371
    %v1472 = vpack.c.b16 %v1376, %v1372
    %v1473 = vpack.c.b16 %v1377, %v1373
    %v1474 = vpack.c.b16 %v1378, %v1374
    %v1475 = vpack.c.b16 %v1383, %v1379
    %v1476 = vpack.c.b16 %v1384, %v1380
    %v1477 = vpack.c.b16 %v1385, %v1381
    %v1478 = vpack.c.b16 %v1386, %v1382
    %v1479 = vpack.c.b16 %v1391, %v1387
    %v1480 = vpack.c.b16 %v1392, %v1388
    %v1481 = vpack.c.b16 %v1393, %v1389
    %v1482 = vpack.c.b16 %v1394, %v1390
    %v1483 = vpack.c.b16 %v1399, %v1395
    %v1484 = vpack.c.b16 %v1400, %v1396
    %v1485 = vpack.c.b16 %v1401, %v1397
    %v1486 = vpack.c.b16 %v1402, %v1398
    %v1487 = vpack.c.b16 %v1407, %v1403
    %v1488 = vpack.c.b16 %v1408, %v1404
    %v1489 = vpack.c.b16 %v1409, %v1405
    %v1490 = vpack.c.b16 %v1410, %v1406
    %v1491 = vpack.c.b16 %v1415, %v1411
    %v1492 = vpack.c.b16 %v1416, %v1412
    %v1493 = vpack.c.b16 %v1417, %v1413
    %v1494 = vpack.c.b16 %v1418, %v1414
    %v1495 = vpack.c.b16 %v1423, %v1419
    %v1496 = vpack.c.b16 %v1424, %v1420
    %v1497 = vpack.c.b16 %v1425, %v1421
    %v1498 = vpack.c.b16 %v1426, %v1422
    %v1499 = vpack.c.b16 %v1431, %v1427
    %v1500 = vpack.c.b16 %v1432, %v1428
    %v1501 = vpack.c.b16 %v1433, %v1429
    %v1502 = vpack.c.b16 %v1434, %v1430
    %v1503 = vpack.c.b16 %v1439, %v1435
    %v1504 = vpack.c.b16 %v1440, %v1436
    %v1505 = vpack.c.b16 %v1441, %v1437
    %v1506 = vpack.c.b16 %v1442, %v1438
    %1571 = vmatpush.bf16.msra.mxu0 %v1471
    %1572 = vmatpush.bf16.msra.mxu0 %v1467
    %1573 = vmatpush.bf16.msra.mxu0 %v1463
    %1574 = vmatpush.bf16.msra.mxu0 %v1459
    %1575 = vmatpush.bf16.msra.mxu0 %v1455
    %1576 = vmatpush.bf16.msra.mxu0 %v1451
    %1577 = vmatpush.bf16.msra.mxu0 %v1447
    %1578 = vmatpush.bf16.msra.mxu0 %v1443
    %1579 = vmatmul.bf16.gmra.mxu0 %v369
    %v1580 = vpop.f32.mrf.mxu0
    %v1581 = vadd.f32 0.0, %v1580
    %v1582 = vpop.f32.mrf.mxu0
    %v1583 = vadd.f32 0.0, %v1582
    %1584 = vdwg.mxu0
    %1585 = vmatpush.bf16.msra.mxu0 %v1503
    %1586 = vmatpush.bf16.msra.mxu0 %v1499
    %1587 = vmatpush.bf16.msra.mxu0 %v1495
    %1588 = vmatpush.bf16.msra.mxu0 %v1491
    %1589 = vmatpush.bf16.msra.mxu0 %v1487
    %1590 = vmatpush.bf16.msra.mxu0 %v1483
    %1591 = vmatpush.bf16.msra.mxu0 %v1479
    %1592 = vmatpush.bf16.msra.mxu0 %v1475
    %1593 = vmatmul.bf16.gmra.mxu0 %v370
    %v1594 = vpop.f32.mrf.mxu0
    %v1595 = vadd.f32 %v1581, %v1594
    %v1596 = vpop.f32.mrf.mxu0
    %v1597 = vadd.f32 %v1583, %v1596
    %1598 = vdwg.mxu0
    %1599 = vmatpush.bf16.msra.mxu0 %v1472
    %1600 = vmatpush.bf16.msra.mxu0 %v1468
    %1601 = vmatpush.bf16.msra.mxu0 %v1464
    %1602 = vmatpush.bf16.msra.mxu0 %v1460
    %1603 = vmatpush.bf16.msra.mxu0 %v1456
    %1604 = vmatpush.bf16.msra.mxu0 %v1452
    %1605 = vmatpush.bf16.msra.mxu0 %v1448
    %1606 = vmatpush.bf16.msra.mxu0 %v1444
    %1607 = vmatmul.bf16.gmra.mxu0 %v369
    %v1608 = vpop.f32.mrf.mxu0
    %v1609 = vadd.f32 0.0, %v1608
    %v1610 = vpop.f32.mrf.mxu0
    %v1611 = vadd.f32 0.0, %v1610
    %1612 = vdwg.mxu0
    %1613 = vmatpush.bf16.msra.mxu0 %v1504
    %1614 = vmatpush.bf16.msra.mxu0 %v1500
    %1615 = vmatpush.bf16.msra.mxu0 %v1496
    %1616 = vmatpush.bf16.msra.mxu0 %v1492
    %1617 = vmatpush.bf16.msra.mxu0 %v1488
    %1618 = vmatpush.bf16.msra.mxu0 %v1484
    %1619 = vmatpush.bf16.msra.mxu0 %v1480
    %1620 = vmatpush.bf16.msra.mxu0 %v1476
    %1621 = vmatmul.bf16.gmra.mxu0 %v370
    %v1622 = vpop.f32.mrf.mxu0
    %v1623 = vadd.f32 %v1609, %v1622
    %v1624 = vpop.f32.mrf.mxu0
    %v1625 = vadd.f32 %v1611, %v1624
    %1626 = vdwg.mxu0
    %1627 = vmatpush.bf16.msra.mxu0 %v1473
    %1628 = vmatpush.bf16.msra.mxu0 %v1469
    %1629 = vmatpush.bf16.msra.mxu0 %v1465
    %1630 = vmatpush.bf16.msra.mxu0 %v1461
    %1631 = vmatpush.bf16.msra.mxu0 %v1457
    %1632 = vmatpush.bf16.msra.mxu0 %v1453
    %1633 = vmatpush.bf16.msra.mxu0 %v1449
    %1634 = vmatpush.bf16.msra.mxu0 %v1445
    %1635 = vmatmul.bf16.gmra.mxu0 %v369
    %v1636 = vpop.f32.mrf.mxu0
    %v1637 = vadd.f32 0.0, %v1636
    %v1638 = vpop.f32.mrf.mxu0
    %v1639 = vadd.f32 0.0, %v1638
    %1640 = vdwg.mxu0
    %1641 = vmatpush.bf16.msra.mxu0 %v1505
    %1642 = vmatpush.bf16.msra.mxu0 %v1501
    %1643 = vmatpush.bf16.msra.mxu0 %v1497
    %1644 = vmatpush.bf16.msra.mxu0 %v1493
    %1645 = vmatpush.bf16.msra.mxu0 %v1489
    %1646 = vmatpush.bf16.msra.mxu0 %v1485
    %1647 = vmatpush.bf16.msra.mxu0 %v1481
    %1648 = vmatpush.bf16.msra.mxu0 %v1477
    %1649 = vmatmul.bf16.gmra.mxu0 %v370
    %v1650 = vpop.f32.mrf.mxu0
    %v1651 = vadd.f32 %v1637, %v1650
    %v1652 = vpop.f32.mrf.mxu0
    %v1653 = vadd.f32 %v1639, %v1652
    %1654 = vdwg.mxu0
    %1655 = vmatpush.bf16.msra.mxu0 %v1474
    %1656 = vmatpush.bf16.msra.mxu0 %v1470
    %1657 = vmatpush.bf16.msra.mxu0 %v1466
    %1658 = vmatpush.bf16.msra.mxu0 %v1462
    %1659 = vmatpush.bf16.msra.mxu0 %v1458
    %1660 = vmatpush.bf16.msra.mxu0 %v1454
    %1661 = vmatpush.bf16.msra.mxu0 %v1450
    %1662 = vmatpush.bf16.msra.mxu0 %v1446
    %1663 = vmatmul.bf16.gmra.mxu0 %v369
    %v1664 = vpop.f32.mrf.mxu0
    %v1665 = vadd.f32 0.0, %v1664
    %v1666 = vpop.f32.mrf.mxu0
    %v1667 = vadd.f32 0.0, %v1666
    %1668 = vdwg.mxu0
    %1669 = vmatpush.bf16.msra.mxu0 %v1506
    %1670 = vmatpush.bf16.msra.mxu0 %v1502
    %1671 = vmatpush.bf16.msra.mxu0 %v1498
    %1672 = vmatpush.bf16.msra.mxu0 %v1494
    %1673 = vmatpush.bf16.msra.mxu0 %v1490
    %1674 = vmatpush.bf16.msra.mxu0 %v1486
    %1675 = vmatpush.bf16.msra.mxu0 %v1482
    %1676 = vmatpush.bf16.msra.mxu0 %v1478
    %1677 = vmatmul.bf16.gmra.mxu0 %v370
    %v1678 = vpop.f32.mrf.mxu0
    %v1679 = vadd.f32 %v1665, %v1678
    %v1680 = vpop.f32.mrf.mxu0
    %v1681 = vadd.f32 %v1667, %v1680
    %1682 = vdwg.mxu0
    %v1683 = vadd.f32 %v1178, %v1595
    %v1684 = vadd.f32 %v1179, %v1623
    %v1685 = vadd.f32 %v1180, %v1651
    %v1686 = vadd.f32 %v1181, %v1679
    %v1687 = vadd.f32 %v1182, %v1597
    %v1688 = vadd.f32 %v1183, %v1625
    %v1689 = vadd.f32 %v1184, %v1653
    %v1690 = vadd.f32 %v1185, %v1681
    %s1691 = scalar_lea.vmem [#allocation6], 1024
    %v1692 = vld [vmem:[%s1691] sm:$0xff]
    %v1693 = vld [vmem:[%s1691 + $0x8] sm:$0xff]
    %v1694 = vld [vmem:[%s1691 + $0x10] sm:$0xff]
    %v1695 = vld [vmem:[%s1691 + $0x18] sm:$0xff]
    %v1696 = vld [vmem:[%s1691 + $0x20] sm:$0xff]
    %v1697 = vld [vmem:[%s1691 + $0x28] sm:$0xff]
    %v1698 = vld [vmem:[%s1691 + $0x30] sm:$0xff]
    %v1699 = vld [vmem:[%s1691 + $0x38] sm:$0xff]
    %v1700 = vld [vmem:[%s1691 + $0x40] sm:$0xff]
    %v1701 = vld [vmem:[%s1691 + $0x48] sm:$0xff]
    %v1702 = vld [vmem:[%s1691 + $0x50] sm:$0xff]
    %v1703 = vld [vmem:[%s1691 + $0x58] sm:$0xff]
    %v1704 = vld [vmem:[%s1691 + $0x60] sm:$0xff]
    %v1705 = vld [vmem:[%s1691 + $0x68] sm:$0xff]
    %v1706 = vld [vmem:[%s1691 + $0x70] sm:$0xff]
    %v1707 = vld [vmem:[%s1691 + $0x78] sm:$0xff]
    %v1708 = vld [vmem:[%s1691 + $0x80] sm:$0xff]
    %v1709 = vld [vmem:[%s1691 + $0x88] sm:$0xff]
    %v1710 = vld [vmem:[%s1691 + $0x90] sm:$0xff]
    %v1711 = vld [vmem:[%s1691 + $0x98] sm:$0xff]
    %v1712 = vld [vmem:[%s1691 + $0xa0] sm:$0xff]
    %v1713 = vld [vmem:[%s1691 + $0xa8] sm:$0xff]
    %v1714 = vld [vmem:[%s1691 + $0xb0] sm:$0xff]
    %v1715 = vld [vmem:[%s1691 + $0xb8] sm:$0xff]
    %v1716 = vld [vmem:[%s1691 + $0xc0] sm:$0xff]
    %v1717 = vld [vmem:[%s1691 + $0xc8] sm:$0xff]
    %v1718 = vld [vmem:[%s1691 + $0xd0] sm:$0xff]
    %v1719 = vld [vmem:[%s1691 + $0xd8] sm:$0xff]
    %v1720 = vld [vmem:[%s1691 + $0xe0] sm:$0xff]
    %v1721 = vld [vmem:[%s1691 + $0xe8] sm:$0xff]
    %v1722 = vld [vmem:[%s1691 + $0xf0] sm:$0xff]
    %v1723 = vld [vmem:[%s1691 + $0xf8] sm:$0xff]
    %v1724 = vld [vmem:[%s1691 + $0x100] sm:$0xff]
    %v1725 = vld [vmem:[%s1691 + $0x108] sm:$0xff]
    %v1726 = vld [vmem:[%s1691 + $0x110] sm:$0xff]
    %v1727 = vld [vmem:[%s1691 + $0x118] sm:$0xff]
    %v1728 = vld [vmem:[%s1691 + $0x120] sm:$0xff]
    %v1729 = vld [vmem:[%s1691 + $0x128] sm:$0xff]
    %v1730 = vld [vmem:[%s1691 + $0x130] sm:$0xff]
    %v1731 = vld [vmem:[%s1691 + $0x138] sm:$0xff]
    %v1732 = vld [vmem:[%s1691 + $0x140] sm:$0xff]
    %v1733 = vld [vmem:[%s1691 + $0x148] sm:$0xff]
    %v1734 = vld [vmem:[%s1691 + $0x150] sm:$0xff]
    %v1735 = vld [vmem:[%s1691 + $0x158] sm:$0xff]
    %v1736 = vld [vmem:[%s1691 + $0x160] sm:$0xff]
    %v1737 = vld [vmem:[%s1691 + $0x168] sm:$0xff]
    %v1738 = vld [vmem:[%s1691 + $0x170] sm:$0xff]
    %v1739 = vld [vmem:[%s1691 + $0x178] sm:$0xff]
    %v1740 = vld [vmem:[%s1691 + $0x180] sm:$0xff]
    %v1741 = vld [vmem:[%s1691 + $0x188] sm:$0xff]
    %v1742 = vld [vmem:[%s1691 + $0x190] sm:$0xff]
    %v1743 = vld [vmem:[%s1691 + $0x198] sm:$0xff]
    %v1744 = vld [vmem:[%s1691 + $0x1a0] sm:$0xff]
    %v1745 = vld [vmem:[%s1691 + $0x1a8] sm:$0xff]
    %v1746 = vld [vmem:[%s1691 + $0x1b0] sm:$0xff]
    %v1747 = vld [vmem:[%s1691 + $0x1b8] sm:$0xff]
    %v1748 = vld [vmem:[%s1691 + $0x1c0] sm:$0xff]
    %v1749 = vld [vmem:[%s1691 + $0x1c8] sm:$0xff]
    %v1750 = vld [vmem:[%s1691 + $0x1d0] sm:$0xff]
    %v1751 = vld [vmem:[%s1691 + $0x1d8] sm:$0xff]
    %v1752 = vld [vmem:[%s1691 + $0x1e0] sm:$0xff]
    %v1753 = vld [vmem:[%s1691 + $0x1e8] sm:$0xff]
    %v1754 = vld [vmem:[%s1691 + $0x1f0] sm:$0xff]
    %v1755 = vld [vmem:[%s1691 + $0x1f8] sm:$0xff]
    %v1820 = vunpack.c.l.b16 %v1692
    %v1821 = vunpack.c.h.b16 %v1692
    %v1822 = vunpack.c.l.b16 %v1693
    %v1823 = vunpack.c.h.b16 %v1693
    %v1824 = vunpack.c.l.b16 %v1694
    %v1825 = vunpack.c.h.b16 %v1694
    %v1826 = vunpack.c.l.b16 %v1695
    %v1827 = vunpack.c.h.b16 %v1695
    %v1828 = vunpack.c.l.b16 %v1696
    %v1829 = vunpack.c.h.b16 %v1696
    %v1830 = vunpack.c.l.b16 %v1697
    %v1831 = vunpack.c.h.b16 %v1697
    %v1832 = vunpack.c.l.b16 %v1698
    %v1833 = vunpack.c.h.b16 %v1698
    %v1834 = vunpack.c.l.b16 %v1699
    %v1835 = vunpack.c.h.b16 %v1699
    %v1836 = vunpack.c.l.b16 %v1700
    %v1837 = vunpack.c.h.b16 %v1700
    %v1838 = vunpack.c.l.b16 %v1701
    %v1839 = vunpack.c.h.b16 %v1701
    %v1840 = vunpack.c.l.b16 %v1702
    %v1841 = vunpack.c.h.b16 %v1702
    %v1842 = vunpack.c.l.b16 %v1703
    %v1843 = vunpack.c.h.b16 %v1703
    %v1844 = vunpack.c.l.b16 %v1704
    %v1845 = vunpack.c.h.b16 %v1704
    %v1846 = vunpack.c.l.b16 %v1705
    %v1847 = vunpack.c.h.b16 %v1705
    %v1848 = vunpack.c.l.b16 %v1706
    %v1849 = vunpack.c.h.b16 %v1706
    %v1850 = vunpack.c.l.b16 %v1707
    %v1851 = vunpack.c.h.b16 %v1707
    %v1852 = vunpack.c.l.b16 %v1708
    %v1853 = vunpack.c.h.b16 %v1708
    %v1854 = vunpack.c.l.b16 %v1709
    %v1855 = vunpack.c.h.b16 %v1709
    %v1856 = vunpack.c.l.b16 %v1710
    %v1857 = vunpack.c.h.b16 %v1710
    %v1858 = vunpack.c.l.b16 %v1711
    %v1859 = vunpack.c.h.b16 %v1711
    %v1860 = vunpack.c.l.b16 %v1712
    %v1861 = vunpack.c.h.b16 %v1712
    %v1862 = vunpack.c.l.b16 %v1713
    %v1863 = vunpack.c.h.b16 %v1713
    %v1864 = vunpack.c.l.b16 %v1714
    %v1865 = vunpack.c.h.b16 %v1714
    %v1866 = vunpack.c.l.b16 %v1715
    %v1867 = vunpack.c.h.b16 %v1715
    %v1868 = vunpack.c.l.b16 %v1716
    %v1869 = vunpack.c.h.b16 %v1716
    %v1870 = vunpack.c.l.b16 %v1717
    %v1871 = vunpack.c.h.b16 %v1717
    %v1872 = vunpack.c.l.b16 %v1718
    %v1873 = vunpack.c.h.b16 %v1718
    %v1874 = vunpack.c.l.b16 %v1719
    %v1875 = vunpack.c.h.b16 %v1719
    %v1876 = vunpack.c.l.b16 %v1720
    %v1877 = vunpack.c.h.b16 %v1720
    %v1878 = vunpack.c.l.b16 %v1721
    %v1879 = vunpack.c.h.b16 %v1721
    %v1880 = vunpack.c.l.b16 %v1722
    %v1881 = vunpack.c.h.b16 %v1722
    %v1882 = vunpack.c.l.b16 %v1723
    %v1883 = vunpack.c.h.b16 %v1723
    %v1884 = vunpack.c.l.b16 %v1724
    %v1885 = vunpack.c.h.b16 %v1724
    %v1886 = vunpack.c.l.b16 %v1725
    %v1887 = vunpack.c.h.b16 %v1725
    %v1888 = vunpack.c.l.b16 %v1726
    %v1889 = vunpack.c.h.b16 %v1726
    %v1890 = vunpack.c.l.b16 %v1727
    %v1891 = vunpack.c.h.b16 %v1727
    %v1892 = vunpack.c.l.b16 %v1728
    %v1893 = vunpack.c.h.b16 %v1728
    %v1894 = vunpack.c.l.b16 %v1729
    %v1895 = vunpack.c.h.b16 %v1729
    %v1896 = vunpack.c.l.b16 %v1730
    %v1897 = vunpack.c.h.b16 %v1730
    %v1898 = vunpack.c.l.b16 %v1731
    %v1899 = vunpack.c.h.b16 %v1731
    %v1900 = vunpack.c.l.b16 %v1732
    %v1901 = vunpack.c.h.b16 %v1732
    %v1902 = vunpack.c.l.b16 %v1733
    %v1903 = vunpack.c.h.b16 %v1733
    %v1904 = vunpack.c.l.b16 %v1734
    %v1905 = vunpack.c.h.b16 %v1734
    %v1906 = vunpack.c.l.b16 %v1735
    %v1907 = vunpack.c.h.b16 %v1735
    %v1908 = vunpack.c.l.b16 %v1736
    %v1909 = vunpack.c.h.b16 %v1736
    %v1910 = vunpack.c.l.b16 %v1737
    %v1911 = vunpack.c.h.b16 %v1737
    %v1912 = vunpack.c.l.b16 %v1738
    %v1913 = vunpack.c.h.b16 %v1738
    %v1914 = vunpack.c.l.b16 %v1739
    %v1915 = vunpack.c.h.b16 %v1739
    %v1916 = vunpack.c.l.b16 %v1740
    %v1917 = vunpack.c.h.b16 %v1740
    %v1918 = vunpack.c.l.b16 %v1741
    %v1919 = vunpack.c.h.b16 %v1741
    %v1920 = vunpack.c.l.b16 %v1742
    %v1921 = vunpack.c.h.b16 %v1742
    %v1922 = vunpack.c.l.b16 %v1743
    %v1923 = vunpack.c.h.b16 %v1743
    %v1924 = vunpack.c.l.b16 %v1744
    %v1925 = vunpack.c.h.b16 %v1744
    %v1926 = vunpack.c.l.b16 %v1745
    %v1927 = vunpack.c.h.b16 %v1745
    %v1928 = vunpack.c.l.b16 %v1746
    %v1929 = vunpack.c.h.b16 %v1746
    %v1930 = vunpack.c.l.b16 %v1747
    %v1931 = vunpack.c.h.b16 %v1747
    %v1932 = vunpack.c.l.b16 %v1748
    %v1933 = vunpack.c.h.b16 %v1748
    %v1934 = vunpack.c.l.b16 %v1749
    %v1935 = vunpack.c.h.b16 %v1749
    %v1936 = vunpack.c.l.b16 %v1750
    %v1937 = vunpack.c.h.b16 %v1750
    %v1938 = vunpack.c.l.b16 %v1751
    %v1939 = vunpack.c.h.b16 %v1751
    %v1940 = vunpack.c.l.b16 %v1752
    %v1941 = vunpack.c.h.b16 %v1752
    %v1942 = vunpack.c.l.b16 %v1753
    %v1943 = vunpack.c.h.b16 %v1753
    %v1944 = vunpack.c.l.b16 %v1754
    %v1945 = vunpack.c.h.b16 %v1754
    %v1946 = vunpack.c.l.b16 %v1755
    %v1947 = vunpack.c.h.b16 %v1755
    %v1948 = vpack.c.b16 %v1824, %v1820
    %v1949 = vpack.c.b16 %v1825, %v1821
    %v1950 = vpack.c.b16 %v1826, %v1822
    %v1951 = vpack.c.b16 %v1827, %v1823
    %v1952 = vpack.c.b16 %v1832, %v1828
    %v1953 = vpack.c.b16 %v1833, %v1829
    %v1954 = vpack.c.b16 %v1834, %v1830
    %v1955 = vpack.c.b16 %v1835, %v1831
    %v1956 = vpack.c.b16 %v1840, %v1836
    %v1957 = vpack.c.b16 %v1841, %v1837
    %v1958 = vpack.c.b16 %v1842, %v1838
    %v1959 = vpack.c.b16 %v1843, %v1839
    %v1960 = vpack.c.b16 %v1848, %v1844
    %v1961 = vpack.c.b16 %v1849, %v1845
    %v1962 = vpack.c.b16 %v1850, %v1846
    %v1963 = vpack.c.b16 %v1851, %v1847
    %v1964 = vpack.c.b16 %v1856, %v1852
    %v1965 = vpack.c.b16 %v1857, %v1853
    %v1966 = vpack.c.b16 %v1858, %v1854
    %v1967 = vpack.c.b16 %v1859, %v1855
    %v1968 = vpack.c.b16 %v1864, %v1860
    %v1969 = vpack.c.b16 %v1865, %v1861
    %v1970 = vpack.c.b16 %v1866, %v1862
    %v1971 = vpack.c.b16 %v1867, %v1863
    %v1972 = vpack.c.b16 %v1872, %v1868
    %v1973 = vpack.c.b16 %v1873, %v1869
    %v1974 = vpack.c.b16 %v1874, %v1870
    %v1975 = vpack.c.b16 %v1875, %v1871
    %v1976 = vpack.c.b16 %v1880, %v1876
    %v1977 = vpack.c.b16 %v1881, %v1877
    %v1978 = vpack.c.b16 %v1882, %v1878
    %v1979 = vpack.c.b16 %v1883, %v1879
    %v1980 = vpack.c.b16 %v1888, %v1884
    %v1981 = vpack.c.b16 %v1889, %v1885
    %v1982 = vpack.c.b16 %v1890, %v1886
    %v1983 = vpack.c.b16 %v1891, %v1887
    %v1984 = vpack.c.b16 %v1896, %v1892
    %v1985 = vpack.c.b16 %v1897, %v1893
    %v1986 = vpack.c.b16 %v1898, %v1894
    %v1987 = vpack.c.b16 %v1899, %v1895
    %v1988 = vpack.c.b16 %v1904, %v1900
    %v1989 = vpack.c.b16 %v1905, %v1901
    %v1990 = vpack.c.b16 %v1906, %v1902
    %v1991 = vpack.c.b16 %v1907, %v1903
    %v1992 = vpack.c.b16 %v1912, %v1908
    %v1993 = vpack.c.b16 %v1913, %v1909
    %v1994 = vpack.c.b16 %v1914, %v1910
    %v1995 = vpack.c.b16 %v1915, %v1911
    %v1996 = vpack.c.b16 %v1920, %v1916
    %v1997 = vpack.c.b16 %v1921, %v1917
    %v1998 = vpack.c.b16 %v1922, %v1918
    %v1999 = vpack.c.b16 %v1923, %v1919
    %v2000 = vpack.c.b16 %v1928, %v1924
    %v2001 = vpack.c.b16 %v1929, %v1925
    %v2002 = vpack.c.b16 %v1930, %v1926
    %v2003 = vpack.c.b16 %v1931, %v1927
    %v2004 = vpack.c.b16 %v1936, %v1932
    %v2005 = vpack.c.b16 %v1937, %v1933
    %v2006 = vpack.c.b16 %v1938, %v1934
    %v2007 = vpack.c.b16 %v1939, %v1935
    %v2008 = vpack.c.b16 %v1944, %v1940
    %v2009 = vpack.c.b16 %v1945, %v1941
    %v2010 = vpack.c.b16 %v1946, %v1942
    %v2011 = vpack.c.b16 %v1947, %v1943
    %2076 = vmatpush.bf16.msra.mxu0 %v1976
    %2077 = vmatpush.bf16.msra.mxu0 %v1972
    %2078 = vmatpush.bf16.msra.mxu0 %v1968
    %2079 = vmatpush.bf16.msra.mxu0 %v1964
    %2080 = vmatpush.bf16.msra.mxu0 %v1960
    %2081 = vmatpush.bf16.msra.mxu0 %v1956
    %2082 = vmatpush.bf16.msra.mxu0 %v1952
    %2083 = vmatpush.bf16.msra.mxu0 %v1948
    %2084 = vmatmul.bf16.gmra.mxu0 %v455
    %v2085 = vpop.f32.mrf.mxu0
    %v2086 = vadd.f32 0.0, %v2085
    %v2087 = vpop.f32.mrf.mxu0
    %v2088 = vadd.f32 0.0, %v2087
    %2089 = vdwg.mxu0
    %2090 = vmatpush.bf16.msra.mxu0 %v2008
    %2091 = vmatpush.bf16.msra.mxu0 %v2004
    %2092 = vmatpush.bf16.msra.mxu0 %v2000
    %2093 = vmatpush.bf16.msra.mxu0 %v1996
    %2094 = vmatpush.bf16.msra.mxu0 %v1992
    %2095 = vmatpush.bf16.msra.mxu0 %v1988
    %2096 = vmatpush.bf16.msra.mxu0 %v1984
    %2097 = vmatpush.bf16.msra.mxu0 %v1980
    %2098 = vmatmul.bf16.gmra.mxu0 %v456
    %v2099 = vpop.f32.mrf.mxu0
    %v2100 = vadd.f32 %v2086, %v2099
    %v2101 = vpop.f32.mrf.mxu0
    %v2102 = vadd.f32 %v2088, %v2101
    %2103 = vdwg.mxu0
    %2104 = vmatpush.bf16.msra.mxu0 %v1977
    %2105 = vmatpush.bf16.msra.mxu0 %v1973
    %2106 = vmatpush.bf16.msra.mxu0 %v1969
    %2107 = vmatpush.bf16.msra.mxu0 %v1965
    %2108 = vmatpush.bf16.msra.mxu0 %v1961
    %2109 = vmatpush.bf16.msra.mxu0 %v1957
    %2110 = vmatpush.bf16.msra.mxu0 %v1953
    %2111 = vmatpush.bf16.msra.mxu0 %v1949
    %2112 = vmatmul.bf16.gmra.mxu0 %v455
    %v2113 = vpop.f32.mrf.mxu0
    %v2114 = vadd.f32 0.0, %v2113
    %v2115 = vpop.f32.mrf.mxu0
    %v2116 = vadd.f32 0.0, %v2115
    %2117 = vdwg.mxu0
    %2118 = vmatpush.bf16.msra.mxu0 %v2009
    %2119 = vmatpush.bf16.msra.mxu0 %v2005
    %2120 = vmatpush.bf16.msra.mxu0 %v2001
    %2121 = vmatpush.bf16.msra.mxu0 %v1997
    %2122 = vmatpush.bf16.msra.mxu0 %v1993
    %2123 = vmatpush.bf16.msra.mxu0 %v1989
    %2124 = vmatpush.bf16.msra.mxu0 %v1985
    %2125 = vmatpush.bf16.msra.mxu0 %v1981
    %2126 = vmatmul.bf16.gmra.mxu0 %v456
    %v2127 = vpop.f32.mrf.mxu0
    %v2128 = vadd.f32 %v2114, %v2127
    %v2129 = vpop.f32.mrf.mxu0
    %v2130 = vadd.f32 %v2116, %v2129
    %2131 = vdwg.mxu0
    %2132 = vmatpush.bf16.msra.mxu0 %v1978
    %2133 = vmatpush.bf16.msra.mxu0 %v1974
    %2134 = vmatpush.bf16.msra.mxu0 %v1970
    %2135 = vmatpush.bf16.msra.mxu0 %v1966
    %2136 = vmatpush.bf16.msra.mxu0 %v1962
    %2137 = vmatpush.bf16.msra.mxu0 %v1958
    %2138 = vmatpush.bf16.msra.mxu0 %v1954
    %2139 = vmatpush.bf16.msra.mxu0 %v1950
    %2140 = vmatmul.bf16.gmra.mxu0 %v455
    %v2141 = vpop.f32.mrf.mxu0
    %v2142 = vadd.f32 0.0, %v2141
    %v2143 = vpop.f32.mrf.mxu0
    %v2144 = vadd.f32 0.0, %v2143
    %2145 = vdwg.mxu0
    %2146 = vmatpush.bf16.msra.mxu0 %v2010
    %2147 = vmatpush.bf16.msra.mxu0 %v2006
    %2148 = vmatpush.bf16.msra.mxu0 %v2002
    %2149 = vmatpush.bf16.msra.mxu0 %v1998
    %2150 = vmatpush.bf16.msra.mxu0 %v1994
    %2151 = vmatpush.bf16.msra.mxu0 %v1990
    %2152 = vmatpush.bf16.msra.mxu0 %v1986
    %2153 = vmatpush.bf16.msra.mxu0 %v1982
    %2154 = vmatmul.bf16.gmra.mxu0 %v456
    %v2155 = vpop.f32.mrf.mxu0
    %v2156 = vadd.f32 %v2142, %v2155
    %v2157 = vpop.f32.mrf.mxu0
    %v2158 = vadd.f32 %v2144, %v2157
    %2159 = vdwg.mxu0
    %2160 = vmatpush.bf16.msra.mxu0 %v1979
    %2161 = vmatpush.bf16.msra.mxu0 %v1975
    %2162 = vmatpush.bf16.msra.mxu0 %v1971
    %2163 = vmatpush.bf16.msra.mxu0 %v1967
    %2164 = vmatpush.bf16.msra.mxu0 %v1963
    %2165 = vmatpush.bf16.msra.mxu0 %v1959
    %2166 = vmatpush.bf16.msra.mxu0 %v1955
    %2167 = vmatpush.bf16.msra.mxu0 %v1951
    %2168 = vmatmul.bf16.gmra.mxu0 %v455
    %v2169 = vpop.f32.mrf.mxu0
    %v2170 = vadd.f32 0.0, %v2169
    %v2171 = vpop.f32.mrf.mxu0
    %v2172 = vadd.f32 0.0, %v2171
    %2173 = vdwg.mxu0
    %2174 = vmatpush.bf16.msra.mxu0 %v2011
    %2175 = vmatpush.bf16.msra.mxu0 %v2007
    %2176 = vmatpush.bf16.msra.mxu0 %v2003
    %2177 = vmatpush.bf16.msra.mxu0 %v1999
    %2178 = vmatpush.bf16.msra.mxu0 %v1995
    %2179 = vmatpush.bf16.msra.mxu0 %v1991
    %2180 = vmatpush.bf16.msra.mxu0 %v1987
    %2181 = vmatpush.bf16.msra.mxu0 %v1983
    %2182 = vmatmul.bf16.gmra.mxu0 %v456
    %v2183 = vpop.f32.mrf.mxu0
    %v2184 = vadd.f32 %v2170, %v2183
    %v2185 = vpop.f32.mrf.mxu0
    %v2186 = vadd.f32 %v2172, %v2185
    %2187 = vdwg.mxu0
    %v2188 = vadd.f32 %v1683, %v2100
    %v2189 = vadd.f32 %v1684, %v2128
    %v2190 = vadd.f32 %v1685, %v2156
    %v2191 = vadd.f32 %v1686, %v2184
    %v2192 = vadd.f32 %v1687, %v2102
    %v2193 = vadd.f32 %v1688, %v2130
    %v2194 = vadd.f32 %v1689, %v2158
    %v2195 = vadd.f32 %v1690, %v2186
    %s2196 = scalar_lea.vmem [#allocation6], 1536
    %v2197 = vld [vmem:[%s2196] sm:$0xff]
    %v2198 = vld [vmem:[%s2196 + $0x8] sm:$0xff]
    %v2199 = vld [vmem:[%s2196 + $0x10] sm:$0xff]
    %v2200 = vld [vmem:[%s2196 + $0x18] sm:$0xff]
    %v2201 = vld [vmem:[%s2196 + $0x20] sm:$0xff]
    %v2202 = vld [vmem:[%s2196 + $0x28] sm:$0xff]
    %v2203 = vld [vmem:[%s2196 + $0x30] sm:$0xff]
    %v2204 = vld [vmem:[%s2196 + $0x38] sm:$0xff]
    %v2205 = vld [vmem:[%s2196 + $0x40] sm:$0xff]
    %v2206 = vld [vmem:[%s2196 + $0x48] sm:$0xff]
    %v2207 = vld [vmem:[%s2196 + $0x50] sm:$0xff]
    %v2208 = vld [vmem:[%s2196 + $0x58] sm:$0xff]
    %v2209 = vld [vmem:[%s2196 + $0x60] sm:$0xff]
    %v2210 = vld [vmem:[%s2196 + $0x68] sm:$0xff]
    %v2211 = vld [vmem:[%s2196 + $0x70] sm:$0xff]
    %v2212 = vld [vmem:[%s2196 + $0x78] sm:$0xff]
    %v2213 = vld [vmem:[%s2196 + $0x80] sm:$0xff]
    %v2214 = vld [vmem:[%s2196 + $0x88] sm:$0xff]
    %v2215 = vld [vmem:[%s2196 + $0x90] sm:$0xff]
    %v2216 = vld [vmem:[%s2196 + $0x98] sm:$0xff]
    %v2217 = vld [vmem:[%s2196 + $0xa0] sm:$0xff]
    %v2218 = vld [vmem:[%s2196 + $0xa8] sm:$0xff]
    %v2219 = vld [vmem:[%s2196 + $0xb0] sm:$0xff]
    %v2220 = vld [vmem:[%s2196 + $0xb8] sm:$0xff]
    %v2221 = vld [vmem:[%s2196 + $0xc0] sm:$0xff]
    %v2222 = vld [vmem:[%s2196 + $0xc8] sm:$0xff]
    %v2223 = vld [vmem:[%s2196 + $0xd0] sm:$0xff]
    %v2224 = vld [vmem:[%s2196 + $0xd8] sm:$0xff]
    %v2225 = vld [vmem:[%s2196 + $0xe0] sm:$0xff]
    %v2226 = vld [vmem:[%s2196 + $0xe8] sm:$0xff]
    %v2227 = vld [vmem:[%s2196 + $0xf0] sm:$0xff]
    %v2228 = vld [vmem:[%s2196 + $0xf8] sm:$0xff]
    %v2229 = vld [vmem:[%s2196 + $0x100] sm:$0xff]
    %v2230 = vld [vmem:[%s2196 + $0x108] sm:$0xff]
    %v2231 = vld [vmem:[%s2196 + $0x110] sm:$0xff]
    %v2232 = vld [vmem:[%s2196 + $0x118] sm:$0xff]
    %v2233 = vld [vmem:[%s2196 + $0x120] sm:$0xff]
    %v2234 = vld [vmem:[%s2196 + $0x128] sm:$0xff]
    %v2235 = vld [vmem:[%s2196 + $0x130] sm:$0xff]
    %v2236 = vld [vmem:[%s2196 + $0x138] sm:$0xff]
    %v2237 = vld [vmem:[%s2196 + $0x140] sm:$0xff]
    %v2238 = vld [vmem:[%s2196 + $0x148] sm:$0xff]
    %v2239 = vld [vmem:[%s2196 + $0x150] sm:$0xff]
    %v2240 = vld [vmem:[%s2196 + $0x158] sm:$0xff]
    %v2241 = vld [vmem:[%s2196 + $0x160] sm:$0xff]
    %v2242 = vld [vmem:[%s2196 + $0x168] sm:$0xff]
    %v2243 = vld [vmem:[%s2196 + $0x170] sm:$0xff]
    %v2244 = vld [vmem:[%s2196 + $0x178] sm:$0xff]
    %v2245 = vld [vmem:[%s2196 + $0x180] sm:$0xff]
    %v2246 = vld [vmem:[%s2196 + $0x188] sm:$0xff]
    %v2247 = vld [vmem:[%s2196 + $0x190] sm:$0xff]
    %v2248 = vld [vmem:[%s2196 + $0x198] sm:$0xff]
    %v2249 = vld [vmem:[%s2196 + $0x1a0] sm:$0xff]
    %v2250 = vld [vmem:[%s2196 + $0x1a8] sm:$0xff]
    %v2251 = vld [vmem:[%s2196 + $0x1b0] sm:$0xff]
    %v2252 = vld [vmem:[%s2196 + $0x1b8] sm:$0xff]
    %v2253 = vld [vmem:[%s2196 + $0x1c0] sm:$0xff]
    %v2254 = vld [vmem:[%s2196 + $0x1c8] sm:$0xff]
    %v2255 = vld [vmem:[%s2196 + $0x1d0] sm:$0xff]
    %v2256 = vld [vmem:[%s2196 + $0x1d8] sm:$0xff]
    %v2257 = vld [vmem:[%s2196 + $0x1e0] sm:$0xff]
    %v2258 = vld [vmem:[%s2196 + $0x1e8] sm:$0xff]
    %v2259 = vld [vmem:[%s2196 + $0x1f0] sm:$0xff]
    %v2260 = vld [vmem:[%s2196 + $0x1f8] sm:$0xff]
    %v2325 = vunpack.c.l.b16 %v2197
    %v2326 = vunpack.c.h.b16 %v2197
    %v2327 = vunpack.c.l.b16 %v2198
    %v2328 = vunpack.c.h.b16 %v2198
    %v2329 = vunpack.c.l.b16 %v2199
    %v2330 = vunpack.c.h.b16 %v2199
    %v2331 = vunpack.c.l.b16 %v2200
    %v2332 = vunpack.c.h.b16 %v2200
    %v2333 = vunpack.c.l.b16 %v2201
    %v2334 = vunpack.c.h.b16 %v2201
    %v2335 = vunpack.c.l.b16 %v2202
    %v2336 = vunpack.c.h.b16 %v2202
    %v2337 = vunpack.c.l.b16 %v2203
    %v2338 = vunpack.c.h.b16 %v2203
    %v2339 = vunpack.c.l.b16 %v2204
    %v2340 = vunpack.c.h.b16 %v2204
    %v2341 = vunpack.c.l.b16 %v2205
    %v2342 = vunpack.c.h.b16 %v2205
    %v2343 = vunpack.c.l.b16 %v2206
    %v2344 = vunpack.c.h.b16 %v2206
    %v2345 = vunpack.c.l.b16 %v2207
    %v2346 = vunpack.c.h.b16 %v2207
    %v2347 = vunpack.c.l.b16 %v2208
    %v2348 = vunpack.c.h.b16 %v2208
    %v2349 = vunpack.c.l.b16 %v2209
    %v2350 = vunpack.c.h.b16 %v2209
    %v2351 = vunpack.c.l.b16 %v2210
    %v2352 = vunpack.c.h.b16 %v2210
    %v2353 = vunpack.c.l.b16 %v2211
    %v2354 = vunpack.c.h.b16 %v2211
    %v2355 = vunpack.c.l.b16 %v2212
    %v2356 = vunpack.c.h.b16 %v2212
    %v2357 = vunpack.c.l.b16 %v2213
    %v2358 = vunpack.c.h.b16 %v2213
    %v2359 = vunpack.c.l.b16 %v2214
    %v2360 = vunpack.c.h.b16 %v2214
    %v2361 = vunpack.c.l.b16 %v2215
    %v2362 = vunpack.c.h.b16 %v2215
    %v2363 = vunpack.c.l.b16 %v2216
    %v2364 = vunpack.c.h.b16 %v2216
    %v2365 = vunpack.c.l.b16 %v2217
    %v2366 = vunpack.c.h.b16 %v2217
    %v2367 = vunpack.c.l.b16 %v2218
    %v2368 = vunpack.c.h.b16 %v2218
    %v2369 = vunpack.c.l.b16 %v2219
    %v2370 = vunpack.c.h.b16 %v2219
    %v2371 = vunpack.c.l.b16 %v2220
    %v2372 = vunpack.c.h.b16 %v2220
    %v2373 = vunpack.c.l.b16 %v2221
    %v2374 = vunpack.c.h.b16 %v2221
    %v2375 = vunpack.c.l.b16 %v2222
    %v2376 = vunpack.c.h.b16 %v2222
    %v2377 = vunpack.c.l.b16 %v2223
    %v2378 = vunpack.c.h.b16 %v2223
    %v2379 = vunpack.c.l.b16 %v2224
    %v2380 = vunpack.c.h.b16 %v2224
    %v2381 = vunpack.c.l.b16 %v2225
    %v2382 = vunpack.c.h.b16 %v2225
    %v2383 = vunpack.c.l.b16 %v2226
    %v2384 = vunpack.c.h.b16 %v2226
    %v2385 = vunpack.c.l.b16 %v2227
    %v2386 = vunpack.c.h.b16 %v2227
    %v2387 = vunpack.c.l.b16 %v2228
    %v2388 = vunpack.c.h.b16 %v2228
    %v2389 = vunpack.c.l.b16 %v2229
    %v2390 = vunpack.c.h.b16 %v2229
    %v2391 = vunpack.c.l.b16 %v2230
    %v2392 = vunpack.c.h.b16 %v2230
    %v2393 = vunpack.c.l.b16 %v2231
    %v2394 = vunpack.c.h.b16 %v2231
    %v2395 = vunpack.c.l.b16 %v2232
    %v2396 = vunpack.c.h.b16 %v2232
    %v2397 = vunpack.c.l.b16 %v2233
    %v2398 = vunpack.c.h.b16 %v2233
    %v2399 = vunpack.c.l.b16 %v2234
    %v2400 = vunpack.c.h.b16 %v2234
    %v2401 = vunpack.c.l.b16 %v2235
    %v2402 = vunpack.c.h.b16 %v2235
    %v2403 = vunpack.c.l.b16 %v2236
    %v2404 = vunpack.c.h.b16 %v2236
    %v2405 = vunpack.c.l.b16 %v2237
    %v2406 = vunpack.c.h.b16 %v2237
    %v2407 = vunpack.c.l.b16 %v2238
    %v2408 = vunpack.c.h.b16 %v2238
    %v2409 = vunpack.c.l.b16 %v2239
    %v2410 = vunpack.c.h.b16 %v2239
    %v2411 = vunpack.c.l.b16 %v2240
    %v2412 = vunpack.c.h.b16 %v2240
    %v2413 = vunpack.c.l.b16 %v2241
    %v2414 = vunpack.c.h.b16 %v2241
    %v2415 = vunpack.c.l.b16 %v2242
    %v2416 = vunpack.c.h.b16 %v2242
    %v2417 = vunpack.c.l.b16 %v2243
    %v2418 = vunpack.c.h.b16 %v2243
    %v2419 = vunpack.c.l.b16 %v2244
    %v2420 = vunpack.c.h.b16 %v2244
    %v2421 = vunpack.c.l.b16 %v2245
    %v2422 = vunpack.c.h.b16 %v2245
    %v2423 = vunpack.c.l.b16 %v2246
    %v2424 = vunpack.c.h.b16 %v2246
    %v2425 = vunpack.c.l.b16 %v2247
    %v2426 = vunpack.c.h.b16 %v2247
    %v2427 = vunpack.c.l.b16 %v2248
    %v2428 = vunpack.c.h.b16 %v2248
    %v2429 = vunpack.c.l.b16 %v2249
    %v2430 = vunpack.c.h.b16 %v2249
    %v2431 = vunpack.c.l.b16 %v2250
    %v2432 = vunpack.c.h.b16 %v2250
    %v2433 = vunpack.c.l.b16 %v2251
    %v2434 = vunpack.c.h.b16 %v2251
    %v2435 = vunpack.c.l.b16 %v2252
    %v2436 = vunpack.c.h.b16 %v2252
    %v2437 = vunpack.c.l.b16 %v2253
    %v2438 = vunpack.c.h.b16 %v2253
    %v2439 = vunpack.c.l.b16 %v2254
    %v2440 = vunpack.c.h.b16 %v2254
    %v2441 = vunpack.c.l.b16 %v2255
    %v2442 = vunpack.c.h.b16 %v2255
    %v2443 = vunpack.c.l.b16 %v2256
    %v2444 = vunpack.c.h.b16 %v2256
    %v2445 = vunpack.c.l.b16 %v2257
    %v2446 = vunpack.c.h.b16 %v2257
    %v2447 = vunpack.c.l.b16 %v2258
    %v2448 = vunpack.c.h.b16 %v2258
    %v2449 = vunpack.c.l.b16 %v2259
    %v2450 = vunpack.c.h.b16 %v2259
    %v2451 = vunpack.c.l.b16 %v2260
    %v2452 = vunpack.c.h.b16 %v2260
    %v2453 = vpack.c.b16 %v2329, %v2325
    %v2454 = vpack.c.b16 %v2330, %v2326
    %v2455 = vpack.c.b16 %v2331, %v2327
    %v2456 = vpack.c.b16 %v2332, %v2328
    %v2457 = vpack.c.b16 %v2337, %v2333
    %v2458 = vpack.c.b16 %v2338, %v2334
    %v2459 = vpack.c.b16 %v2339, %v2335
    %v2460 = vpack.c.b16 %v2340, %v2336
    %v2461 = vpack.c.b16 %v2345, %v2341
    %v2462 = vpack.c.b16 %v2346, %v2342
    %v2463 = vpack.c.b16 %v2347, %v2343
    %v2464 = vpack.c.b16 %v2348, %v2344
    %v2465 = vpack.c.b16 %v2353, %v2349
    %v2466 = vpack.c.b16 %v2354, %v2350
    %v2467 = vpack.c.b16 %v2355, %v2351
    %v2468 = vpack.c.b16 %v2356, %v2352
    %v2469 = vpack.c.b16 %v2361, %v2357
    %v2470 = vpack.c.b16 %v2362, %v2358
    %v2471 = vpack.c.b16 %v2363, %v2359
    %v2472 = vpack.c.b16 %v2364, %v2360
    %v2473 = vpack.c.b16 %v2369, %v2365
    %v2474 = vpack.c.b16 %v2370, %v2366
    %v2475 = vpack.c.b16 %v2371, %v2367
    %v2476 = vpack.c.b16 %v2372, %v2368
    %v2477 = vpack.c.b16 %v2377, %v2373
    %v2478 = vpack.c.b16 %v2378, %v2374
    %v2479 = vpack.c.b16 %v2379, %v2375
    %v2480 = vpack.c.b16 %v2380, %v2376
    %v2481 = vpack.c.b16 %v2385, %v2381
    %v2482 = vpack.c.b16 %v2386, %v2382
    %v2483 = vpack.c.b16 %v2387, %v2383
    %v2484 = vpack.c.b16 %v2388, %v2384
    %v2485 = vpack.c.b16 %v2393, %v2389
    %v2486 = vpack.c.b16 %v2394, %v2390
    %v2487 = vpack.c.b16 %v2395, %v2391
    %v2488 = vpack.c.b16 %v2396, %v2392
    %v2489 = vpack.c.b16 %v2401, %v2397
    %v2490 = vpack.c.b16 %v2402, %v2398
    %v2491 = vpack.c.b16 %v2403, %v2399
    %v2492 = vpack.c.b16 %v2404, %v2400
    %v2493 = vpack.c.b16 %v2409, %v2405
    %v2494 = vpack.c.b16 %v2410, %v2406
    %v2495 = vpack.c.b16 %v2411, %v2407
    %v2496 = vpack.c.b16 %v2412, %v2408
    %v2497 = vpack.c.b16 %v2417, %v2413
    %v2498 = vpack.c.b16 %v2418, %v2414
    %v2499 = vpack.c.b16 %v2419, %v2415
    %v2500 = vpack.c.b16 %v2420, %v2416
    %v2501 = vpack.c.b16 %v2425, %v2421
    %v2502 = vpack.c.b16 %v2426, %v2422
    %v2503 = vpack.c.b16 %v2427, %v2423
    %v2504 = vpack.c.b16 %v2428, %v2424
    %v2505 = vpack.c.b16 %v2433, %v2429
    %v2506 = vpack.c.b16 %v2434, %v2430
    %v2507 = vpack.c.b16 %v2435, %v2431
    %v2508 = vpack.c.b16 %v2436, %v2432
    %v2509 = vpack.c.b16 %v2441, %v2437
    %v2510 = vpack.c.b16 %v2442, %v2438
    %v2511 = vpack.c.b16 %v2443, %v2439
    %v2512 = vpack.c.b16 %v2444, %v2440
    %v2513 = vpack.c.b16 %v2449, %v2445
    %v2514 = vpack.c.b16 %v2450, %v2446
    %v2515 = vpack.c.b16 %v2451, %v2447
    %v2516 = vpack.c.b16 %v2452, %v2448
    %2581 = vmatpush.bf16.msra.mxu0 %v2481
    %2582 = vmatpush.bf16.msra.mxu0 %v2477
    %2583 = vmatpush.bf16.msra.mxu0 %v2473
    %2584 = vmatpush.bf16.msra.mxu0 %v2469
    %2585 = vmatpush.bf16.msra.mxu0 %v2465
    %2586 = vmatpush.bf16.msra.mxu0 %v2461
    %2587 = vmatpush.bf16.msra.mxu0 %v2457
    %2588 = vmatpush.bf16.msra.mxu0 %v2453
    %2589 = vmatmul.bf16.gmra.mxu0 %v498
    %v2590 = vpop.f32.mrf.mxu0
    %v2591 = vadd.f32 0.0, %v2590
    %v2592 = vpop.f32.mrf.mxu0
    %v2593 = vadd.f32 0.0, %v2592
    %2594 = vdwg.mxu0
    %2595 = vmatpush.bf16.msra.mxu0 %v2513
    %2596 = vmatpush.bf16.msra.mxu0 %v2509
    %2597 = vmatpush.bf16.msra.mxu0 %v2505
    %2598 = vmatpush.bf16.msra.mxu0 %v2501
    %2599 = vmatpush.bf16.msra.mxu0 %v2497
    %2600 = vmatpush.bf16.msra.mxu0 %v2493
    %2601 = vmatpush.bf16.msra.mxu0 %v2489
    %2602 = vmatpush.bf16.msra.mxu0 %v2485
    %2603 = vmatmul.bf16.gmra.mxu0 %v499
    %v2604 = vpop.f32.mrf.mxu0
    %v2605 = vadd.f32 %v2591, %v2604
    %v2606 = vpop.f32.mrf.mxu0
    %v2607 = vadd.f32 %v2593, %v2606
    %2608 = vdwg.mxu0
    %2609 = vmatpush.bf16.msra.mxu0 %v2482
    %2610 = vmatpush.bf16.msra.mxu0 %v2478
    %2611 = vmatpush.bf16.msra.mxu0 %v2474
    %2612 = vmatpush.bf16.msra.mxu0 %v2470
    %2613 = vmatpush.bf16.msra.mxu0 %v2466
    %2614 = vmatpush.bf16.msra.mxu0 %v2462
    %2615 = vmatpush.bf16.msra.mxu0 %v2458
    %2616 = vmatpush.bf16.msra.mxu0 %v2454
    %2617 = vmatmul.bf16.gmra.mxu0 %v498
    %v2618 = vpop.f32.mrf.mxu0
    %v2619 = vadd.f32 0.0, %v2618
    %v2620 = vpop.f32.mrf.mxu0
    %v2621 = vadd.f32 0.0, %v2620
    %2622 = vdwg.mxu0
    %2623 = vmatpush.bf16.msra.mxu0 %v2514
    %2624 = vmatpush.bf16.msra.mxu0 %v2510
    %2625 = vmatpush.bf16.msra.mxu0 %v2506
    %2626 = vmatpush.bf16.msra.mxu0 %v2502
    %2627 = vmatpush.bf16.msra.mxu0 %v2498
    %2628 = vmatpush.bf16.msra.mxu0 %v2494
    %2629 = vmatpush.bf16.msra.mxu0 %v2490
    %2630 = vmatpush.bf16.msra.mxu0 %v2486
    %2631 = vmatmul.bf16.gmra.mxu0 %v499
    %v2632 = vpop.f32.mrf.mxu0
    %v2633 = vadd.f32 %v2619, %v2632
    %v2634 = vpop.f32.mrf.mxu0
    %v2635 = vadd.f32 %v2621, %v2634
    %2636 = vdwg.mxu0
    %2637 = vmatpush.bf16.msra.mxu0 %v2483
    %2638 = vmatpush.bf16.msra.mxu0 %v2479
    %2639 = vmatpush.bf16.msra.mxu0 %v2475
    %2640 = vmatpush.bf16.msra.mxu0 %v2471
    %2641 = vmatpush.bf16.msra.mxu0 %v2467
    %2642 = vmatpush.bf16.msra.mxu0 %v2463
    %2643 = vmatpush.bf16.msra.mxu0 %v2459
    %2644 = vmatpush.bf16.msra.mxu0 %v2455
    %2645 = vmatmul.bf16.gmra.mxu0 %v498
    %v2646 = vpop.f32.mrf.mxu0
    %v2647 = vadd.f32 0.0, %v2646
    %v2648 = vpop.f32.mrf.mxu0
    %v2649 = vadd.f32 0.0, %v2648
    %2650 = vdwg.mxu0
    %2651 = vmatpush.bf16.msra.mxu0 %v2515
    %2652 = vmatpush.bf16.msra.mxu0 %v2511
    %2653 = vmatpush.bf16.msra.mxu0 %v2507
    %2654 = vmatpush.bf16.msra.mxu0 %v2503
    %2655 = vmatpush.bf16.msra.mxu0 %v2499
    %2656 = vmatpush.bf16.msra.mxu0 %v2495
    %2657 = vmatpush.bf16.msra.mxu0 %v2491
    %2658 = vmatpush.bf16.msra.mxu0 %v2487
    %2659 = vmatmul.bf16.gmra.mxu0 %v499
    %v2660 = vpop.f32.mrf.mxu0
    %v2661 = vadd.f32 %v2647, %v2660
    %v2662 = vpop.f32.mrf.mxu0
    %v2663 = vadd.f32 %v2649, %v2662
    %2664 = vdwg.mxu0
    %2665 = vmatpush.bf16.msra.mxu0 %v2484
    %2666 = vmatpush.bf16.msra.mxu0 %v2480
    %2667 = vmatpush.bf16.msra.mxu0 %v2476
    %2668 = vmatpush.bf16.msra.mxu0 %v2472
    %2669 = vmatpush.bf16.msra.mxu0 %v2468
    %2670 = vmatpush.bf16.msra.mxu0 %v2464
    %2671 = vmatpush.bf16.msra.mxu0 %v2460
    %2672 = vmatpush.bf16.msra.mxu0 %v2456
    %2673 = vmatmul.bf16.gmra.mxu0 %v498
    %v2674 = vpop.f32.mrf.mxu0
    %v2675 = vadd.f32 0.0, %v2674
    %v2676 = vpop.f32.mrf.mxu0
    %v2677 = vadd.f32 0.0, %v2676
    %2678 = vdwg.mxu0
    %2679 = vmatpush.bf16.msra.mxu0 %v2516
    %2680 = vmatpush.bf16.msra.mxu0 %v2512
    %2681 = vmatpush.bf16.msra.mxu0 %v2508
    %2682 = vmatpush.bf16.msra.mxu0 %v2504
    %2683 = vmatpush.bf16.msra.mxu0 %v2500
    %2684 = vmatpush.bf16.msra.mxu0 %v2496
    %2685 = vmatpush.bf16.msra.mxu0 %v2492
    %2686 = vmatpush.bf16.msra.mxu0 %v2488
    %2687 = vmatmul.bf16.gmra.mxu0 %v499
    %v2688 = vpop.f32.mrf.mxu0
    %v2689 = vadd.f32 %v2675, %v2688
    %v2690 = vpop.f32.mrf.mxu0
    %v2691 = vadd.f32 %v2677, %v2690
    %2692 = vdwg.mxu0
    %v2693 = vadd.f32 %v2188, %v2605
    %v2694 = vadd.f32 %v2189, %v2633
    %v2695 = vadd.f32 %v2190, %v2661
    %v2696 = vadd.f32 %v2191, %v2689
    %v2697 = vadd.f32 %v2192, %v2607
    %v2698 = vadd.f32 %v2193, %v2635
    %v2699 = vadd.f32 %v2194, %v2663
    %v2700 = vadd.f32 %v2195, %v2691
    %v2701 = vmax.f32 %v2693, 0.0
    %v2702 = vmax.f32 %v2694, 0.0
    %v2703 = vmax.f32 %v2695, 0.0
    %v2704 = vmax.f32 %v2696, 0.0
    %v2705 = vmax.f32 %v2697, 0.0
    %v2706 = vmax.f32 %v2698, 0.0
    %v2707 = vmax.f32 %v2699, 0.0
    %v2708 = vmax.f32 %v2700, 0.0
    %v2709 = vpack.c.bf16 %v2705, %v2701
    %v2710 = vpack.c.bf16 %v2706, %v2702
    %v2711 = vpack.c.bf16 %v2707, %v2703
    %v2712 = vpack.c.bf16 %v2708, %v2704
    %2713 = vmatpush.bf16.msra.mxu0 %v957
    %2714 = vmatpush.bf16.msra.mxu0 %v953
    %2715 = vmatpush.bf16.msra.mxu0 %v949
    %2716 = vmatpush.bf16.msra.mxu0 %v945
    %2717 = vmatpush.bf16.msra.mxu0 %v941
    %2718 = vmatpush.bf16.msra.mxu0 %v937
    %2719 = vmatpush.bf16.msra.mxu0 %v933
    %2720 = vmatpush.bf16.msra.mxu0 %v929
    %2721 = vmatmul.bf16.gmra.mxu0 %v369
    %v2722 = vpop.f32.mrf.mxu0
    %v2723 = vadd.f32 0.0, %v2722
    %v2724 = vpop.f32.mrf.mxu0
    %v2725 = vadd.f32 0.0, %v2724
    %2726 = vdwg.mxu0
    %2727 = vmatpush.bf16.msra.mxu0 %v989
    %2728 = vmatpush.bf16.msra.mxu0 %v985
    %2729 = vmatpush.bf16.msra.mxu0 %v981
    %2730 = vmatpush.bf16.msra.mxu0 %v977
    %2731 = vmatpush.bf16.msra.mxu0 %v973
    %2732 = vmatpush.bf16.msra.mxu0 %v969
    %2733 = vmatpush.bf16.msra.mxu0 %v965
    %2734 = vmatpush.bf16.msra.mxu0 %v961
    %2735 = vmatmul.bf16.gmra.mxu0 %v370
    %v2736 = vpop.f32.mrf.mxu0
    %v2737 = vadd.f32 %v2723, %v2736
    %v2738 = vpop.f32.mrf.mxu0
    %v2739 = vadd.f32 %v2725, %v2738
    %2740 = vdwg.mxu0
    %2741 = vmatpush.bf16.msra.mxu0 %v958
    %2742 = vmatpush.bf16.msra.mxu0 %v954
    %2743 = vmatpush.bf16.msra.mxu0 %v950
    %2744 = vmatpush.bf16.msra.mxu0 %v946
    %2745 = vmatpush.bf16.msra.mxu0 %v942
    %2746 = vmatpush.bf16.msra.mxu0 %v938
    %2747 = vmatpush.bf16.msra.mxu0 %v934
    %2748 = vmatpush.bf16.msra.mxu0 %v930
    %2749 = vmatmul.bf16.gmra.mxu0 %v369
    %v2750 = vpop.f32.mrf.mxu0
    %v2751 = vadd.f32 0.0, %v2750
    %v2752 = vpop.f32.mrf.mxu0
    %v2753 = vadd.f32 0.0, %v2752
    %2754 = vdwg.mxu0
    %2755 = vmatpush.bf16.msra.mxu0 %v990
    %2756 = vmatpush.bf16.msra.mxu0 %v986
    %2757 = vmatpush.bf16.msra.mxu0 %v982
    %2758 = vmatpush.bf16.msra.mxu0 %v978
    %2759 = vmatpush.bf16.msra.mxu0 %v974
    %2760 = vmatpush.bf16.msra.mxu0 %v970
    %2761 = vmatpush.bf16.msra.mxu0 %v966
    %2762 = vmatpush.bf16.msra.mxu0 %v962
    %2763 = vmatmul.bf16.gmra.mxu0 %v370
    %v2764 = vpop.f32.mrf.mxu0
    %v2765 = vadd.f32 %v2751, %v2764
    %v2766 = vpop.f32.mrf.mxu0
    %v2767 = vadd.f32 %v2753, %v2766
    %2768 = vdwg.mxu0
    %2769 = vmatpush.bf16.msra.mxu0 %v959
    %2770 = vmatpush.bf16.msra.mxu0 %v955
    %2771 = vmatpush.bf16.msra.mxu0 %v951
    %2772 = vmatpush.bf16.msra.mxu0 %v947
    %2773 = vmatpush.bf16.msra.mxu0 %v943
    %2774 = vmatpush.bf16.msra.mxu0 %v939
    %2775 = vmatpush.bf16.msra.mxu0 %v935
    %2776 = vmatpush.bf16.msra.mxu0 %v931
    %2777 = vmatmul.bf16.gmra.mxu0 %v369
    %v2778 = vpop.f32.mrf.mxu0
    %v2779 = vadd.f32 0.0, %v2778
    %v2780 = vpop.f32.mrf.mxu0
    %v2781 = vadd.f32 0.0, %v2780
    %2782 = vdwg.mxu0
    %2783 = vmatpush.bf16.msra.mxu0 %v991
    %2784 = vmatpush.bf16.msra.mxu0 %v987
    %2785 = vmatpush.bf16.msra.mxu0 %v983
    %2786 = vmatpush.bf16.msra.mxu0 %v979
    %2787 = vmatpush.bf16.msra.mxu0 %v975
    %2788 = vmatpush.bf16.msra.mxu0 %v971
    %2789 = vmatpush.bf16.msra.mxu0 %v967
    %2790 = vmatpush.bf16.msra.mxu0 %v963
    %2791 = vmatmul.bf16.gmra.mxu0 %v370
    %v2792 = vpop.f32.mrf.mxu0
    %v2793 = vadd.f32 %v2779, %v2792
    %v2794 = vpop.f32.mrf.mxu0
    %v2795 = vadd.f32 %v2781, %v2794
    %2796 = vdwg.mxu0
    %2797 = vmatpush.bf16.msra.mxu0 %v960
    %2798 = vmatpush.bf16.msra.mxu0 %v956
    %2799 = vmatpush.bf16.msra.mxu0 %v952
    %2800 = vmatpush.bf16.msra.mxu0 %v948
    %2801 = vmatpush.bf16.msra.mxu0 %v944
    %2802 = vmatpush.bf16.msra.mxu0 %v940
    %2803 = vmatpush.bf16.msra.mxu0 %v936
    %2804 = vmatpush.bf16.msra.mxu0 %v932
    %2805 = vmatmul.bf16.gmra.mxu0 %v369
    %v2806 = vpop.f32.mrf.mxu0
    %v2807 = vadd.f32 0.0, %v2806
    %v2808 = vpop.f32.mrf.mxu0
    %v2809 = vadd.f32 0.0, %v2808
    %2810 = vdwg.mxu0
    %2811 = vmatpush.bf16.msra.mxu0 %v992
    %2812 = vmatpush.bf16.msra.mxu0 %v988
    %2813 = vmatpush.bf16.msra.mxu0 %v984
    %2814 = vmatpush.bf16.msra.mxu0 %v980
    %2815 = vmatpush.bf16.msra.mxu0 %v976
    %2816 = vmatpush.bf16.msra.mxu0 %v972
    %2817 = vmatpush.bf16.msra.mxu0 %v968
    %2818 = vmatpush.bf16.msra.mxu0 %v964
    %2819 = vmatmul.bf16.gmra.mxu0 %v370
    %v2820 = vpop.f32.mrf.mxu0
    %v2821 = vadd.f32 %v2807, %v2820
    %v2822 = vpop.f32.mrf.mxu0
    %v2823 = vadd.f32 %v2809, %v2822
    %2824 = vdwg.mxu0
    %v2825 = vadd.f32 %v1170, %v2737
    %v2826 = vadd.f32 %v1171, %v2765
    %v2827 = vadd.f32 %v1172, %v2793
    %v2828 = vadd.f32 %v1173, %v2821
    %v2829 = vadd.f32 %v1170, %v2739
    %v2830 = vadd.f32 %v1171, %v2767
    %v2831 = vadd.f32 %v1172, %v2795
    %v2832 = vadd.f32 %v1173, %v2823
    %2833 = vmatpush.bf16.msra.mxu0 %v1471
    %2834 = vmatpush.bf16.msra.mxu0 %v1467
    %2835 = vmatpush.bf16.msra.mxu0 %v1463
    %2836 = vmatpush.bf16.msra.mxu0 %v1459
    %2837 = vmatpush.bf16.msra.mxu0 %v1455
    %2838 = vmatpush.bf16.msra.mxu0 %v1451
    %2839 = vmatpush.bf16.msra.mxu0 %v1447
    %2840 = vmatpush.bf16.msra.mxu0 %v1443
    %2841 = vmatmul.bf16.gmra.mxu0 %v412
    %v2842 = vpop.f32.mrf.mxu0
    %v2843 = vadd.f32 0.0, %v2842
    %v2844 = vpop.f32.mrf.mxu0
    %v2845 = vadd.f32 0.0, %v2844
    %2846 = vdwg.mxu0
    %2847 = vmatpush.bf16.msra.mxu0 %v1503
    %2848 = vmatpush.bf16.msra.mxu0 %v1499
    %2849 = vmatpush.bf16.msra.mxu0 %v1495
    %2850 = vmatpush.bf16.msra.mxu0 %v1491
    %2851 = vmatpush.bf16.msra.mxu0 %v1487
    %2852 = vmatpush.bf16.msra.mxu0 %v1483
    %2853 = vmatpush.bf16.msra.mxu0 %v1479
    %2854 = vmatpush.bf16.msra.mxu0 %v1475
    %2855 = vmatmul.bf16.gmra.mxu0 %v413
    %v2856 = vpop.f32.mrf.mxu0
    %v2857 = vadd.f32 %v2843, %v2856
    %v2858 = vpop.f32.mrf.mxu0
    %v2859 = vadd.f32 %v2845, %v2858
    %2860 = vdwg.mxu0
    %2861 = vmatpush.bf16.msra.mxu0 %v1472
    %2862 = vmatpush.bf16.msra.mxu0 %v1468
    %2863 = vmatpush.bf16.msra.mxu0 %v1464
    %2864 = vmatpush.bf16.msra.mxu0 %v1460
    %2865 = vmatpush.bf16.msra.mxu0 %v1456
    %2866 = vmatpush.bf16.msra.mxu0 %v1452
    %2867 = vmatpush.bf16.msra.mxu0 %v1448
    %2868 = vmatpush.bf16.msra.mxu0 %v1444
    %2869 = vmatmul.bf16.gmra.mxu0 %v412
    %v2870 = vpop.f32.mrf.mxu0
    %v2871 = vadd.f32 0.0, %v2870
    %v2872 = vpop.f32.mrf.mxu0
    %v2873 = vadd.f32 0.0, %v2872
    %2874 = vdwg.mxu0
    %2875 = vmatpush.bf16.msra.mxu0 %v1504
    %2876 = vmatpush.bf16.msra.mxu0 %v1500
    %2877 = vmatpush.bf16.msra.mxu0 %v1496
    %2878 = vmatpush.bf16.msra.mxu0 %v1492
    %2879 = vmatpush.bf16.msra.mxu0 %v1488
    %2880 = vmatpush.bf16.msra.mxu0 %v1484
    %2881 = vmatpush.bf16.msra.mxu0 %v1480
    %2882 = vmatpush.bf16.msra.mxu0 %v1476
    %2883 = vmatmul.bf16.gmra.mxu0 %v413
    %v2884 = vpop.f32.mrf.mxu0
    %v2885 = vadd.f32 %v2871, %v2884
    %v2886 = vpop.f32.mrf.mxu0
    %v2887 = vadd.f32 %v2873, %v2886
    %2888 = vdwg.mxu0
    %2889 = vmatpush.bf16.msra.mxu0 %v1473
    %2890 = vmatpush.bf16.msra.mxu0 %v1469
    %2891 = vmatpush.bf16.msra.mxu0 %v1465
    %2892 = vmatpush.bf16.msra.mxu0 %v1461
    %2893 = vmatpush.bf16.msra.mxu0 %v1457
    %2894 = vmatpush.bf16.msra.mxu0 %v1453
    %2895 = vmatpush.bf16.msra.mxu0 %v1449
    %2896 = vmatpush.bf16.msra.mxu0 %v1445
    %2897 = vmatmul.bf16.gmra.mxu0 %v412
    %v2898 = vpop.f32.mrf.mxu0
    %v2899 = vadd.f32 0.0, %v2898
    %v2900 = vpop.f32.mrf.mxu0
    %v2901 = vadd.f32 0.0, %v2900
    %2902 = vdwg.mxu0
    %2903 = vmatpush.bf16.msra.mxu0 %v1505
    %2904 = vmatpush.bf16.msra.mxu0 %v1501
    %2905 = vmatpush.bf16.msra.mxu0 %v1497
    %2906 = vmatpush.bf16.msra.mxu0 %v1493
    %2907 = vmatpush.bf16.msra.mxu0 %v1489
    %2908 = vmatpush.bf16.msra.mxu0 %v1485
    %2909 = vmatpush.bf16.msra.mxu0 %v1481
    %2910 = vmatpush.bf16.msra.mxu0 %v1477
    %2911 = vmatmul.bf16.gmra.mxu0 %v413
    %v2912 = vpop.f32.mrf.mxu0
    %v2913 = vadd.f32 %v2899, %v2912
    %v2914 = vpop.f32.mrf.mxu0
    %v2915 = vadd.f32 %v2901, %v2914
    %2916 = vdwg.mxu0
    %2917 = vmatpush.bf16.msra.mxu0 %v1474
    %2918 = vmatpush.bf16.msra.mxu0 %v1470
    %2919 = vmatpush.bf16.msra.mxu0 %v1466
    %2920 = vmatpush.bf16.msra.mxu0 %v1462
    %2921 = vmatpush.bf16.msra.mxu0 %v1458
    %2922 = vmatpush.bf16.msra.mxu0 %v1454
    %2923 = vmatpush.bf16.msra.mxu0 %v1450
    %2924 = vmatpush.bf16.msra.mxu0 %v1446
    %2925 = vmatmul.bf16.gmra.mxu0 %v412
    %v2926 = vpop.f32.mrf.mxu0
    %v2927 = vadd.f32 0.0, %v2926
    %v2928 = vpop.f32.mrf.mxu0
    %v2929 = vadd.f32 0.0, %v2928
    %2930 = vdwg.mxu0
    %2931 = vmatpush.bf16.msra.mxu0 %v1506
    %2932 = vmatpush.bf16.msra.mxu0 %v1502
    %2933 = vmatpush.bf16.msra.mxu0 %v1498
    %2934 = vmatpush.bf16.msra.mxu0 %v1494
    %2935 = vmatpush.bf16.msra.mxu0 %v1490
    %2936 = vmatpush.bf16.msra.mxu0 %v1486
    %2937 = vmatpush.bf16.msra.mxu0 %v1482
    %2938 = vmatpush.bf16.msra.mxu0 %v1478
    %2939 = vmatmul.bf16.gmra.mxu0 %v413
    %v2940 = vpop.f32.mrf.mxu0
    %v2941 = vadd.f32 %v2927, %v2940
    %v2942 = vpop.f32.mrf.mxu0
    %v2943 = vadd.f32 %v2929, %v2942
    %2944 = vdwg.mxu0
    %v2945 = vadd.f32 %v2825, %v2857
    %v2946 = vadd.f32 %v2826, %v2885
    %v2947 = vadd.f32 %v2827, %v2913
    %v2948 = vadd.f32 %v2828, %v2941
    %v2949 = vadd.f32 %v2829, %v2859
    %v2950 = vadd.f32 %v2830, %v2887
    %v2951 = vadd.f32 %v2831, %v2915
    %v2952 = vadd.f32 %v2832, %v2943
    %2953 = vmatpush.bf16.msra.mxu0 %v1976
    %2954 = vmatpush.bf16.msra.mxu0 %v1972
    %2955 = vmatpush.bf16.msra.mxu0 %v1968
    %2956 = vmatpush.bf16.msra.mxu0 %v1964
    %2957 = vmatpush.bf16.msra.mxu0 %v1960
    %2958 = vmatpush.bf16.msra.mxu0 %v1956
    %2959 = vmatpush.bf16.msra.mxu0 %v1952
    %2960 = vmatpush.bf16.msra.mxu0 %v1948
    %2961 = vmatmul.bf16.gmra.mxu0 %v498
    %v2962 = vpop.f32.mrf.mxu0
    %v2963 = vadd.f32 0.0, %v2962
    %v2964 = vpop.f32.mrf.mxu0
    %v2965 = vadd.f32 0.0, %v2964
    %2966 = vdwg.mxu0
    %2967 = vmatpush.bf16.msra.mxu0 %v2008
    %2968 = vmatpush.bf16.msra.mxu0 %v2004
    %2969 = vmatpush.bf16.msra.mxu0 %v2000
    %2970 = vmatpush.bf16.msra.mxu0 %v1996
    %2971 = vmatpush.bf16.msra.mxu0 %v1992
    %2972 = vmatpush.bf16.msra.mxu0 %v1988
    %2973 = vmatpush.bf16.msra.mxu0 %v1984
    %2974 = vmatpush.bf16.msra.mxu0 %v1980
    %2975 = vmatmul.bf16.gmra.mxu0 %v499
    %v2976 = vpop.f32.mrf.mxu0
    %v2977 = vadd.f32 %v2963, %v2976
    %v2978 = vpop.f32.mrf.mxu0
    %v2979 = vadd.f32 %v2965, %v2978
    %2980 = vdwg.mxu0
    %2981 = vmatpush.bf16.msra.mxu0 %v1977
    %2982 = vmatpush.bf16.msra.mxu0 %v1973
    %2983 = vmatpush.bf16.msra.mxu0 %v1969
    %2984 = vmatpush.bf16.msra.mxu0 %v1965
    %2985 = vmatpush.bf16.msra.mxu0 %v1961
    %2986 = vmatpush.bf16.msra.mxu0 %v1957
    %2987 = vmatpush.bf16.msra.mxu0 %v1953
    %2988 = vmatpush.bf16.msra.mxu0 %v1949
    %2989 = vmatmul.bf16.gmra.mxu0 %v498
    %v2990 = vpop.f32.mrf.mxu0
    %v2991 = vadd.f32 0.0, %v2990
    %v2992 = vpop.f32.mrf.mxu0
    %v2993 = vadd.f32 0.0, %v2992
    %2994 = vdwg.mxu0
    %2995 = vmatpush.bf16.msra.mxu0 %v2009
    %2996 = vmatpush.bf16.msra.mxu0 %v2005
    %2997 = vmatpush.bf16.msra.mxu0 %v2001
    %2998 = vmatpush.bf16.msra.mxu0 %v1997
    %2999 = vmatpush.bf16.msra.mxu0 %v1993
    %3000 = vmatpush.bf16.msra.mxu0 %v1989
    %3001 = vmatpush.bf16.msra.mxu0 %v1985
    %3002 = vmatpush.bf16.msra.mxu0 %v1981
    %3003 = vmatmul.bf16.gmra.mxu0 %v499
    %v3004 = vpop.f32.mrf.mxu0
    %v3005 = vadd.f32 %v2991, %v3004
    %v3006 = vpop.f32.mrf.mxu0
    %v3007 = vadd.f32 %v2993, %v3006
    %3008 = vdwg.mxu0
    %3009 = vmatpush.bf16.msra.mxu0 %v1978
    %3010 = vmatpush.bf16.msra.mxu0 %v1974
    %3011 = vmatpush.bf16.msra.mxu0 %v1970
    %3012 = vmatpush.bf16.msra.mxu0 %v1966
    %3013 = vmatpush.bf16.msra.mxu0 %v1962
    %3014 = vmatpush.bf16.msra.mxu0 %v1958
    %3015 = vmatpush.bf16.msra.mxu0 %v1954
    %3016 = vmatpush.bf16.msra.mxu0 %v1950
    %3017 = vmatmul.bf16.gmra.mxu0 %v498
    %v3018 = vpop.f32.mrf.mxu0
    %v3019 = vadd.f32 0.0, %v3018
    %v3020 = vpop.f32.mrf.mxu0
    %v3021 = vadd.f32 0.0, %v3020
    %3022 = vdwg.mxu0
    %3023 = vmatpush.bf16.msra.mxu0 %v2010
    %3024 = vmatpush.bf16.msra.mxu0 %v2006
    %3025 = vmatpush.bf16.msra.mxu0 %v2002
    %3026 = vmatpush.bf16.msra.mxu0 %v1998
    %3027 = vmatpush.bf16.msra.mxu0 %v1994
    %3028 = vmatpush.bf16.msra.mxu0 %v1990
    %3029 = vmatpush.bf16.msra.mxu0 %v1986
    %3030 = vmatpush.bf16.msra.mxu0 %v1982
    %3031 = vmatmul.bf16.gmra.mxu0 %v499
    %v3032 = vpop.f32.mrf.mxu0
    %v3033 = vadd.f32 %v3019, %v3032
    %v3034 = vpop.f32.mrf.mxu0
    %v3035 = vadd.f32 %v3021, %v3034
    %3036 = vdwg.mxu0
    %3037 = vmatpush.bf16.msra.mxu0 %v1979
    %3038 = vmatpush.bf16.msra.mxu0 %v1975
    %3039 = vmatpush.bf16.msra.mxu0 %v1971
    %3040 = vmatpush.bf16.msra.mxu0 %v1967
    %3041 = vmatpush.bf16.msra.mxu0 %v1963
    %3042 = vmatpush.bf16.msra.mxu0 %v1959
    %3043 = vmatpush.bf16.msra.mxu0 %v1955
    %3044 = vmatpush.bf16.msra.mxu0 %v1951
    %3045 = vmatmul.bf16.gmra.mxu0 %v498
    %v3046 = vpop.f32.mrf.mxu0
    %v3047 = vadd.f32 0.0, %v3046
    %v3048 = vpop.f32.mrf.mxu0
    %v3049 = vadd.f32 0.0, %v3048
    %3050 = vdwg.mxu0
    %3051 = vmatpush.bf16.msra.mxu0 %v2011
    %3052 = vmatpush.bf16.msra.mxu0 %v2007
    %3053 = vmatpush.bf16.msra.mxu0 %v2003
    %3054 = vmatpush.bf16.msra.mxu0 %v1999
    %3055 = vmatpush.bf16.msra.mxu0 %v1995
    %3056 = vmatpush.bf16.msra.mxu0 %v1991
    %3057 = vmatpush.bf16.msra.mxu0 %v1987
    %3058 = vmatpush.bf16.msra.mxu0 %v1983
    %3059 = vmatmul.bf16.gmra.mxu0 %v499
    %v3060 = vpop.f32.mrf.mxu0
    %v3061 = vadd.f32 %v3047, %v3060
    %v3062 = vpop.f32.mrf.mxu0
    %v3063 = vadd.f32 %v3049, %v3062
    %3064 = vdwg.mxu0
    %v3065 = vadd.f32 %v2945, %v2977
    %v3066 = vadd.f32 %v2946, %v3005
    %v3067 = vadd.f32 %v2947, %v3033
    %v3068 = vadd.f32 %v2948, %v3061
    %v3069 = vadd.f32 %v2949, %v2979
    %v3070 = vadd.f32 %v2950, %v3007
    %v3071 = vadd.f32 %v2951, %v3035
    %v3072 = vadd.f32 %v2952, %v3063
    %3073 = vmatpush.bf16.msra.mxu0 %v2481
    %3074 = vmatpush.bf16.msra.mxu0 %v2477
    %3075 = vmatpush.bf16.msra.mxu0 %v2473
    %3076 = vmatpush.bf16.msra.mxu0 %v2469
    %3077 = vmatpush.bf16.msra.mxu0 %v2465
    %3078 = vmatpush.bf16.msra.mxu0 %v2461
    %3079 = vmatpush.bf16.msra.mxu0 %v2457
    %3080 = vmatpush.bf16.msra.mxu0 %v2453
    %3081 = vmatmul.bf16.gmra.mxu0 %v541
    %v3082 = vpop.f32.mrf.mxu0
    %v3083 = vadd.f32 0.0, %v3082
    %v3084 = vpop.f32.mrf.mxu0
    %v3085 = vadd.f32 0.0, %v3084
    %3086 = vdwg.mxu0
    %3087 = vmatpush.bf16.msra.mxu0 %v2513
    %3088 = vmatpush.bf16.msra.mxu0 %v2509
    %3089 = vmatpush.bf16.msra.mxu0 %v2505
    %3090 = vmatpush.bf16.msra.mxu0 %v2501
    %3091 = vmatpush.bf16.msra.mxu0 %v2497
    %3092 = vmatpush.bf16.msra.mxu0 %v2493
    %3093 = vmatpush.bf16.msra.mxu0 %v2489
    %3094 = vmatpush.bf16.msra.mxu0 %v2485
    %3095 = vmatmul.bf16.gmra.mxu0 %v542
    %v3096 = vpop.f32.mrf.mxu0
    %v3097 = vadd.f32 %v3083, %v3096
    %v3098 = vpop.f32.mrf.mxu0
    %v3099 = vadd.f32 %v3085, %v3098
    %3100 = vdwg.mxu0
    %3101 = vmatpush.bf16.msra.mxu0 %v2482
    %3102 = vmatpush.bf16.msra.mxu0 %v2478
    %3103 = vmatpush.bf16.msra.mxu0 %v2474
    %3104 = vmatpush.bf16.msra.mxu0 %v2470
    %3105 = vmatpush.bf16.msra.mxu0 %v2466
    %3106 = vmatpush.bf16.msra.mxu0 %v2462
    %3107 = vmatpush.bf16.msra.mxu0 %v2458
    %3108 = vmatpush.bf16.msra.mxu0 %v2454
    %3109 = vmatmul.bf16.gmra.mxu0 %v541
    %v3110 = vpop.f32.mrf.mxu0
    %v3111 = vadd.f32 0.0, %v3110
    %v3112 = vpop.f32.mrf.mxu0
    %v3113 = vadd.f32 0.0, %v3112
    %3114 = vdwg.mxu0
    %3115 = vmatpush.bf16.msra.mxu0 %v2514
    %3116 = vmatpush.bf16.msra.mxu0 %v2510
    %3117 = vmatpush.bf16.msra.mxu0 %v2506
    %3118 = vmatpush.bf16.msra.mxu0 %v2502
    %3119 = vmatpush.bf16.msra.mxu0 %v2498
    %3120 = vmatpush.bf16.msra.mxu0 %v2494
    %3121 = vmatpush.bf16.msra.mxu0 %v2490
    %3122 = vmatpush.bf16.msra.mxu0 %v2486
    %3123 = vmatmul.bf16.gmra.mxu0 %v542
    %v3124 = vpop.f32.mrf.mxu0
    %v3125 = vadd.f32 %v3111, %v3124
    %v3126 = vpop.f32.mrf.mxu0
    %v3127 = vadd.f32 %v3113, %v3126
    %3128 = vdwg.mxu0
    %3129 = vmatpush.bf16.msra.mxu0 %v2483
    %3130 = vmatpush.bf16.msra.mxu0 %v2479
    %3131 = vmatpush.bf16.msra.mxu0 %v2475
    %3132 = vmatpush.bf16.msra.mxu0 %v2471
    %3133 = vmatpush.bf16.msra.mxu0 %v2467
    %3134 = vmatpush.bf16.msra.mxu0 %v2463
    %3135 = vmatpush.bf16.msra.mxu0 %v2459
    %3136 = vmatpush.bf16.msra.mxu0 %v2455
    %3137 = vmatmul.bf16.gmra.mxu0 %v541
    %v3138 = vpop.f32.mrf.mxu0
    %v3139 = vadd.f32 0.0, %v3138
    %v3140 = vpop.f32.mrf.mxu0
    %v3141 = vadd.f32 0.0, %v3140
    %3142 = vdwg.mxu0
    %3143 = vmatpush.bf16.msra.mxu0 %v2515
    %3144 = vmatpush.bf16.msra.mxu0 %v2511
    %3145 = vmatpush.bf16.msra.mxu0 %v2507
    %3146 = vmatpush.bf16.msra.mxu0 %v2503
    %3147 = vmatpush.bf16.msra.mxu0 %v2499
    %3148 = vmatpush.bf16.msra.mxu0 %v2495
    %3149 = vmatpush.bf16.msra.mxu0 %v2491
    %3150 = vmatpush.bf16.msra.mxu0 %v2487
    %3151 = vmatmul.bf16.gmra.mxu0 %v542
    %v3152 = vpop.f32.mrf.mxu0
    %v3153 = vadd.f32 %v3139, %v3152
    %v3154 = vpop.f32.mrf.mxu0
    %v3155 = vadd.f32 %v3141, %v3154
    %3156 = vdwg.mxu0
    %3157 = vmatpush.bf16.msra.mxu0 %v2484
    %3158 = vmatpush.bf16.msra.mxu0 %v2480
    %3159 = vmatpush.bf16.msra.mxu0 %v2476
    %3160 = vmatpush.bf16.msra.mxu0 %v2472
    %3161 = vmatpush.bf16.msra.mxu0 %v2468
    %3162 = vmatpush.bf16.msra.mxu0 %v2464
    %3163 = vmatpush.bf16.msra.mxu0 %v2460
    %3164 = vmatpush.bf16.msra.mxu0 %v2456
    %3165 = vmatmul.bf16.gmra.mxu0 %v541
    %v3166 = vpop.f32.mrf.mxu0
    %v3167 = vadd.f32 0.0, %v3166
    %v3168 = vpop.f32.mrf.mxu0
    %v3169 = vadd.f32 0.0, %v3168
    %3170 = vdwg.mxu0
    %3171 = vmatpush.bf16.msra.mxu0 %v2516
    %3172 = vmatpush.bf16.msra.mxu0 %v2512
    %3173 = vmatpush.bf16.msra.mxu0 %v2508
    %3174 = vmatpush.bf16.msra.mxu0 %v2504
    %3175 = vmatpush.bf16.msra.mxu0 %v2500
    %3176 = vmatpush.bf16.msra.mxu0 %v2496
    %3177 = vmatpush.bf16.msra.mxu0 %v2492
    %3178 = vmatpush.bf16.msra.mxu0 %v2488
    %3179 = vmatmul.bf16.gmra.mxu0 %v542
    %v3180 = vpop.f32.mrf.mxu0
    %v3181 = vadd.f32 %v3167, %v3180
    %v3182 = vpop.f32.mrf.mxu0
    %v3183 = vadd.f32 %v3169, %v3182
    %3184 = vdwg.mxu0
    %v3185 = vadd.f32 %v3065, %v3097
    %v3186 = vadd.f32 %v3066, %v3125
    %v3187 = vadd.f32 %v3067, %v3153
    %v3188 = vadd.f32 %v3068, %v3181
    %v3189 = vadd.f32 %v3069, %v3099
    %v3190 = vadd.f32 %v3070, %v3127
    %v3191 = vadd.f32 %v3071, %v3155
    %v3192 = vadd.f32 %v3072, %v3183
    %v3193 = vmax.f32 %v3185, 0.0
    %v3194 = vmax.f32 %v3186, 0.0
    %v3195 = vmax.f32 %v3187, 0.0
    %v3196 = vmax.f32 %v3188, 0.0
    %v3197 = vmax.f32 %v3189, 0.0
    %v3198 = vmax.f32 %v3190, 0.0
    %v3199 = vmax.f32 %v3191, 0.0
    %v3200 = vmax.f32 %v3192, 0.0
    %v3201 = vpack.c.bf16 %v3197, %v3193
    %v3202 = vpack.c.bf16 %v3198, %v3194
    %v3203 = vpack.c.bf16 %v3199, %v3195
    %v3204 = vpack.c.bf16 %v3200, %v3196
    %3205 = vmatpush.bf16.msra.mxu0 %v957
    %3206 = vmatpush.bf16.msra.mxu0 %v953
    %3207 = vmatpush.bf16.msra.mxu0 %v949
    %3208 = vmatpush.bf16.msra.mxu0 %v945
    %3209 = vmatpush.bf16.msra.mxu0 %v941
    %3210 = vmatpush.bf16.msra.mxu0 %v937
    %3211 = vmatpush.bf16.msra.mxu0 %v933
    %3212 = vmatpush.bf16.msra.mxu0 %v929
    %3213 = vmatmul.bf16.gmra.mxu0 %v455
    %v3214 = vpop.f32.mrf.mxu0
    %v3215 = vadd.f32 0.0, %v3214
    %v3216 = vpop.f32.mrf.mxu0
    %v3217 = vadd.f32 0.0, %v3216
    %3218 = vdwg.mxu0
    %3219 = vmatpush.bf16.msra.mxu0 %v989
    %3220 = vmatpush.bf16.msra.mxu0 %v985
    %3221 = vmatpush.bf16.msra.mxu0 %v981
    %3222 = vmatpush.bf16.msra.mxu0 %v977
    %3223 = vmatpush.bf16.msra.mxu0 %v973
    %3224 = vmatpush.bf16.msra.mxu0 %v969
    %3225 = vmatpush.bf16.msra.mxu0 %v965
    %3226 = vmatpush.bf16.msra.mxu0 %v961
    %3227 = vmatmul.bf16.gmra.mxu0 %v456
    %v3228 = vpop.f32.mrf.mxu0
    %v3229 = vadd.f32 %v3215, %v3228
    %v3230 = vpop.f32.mrf.mxu0
    %v3231 = vadd.f32 %v3217, %v3230
    %3232 = vdwg.mxu0
    %3233 = vmatpush.bf16.msra.mxu0 %v958
    %3234 = vmatpush.bf16.msra.mxu0 %v954
    %3235 = vmatpush.bf16.msra.mxu0 %v950
    %3236 = vmatpush.bf16.msra.mxu0 %v946
    %3237 = vmatpush.bf16.msra.mxu0 %v942
    %3238 = vmatpush.bf16.msra.mxu0 %v938
    %3239 = vmatpush.bf16.msra.mxu0 %v934
    %3240 = vmatpush.bf16.msra.mxu0 %v930
    %3241 = vmatmul.bf16.gmra.mxu0 %v455
    %v3242 = vpop.f32.mrf.mxu0
    %v3243 = vadd.f32 0.0, %v3242
    %v3244 = vpop.f32.mrf.mxu0
    %v3245 = vadd.f32 0.0, %v3244
    %3246 = vdwg.mxu0
    %3247 = vmatpush.bf16.msra.mxu0 %v990
    %3248 = vmatpush.bf16.msra.mxu0 %v986
    %3249 = vmatpush.bf16.msra.mxu0 %v982
    %3250 = vmatpush.bf16.msra.mxu0 %v978
    %3251 = vmatpush.bf16.msra.mxu0 %v974
    %3252 = vmatpush.bf16.msra.mxu0 %v970
    %3253 = vmatpush.bf16.msra.mxu0 %v966
    %3254 = vmatpush.bf16.msra.mxu0 %v962
    %3255 = vmatmul.bf16.gmra.mxu0 %v456
    %v3256 = vpop.f32.mrf.mxu0
    %v3257 = vadd.f32 %v3243, %v3256
    %v3258 = vpop.f32.mrf.mxu0
    %v3259 = vadd.f32 %v3245, %v3258
    %3260 = vdwg.mxu0
    %3261 = vmatpush.bf16.msra.mxu0 %v959
    %3262 = vmatpush.bf16.msra.mxu0 %v955
    %3263 = vmatpush.bf16.msra.mxu0 %v951
    %3264 = vmatpush.bf16.msra.mxu0 %v947
    %3265 = vmatpush.bf16.msra.mxu0 %v943
    %3266 = vmatpush.bf16.msra.mxu0 %v939
    %3267 = vmatpush.bf16.msra.mxu0 %v935
    %3268 = vmatpush.bf16.msra.mxu0 %v931
    %3269 = vmatmul.bf16.gmra.mxu0 %v455
    %v3270 = vpop.f32.mrf.mxu0
    %v3271 = vadd.f32 0.0, %v3270
    %v3272 = vpop.f32.mrf.mxu0
    %v3273 = vadd.f32 0.0, %v3272
    %3274 = vdwg.mxu0
    %3275 = vmatpush.bf16.msra.mxu0 %v991
    %3276 = vmatpush.bf16.msra.mxu0 %v987
    %3277 = vmatpush.bf16.msra.mxu0 %v983
    %3278 = vmatpush.bf16.msra.mxu0 %v979
    %3279 = vmatpush.bf16.msra.mxu0 %v975
    %3280 = vmatpush.bf16.msra.mxu0 %v971
    %3281 = vmatpush.bf16.msra.mxu0 %v967
    %3282 = vmatpush.bf16.msra.mxu0 %v963
    %3283 = vmatmul.bf16.gmra.mxu0 %v456
    %v3284 = vpop.f32.mrf.mxu0
    %v3285 = vadd.f32 %v3271, %v3284
    %v3286 = vpop.f32.mrf.mxu0
    %v3287 = vadd.f32 %v3273, %v3286
    %3288 = vdwg.mxu0
    %3289 = vmatpush.bf16.msra.mxu0 %v960
    %3290 = vmatpush.bf16.msra.mxu0 %v956
    %3291 = vmatpush.bf16.msra.mxu0 %v952
    %3292 = vmatpush.bf16.msra.mxu0 %v948
    %3293 = vmatpush.bf16.msra.mxu0 %v944
    %3294 = vmatpush.bf16.msra.mxu0 %v940
    %3295 = vmatpush.bf16.msra.mxu0 %v936
    %3296 = vmatpush.bf16.msra.mxu0 %v932
    %3297 = vmatmul.bf16.gmra.mxu0 %v455
    %v3298 = vpop.f32.mrf.mxu0
    %v3299 = vadd.f32 0.0, %v3298
    %v3300 = vpop.f32.mrf.mxu0
    %v3301 = vadd.f32 0.0, %v3300
    %3302 = vdwg.mxu0
    %3303 = vmatpush.bf16.msra.mxu0 %v992
    %3304 = vmatpush.bf16.msra.mxu0 %v988
    %3305 = vmatpush.bf16.msra.mxu0 %v984
    %3306 = vmatpush.bf16.msra.mxu0 %v980
    %3307 = vmatpush.bf16.msra.mxu0 %v976
    %3308 = vmatpush.bf16.msra.mxu0 %v972
    %3309 = vmatpush.bf16.msra.mxu0 %v968
    %3310 = vmatpush.bf16.msra.mxu0 %v964
    %3311 = vmatmul.bf16.gmra.mxu0 %v456
    %v3312 = vpop.f32.mrf.mxu0
    %v3313 = vadd.f32 %v3299, %v3312
    %v3314 = vpop.f32.mrf.mxu0
    %v3315 = vadd.f32 %v3301, %v3314
    %3316 = vdwg.mxu0
    %v3317 = vadd.f32 %v1170, %v3229
    %v3318 = vadd.f32 %v1171, %v3257
    %v3319 = vadd.f32 %v1172, %v3285
    %v3320 = vadd.f32 %v1173, %v3313
    %v3321 = vadd.f32 %v1170, %v3231
    %v3322 = vadd.f32 %v1171, %v3259
    %v3323 = vadd.f32 %v1172, %v3287
    %v3324 = vadd.f32 %v1173, %v3315
    %3325 = vmatpush.bf16.msra.mxu0 %v1471
    %3326 = vmatpush.bf16.msra.mxu0 %v1467
    %3327 = vmatpush.bf16.msra.mxu0 %v1463
    %3328 = vmatpush.bf16.msra.mxu0 %v1459
    %3329 = vmatpush.bf16.msra.mxu0 %v1455
    %3330 = vmatpush.bf16.msra.mxu0 %v1451
    %3331 = vmatpush.bf16.msra.mxu0 %v1447
    %3332 = vmatpush.bf16.msra.mxu0 %v1443
    %3333 = vmatmul.bf16.gmra.mxu0 %v498
    %v3334 = vpop.f32.mrf.mxu0
    %v3335 = vadd.f32 0.0, %v3334
    %v3336 = vpop.f32.mrf.mxu0
    %v3337 = vadd.f32 0.0, %v3336
    %3338 = vdwg.mxu0
    %3339 = vmatpush.bf16.msra.mxu0 %v1503
    %3340 = vmatpush.bf16.msra.mxu0 %v1499
    %3341 = vmatpush.bf16.msra.mxu0 %v1495
    %3342 = vmatpush.bf16.msra.mxu0 %v1491
    %3343 = vmatpush.bf16.msra.mxu0 %v1487
    %3344 = vmatpush.bf16.msra.mxu0 %v1483
    %3345 = vmatpush.bf16.msra.mxu0 %v1479
    %3346 = vmatpush.bf16.msra.mxu0 %v1475
    %3347 = vmatmul.bf16.gmra.mxu0 %v499
    %v3348 = vpop.f32.mrf.mxu0
    %v3349 = vadd.f32 %v3335, %v3348
    %v3350 = vpop.f32.mrf.mxu0
    %v3351 = vadd.f32 %v3337, %v3350
    %3352 = vdwg.mxu0
    %3353 = vmatpush.bf16.msra.mxu0 %v1472
    %3354 = vmatpush.bf16.msra.mxu0 %v1468
    %3355 = vmatpush.bf16.msra.mxu0 %v1464
    %3356 = vmatpush.bf16.msra.mxu0 %v1460
    %3357 = vmatpush.bf16.msra.mxu0 %v1456
    %3358 = vmatpush.bf16.msra.mxu0 %v1452
    %3359 = vmatpush.bf16.msra.mxu0 %v1448
    %3360 = vmatpush.bf16.msra.mxu0 %v1444
    %3361 = vmatmul.bf16.gmra.mxu0 %v498
    %v3362 = vpop.f32.mrf.mxu0
    %v3363 = vadd.f32 0.0, %v3362
    %v3364 = vpop.f32.mrf.mxu0
    %v3365 = vadd.f32 0.0, %v3364
    %3366 = vdwg.mxu0
    %3367 = vmatpush.bf16.msra.mxu0 %v1504
    %3368 = vmatpush.bf16.msra.mxu0 %v1500
    %3369 = vmatpush.bf16.msra.mxu0 %v1496
    %3370 = vmatpush.bf16.msra.mxu0 %v1492
    %3371 = vmatpush.bf16.msra.mxu0 %v1488
    %3372 = vmatpush.bf16.msra.mxu0 %v1484
    %3373 = vmatpush.bf16.msra.mxu0 %v1480
    %3374 = vmatpush.bf16.msra.mxu0 %v1476
    %3375 = vmatmul.bf16.gmra.mxu0 %v499
    %v3376 = vpop.f32.mrf.mxu0
    %v3377 = vadd.f32 %v3363, %v3376
    %v3378 = vpop.f32.mrf.mxu0
    %v3379 = vadd.f32 %v3365, %v3378
    %3380 = vdwg.mxu0
    %3381 = vmatpush.bf16.msra.mxu0 %v1473
    %3382 = vmatpush.bf16.msra.mxu0 %v1469
    %3383 = vmatpush.bf16.msra.mxu0 %v1465
    %3384 = vmatpush.bf16.msra.mxu0 %v1461
    %3385 = vmatpush.bf16.msra.mxu0 %v1457
    %3386 = vmatpush.bf16.msra.mxu0 %v1453
    %3387 = vmatpush.bf16.msra.mxu0 %v1449
    %3388 = vmatpush.bf16.msra.mxu0 %v1445
    %3389 = vmatmul.bf16.gmra.mxu0 %v498
    %v3390 = vpop.f32.mrf.mxu0
    %v3391 = vadd.f32 0.0, %v3390
    %v3392 = vpop.f32.mrf.mxu0
    %v3393 = vadd.f32 0.0, %v3392
    %3394 = vdwg.mxu0
    %3395 = vmatpush.bf16.msra.mxu0 %v1505
    %3396 = vmatpush.bf16.msra.mxu0 %v1501
    %3397 = vmatpush.bf16.msra.mxu0 %v1497
    %3398 = vmatpush.bf16.msra.mxu0 %v1493
    %3399 = vmatpush.bf16.msra.mxu0 %v1489
    %3400 = vmatpush.bf16.msra.mxu0 %v1485
    %3401 = vmatpush.bf16.msra.mxu0 %v1481
    %3402 = vmatpush.bf16.msra.mxu0 %v1477
    %3403 = vmatmul.bf16.gmra.mxu0 %v499
    %v3404 = vpop.f32.mrf.mxu0
    %v3405 = vadd.f32 %v3391, %v3404
    %v3406 = vpop.f32.mrf.mxu0
    %v3407 = vadd.f32 %v3393, %v3406
    %3408 = vdwg.mxu0
    %3409 = vmatpush.bf16.msra.mxu0 %v1474
    %3410 = vmatpush.bf16.msra.mxu0 %v1470
    %3411 = vmatpush.bf16.msra.mxu0 %v1466
    %3412 = vmatpush.bf16.msra.mxu0 %v1462
    %3413 = vmatpush.bf16.msra.mxu0 %v1458
    %3414 = vmatpush.bf16.msra.mxu0 %v1454
    %3415 = vmatpush.bf16.msra.mxu0 %v1450
    %3416 = vmatpush.bf16.msra.mxu0 %v1446
    %3417 = vmatmul.bf16.gmra.mxu0 %v498
    %v3418 = vpop.f32.mrf.mxu0
    %v3419 = vadd.f32 0.0, %v3418
    %v3420 = vpop.f32.mrf.mxu0
    %v3421 = vadd.f32 0.0, %v3420
    %3422 = vdwg.mxu0
    %3423 = vmatpush.bf16.msra.mxu0 %v1506
    %3424 = vmatpush.bf16.msra.mxu0 %v1502
    %3425 = vmatpush.bf16.msra.mxu0 %v1498
    %3426 = vmatpush.bf16.msra.mxu0 %v1494
    %3427 = vmatpush.bf16.msra.mxu0 %v1490
    %3428 = vmatpush.bf16.msra.mxu0 %v1486
    %3429 = vmatpush.bf16.msra.mxu0 %v1482
    %3430 = vmatpush.bf16.msra.mxu0 %v1478
    %3431 = vmatmul.bf16.gmra.mxu0 %v499
    %v3432 = vpop.f32.mrf.mxu0
    %v3433 = vadd.f32 %v3419, %v3432
    %v3434 = vpop.f32.mrf.mxu0
    %v3435 = vadd.f32 %v3421, %v3434
    %3436 = vdwg.mxu0
    %v3437 = vadd.f32 %v3317, %v3349
    %v3438 = vadd.f32 %v3318, %v3377
    %v3439 = vadd.f32 %v3319, %v3405
    %v3440 = vadd.f32 %v3320, %v3433
    %v3441 = vadd.f32 %v3321, %v3351
    %v3442 = vadd.f32 %v3322, %v3379
    %v3443 = vadd.f32 %v3323, %v3407
    %v3444 = vadd.f32 %v3324, %v3435
    %3445 = vmatpush.bf16.msra.mxu0 %v1976
    %3446 = vmatpush.bf16.msra.mxu0 %v1972
    %3447 = vmatpush.bf16.msra.mxu0 %v1968
    %3448 = vmatpush.bf16.msra.mxu0 %v1964
    %3449 = vmatpush.bf16.msra.mxu0 %v1960
    %3450 = vmatpush.bf16.msra.mxu0 %v1956
    %3451 = vmatpush.bf16.msra.mxu0 %v1952
    %3452 = vmatpush.bf16.msra.mxu0 %v1948
    %3453 = vmatmul.bf16.gmra.mxu0 %v584
    %v3454 = vpop.f32.mrf.mxu0
    %v3455 = vadd.f32 0.0, %v3454
    %v3456 = vpop.f32.mrf.mxu0
    %v3457 = vadd.f32 0.0, %v3456
    %3458 = vdwg.mxu0
    %3459 = vmatpush.bf16.msra.mxu0 %v2008
    %3460 = vmatpush.bf16.msra.mxu0 %v2004
    %3461 = vmatpush.bf16.msra.mxu0 %v2000
    %3462 = vmatpush.bf16.msra.mxu0 %v1996
    %3463 = vmatpush.bf16.msra.mxu0 %v1992
    %3464 = vmatpush.bf16.msra.mxu0 %v1988
    %3465 = vmatpush.bf16.msra.mxu0 %v1984
    %3466 = vmatpush.bf16.msra.mxu0 %v1980
    %3467 = vmatmul.bf16.gmra.mxu0 %v585
    %v3468 = vpop.f32.mrf.mxu0
    %v3469 = vadd.f32 %v3455, %v3468
    %v3470 = vpop.f32.mrf.mxu0
    %v3471 = vadd.f32 %v3457, %v3470
    %3472 = vdwg.mxu0
    %3473 = vmatpush.bf16.msra.mxu0 %v1977
    %3474 = vmatpush.bf16.msra.mxu0 %v1973
    %3475 = vmatpush.bf16.msra.mxu0 %v1969
    %3476 = vmatpush.bf16.msra.mxu0 %v1965
    %3477 = vmatpush.bf16.msra.mxu0 %v1961
    %3478 = vmatpush.bf16.msra.mxu0 %v1957
    %3479 = vmatpush.bf16.msra.mxu0 %v1953
    %3480 = vmatpush.bf16.msra.mxu0 %v1949
    %3481 = vmatmul.bf16.gmra.mxu0 %v584
    %v3482 = vpop.f32.mrf.mxu0
    %v3483 = vadd.f32 0.0, %v3482
    %v3484 = vpop.f32.mrf.mxu0
    %v3485 = vadd.f32 0.0, %v3484
    %3486 = vdwg.mxu0
    %3487 = vmatpush.bf16.msra.mxu0 %v2009
    %3488 = vmatpush.bf16.msra.mxu0 %v2005
    %3489 = vmatpush.bf16.msra.mxu0 %v2001
    %3490 = vmatpush.bf16.msra.mxu0 %v1997
    %3491 = vmatpush.bf16.msra.mxu0 %v1993
    %3492 = vmatpush.bf16.msra.mxu0 %v1989
    %3493 = vmatpush.bf16.msra.mxu0 %v1985
    %3494 = vmatpush.bf16.msra.mxu0 %v1981
    %3495 = vmatmul.bf16.gmra.mxu0 %v585
    %v3496 = vpop.f32.mrf.mxu0
    %v3497 = vadd.f32 %v3483, %v3496
    %v3498 = vpop.f32.mrf.mxu0
    %v3499 = vadd.f32 %v3485, %v3498
    %3500 = vdwg.mxu0
    %3501 = vmatpush.bf16.msra.mxu0 %v1978
    %3502 = vmatpush.bf16.msra.mxu0 %v1974
    %3503 = vmatpush.bf16.msra.mxu0 %v1970
    %3504 = vmatpush.bf16.msra.mxu0 %v1966
    %3505 = vmatpush.bf16.msra.mxu0 %v1962
    %3506 = vmatpush.bf16.msra.mxu0 %v1958
    %3507 = vmatpush.bf16.msra.mxu0 %v1954
    %3508 = vmatpush.bf16.msra.mxu0 %v1950
    %3509 = vmatmul.bf16.gmra.mxu0 %v584
    %v3510 = vpop.f32.mrf.mxu0
    %v3511 = vadd.f32 0.0, %v3510
    %v3512 = vpop.f32.mrf.mxu0
    %v3513 = vadd.f32 0.0, %v3512
    %3514 = vdwg.mxu0
    %3515 = vmatpush.bf16.msra.mxu0 %v2010
    %3516 = vmatpush.bf16.msra.mxu0 %v2006
    %3517 = vmatpush.bf16.msra.mxu0 %v2002
    %3518 = vmatpush.bf16.msra.mxu0 %v1998
    %3519 = vmatpush.bf16.msra.mxu0 %v1994
    %3520 = vmatpush.bf16.msra.mxu0 %v1990
    %3521 = vmatpush.bf16.msra.mxu0 %v1986
    %3522 = vmatpush.bf16.msra.mxu0 %v1982
    %3523 = vmatmul.bf16.gmra.mxu0 %v585
    %v3524 = vpop.f32.mrf.mxu0
    %v3525 = vadd.f32 %v3511, %v3524
    %v3526 = vpop.f32.mrf.mxu0
    %v3527 = vadd.f32 %v3513, %v3526
    %3528 = vdwg.mxu0
    %3529 = vmatpush.bf16.msra.mxu0 %v1979
    %3530 = vmatpush.bf16.msra.mxu0 %v1975
    %3531 = vmatpush.bf16.msra.mxu0 %v1971
    %3532 = vmatpush.bf16.msra.mxu0 %v1967
    %3533 = vmatpush.bf16.msra.mxu0 %v1963
    %3534 = vmatpush.bf16.msra.mxu0 %v1959
    %3535 = vmatpush.bf16.msra.mxu0 %v1955
    %3536 = vmatpush.bf16.msra.mxu0 %v1951
    %3537 = vmatmul.bf16.gmra.mxu0 %v584
    %v3538 = vpop.f32.mrf.mxu0
    %v3539 = vadd.f32 0.0, %v3538
    %v3540 = vpop.f32.mrf.mxu0
    %v3541 = vadd.f32 0.0, %v3540
    %3542 = vdwg.mxu0
    %3543 = vmatpush.bf16.msra.mxu0 %v2011
    %3544 = vmatpush.bf16.msra.mxu0 %v2007
    %3545 = vmatpush.bf16.msra.mxu0 %v2003
    %3546 = vmatpush.bf16.msra.mxu0 %v1999
    %3547 = vmatpush.bf16.msra.mxu0 %v1995
    %3548 = vmatpush.bf16.msra.mxu0 %v1991
    %3549 = vmatpush.bf16.msra.mxu0 %v1987
    %3550 = vmatpush.bf16.msra.mxu0 %v1983
    %3551 = vmatmul.bf16.gmra.mxu0 %v585
    %v3552 = vpop.f32.mrf.mxu0
    %v3553 = vadd.f32 %v3539, %v3552
    %v3554 = vpop.f32.mrf.mxu0
    %v3555 = vadd.f32 %v3541, %v3554
    %3556 = vdwg.mxu0
    %v3557 = vadd.f32 %v3437, %v3469
    %v3558 = vadd.f32 %v3438, %v3497
    %v3559 = vadd.f32 %v3439, %v3525
    %v3560 = vadd.f32 %v3440, %v3553
    %v3561 = vadd.f32 %v3441, %v3471
    %v3562 = vadd.f32 %v3442, %v3499
    %v3563 = vadd.f32 %v3443, %v3527
    %v3564 = vadd.f32 %v3444, %v3555
    %3565 = vmatpush.bf16.msra.mxu0 %v2481
    %3566 = vmatpush.bf16.msra.mxu0 %v2477
    %3567 = vmatpush.bf16.msra.mxu0 %v2473
    %3568 = vmatpush.bf16.msra.mxu0 %v2469
    %3569 = vmatpush.bf16.msra.mxu0 %v2465
    %3570 = vmatpush.bf16.msra.mxu0 %v2461
    %3571 = vmatpush.bf16.msra.mxu0 %v2457
    %3572 = vmatpush.bf16.msra.mxu0 %v2453
    %3573 = vmatmul.bf16.gmra.mxu0 %v627
    %v3574 = vpop.f32.mrf.mxu0
    %v3575 = vadd.f32 0.0, %v3574
    %v3576 = vpop.f32.mrf.mxu0
    %v3577 = vadd.f32 0.0, %v3576
    %3578 = vdwg.mxu0
    %3579 = vmatpush.bf16.msra.mxu0 %v2513
    %3580 = vmatpush.bf16.msra.mxu0 %v2509
    %3581 = vmatpush.bf16.msra.mxu0 %v2505
    %3582 = vmatpush.bf16.msra.mxu0 %v2501
    %3583 = vmatpush.bf16.msra.mxu0 %v2497
    %3584 = vmatpush.bf16.msra.mxu0 %v2493
    %3585 = vmatpush.bf16.msra.mxu0 %v2489
    %3586 = vmatpush.bf16.msra.mxu0 %v2485
    %3587 = vmatmul.bf16.gmra.mxu0 %v628
    %v3588 = vpop.f32.mrf.mxu0
    %v3589 = vadd.f32 %v3575, %v3588
    %v3590 = vpop.f32.mrf.mxu0
    %v3591 = vadd.f32 %v3577, %v3590
    %3592 = vdwg.mxu0
    %3593 = vmatpush.bf16.msra.mxu0 %v2482
    %3594 = vmatpush.bf16.msra.mxu0 %v2478
    %3595 = vmatpush.bf16.msra.mxu0 %v2474
    %3596 = vmatpush.bf16.msra.mxu0 %v2470
    %3597 = vmatpush.bf16.msra.mxu0 %v2466
    %3598 = vmatpush.bf16.msra.mxu0 %v2462
    %3599 = vmatpush.bf16.msra.mxu0 %v2458
    %3600 = vmatpush.bf16.msra.mxu0 %v2454
    %3601 = vmatmul.bf16.gmra.mxu0 %v627
    %v3602 = vpop.f32.mrf.mxu0
    %v3603 = vadd.f32 0.0, %v3602
    %v3604 = vpop.f32.mrf.mxu0
    %v3605 = vadd.f32 0.0, %v3604
    %3606 = vdwg.mxu0
    %3607 = vmatpush.bf16.msra.mxu0 %v2514
    %3608 = vmatpush.bf16.msra.mxu0 %v2510
    %3609 = vmatpush.bf16.msra.mxu0 %v2506
    %3610 = vmatpush.bf16.msra.mxu0 %v2502
    %3611 = vmatpush.bf16.msra.mxu0 %v2498
    %3612 = vmatpush.bf16.msra.mxu0 %v2494
    %3613 = vmatpush.bf16.msra.mxu0 %v2490
    %3614 = vmatpush.bf16.msra.mxu0 %v2486
    %3615 = vmatmul.bf16.gmra.mxu0 %v628
    %v3616 = vpop.f32.mrf.mxu0
    %v3617 = vadd.f32 %v3603, %v3616
    %v3618 = vpop.f32.mrf.mxu0
    %v3619 = vadd.f32 %v3605, %v3618
    %3620 = vdwg.mxu0
    %3621 = vmatpush.bf16.msra.mxu0 %v2483
    %3622 = vmatpush.bf16.msra.mxu0 %v2479
    %3623 = vmatpush.bf16.msra.mxu0 %v2475
    %3624 = vmatpush.bf16.msra.mxu0 %v2471
    %3625 = vmatpush.bf16.msra.mxu0 %v2467
    %3626 = vmatpush.bf16.msra.mxu0 %v2463
    %3627 = vmatpush.bf16.msra.mxu0 %v2459
    %3628 = vmatpush.bf16.msra.mxu0 %v2455
    %3629 = vmatmul.bf16.gmra.mxu0 %v627
    %v3630 = vpop.f32.mrf.mxu0
    %v3631 = vadd.f32 0.0, %v3630
    %v3632 = vpop.f32.mrf.mxu0
    %v3633 = vadd.f32 0.0, %v3632
    %3634 = vdwg.mxu0
    %3635 = vmatpush.bf16.msra.mxu0 %v2515
    %3636 = vmatpush.bf16.msra.mxu0 %v2511
    %3637 = vmatpush.bf16.msra.mxu0 %v2507
    %3638 = vmatpush.bf16.msra.mxu0 %v2503
    %3639 = vmatpush.bf16.msra.mxu0 %v2499
    %3640 = vmatpush.bf16.msra.mxu0 %v2495
    %3641 = vmatpush.bf16.msra.mxu0 %v2491
    %3642 = vmatpush.bf16.msra.mxu0 %v2487
    %3643 = vmatmul.bf16.gmra.mxu0 %v628
    %v3644 = vpop.f32.mrf.mxu0
    %v3645 = vadd.f32 %v3631, %v3644
    %v3646 = vpop.f32.mrf.mxu0
    %v3647 = vadd.f32 %v3633, %v3646
    %3648 = vdwg.mxu0
    %3649 = vmatpush.bf16.msra.mxu0 %v2484
    %3650 = vmatpush.bf16.msra.mxu0 %v2480
    %3651 = vmatpush.bf16.msra.mxu0 %v2476
    %3652 = vmatpush.bf16.msra.mxu0 %v2472
    %3653 = vmatpush.bf16.msra.mxu0 %v2468
    %3654 = vmatpush.bf16.msra.mxu0 %v2464
    %3655 = vmatpush.bf16.msra.mxu0 %v2460
    %3656 = vmatpush.bf16.msra.mxu0 %v2456
    %3657 = vmatmul.bf16.gmra.mxu0 %v627
    %v3658 = vpop.f32.mrf.mxu0
    %v3659 = vadd.f32 0.0, %v3658
    %v3660 = vpop.f32.mrf.mxu0
    %v3661 = vadd.f32 0.0, %v3660
    %3662 = vdwg.mxu0
    %3663 = vmatpush.bf16.msra.mxu0 %v2516
    %3664 = vmatpush.bf16.msra.mxu0 %v2512
    %3665 = vmatpush.bf16.msra.mxu0 %v2508
    %3666 = vmatpush.bf16.msra.mxu0 %v2504
    %3667 = vmatpush.bf16.msra.mxu0 %v2500
    %3668 = vmatpush.bf16.msra.mxu0 %v2496
    %3669 = vmatpush.bf16.msra.mxu0 %v2492
    %3670 = vmatpush.bf16.msra.mxu0 %v2488
    %3671 = vmatmul.bf16.gmra.mxu0 %v628
    %v3672 = vpop.f32.mrf.mxu0
    %v3673 = vadd.f32 %v3659, %v3672
    %v3674 = vpop.f32.mrf.mxu0
    %v3675 = vadd.f32 %v3661, %v3674
    %3676 = vdwg.mxu0
    %v3677 = vadd.f32 %v3557, %v3589
    %v3678 = vadd.f32 %v3558, %v3617
    %v3679 = vadd.f32 %v3559, %v3645
    %v3680 = vadd.f32 %v3560, %v3673
    %v3681 = vadd.f32 %v3561, %v3591
    %v3682 = vadd.f32 %v3562, %v3619
    %v3683 = vadd.f32 %v3563, %v3647
    %v3684 = vadd.f32 %v3564, %v3675
    %v3685 = vmax.f32 %v3677, 0.0
    %v3686 = vmax.f32 %v3678, 0.0
    %v3687 = vmax.f32 %v3679, 0.0
    %v3688 = vmax.f32 %v3680, 0.0
    %v3689 = vmax.f32 %v3681, 0.0
    %v3690 = vmax.f32 %v3682, 0.0
    %v3691 = vmax.f32 %v3683, 0.0
    %v3692 = vmax.f32 %v3684, 0.0
    %v3693 = vpack.c.bf16 %v3689, %v3685
    %v3694 = vpack.c.bf16 %v3690, %v3686
    %v3695 = vpack.c.bf16 %v3691, %v3687
    %v3696 = vpack.c.bf16 %v3692, %v3688
    %3697 = vmatpush.bf16.msra.mxu0 %v957
    %3698 = vmatpush.bf16.msra.mxu0 %v953
    %3699 = vmatpush.bf16.msra.mxu0 %v949
    %3700 = vmatpush.bf16.msra.mxu0 %v945
    %3701 = vmatpush.bf16.msra.mxu0 %v941
    %3702 = vmatpush.bf16.msra.mxu0 %v937
    %3703 = vmatpush.bf16.msra.mxu0 %v933
    %3704 = vmatpush.bf16.msra.mxu0 %v929
    %3705 = vmatmul.bf16.gmra.mxu0 %v498
    %v3706 = vpop.f32.mrf.mxu0
    %v3707 = vadd.f32 0.0, %v3706
    %v3708 = vpop.f32.mrf.mxu0
    %v3709 = vadd.f32 0.0, %v3708
    %3710 = vdwg.mxu0
    %3711 = vmatpush.bf16.msra.mxu0 %v989
    %3712 = vmatpush.bf16.msra.mxu0 %v985
    %3713 = vmatpush.bf16.msra.mxu0 %v981
    %3714 = vmatpush.bf16.msra.mxu0 %v977
    %3715 = vmatpush.bf16.msra.mxu0 %v973
    %3716 = vmatpush.bf16.msra.mxu0 %v969
    %3717 = vmatpush.bf16.msra.mxu0 %v965
    %3718 = vmatpush.bf16.msra.mxu0 %v961
    %3719 = vmatmul.bf16.gmra.mxu0 %v499
    %v3720 = vpop.f32.mrf.mxu0
    %v3721 = vadd.f32 %v3707, %v3720
    %v3722 = vpop.f32.mrf.mxu0
    %v3723 = vadd.f32 %v3709, %v3722
    %3724 = vdwg.mxu0
    %3725 = vmatpush.bf16.msra.mxu0 %v958
    %3726 = vmatpush.bf16.msra.mxu0 %v954
    %3727 = vmatpush.bf16.msra.mxu0 %v950
    %3728 = vmatpush.bf16.msra.mxu0 %v946
    %3729 = vmatpush.bf16.msra.mxu0 %v942
    %3730 = vmatpush.bf16.msra.mxu0 %v938
    %3731 = vmatpush.bf16.msra.mxu0 %v934
    %3732 = vmatpush.bf16.msra.mxu0 %v930
    %3733 = vmatmul.bf16.gmra.mxu0 %v498
    %v3734 = vpop.f32.mrf.mxu0
    %v3735 = vadd.f32 0.0, %v3734
    %v3736 = vpop.f32.mrf.mxu0
    %v3737 = vadd.f32 0.0, %v3736
    %3738 = vdwg.mxu0
    %3739 = vmatpush.bf16.msra.mxu0 %v990
    %3740 = vmatpush.bf16.msra.mxu0 %v986
    %3741 = vmatpush.bf16.msra.mxu0 %v982
    %3742 = vmatpush.bf16.msra.mxu0 %v978
    %3743 = vmatpush.bf16.msra.mxu0 %v974
    %3744 = vmatpush.bf16.msra.mxu0 %v970
    %3745 = vmatpush.bf16.msra.mxu0 %v966
    %3746 = vmatpush.bf16.msra.mxu0 %v962
    %3747 = vmatmul.bf16.gmra.mxu0 %v499
    %v3748 = vpop.f32.mrf.mxu0
    %v3749 = vadd.f32 %v3735, %v3748
    %v3750 = vpop.f32.mrf.mxu0
    %v3751 = vadd.f32 %v3737, %v3750
    %3752 = vdwg.mxu0
    %3753 = vmatpush.bf16.msra.mxu0 %v959
    %3754 = vmatpush.bf16.msra.mxu0 %v955
    %3755 = vmatpush.bf16.msra.mxu0 %v951
    %3756 = vmatpush.bf16.msra.mxu0 %v947
    %3757 = vmatpush.bf16.msra.mxu0 %v943
    %3758 = vmatpush.bf16.msra.mxu0 %v939
    %3759 = vmatpush.bf16.msra.mxu0 %v935
    %3760 = vmatpush.bf16.msra.mxu0 %v931
    %3761 = vmatmul.bf16.gmra.mxu0 %v498
    %v3762 = vpop.f32.mrf.mxu0
    %v3763 = vadd.f32 0.0, %v3762
    %v3764 = vpop.f32.mrf.mxu0
    %v3765 = vadd.f32 0.0, %v3764
    %3766 = vdwg.mxu0
    %3767 = vmatpush.bf16.msra.mxu0 %v991
    %3768 = vmatpush.bf16.msra.mxu0 %v987
    %3769 = vmatpush.bf16.msra.mxu0 %v983
    %3770 = vmatpush.bf16.msra.mxu0 %v979
    %3771 = vmatpush.bf16.msra.mxu0 %v975
    %3772 = vmatpush.bf16.msra.mxu0 %v971
    %3773 = vmatpush.bf16.msra.mxu0 %v967
    %3774 = vmatpush.bf16.msra.mxu0 %v963
    %3775 = vmatmul.bf16.gmra.mxu0 %v499
    %v3776 = vpop.f32.mrf.mxu0
    %v3777 = vadd.f32 %v3763, %v3776
    %v3778 = vpop.f32.mrf.mxu0
    %v3779 = vadd.f32 %v3765, %v3778
    %3780 = vdwg.mxu0
    %3781 = vmatpush.bf16.msra.mxu0 %v960
    %3782 = vmatpush.bf16.msra.mxu0 %v956
    %3783 = vmatpush.bf16.msra.mxu0 %v952
    %3784 = vmatpush.bf16.msra.mxu0 %v948
    %3785 = vmatpush.bf16.msra.mxu0 %v944
    %3786 = vmatpush.bf16.msra.mxu0 %v940
    %3787 = vmatpush.bf16.msra.mxu0 %v936
    %3788 = vmatpush.bf16.msra.mxu0 %v932
    %3789 = vmatmul.bf16.gmra.mxu0 %v498
    %v3790 = vpop.f32.mrf.mxu0
    %v3791 = vadd.f32 0.0, %v3790
    %v3792 = vpop.f32.mrf.mxu0
    %v3793 = vadd.f32 0.0, %v3792
    %3794 = vdwg.mxu0
    %3795 = vmatpush.bf16.msra.mxu0 %v992
    %3796 = vmatpush.bf16.msra.mxu0 %v988
    %3797 = vmatpush.bf16.msra.mxu0 %v984
    %3798 = vmatpush.bf16.msra.mxu0 %v980
    %3799 = vmatpush.bf16.msra.mxu0 %v976
    %3800 = vmatpush.bf16.msra.mxu0 %v972
    %3801 = vmatpush.bf16.msra.mxu0 %v968
    %3802 = vmatpush.bf16.msra.mxu0 %v964
    %3803 = vmatmul.bf16.gmra.mxu0 %v499
    %v3804 = vpop.f32.mrf.mxu0
    %v3805 = vadd.f32 %v3791, %v3804
    %v3806 = vpop.f32.mrf.mxu0
    %v3807 = vadd.f32 %v3793, %v3806
    %3808 = vdwg.mxu0
    %v3809 = vadd.f32 %v1170, %v3721
    %v3810 = vadd.f32 %v1171, %v3749
    %v3811 = vadd.f32 %v1172, %v3777
    %v3812 = vadd.f32 %v1173, %v3805
    %v3813 = vadd.f32 %v1170, %v3723
    %v3814 = vadd.f32 %v1171, %v3751
    %v3815 = vadd.f32 %v1172, %v3779
    %v3816 = vadd.f32 %v1173, %v3807
    %3817 = vmatpush.bf16.msra.mxu0 %v1471
    %3818 = vmatpush.bf16.msra.mxu0 %v1467
    %3819 = vmatpush.bf16.msra.mxu0 %v1463
    %3820 = vmatpush.bf16.msra.mxu0 %v1459
    %3821 = vmatpush.bf16.msra.mxu0 %v1455
    %3822 = vmatpush.bf16.msra.mxu0 %v1451
    %3823 = vmatpush.bf16.msra.mxu0 %v1447
    %3824 = vmatpush.bf16.msra.mxu0 %v1443
    %3825 = vmatmul.bf16.gmra.mxu0 %v541
    %v3826 = vpop.f32.mrf.mxu0
    %v3827 = vadd.f32 0.0, %v3826
    %v3828 = vpop.f32.mrf.mxu0
    %v3829 = vadd.f32 0.0, %v3828
    %3830 = vdwg.mxu0
    %3831 = vmatpush.bf16.msra.mxu0 %v1503
    %3832 = vmatpush.bf16.msra.mxu0 %v1499
    %3833 = vmatpush.bf16.msra.mxu0 %v1495
    %3834 = vmatpush.bf16.msra.mxu0 %v1491
    %3835 = vmatpush.bf16.msra.mxu0 %v1487
    %3836 = vmatpush.bf16.msra.mxu0 %v1483
    %3837 = vmatpush.bf16.msra.mxu0 %v1479
    %3838 = vmatpush.bf16.msra.mxu0 %v1475
    %3839 = vmatmul.bf16.gmra.mxu0 %v542
    %v3840 = vpop.f32.mrf.mxu0
    %v3841 = vadd.f32 %v3827, %v3840
    %v3842 = vpop.f32.mrf.mxu0
    %v3843 = vadd.f32 %v3829, %v3842
    %3844 = vdwg.mxu0
    %3845 = vmatpush.bf16.msra.mxu0 %v1472
    %3846 = vmatpush.bf16.msra.mxu0 %v1468
    %3847 = vmatpush.bf16.msra.mxu0 %v1464
    %3848 = vmatpush.bf16.msra.mxu0 %v1460
    %3849 = vmatpush.bf16.msra.mxu0 %v1456
    %3850 = vmatpush.bf16.msra.mxu0 %v1452
    %3851 = vmatpush.bf16.msra.mxu0 %v1448
    %3852 = vmatpush.bf16.msra.mxu0 %v1444
    %3853 = vmatmul.bf16.gmra.mxu0 %v541
    %v3854 = vpop.f32.mrf.mxu0
    %v3855 = vadd.f32 0.0, %v3854
    %v3856 = vpop.f32.mrf.mxu0
    %v3857 = vadd.f32 0.0, %v3856
    %3858 = vdwg.mxu0
    %3859 = vmatpush.bf16.msra.mxu0 %v1504
    %3860 = vmatpush.bf16.msra.mxu0 %v1500
    %3861 = vmatpush.bf16.msra.mxu0 %v1496
    %3862 = vmatpush.bf16.msra.mxu0 %v1492
    %3863 = vmatpush.bf16.msra.mxu0 %v1488
    %3864 = vmatpush.bf16.msra.mxu0 %v1484
    %3865 = vmatpush.bf16.msra.mxu0 %v1480
    %3866 = vmatpush.bf16.msra.mxu0 %v1476
    %3867 = vmatmul.bf16.gmra.mxu0 %v542
    %v3868 = vpop.f32.mrf.mxu0
    %v3869 = vadd.f32 %v3855, %v3868
    %v3870 = vpop.f32.mrf.mxu0
    %v3871 = vadd.f32 %v3857, %v3870
    %3872 = vdwg.mxu0
    %3873 = vmatpush.bf16.msra.mxu0 %v1473
    %3874 = vmatpush.bf16.msra.mxu0 %v1469
    %3875 = vmatpush.bf16.msra.mxu0 %v1465
    %3876 = vmatpush.bf16.msra.mxu0 %v1461
    %3877 = vmatpush.bf16.msra.mxu0 %v1457
    %3878 = vmatpush.bf16.msra.mxu0 %v1453
    %3879 = vmatpush.bf16.msra.mxu0 %v1449
    %3880 = vmatpush.bf16.msra.mxu0 %v1445
    %3881 = vmatmul.bf16.gmra.mxu0 %v541
    %v3882 = vpop.f32.mrf.mxu0
    %v3883 = vadd.f32 0.0, %v3882
    %v3884 = vpop.f32.mrf.mxu0
    %v3885 = vadd.f32 0.0, %v3884
    %3886 = vdwg.mxu0
    %3887 = vmatpush.bf16.msra.mxu0 %v1505
    %3888 = vmatpush.bf16.msra.mxu0 %v1501
    %3889 = vmatpush.bf16.msra.mxu0 %v1497
    %3890 = vmatpush.bf16.msra.mxu0 %v1493
    %3891 = vmatpush.bf16.msra.mxu0 %v1489
    %3892 = vmatpush.bf16.msra.mxu0 %v1485
    %3893 = vmatpush.bf16.msra.mxu0 %v1481
    %3894 = vmatpush.bf16.msra.mxu0 %v1477
    %3895 = vmatmul.bf16.gmra.mxu0 %v542
    %v3896 = vpop.f32.mrf.mxu0
    %v3897 = vadd.f32 %v3883, %v3896
    %v3898 = vpop.f32.mrf.mxu0
    %v3899 = vadd.f32 %v3885, %v3898
    %3900 = vdwg.mxu0
    %3901 = vmatpush.bf16.msra.mxu0 %v1474
    %3902 = vmatpush.bf16.msra.mxu0 %v1470
    %3903 = vmatpush.bf16.msra.mxu0 %v1466
    %3904 = vmatpush.bf16.msra.mxu0 %v1462
    %3905 = vmatpush.bf16.msra.mxu0 %v1458
    %3906 = vmatpush.bf16.msra.mxu0 %v1454
    %3907 = vmatpush.bf16.msra.mxu0 %v1450
    %3908 = vmatpush.bf16.msra.mxu0 %v1446
    %3909 = vmatmul.bf16.gmra.mxu0 %v541
    %v3910 = vpop.f32.mrf.mxu0
    %v3911 = vadd.f32 0.0, %v3910
    %v3912 = vpop.f32.mrf.mxu0
    %v3913 = vadd.f32 0.0, %v3912
    %3914 = vdwg.mxu0
    %3915 = vmatpush.bf16.msra.mxu0 %v1506
    %3916 = vmatpush.bf16.msra.mxu0 %v1502
    %3917 = vmatpush.bf16.msra.mxu0 %v1498
    %3918 = vmatpush.bf16.msra.mxu0 %v1494
    %3919 = vmatpush.bf16.msra.mxu0 %v1490
    %3920 = vmatpush.bf16.msra.mxu0 %v1486
    %3921 = vmatpush.bf16.msra.mxu0 %v1482
    %3922 = vmatpush.bf16.msra.mxu0 %v1478
    %3923 = vmatmul.bf16.gmra.mxu0 %v542
    %v3924 = vpop.f32.mrf.mxu0
    %v3925 = vadd.f32 %v3911, %v3924
    %v3926 = vpop.f32.mrf.mxu0
    %v3927 = vadd.f32 %v3913, %v3926
    %3928 = vdwg.mxu0
    %v3929 = vadd.f32 %v3809, %v3841
    %v3930 = vadd.f32 %v3810, %v3869
    %v3931 = vadd.f32 %v3811, %v3897
    %v3932 = vadd.f32 %v3812, %v3925
    %v3933 = vadd.f32 %v3813, %v3843
    %v3934 = vadd.f32 %v3814, %v3871
    %v3935 = vadd.f32 %v3815, %v3899
    %v3936 = vadd.f32 %v3816, %v3927
    %3937 = vmatpush.bf16.msra.mxu0 %v1976
    %3938 = vmatpush.bf16.msra.mxu0 %v1972
    %3939 = vmatpush.bf16.msra.mxu0 %v1968
    %3940 = vmatpush.bf16.msra.mxu0 %v1964
    %3941 = vmatpush.bf16.msra.mxu0 %v1960
    %3942 = vmatpush.bf16.msra.mxu0 %v1956
    %3943 = vmatpush.bf16.msra.mxu0 %v1952
    %3944 = vmatpush.bf16.msra.mxu0 %v1948
    %3945 = vmatmul.bf16.gmra.mxu0 %v627
    %v3946 = vpop.f32.mrf.mxu0
    %v3947 = vadd.f32 0.0, %v3946
    %v3948 = vpop.f32.mrf.mxu0
    %v3949 = vadd.f32 0.0, %v3948
    %3950 = vdwg.mxu0
    %3951 = vmatpush.bf16.msra.mxu0 %v2008
    %3952 = vmatpush.bf16.msra.mxu0 %v2004
    %3953 = vmatpush.bf16.msra.mxu0 %v2000
    %3954 = vmatpush.bf16.msra.mxu0 %v1996
    %3955 = vmatpush.bf16.msra.mxu0 %v1992
    %3956 = vmatpush.bf16.msra.mxu0 %v1988
    %3957 = vmatpush.bf16.msra.mxu0 %v1984
    %3958 = vmatpush.bf16.msra.mxu0 %v1980
    %3959 = vmatmul.bf16.gmra.mxu0 %v628
    %v3960 = vpop.f32.mrf.mxu0
    %v3961 = vadd.f32 %v3947, %v3960
    %v3962 = vpop.f32.mrf.mxu0
    %v3963 = vadd.f32 %v3949, %v3962
    %3964 = vdwg.mxu0
    %3965 = vmatpush.bf16.msra.mxu0 %v1977
    %3966 = vmatpush.bf16.msra.mxu0 %v1973
    %3967 = vmatpush.bf16.msra.mxu0 %v1969
    %3968 = vmatpush.bf16.msra.mxu0 %v1965
    %3969 = vmatpush.bf16.msra.mxu0 %v1961
    %3970 = vmatpush.bf16.msra.mxu0 %v1957
    %3971 = vmatpush.bf16.msra.mxu0 %v1953
    %3972 = vmatpush.bf16.msra.mxu0 %v1949
    %3973 = vmatmul.bf16.gmra.mxu0 %v627
    %v3974 = vpop.f32.mrf.mxu0
    %v3975 = vadd.f32 0.0, %v3974
    %v3976 = vpop.f32.mrf.mxu0
    %v3977 = vadd.f32 0.0, %v3976
    %3978 = vdwg.mxu0
    %3979 = vmatpush.bf16.msra.mxu0 %v2009
    %3980 = vmatpush.bf16.msra.mxu0 %v2005
    %3981 = vmatpush.bf16.msra.mxu0 %v2001
    %3982 = vmatpush.bf16.msra.mxu0 %v1997
    %3983 = vmatpush.bf16.msra.mxu0 %v1993
    %3984 = vmatpush.bf16.msra.mxu0 %v1989
    %3985 = vmatpush.bf16.msra.mxu0 %v1985
    %3986 = vmatpush.bf16.msra.mxu0 %v1981
    %3987 = vmatmul.bf16.gmra.mxu0 %v628
    %v3988 = vpop.f32.mrf.mxu0
    %v3989 = vadd.f32 %v3975, %v3988
    %v3990 = vpop.f32.mrf.mxu0
    %v3991 = vadd.f32 %v3977, %v3990
    %3992 = vdwg.mxu0
    %3993 = vmatpush.bf16.msra.mxu0 %v1978
    %3994 = vmatpush.bf16.msra.mxu0 %v1974
    %3995 = vmatpush.bf16.msra.mxu0 %v1970
    %3996 = vmatpush.bf16.msra.mxu0 %v1966
    %3997 = vmatpush.bf16.msra.mxu0 %v1962
    %3998 = vmatpush.bf16.msra.mxu0 %v1958
    %3999 = vmatpush.bf16.msra.mxu0 %v1954
    %4000 = vmatpush.bf16.msra.mxu0 %v1950
    %4001 = vmatmul.bf16.gmra.mxu0 %v627
    %v4002 = vpop.f32.mrf.mxu0
    %v4003 = vadd.f32 0.0, %v4002
    %v4004 = vpop.f32.mrf.mxu0
    %v4005 = vadd.f32 0.0, %v4004
    %4006 = vdwg.mxu0
    %4007 = vmatpush.bf16.msra.mxu0 %v2010
    %4008 = vmatpush.bf16.msra.mxu0 %v2006
    %4009 = vmatpush.bf16.msra.mxu0 %v2002
    %4010 = vmatpush.bf16.msra.mxu0 %v1998
    %4011 = vmatpush.bf16.msra.mxu0 %v1994
    %4012 = vmatpush.bf16.msra.mxu0 %v1990
    %4013 = vmatpush.bf16.msra.mxu0 %v1986
    %4014 = vmatpush.bf16.msra.mxu0 %v1982
    %4015 = vmatmul.bf16.gmra.mxu0 %v628
    %v4016 = vpop.f32.mrf.mxu0
    %v4017 = vadd.f32 %v4003, %v4016
    %v4018 = vpop.f32.mrf.mxu0
    %v4019 = vadd.f32 %v4005, %v4018
    %4020 = vdwg.mxu0
    %4021 = vmatpush.bf16.msra.mxu0 %v1979
    %4022 = vmatpush.bf16.msra.mxu0 %v1975
    %4023 = vmatpush.bf16.msra.mxu0 %v1971
    %4024 = vmatpush.bf16.msra.mxu0 %v1967
    %4025 = vmatpush.bf16.msra.mxu0 %v1963
    %4026 = vmatpush.bf16.msra.mxu0 %v1959
    %4027 = vmatpush.bf16.msra.mxu0 %v1955
    %4028 = vmatpush.bf16.msra.mxu0 %v1951
    %4029 = vmatmul.bf16.gmra.mxu0 %v627
    %v4030 = vpop.f32.mrf.mxu0
    %v4031 = vadd.f32 0.0, %v4030
    %v4032 = vpop.f32.mrf.mxu0
    %v4033 = vadd.f32 0.0, %v4032
    %4034 = vdwg.mxu0
    %4035 = vmatpush.bf16.msra.mxu0 %v2011
    %4036 = vmatpush.bf16.msra.mxu0 %v2007
    %4037 = vmatpush.bf16.msra.mxu0 %v2003
    %4038 = vmatpush.bf16.msra.mxu0 %v1999
    %4039 = vmatpush.bf16.msra.mxu0 %v1995
    %4040 = vmatpush.bf16.msra.mxu0 %v1991
    %4041 = vmatpush.bf16.msra.mxu0 %v1987
    %4042 = vmatpush.bf16.msra.mxu0 %v1983
    %4043 = vmatmul.bf16.gmra.mxu0 %v628
    %v4044 = vpop.f32.mrf.mxu0
    %v4045 = vadd.f32 %v4031, %v4044
    %v4046 = vpop.f32.mrf.mxu0
    %v4047 = vadd.f32 %v4033, %v4046
    %4048 = vdwg.mxu0
    %v4049 = vadd.f32 %v3929, %v3961
    %v4050 = vadd.f32 %v3930, %v3989
    %v4051 = vadd.f32 %v3931, %v4017
    %v4052 = vadd.f32 %v3932, %v4045
    %v4053 = vadd.f32 %v3933, %v3963
    %v4054 = vadd.f32 %v3934, %v3991
    %v4055 = vadd.f32 %v3935, %v4019
    %v4056 = vadd.f32 %v3936, %v4047
    %4057 = vmatpush.bf16.msra.mxu0 %v2481
    %4058 = vmatpush.bf16.msra.mxu0 %v2477
    %4059 = vmatpush.bf16.msra.mxu0 %v2473
    %4060 = vmatpush.bf16.msra.mxu0 %v2469
    %4061 = vmatpush.bf16.msra.mxu0 %v2465
    %4062 = vmatpush.bf16.msra.mxu0 %v2461
    %4063 = vmatpush.bf16.msra.mxu0 %v2457
    %4064 = vmatpush.bf16.msra.mxu0 %v2453
    %4065 = vmatmul.bf16.gmra.mxu0 %v670
    %v4066 = vpop.f32.mrf.mxu0
    %v4067 = vadd.f32 0.0, %v4066
    %v4068 = vpop.f32.mrf.mxu0
    %v4069 = vadd.f32 0.0, %v4068
    %4070 = vdwg.mxu0
    %4071 = vmatpush.bf16.msra.mxu0 %v2513
    %4072 = vmatpush.bf16.msra.mxu0 %v2509
    %4073 = vmatpush.bf16.msra.mxu0 %v2505
    %4074 = vmatpush.bf16.msra.mxu0 %v2501
    %4075 = vmatpush.bf16.msra.mxu0 %v2497
    %4076 = vmatpush.bf16.msra.mxu0 %v2493
    %4077 = vmatpush.bf16.msra.mxu0 %v2489
    %4078 = vmatpush.bf16.msra.mxu0 %v2485
    %4079 = vmatmul.bf16.gmra.mxu0 %v671
    %v4080 = vpop.f32.mrf.mxu0
    %v4081 = vadd.f32 %v4067, %v4080
    %v4082 = vpop.f32.mrf.mxu0
    %v4083 = vadd.f32 %v4069, %v4082
    %4084 = vdwg.mxu0
    %4085 = vmatpush.bf16.msra.mxu0 %v2482
    %4086 = vmatpush.bf16.msra.mxu0 %v2478
    %4087 = vmatpush.bf16.msra.mxu0 %v2474
    %4088 = vmatpush.bf16.msra.mxu0 %v2470
    %4089 = vmatpush.bf16.msra.mxu0 %v2466
    %4090 = vmatpush.bf16.msra.mxu0 %v2462
    %4091 = vmatpush.bf16.msra.mxu0 %v2458
    %4092 = vmatpush.bf16.msra.mxu0 %v2454
    %4093 = vmatmul.bf16.gmra.mxu0 %v670
    %v4094 = vpop.f32.mrf.mxu0
    %v4095 = vadd.f32 0.0, %v4094
    %v4096 = vpop.f32.mrf.mxu0
    %v4097 = vadd.f32 0.0, %v4096
    %4098 = vdwg.mxu0
    %4099 = vmatpush.bf16.msra.mxu0 %v2514
    %4100 = vmatpush.bf16.msra.mxu0 %v2510
    %4101 = vmatpush.bf16.msra.mxu0 %v2506
    %4102 = vmatpush.bf16.msra.mxu0 %v2502
    %4103 = vmatpush.bf16.msra.mxu0 %v2498
    %4104 = vmatpush.bf16.msra.mxu0 %v2494
    %4105 = vmatpush.bf16.msra.mxu0 %v2490
    %4106 = vmatpush.bf16.msra.mxu0 %v2486
    %4107 = vmatmul.bf16.gmra.mxu0 %v671
    %v4108 = vpop.f32.mrf.mxu0
    %v4109 = vadd.f32 %v4095, %v4108
    %v4110 = vpop.f32.mrf.mxu0
    %v4111 = vadd.f32 %v4097, %v4110
    %4112 = vdwg.mxu0
    %4113 = vmatpush.bf16.msra.mxu0 %v2483
    %4114 = vmatpush.bf16.msra.mxu0 %v2479
    %4115 = vmatpush.bf16.msra.mxu0 %v2475
    %4116 = vmatpush.bf16.msra.mxu0 %v2471
    %4117 = vmatpush.bf16.msra.mxu0 %v2467
    %4118 = vmatpush.bf16.msra.mxu0 %v2463
    %4119 = vmatpush.bf16.msra.mxu0 %v2459
    %4120 = vmatpush.bf16.msra.mxu0 %v2455
    %4121 = vmatmul.bf16.gmra.mxu0 %v670
    %v4122 = vpop.f32.mrf.mxu0
    %v4123 = vadd.f32 0.0, %v4122
    %v4124 = vpop.f32.mrf.mxu0
    %v4125 = vadd.f32 0.0, %v4124
    %4126 = vdwg.mxu0
    %4127 = vmatpush.bf16.msra.mxu0 %v2515
    %4128 = vmatpush.bf16.msra.mxu0 %v2511
    %4129 = vmatpush.bf16.msra.mxu0 %v2507
    %4130 = vmatpush.bf16.msra.mxu0 %v2503
    %4131 = vmatpush.bf16.msra.mxu0 %v2499
    %4132 = vmatpush.bf16.msra.mxu0 %v2495
    %4133 = vmatpush.bf16.msra.mxu0 %v2491
    %4134 = vmatpush.bf16.msra.mxu0 %v2487
    %4135 = vmatmul.bf16.gmra.mxu0 %v671
    %v4136 = vpop.f32.mrf.mxu0
    %v4137 = vadd.f32 %v4123, %v4136
    %v4138 = vpop.f32.mrf.mxu0
    %v4139 = vadd.f32 %v4125, %v4138
    %4140 = vdwg.mxu0
    %4141 = vmatpush.bf16.msra.mxu0 %v2484
    %4142 = vmatpush.bf16.msra.mxu0 %v2480
    %4143 = vmatpush.bf16.msra.mxu0 %v2476
    %4144 = vmatpush.bf16.msra.mxu0 %v2472
    %4145 = vmatpush.bf16.msra.mxu0 %v2468
    %4146 = vmatpush.bf16.msra.mxu0 %v2464
    %4147 = vmatpush.bf16.msra.mxu0 %v2460
    %4148 = vmatpush.bf16.msra.mxu0 %v2456
    %4149 = vmatmul.bf16.gmra.mxu0 %v670
    %v4150 = vpop.f32.mrf.mxu0
    %v4151 = vadd.f32 0.0, %v4150
    %v4152 = vpop.f32.mrf.mxu0
    %v4153 = vadd.f32 0.0, %v4152
    %4154 = vdwg.mxu0
    %4155 = vmatpush.bf16.msra.mxu0 %v2516
    %4156 = vmatpush.bf16.msra.mxu0 %v2512
    %4157 = vmatpush.bf16.msra.mxu0 %v2508
    %4158 = vmatpush.bf16.msra.mxu0 %v2504
    %4159 = vmatpush.bf16.msra.mxu0 %v2500
    %4160 = vmatpush.bf16.msra.mxu0 %v2496
    %4161 = vmatpush.bf16.msra.mxu0 %v2492
    %4162 = vmatpush.bf16.msra.mxu0 %v2488
    %4163 = vmatmul.bf16.gmra.mxu0 %v671
    %v4164 = vpop.f32.mrf.mxu0
    %v4165 = vadd.f32 %v4151, %v4164
    %v4166 = vpop.f32.mrf.mxu0
    %v4167 = vadd.f32 %v4153, %v4166
    %4168 = vdwg.mxu0
    %v4169 = vadd.f32 %v4049, %v4081
    %v4170 = vadd.f32 %v4050, %v4109
    %v4171 = vadd.f32 %v4051, %v4137
    %v4172 = vadd.f32 %v4052, %v4165
    %v4173 = vadd.f32 %v4053, %v4083
    %v4174 = vadd.f32 %v4054, %v4111
    %v4175 = vadd.f32 %v4055, %v4139
    %v4176 = vadd.f32 %v4056, %v4167
    %v4177 = vmax.f32 %v4169, 0.0
    %v4178 = vmax.f32 %v4170, 0.0
    %v4179 = vmax.f32 %v4171, 0.0
    %v4180 = vmax.f32 %v4172, 0.0
    %v4181 = vmax.f32 %v4173, 0.0
    %v4182 = vmax.f32 %v4174, 0.0
    %v4183 = vmax.f32 %v4175, 0.0
    %v4184 = vmax.f32 %v4176, 0.0
    %v4185 = vpack.c.bf16 %v4181, %v4177
    %v4186 = vpack.c.bf16 %v4182, %v4178
    %v4187 = vpack.c.bf16 %v4183, %v4179
    %v4188 = vpack.c.bf16 %v4184, %v4180
    %v4189 = vld [vmem:[#allocation10] sm:$0xff]
    %v4190 = vld [vmem:[#allocation9] sm:$0xff]
    %v4191 = vld [vmem:[#allocation9 + $0x8] sm:$0xff]
    %v4192 = vld [vmem:[#allocation9 + $0x10] sm:$0xff]
    %v4193 = vld [vmem:[#allocation9 + $0x18] sm:$0xff]
    %v4194 = vld [vmem:[#allocation9 + $0x20] sm:$0xff]
    %v4195 = vld [vmem:[#allocation9 + $0x28] sm:$0xff]
    %v4196 = vld [vmem:[#allocation9 + $0x30] sm:$0xff]
    %v4197 = vld [vmem:[#allocation9 + $0x38] sm:$0xff]
    %v4198 = vld [vmem:[#allocation9 + $0x40] sm:$0xff]
    %v4199 = vld [vmem:[#allocation9 + $0x48] sm:$0xff]
    %v4200 = vld [vmem:[#allocation9 + $0x50] sm:$0xff]
    %v4201 = vld [vmem:[#allocation9 + $0x58] sm:$0xff]
    %v4202 = vld [vmem:[#allocation9 + $0x60] sm:$0xff]
    %v4203 = vld [vmem:[#allocation9 + $0x68] sm:$0xff]
    %v4204 = vld [vmem:[#allocation9 + $0x70] sm:$0xff]
    %v4205 = vld [vmem:[#allocation9 + $0x78] sm:$0xff]
    %v4206 = vld [vmem:[#allocation9 + $0x80] sm:$0xff]
    %v4207 = vld [vmem:[#allocation9 + $0x88] sm:$0xff]
    %v4208 = vld [vmem:[#allocation9 + $0x90] sm:$0xff]
    %v4209 = vld [vmem:[#allocation9 + $0x98] sm:$0xff]
    %v4210 = vld [vmem:[#allocation9 + $0xa0] sm:$0xff]
    %v4211 = vld [vmem:[#allocation9 + $0xa8] sm:$0xff]
    %v4212 = vld [vmem:[#allocation9 + $0xb0] sm:$0xff]
    %v4213 = vld [vmem:[#allocation9 + $0xb8] sm:$0xff]
    %v4214 = vld [vmem:[#allocation9 + $0xc0] sm:$0xff]
    %v4215 = vld [vmem:[#allocation9 + $0xc8] sm:$0xff]
    %v4216 = vld [vmem:[#allocation9 + $0xd0] sm:$0xff]
    %v4217 = vld [vmem:[#allocation9 + $0xd8] sm:$0xff]
    %v4218 = vld [vmem:[#allocation9 + $0xe0] sm:$0xff]
    %v4219 = vld [vmem:[#allocation9 + $0xe8] sm:$0xff]
    %v4220 = vld [vmem:[#allocation9 + $0xf0] sm:$0xff]
    %v4221 = vld [vmem:[#allocation9 + $0xf8] sm:$0xff]
    %v4222 = vld [vmem:[#allocation9 + $0x100] sm:$0xff]
    %v4223 = vld [vmem:[#allocation9 + $0x108] sm:$0xff]
    %v4224 = vld [vmem:[#allocation9 + $0x110] sm:$0xff]
    %v4225 = vld [vmem:[#allocation9 + $0x118] sm:$0xff]
    %v4226 = vld [vmem:[#allocation9 + $0x120] sm:$0xff]
    %v4227 = vld [vmem:[#allocation9 + $0x128] sm:$0xff]
    %v4228 = vld [vmem:[#allocation9 + $0x130] sm:$0xff]
    %v4229 = vld [vmem:[#allocation9 + $0x138] sm:$0xff]
    %v4230 = vld [vmem:[#allocation9 + $0x140] sm:$0xff]
    %v4231 = vld [vmem:[#allocation9 + $0x148] sm:$0xff]
    %v4232 = vld [vmem:[#allocation9 + $0x150] sm:$0xff]
    %v4233 = vld [vmem:[#allocation9 + $0x158] sm:$0xff]
    %v4234 = vld [vmem:[#allocation9 + $0x160] sm:$0xff]
    %v4235 = vld [vmem:[#allocation9 + $0x168] sm:$0xff]
    %v4236 = vld [vmem:[#allocation9 + $0x170] sm:$0xff]
    %v4237 = vld [vmem:[#allocation9 + $0x178] sm:$0xff]
    %v4238 = vld [vmem:[#allocation9 + $0x180] sm:$0xff]
    %v4239 = vld [vmem:[#allocation9 + $0x188] sm:$0xff]
    %v4240 = vld [vmem:[#allocation9 + $0x190] sm:$0xff]
    %v4241 = vld [vmem:[#allocation9 + $0x198] sm:$0xff]
    %v4242 = vld [vmem:[#allocation9 + $0x1a0] sm:$0xff]
    %v4243 = vld [vmem:[#allocation9 + $0x1a8] sm:$0xff]
    %v4244 = vld [vmem:[#allocation9 + $0x1b0] sm:$0xff]
    %v4245 = vld [vmem:[#allocation9 + $0x1b8] sm:$0xff]
    %v4246 = vld [vmem:[#allocation9 + $0x1c0] sm:$0xff]
    %v4247 = vld [vmem:[#allocation9 + $0x1c8] sm:$0xff]
    %v4248 = vld [vmem:[#allocation9 + $0x1d0] sm:$0xff]
    %v4249 = vld [vmem:[#allocation9 + $0x1d8] sm:$0xff]
    %v4250 = vld [vmem:[#allocation9 + $0x1e0] sm:$0xff]
    %v4251 = vld [vmem:[#allocation9 + $0x1e8] sm:$0xff]
    %v4252 = vld [vmem:[#allocation9 + $0x1f0] sm:$0xff]
    %v4253 = vld [vmem:[#allocation9 + $0x1f8] sm:$0xff]
    %v4254 = vld [vmem:[#allocation9 + $0x200] sm:$0xff]
    %v4255 = vld [vmem:[#allocation9 + $0x208] sm:$0xff]
    %v4256 = vld [vmem:[#allocation9 + $0x210] sm:$0xff]
    %v4257 = vld [vmem:[#allocation9 + $0x218] sm:$0xff]
    %v4258 = vld [vmem:[#allocation9 + $0x220] sm:$0xff]
    %v4259 = vld [vmem:[#allocation9 + $0x228] sm:$0xff]
    %v4260 = vld [vmem:[#allocation9 + $0x230] sm:$0xff]
    %v4261 = vld [vmem:[#allocation9 + $0x238] sm:$0xff]
    %v4262 = vld [vmem:[#allocation9 + $0x240] sm:$0xff]
    %v4263 = vld [vmem:[#allocation9 + $0x248] sm:$0xff]
    %v4264 = vld [vmem:[#allocation9 + $0x250] sm:$0xff]
    %v4265 = vld [vmem:[#allocation9 + $0x258] sm:$0xff]
    %v4266 = vld [vmem:[#allocation9 + $0x260] sm:$0xff]
    %v4267 = vld [vmem:[#allocation9 + $0x268] sm:$0xff]
    %v4268 = vld [vmem:[#allocation9 + $0x270] sm:$0xff]
    %v4269 = vld [vmem:[#allocation9 + $0x278] sm:$0xff]
    %v4270 = vld [vmem:[#allocation9 + $0x280] sm:$0xff]
    %v4271 = vld [vmem:[#allocation9 + $0x288] sm:$0xff]
    %v4272 = vld [vmem:[#allocation9 + $0x290] sm:$0xff]
    %v4273 = vld [vmem:[#allocation9 + $0x298] sm:$0xff]
    %v4274 = vld [vmem:[#allocation9 + $0x2a0] sm:$0xff]
    %v4275 = vld [vmem:[#allocation9 + $0x2a8] sm:$0xff]
    %v4276 = vld [vmem:[#allocation9 + $0x2b0] sm:$0xff]
    %v4277 = vld [vmem:[#allocation9 + $0x2b8] sm:$0xff]
    %v4278 = vld [vmem:[#allocation9 + $0x2c0] sm:$0xff]
    %v4279 = vld [vmem:[#allocation9 + $0x2c8] sm:$0xff]
    %v4280 = vld [vmem:[#allocation9 + $0x2d0] sm:$0xff]
    %v4281 = vld [vmem:[#allocation9 + $0x2d8] sm:$0xff]
    %v4282 = vld [vmem:[#allocation9 + $0x2e0] sm:$0xff]
    %v4283 = vld [vmem:[#allocation9 + $0x2e8] sm:$0xff]
    %v4284 = vld [vmem:[#allocation9 + $0x2f0] sm:$0xff]
    %v4285 = vld [vmem:[#allocation9 + $0x2f8] sm:$0xff]
    %v4286 = vld [vmem:[#allocation9 + $0x300] sm:$0xff]
    %v4287 = vld [vmem:[#allocation9 + $0x308] sm:$0xff]
    %v4288 = vld [vmem:[#allocation9 + $0x310] sm:$0xff]
    %v4289 = vld [vmem:[#allocation9 + $0x318] sm:$0xff]
    %v4290 = vld [vmem:[#allocation9 + $0x320] sm:$0xff]
    %v4291 = vld [vmem:[#allocation9 + $0x328] sm:$0xff]
    %v4292 = vld [vmem:[#allocation9 + $0x330] sm:$0xff]
    %v4293 = vld [vmem:[#allocation9 + $0x338] sm:$0xff]
    %v4294 = vld [vmem:[#allocation9 + $0x340] sm:$0xff]
    %v4295 = vld [vmem:[#allocation9 + $0x348] sm:$0xff]
    %v4296 = vld [vmem:[#allocation9 + $0x350] sm:$0xff]
    %v4297 = vld [vmem:[#allocation9 + $0x358] sm:$0xff]
    %v4298 = vld [vmem:[#allocation9 + $0x360] sm:$0xff]
    %v4299 = vld [vmem:[#allocation9 + $0x368] sm:$0xff]
    %v4300 = vld [vmem:[#allocation9 + $0x370] sm:$0xff]
    %v4301 = vld [vmem:[#allocation9 + $0x378] sm:$0xff]
    %v4302 = vld [vmem:[#allocation9 + $0x380] sm:$0xff]
    %v4303 = vld [vmem:[#allocation9 + $0x388] sm:$0xff]
    %v4304 = vld [vmem:[#allocation9 + $0x390] sm:$0xff]
    %v4305 = vld [vmem:[#allocation9 + $0x398] sm:$0xff]
    %v4306 = vld [vmem:[#allocation9 + $0x3a0] sm:$0xff]
    %v4307 = vld [vmem:[#allocation9 + $0x3a8] sm:$0xff]
    %v4308 = vld [vmem:[#allocation9 + $0x3b0] sm:$0xff]
    %v4309 = vld [vmem:[#allocation9 + $0x3b8] sm:$0xff]
    %v4310 = vld [vmem:[#allocation9 + $0x3c0] sm:$0xff]
    %v4311 = vld [vmem:[#allocation9 + $0x3c8] sm:$0xff]
    %v4312 = vld [vmem:[#allocation9 + $0x3d0] sm:$0xff]
    %v4313 = vld [vmem:[#allocation9 + $0x3d8] sm:$0xff]
    %v4314 = vld [vmem:[#allocation9 + $0x3e0] sm:$0xff]
    %v4315 = vld [vmem:[#allocation9 + $0x3e8] sm:$0xff]
    %v4316 = vld [vmem:[#allocation9 + $0x3f0] sm:$0xff]
    %v4317 = vld [vmem:[#allocation9 + $0x3f8] sm:$0xff]
    %v4318 = vld [vmem:[#allocation9 + $0x400] sm:$0xff]
    %v4319 = vld [vmem:[#allocation9 + $0x408] sm:$0xff]
    %v4320 = vld [vmem:[#allocation9 + $0x410] sm:$0xff]
    %v4321 = vld [vmem:[#allocation9 + $0x418] sm:$0xff]
    %v4322 = vld [vmem:[#allocation9 + $0x420] sm:$0xff]
    %v4323 = vld [vmem:[#allocation9 + $0x428] sm:$0xff]
    %v4324 = vld [vmem:[#allocation9 + $0x430] sm:$0xff]
    %v4325 = vld [vmem:[#allocation9 + $0x438] sm:$0xff]
    %v4326 = vld [vmem:[#allocation9 + $0x440] sm:$0xff]
    %v4327 = vld [vmem:[#allocation9 + $0x448] sm:$0xff]
    %v4328 = vld [vmem:[#allocation9 + $0x450] sm:$0xff]
    %v4329 = vld [vmem:[#allocation9 + $0x458] sm:$0xff]
    %v4330 = vld [vmem:[#allocation9 + $0x460] sm:$0xff]
    %v4331 = vld [vmem:[#allocation9 + $0x468] sm:$0xff]
    %v4332 = vld [vmem:[#allocation9 + $0x470] sm:$0xff]
    %v4333 = vld [vmem:[#allocation9 + $0x478] sm:$0xff]
    %v4334 = vld [vmem:[#allocation9 + $0x480] sm:$0xff]
    %v4335 = vld [vmem:[#allocation9 + $0x488] sm:$0xff]
    %v4336 = vld [vmem:[#allocation9 + $0x490] sm:$0xff]
    %v4337 = vld [vmem:[#allocation9 + $0x498] sm:$0xff]
    %v4338 = vld [vmem:[#allocation9 + $0x4a0] sm:$0xff]
    %v4339 = vld [vmem:[#allocation9 + $0x4a8] sm:$0xff]
    %v4340 = vld [vmem:[#allocation9 + $0x4b0] sm:$0xff]
    %v4341 = vld [vmem:[#allocation9 + $0x4b8] sm:$0xff]
    %v4342 = vld [vmem:[#allocation9 + $0x4c0] sm:$0xff]
    %v4343 = vld [vmem:[#allocation9 + $0x4c8] sm:$0xff]
    %v4344 = vld [vmem:[#allocation9 + $0x4d0] sm:$0xff]
    %v4345 = vld [vmem:[#allocation9 + $0x4d8] sm:$0xff]
    %v4346 = vld [vmem:[#allocation9 + $0x4e0] sm:$0xff]
    %v4347 = vld [vmem:[#allocation9 + $0x4e8] sm:$0xff]
    %v4348 = vld [vmem:[#allocation9 + $0x4f0] sm:$0xff]
    %v4349 = vld [vmem:[#allocation9 + $0x4f8] sm:$0xff]
    %v4350 = vld [vmem:[#allocation9 + $0x500] sm:$0xff]
    %v4351 = vld [vmem:[#allocation9 + $0x508] sm:$0xff]
    %v4352 = vld [vmem:[#allocation9 + $0x510] sm:$0xff]
    %v4353 = vld [vmem:[#allocation9 + $0x518] sm:$0xff]
    %v4354 = vld [vmem:[#allocation9 + $0x520] sm:$0xff]
    %v4355 = vld [vmem:[#allocation9 + $0x528] sm:$0xff]
    %v4356 = vld [vmem:[#allocation9 + $0x530] sm:$0xff]
    %v4357 = vld [vmem:[#allocation9 + $0x538] sm:$0xff]
    %v4358 = vld [vmem:[#allocation9 + $0x540] sm:$0xff]
    %v4359 = vld [vmem:[#allocation9 + $0x548] sm:$0xff]
    %v4360 = vld [vmem:[#allocation9 + $0x550] sm:$0xff]
    %v4361 = vld [vmem:[#allocation9 + $0x558] sm:$0xff]
    %v4362 = vld [vmem:[#allocation9 + $0x560] sm:$0xff]
    %v4363 = vld [vmem:[#allocation9 + $0x568] sm:$0xff]
    %v4364 = vld [vmem:[#allocation9 + $0x570] sm:$0xff]
    %v4365 = vld [vmem:[#allocation9 + $0x578] sm:$0xff]
    %v4366 = vld [vmem:[#allocation9 + $0x580] sm:$0xff]
    %v4367 = vld [vmem:[#allocation9 + $0x588] sm:$0xff]
    %v4368 = vld [vmem:[#allocation9 + $0x590] sm:$0xff]
    %v4369 = vld [vmem:[#allocation9 + $0x598] sm:$0xff]
    %v4370 = vld [vmem:[#allocation9 + $0x5a0] sm:$0xff]
    %v4371 = vld [vmem:[#allocation9 + $0x5a8] sm:$0xff]
    %v4372 = vld [vmem:[#allocation9 + $0x5b0] sm:$0xff]
    %v4373 = vld [vmem:[#allocation9 + $0x5b8] sm:$0xff]
    %v4374 = vld [vmem:[#allocation9 + $0x5c0] sm:$0xff]
    %v4375 = vld [vmem:[#allocation9 + $0x5c8] sm:$0xff]
    %v4376 = vld [vmem:[#allocation9 + $0x5d0] sm:$0xff]
    %v4377 = vld [vmem:[#allocation9 + $0x5d8] sm:$0xff]
    %v4378 = vld [vmem:[#allocation9 + $0x5e0] sm:$0xff]
    %v4379 = vld [vmem:[#allocation9 + $0x5e8] sm:$0xff]
    %v4380 = vld [vmem:[#allocation9 + $0x5f0] sm:$0xff]
    %v4381 = vld [vmem:[#allocation9 + $0x5f8] sm:$0xff]
    %v4382 = vld [vmem:[#allocation9 + $0x600] sm:$0xff]
    %v4383 = vld [vmem:[#allocation9 + $0x608] sm:$0xff]
    %v4384 = vld [vmem:[#allocation9 + $0x610] sm:$0xff]
    %v4385 = vld [vmem:[#allocation9 + $0x618] sm:$0xff]
    %v4386 = vld [vmem:[#allocation9 + $0x620] sm:$0xff]
    %v4387 = vld [vmem:[#allocation9 + $0x628] sm:$0xff]
    %v4388 = vld [vmem:[#allocation9 + $0x630] sm:$0xff]
    %v4389 = vld [vmem:[#allocation9 + $0x638] sm:$0xff]
    %v4390 = vld [vmem:[#allocation9 + $0x640] sm:$0xff]
    %v4391 = vld [vmem:[#allocation9 + $0x648] sm:$0xff]
    %v4392 = vld [vmem:[#allocation9 + $0x650] sm:$0xff]
    %v4393 = vld [vmem:[#allocation9 + $0x658] sm:$0xff]
    %v4394 = vld [vmem:[#allocation9 + $0x660] sm:$0xff]
    %v4395 = vld [vmem:[#allocation9 + $0x668] sm:$0xff]
    %v4396 = vld [vmem:[#allocation9 + $0x670] sm:$0xff]
    %v4397 = vld [vmem:[#allocation9 + $0x678] sm:$0xff]
    %v4398 = vld [vmem:[#allocation9 + $0x680] sm:$0xff]
    %v4399 = vld [vmem:[#allocation9 + $0x688] sm:$0xff]
    %v4400 = vld [vmem:[#allocation9 + $0x690] sm:$0xff]
    %v4401 = vld [vmem:[#allocation9 + $0x698] sm:$0xff]
    %v4402 = vld [vmem:[#allocation9 + $0x6a0] sm:$0xff]
    %v4403 = vld [vmem:[#allocation9 + $0x6a8] sm:$0xff]
    %v4404 = vld [vmem:[#allocation9 + $0x6b0] sm:$0xff]
    %v4405 = vld [vmem:[#allocation9 + $0x6b8] sm:$0xff]
    %v4406 = vld [vmem:[#allocation9 + $0x6c0] sm:$0xff]
    %v4407 = vld [vmem:[#allocation9 + $0x6c8] sm:$0xff]
    %v4408 = vld [vmem:[#allocation9 + $0x6d0] sm:$0xff]
    %v4409 = vld [vmem:[#allocation9 + $0x6d8] sm:$0xff]
    %v4410 = vld [vmem:[#allocation9 + $0x6e0] sm:$0xff]
    %v4411 = vld [vmem:[#allocation9 + $0x6e8] sm:$0xff]
    %v4412 = vld [vmem:[#allocation9 + $0x6f0] sm:$0xff]
    %v4413 = vld [vmem:[#allocation9 + $0x6f8] sm:$0xff]
    %v4414 = vld [vmem:[#allocation9 + $0x700] sm:$0xff]
    %v4415 = vld [vmem:[#allocation9 + $0x708] sm:$0xff]
    %v4416 = vld [vmem:[#allocation9 + $0x710] sm:$0xff]
    %v4417 = vld [vmem:[#allocation9 + $0x718] sm:$0xff]
    %v4418 = vld [vmem:[#allocation9 + $0x720] sm:$0xff]
    %v4419 = vld [vmem:[#allocation9 + $0x728] sm:$0xff]
    %v4420 = vld [vmem:[#allocation9 + $0x730] sm:$0xff]
    %v4421 = vld [vmem:[#allocation9 + $0x738] sm:$0xff]
    %v4422 = vld [vmem:[#allocation9 + $0x740] sm:$0xff]
    %v4423 = vld [vmem:[#allocation9 + $0x748] sm:$0xff]
    %v4424 = vld [vmem:[#allocation9 + $0x750] sm:$0xff]
    %v4425 = vld [vmem:[#allocation9 + $0x758] sm:$0xff]
    %v4426 = vld [vmem:[#allocation9 + $0x760] sm:$0xff]
    %v4427 = vld [vmem:[#allocation9 + $0x768] sm:$0xff]
    %v4428 = vld [vmem:[#allocation9 + $0x770] sm:$0xff]
    %v4429 = vld [vmem:[#allocation9 + $0x778] sm:$0xff]
    %v4430 = vld [vmem:[#allocation9 + $0x780] sm:$0xff]
    %v4431 = vld [vmem:[#allocation9 + $0x788] sm:$0xff]
    %v4432 = vld [vmem:[#allocation9 + $0x790] sm:$0xff]
    %v4433 = vld [vmem:[#allocation9 + $0x798] sm:$0xff]
    %v4434 = vld [vmem:[#allocation9 + $0x7a0] sm:$0xff]
    %v4435 = vld [vmem:[#allocation9 + $0x7a8] sm:$0xff]
    %v4436 = vld [vmem:[#allocation9 + $0x7b0] sm:$0xff]
    %v4437 = vld [vmem:[#allocation9 + $0x7b8] sm:$0xff]
    %v4438 = vld [vmem:[#allocation9 + $0x7c0] sm:$0xff]
    %v4439 = vld [vmem:[#allocation9 + $0x7c8] sm:$0xff]
    %v4440 = vld [vmem:[#allocation9 + $0x7d0] sm:$0xff]
    %v4441 = vld [vmem:[#allocation9 + $0x7d8] sm:$0xff]
    %v4442 = vld [vmem:[#allocation9 + $0x7e0] sm:$0xff]
    %v4443 = vld [vmem:[#allocation9 + $0x7e8] sm:$0xff]
    %v4444 = vld [vmem:[#allocation9 + $0x7f0] sm:$0xff]
    %v4445 = vld [vmem:[#allocation9 + $0x7f8] sm:$0xff]
    %v4702 = vunpack.c.l.b16 %v4190
    %v4703 = vunpack.c.h.b16 %v4190
    %v4704 = vunpack.c.l.b16 %v4191
    %v4705 = vunpack.c.h.b16 %v4191
    %v4706 = vunpack.c.l.b16 %v4192
    %v4707 = vunpack.c.h.b16 %v4192
    %v4708 = vunpack.c.l.b16 %v4193
    %v4709 = vunpack.c.h.b16 %v4193
    %v4710 = vunpack.c.l.b16 %v4194
    %v4711 = vunpack.c.h.b16 %v4194
    %v4712 = vunpack.c.l.b16 %v4195
    %v4713 = vunpack.c.h.b16 %v4195
    %v4714 = vunpack.c.l.b16 %v4196
    %v4715 = vunpack.c.h.b16 %v4196
    %v4716 = vunpack.c.l.b16 %v4197
    %v4717 = vunpack.c.h.b16 %v4197
    %v4718 = vunpack.c.l.b16 %v4198
    %v4719 = vunpack.c.h.b16 %v4198
    %v4720 = vunpack.c.l.b16 %v4199
    %v4721 = vunpack.c.h.b16 %v4199
    %v4722 = vunpack.c.l.b16 %v4200
    %v4723 = vunpack.c.h.b16 %v4200
    %v4724 = vunpack.c.l.b16 %v4201
    %v4725 = vunpack.c.h.b16 %v4201
    %v4726 = vunpack.c.l.b16 %v4202
    %v4727 = vunpack.c.h.b16 %v4202
    %v4728 = vunpack.c.l.b16 %v4203
    %v4729 = vunpack.c.h.b16 %v4203
    %v4730 = vunpack.c.l.b16 %v4204
    %v4731 = vunpack.c.h.b16 %v4204
    %v4732 = vunpack.c.l.b16 %v4205
    %v4733 = vunpack.c.h.b16 %v4205
    %v4734 = vunpack.c.l.b16 %v4206
    %v4735 = vunpack.c.h.b16 %v4206
    %v4736 = vunpack.c.l.b16 %v4207
    %v4737 = vunpack.c.h.b16 %v4207
    %v4738 = vunpack.c.l.b16 %v4208
    %v4739 = vunpack.c.h.b16 %v4208
    %v4740 = vunpack.c.l.b16 %v4209
    %v4741 = vunpack.c.h.b16 %v4209
    %v4742 = vunpack.c.l.b16 %v4210
    %v4743 = vunpack.c.h.b16 %v4210
    %v4744 = vunpack.c.l.b16 %v4211
    %v4745 = vunpack.c.h.b16 %v4211
    %v4746 = vunpack.c.l.b16 %v4212
    %v4747 = vunpack.c.h.b16 %v4212
    %v4748 = vunpack.c.l.b16 %v4213
    %v4749 = vunpack.c.h.b16 %v4213
    %v4750 = vunpack.c.l.b16 %v4214
    %v4751 = vunpack.c.h.b16 %v4214
    %v4752 = vunpack.c.l.b16 %v4215
    %v4753 = vunpack.c.h.b16 %v4215
    %v4754 = vunpack.c.l.b16 %v4216
    %v4755 = vunpack.c.h.b16 %v4216
    %v4756 = vunpack.c.l.b16 %v4217
    %v4757 = vunpack.c.h.b16 %v4217
    %v4758 = vunpack.c.l.b16 %v4218
    %v4759 = vunpack.c.h.b16 %v4218
    %v4760 = vunpack.c.l.b16 %v4219
    %v4761 = vunpack.c.h.b16 %v4219
    %v4762 = vunpack.c.l.b16 %v4220
    %v4763 = vunpack.c.h.b16 %v4220
    %v4764 = vunpack.c.l.b16 %v4221
    %v4765 = vunpack.c.h.b16 %v4221
    %v4766 = vunpack.c.l.b16 %v4222
    %v4767 = vunpack.c.h.b16 %v4222
    %v4768 = vunpack.c.l.b16 %v4223
    %v4769 = vunpack.c.h.b16 %v4223
    %v4770 = vunpack.c.l.b16 %v4224
    %v4771 = vunpack.c.h.b16 %v4224
    %v4772 = vunpack.c.l.b16 %v4225
    %v4773 = vunpack.c.h.b16 %v4225
    %v4774 = vunpack.c.l.b16 %v4226
    %v4775 = vunpack.c.h.b16 %v4226
    %v4776 = vunpack.c.l.b16 %v4227
    %v4777 = vunpack.c.h.b16 %v4227
    %v4778 = vunpack.c.l.b16 %v4228
    %v4779 = vunpack.c.h.b16 %v4228
    %v4780 = vunpack.c.l.b16 %v4229
    %v4781 = vunpack.c.h.b16 %v4229
    %v4782 = vunpack.c.l.b16 %v4230
    %v4783 = vunpack.c.h.b16 %v4230
    %v4784 = vunpack.c.l.b16 %v4231
    %v4785 = vunpack.c.h.b16 %v4231
    %v4786 = vunpack.c.l.b16 %v4232
    %v4787 = vunpack.c.h.b16 %v4232
    %v4788 = vunpack.c.l.b16 %v4233
    %v4789 = vunpack.c.h.b16 %v4233
    %v4790 = vunpack.c.l.b16 %v4234
    %v4791 = vunpack.c.h.b16 %v4234
    %v4792 = vunpack.c.l.b16 %v4235
    %v4793 = vunpack.c.h.b16 %v4235
    %v4794 = vunpack.c.l.b16 %v4236
    %v4795 = vunpack.c.h.b16 %v4236
    %v4796 = vunpack.c.l.b16 %v4237
    %v4797 = vunpack.c.h.b16 %v4237
    %v4798 = vunpack.c.l.b16 %v4238
    %v4799 = vunpack.c.h.b16 %v4238
    %v4800 = vunpack.c.l.b16 %v4239
    %v4801 = vunpack.c.h.b16 %v4239
    %v4802 = vunpack.c.l.b16 %v4240
    %v4803 = vunpack.c.h.b16 %v4240
    %v4804 = vunpack.c.l.b16 %v4241
    %v4805 = vunpack.c.h.b16 %v4241
    %v4806 = vunpack.c.l.b16 %v4242
    %v4807 = vunpack.c.h.b16 %v4242
    %v4808 = vunpack.c.l.b16 %v4243
    %v4809 = vunpack.c.h.b16 %v4243
    %v4810 = vunpack.c.l.b16 %v4244
    %v4811 = vunpack.c.h.b16 %v4244
    %v4812 = vunpack.c.l.b16 %v4245
    %v4813 = vunpack.c.h.b16 %v4245
    %v4814 = vunpack.c.l.b16 %v4246
    %v4815 = vunpack.c.h.b16 %v4246
    %v4816 = vunpack.c.l.b16 %v4247
    %v4817 = vunpack.c.h.b16 %v4247
    %v4818 = vunpack.c.l.b16 %v4248
    %v4819 = vunpack.c.h.b16 %v4248
    %v4820 = vunpack.c.l.b16 %v4249
    %v4821 = vunpack.c.h.b16 %v4249
    %v4822 = vunpack.c.l.b16 %v4250
    %v4823 = vunpack.c.h.b16 %v4250
    %v4824 = vunpack.c.l.b16 %v4251
    %v4825 = vunpack.c.h.b16 %v4251
    %v4826 = vunpack.c.l.b16 %v4252
    %v4827 = vunpack.c.h.b16 %v4252
    %v4828 = vunpack.c.l.b16 %v4253
    %v4829 = vunpack.c.h.b16 %v4253
    %v4830 = vunpack.c.l.b16 %v4254
    %v4831 = vunpack.c.h.b16 %v4254
    %v4832 = vunpack.c.l.b16 %v4255
    %v4833 = vunpack.c.h.b16 %v4255
    %v4834 = vunpack.c.l.b16 %v4256
    %v4835 = vunpack.c.h.b16 %v4256
    %v4836 = vunpack.c.l.b16 %v4257
    %v4837 = vunpack.c.h.b16 %v4257
    %v4838 = vunpack.c.l.b16 %v4258
    %v4839 = vunpack.c.h.b16 %v4258
    %v4840 = vunpack.c.l.b16 %v4259
    %v4841 = vunpack.c.h.b16 %v4259
    %v4842 = vunpack.c.l.b16 %v4260
    %v4843 = vunpack.c.h.b16 %v4260
    %v4844 = vunpack.c.l.b16 %v4261
    %v4845 = vunpack.c.h.b16 %v4261
    %v4846 = vunpack.c.l.b16 %v4262
    %v4847 = vunpack.c.h.b16 %v4262
    %v4848 = vunpack.c.l.b16 %v4263
    %v4849 = vunpack.c.h.b16 %v4263
    %v4850 = vunpack.c.l.b16 %v4264
    %v4851 = vunpack.c.h.b16 %v4264
    %v4852 = vunpack.c.l.b16 %v4265
    %v4853 = vunpack.c.h.b16 %v4265
    %v4854 = vunpack.c.l.b16 %v4266
    %v4855 = vunpack.c.h.b16 %v4266
    %v4856 = vunpack.c.l.b16 %v4267
    %v4857 = vunpack.c.h.b16 %v4267
    %v4858 = vunpack.c.l.b16 %v4268
    %v4859 = vunpack.c.h.b16 %v4268
    %v4860 = vunpack.c.l.b16 %v4269
    %v4861 = vunpack.c.h.b16 %v4269
    %v4862 = vunpack.c.l.b16 %v4270
    %v4863 = vunpack.c.h.b16 %v4270
    %v4864 = vunpack.c.l.b16 %v4271
    %v4865 = vunpack.c.h.b16 %v4271
    %v4866 = vunpack.c.l.b16 %v4272
    %v4867 = vunpack.c.h.b16 %v4272
    %v4868 = vunpack.c.l.b16 %v4273
    %v4869 = vunpack.c.h.b16 %v4273
    %v4870 = vunpack.c.l.b16 %v4274
    %v4871 = vunpack.c.h.b16 %v4274
    %v4872 = vunpack.c.l.b16 %v4275
    %v4873 = vunpack.c.h.b16 %v4275
    %v4874 = vunpack.c.l.b16 %v4276
    %v4875 = vunpack.c.h.b16 %v4276
    %v4876 = vunpack.c.l.b16 %v4277
    %v4877 = vunpack.c.h.b16 %v4277
    %v4878 = vunpack.c.l.b16 %v4278
    %v4879 = vunpack.c.h.b16 %v4278
    %v4880 = vunpack.c.l.b16 %v4279
    %v4881 = vunpack.c.h.b16 %v4279
    %v4882 = vunpack.c.l.b16 %v4280
    %v4883 = vunpack.c.h.b16 %v4280
    %v4884 = vunpack.c.l.b16 %v4281
    %v4885 = vunpack.c.h.b16 %v4281
    %v4886 = vunpack.c.l.b16 %v4282
    %v4887 = vunpack.c.h.b16 %v4282
    %v4888 = vunpack.c.l.b16 %v4283
    %v4889 = vunpack.c.h.b16 %v4283
    %v4890 = vunpack.c.l.b16 %v4284
    %v4891 = vunpack.c.h.b16 %v4284
    %v4892 = vunpack.c.l.b16 %v4285
    %v4893 = vunpack.c.h.b16 %v4285
    %v4894 = vunpack.c.l.b16 %v4286
    %v4895 = vunpack.c.h.b16 %v4286
    %v4896 = vunpack.c.l.b16 %v4287
    %v4897 = vunpack.c.h.b16 %v4287
    %v4898 = vunpack.c.l.b16 %v4288
    %v4899 = vunpack.c.h.b16 %v4288
    %v4900 = vunpack.c.l.b16 %v4289
    %v4901 = vunpack.c.h.b16 %v4289
    %v4902 = vunpack.c.l.b16 %v4290
    %v4903 = vunpack.c.h.b16 %v4290
    %v4904 = vunpack.c.l.b16 %v4291
    %v4905 = vunpack.c.h.b16 %v4291
    %v4906 = vunpack.c.l.b16 %v4292
    %v4907 = vunpack.c.h.b16 %v4292
    %v4908 = vunpack.c.l.b16 %v4293
    %v4909 = vunpack.c.h.b16 %v4293
    %v4910 = vunpack.c.l.b16 %v4294
    %v4911 = vunpack.c.h.b16 %v4294
    %v4912 = vunpack.c.l.b16 %v4295
    %v4913 = vunpack.c.h.b16 %v4295
    %v4914 = vunpack.c.l.b16 %v4296
    %v4915 = vunpack.c.h.b16 %v4296
    %v4916 = vunpack.c.l.b16 %v4297
    %v4917 = vunpack.c.h.b16 %v4297
    %v4918 = vunpack.c.l.b16 %v4298
    %v4919 = vunpack.c.h.b16 %v4298
    %v4920 = vunpack.c.l.b16 %v4299
    %v4921 = vunpack.c.h.b16 %v4299
    %v4922 = vunpack.c.l.b16 %v4300
    %v4923 = vunpack.c.h.b16 %v4300
    %v4924 = vunpack.c.l.b16 %v4301
    %v4925 = vunpack.c.h.b16 %v4301
    %v4926 = vunpack.c.l.b16 %v4302
    %v4927 = vunpack.c.h.b16 %v4302
    %v4928 = vunpack.c.l.b16 %v4303
    %v4929 = vunpack.c.h.b16 %v4303
    %v4930 = vunpack.c.l.b16 %v4304
    %v4931 = vunpack.c.h.b16 %v4304
    %v4932 = vunpack.c.l.b16 %v4305
    %v4933 = vunpack.c.h.b16 %v4305
    %v4934 = vunpack.c.l.b16 %v4306
    %v4935 = vunpack.c.h.b16 %v4306
    %v4936 = vunpack.c.l.b16 %v4307
    %v4937 = vunpack.c.h.b16 %v4307
    %v4938 = vunpack.c.l.b16 %v4308
    %v4939 = vunpack.c.h.b16 %v4308
    %v4940 = vunpack.c.l.b16 %v4309
    %v4941 = vunpack.c.h.b16 %v4309
    %v4942 = vunpack.c.l.b16 %v4310
    %v4943 = vunpack.c.h.b16 %v4310
    %v4944 = vunpack.c.l.b16 %v4311
    %v4945 = vunpack.c.h.b16 %v4311
    %v4946 = vunpack.c.l.b16 %v4312
    %v4947 = vunpack.c.h.b16 %v4312
    %v4948 = vunpack.c.l.b16 %v4313
    %v4949 = vunpack.c.h.b16 %v4313
    %v4950 = vunpack.c.l.b16 %v4314
    %v4951 = vunpack.c.h.b16 %v4314
    %v4952 = vunpack.c.l.b16 %v4315
    %v4953 = vunpack.c.h.b16 %v4315
    %v4954 = vunpack.c.l.b16 %v4316
    %v4955 = vunpack.c.h.b16 %v4316
    %v4956 = vunpack.c.l.b16 %v4317
    %v4957 = vunpack.c.h.b16 %v4317
    %v4958 = vunpack.c.l.b16 %v4318
    %v4959 = vunpack.c.h.b16 %v4318
    %v4960 = vunpack.c.l.b16 %v4319
    %v4961 = vunpack.c.h.b16 %v4319
    %v4962 = vunpack.c.l.b16 %v4320
    %v4963 = vunpack.c.h.b16 %v4320
    %v4964 = vunpack.c.l.b16 %v4321
    %v4965 = vunpack.c.h.b16 %v4321
    %v4966 = vunpack.c.l.b16 %v4322
    %v4967 = vunpack.c.h.b16 %v4322
    %v4968 = vunpack.c.l.b16 %v4323
    %v4969 = vunpack.c.h.b16 %v4323
    %v4970 = vunpack.c.l.b16 %v4324
    %v4971 = vunpack.c.h.b16 %v4324
    %v4972 = vunpack.c.l.b16 %v4325
    %v4973 = vunpack.c.h.b16 %v4325
    %v4974 = vunpack.c.l.b16 %v4326
    %v4975 = vunpack.c.h.b16 %v4326
    %v4976 = vunpack.c.l.b16 %v4327
    %v4977 = vunpack.c.h.b16 %v4327
    %v4978 = vunpack.c.l.b16 %v4328
    %v4979 = vunpack.c.h.b16 %v4328
    %v4980 = vunpack.c.l.b16 %v4329
    %v4981 = vunpack.c.h.b16 %v4329
    %v4982 = vunpack.c.l.b16 %v4330
    %v4983 = vunpack.c.h.b16 %v4330
    %v4984 = vunpack.c.l.b16 %v4331
    %v4985 = vunpack.c.h.b16 %v4331
    %v4986 = vunpack.c.l.b16 %v4332
    %v4987 = vunpack.c.h.b16 %v4332
    %v4988 = vunpack.c.l.b16 %v4333
    %v4989 = vunpack.c.h.b16 %v4333
    %v4990 = vunpack.c.l.b16 %v4334
    %v4991 = vunpack.c.h.b16 %v4334
    %v4992 = vunpack.c.l.b16 %v4335
    %v4993 = vunpack.c.h.b16 %v4335
    %v4994 = vunpack.c.l.b16 %v4336
    %v4995 = vunpack.c.h.b16 %v4336
    %v4996 = vunpack.c.l.b16 %v4337
    %v4997 = vunpack.c.h.b16 %v4337
    %v4998 = vunpack.c.l.b16 %v4338
    %v4999 = vunpack.c.h.b16 %v4338
    %v5000 = vunpack.c.l.b16 %v4339
    %v5001 = vunpack.c.h.b16 %v4339
    %v5002 = vunpack.c.l.b16 %v4340
    %v5003 = vunpack.c.h.b16 %v4340
    %v5004 = vunpack.c.l.b16 %v4341
    %v5005 = vunpack.c.h.b16 %v4341
    %v5006 = vunpack.c.l.b16 %v4342
    %v5007 = vunpack.c.h.b16 %v4342
    %v5008 = vunpack.c.l.b16 %v4343
    %v5009 = vunpack.c.h.b16 %v4343
    %v5010 = vunpack.c.l.b16 %v4344
    %v5011 = vunpack.c.h.b16 %v4344
    %v5012 = vunpack.c.l.b16 %v4345
    %v5013 = vunpack.c.h.b16 %v4345
    %v5014 = vunpack.c.l.b16 %v4346
    %v5015 = vunpack.c.h.b16 %v4346
    %v5016 = vunpack.c.l.b16 %v4347
    %v5017 = vunpack.c.h.b16 %v4347
    %v5018 = vunpack.c.l.b16 %v4348
    %v5019 = vunpack.c.h.b16 %v4348
    %v5020 = vunpack.c.l.b16 %v4349
    %v5021 = vunpack.c.h.b16 %v4349
    %v5022 = vunpack.c.l.b16 %v4350
    %v5023 = vunpack.c.h.b16 %v4350
    %v5024 = vunpack.c.l.b16 %v4351
    %v5025 = vunpack.c.h.b16 %v4351
    %v5026 = vunpack.c.l.b16 %v4352
    %v5027 = vunpack.c.h.b16 %v4352
    %v5028 = vunpack.c.l.b16 %v4353
    %v5029 = vunpack.c.h.b16 %v4353
    %v5030 = vunpack.c.l.b16 %v4354
    %v5031 = vunpack.c.h.b16 %v4354
    %v5032 = vunpack.c.l.b16 %v4355
    %v5033 = vunpack.c.h.b16 %v4355
    %v5034 = vunpack.c.l.b16 %v4356
    %v5035 = vunpack.c.h.b16 %v4356
    %v5036 = vunpack.c.l.b16 %v4357
    %v5037 = vunpack.c.h.b16 %v4357
    %v5038 = vunpack.c.l.b16 %v4358
    %v5039 = vunpack.c.h.b16 %v4358
    %v5040 = vunpack.c.l.b16 %v4359
    %v5041 = vunpack.c.h.b16 %v4359
    %v5042 = vunpack.c.l.b16 %v4360
    %v5043 = vunpack.c.h.b16 %v4360
    %v5044 = vunpack.c.l.b16 %v4361
    %v5045 = vunpack.c.h.b16 %v4361
    %v5046 = vunpack.c.l.b16 %v4362
    %v5047 = vunpack.c.h.b16 %v4362
    %v5048 = vunpack.c.l.b16 %v4363
    %v5049 = vunpack.c.h.b16 %v4363
    %v5050 = vunpack.c.l.b16 %v4364
    %v5051 = vunpack.c.h.b16 %v4364
    %v5052 = vunpack.c.l.b16 %v4365
    %v5053 = vunpack.c.h.b16 %v4365
    %v5054 = vunpack.c.l.b16 %v4366
    %v5055 = vunpack.c.h.b16 %v4366
    %v5056 = vunpack.c.l.b16 %v4367
    %v5057 = vunpack.c.h.b16 %v4367
    %v5058 = vunpack.c.l.b16 %v4368
    %v5059 = vunpack.c.h.b16 %v4368
    %v5060 = vunpack.c.l.b16 %v4369
    %v5061 = vunpack.c.h.b16 %v4369
    %v5062 = vunpack.c.l.b16 %v4370
    %v5063 = vunpack.c.h.b16 %v4370
    %v5064 = vunpack.c.l.b16 %v4371
    %v5065 = vunpack.c.h.b16 %v4371
    %v5066 = vunpack.c.l.b16 %v4372
    %v5067 = vunpack.c.h.b16 %v4372
    %v5068 = vunpack.c.l.b16 %v4373
    %v5069 = vunpack.c.h.b16 %v4373
    %v5070 = vunpack.c.l.b16 %v4374
    %v5071 = vunpack.c.h.b16 %v4374
    %v5072 = vunpack.c.l.b16 %v4375
    %v5073 = vunpack.c.h.b16 %v4375
    %v5074 = vunpack.c.l.b16 %v4376
    %v5075 = vunpack.c.h.b16 %v4376
    %v5076 = vunpack.c.l.b16 %v4377
    %v5077 = vunpack.c.h.b16 %v4377
    %v5078 = vunpack.c.l.b16 %v4378
    %v5079 = vunpack.c.h.b16 %v4378
    %v5080 = vunpack.c.l.b16 %v4379
    %v5081 = vunpack.c.h.b16 %v4379
    %v5082 = vunpack.c.l.b16 %v4380
    %v5083 = vunpack.c.h.b16 %v4380
    %v5084 = vunpack.c.l.b16 %v4381
    %v5085 = vunpack.c.h.b16 %v4381
    %v5086 = vunpack.c.l.b16 %v4382
    %v5087 = vunpack.c.h.b16 %v4382
    %v5088 = vunpack.c.l.b16 %v4383
    %v5089 = vunpack.c.h.b16 %v4383
    %v5090 = vunpack.c.l.b16 %v4384
    %v5091 = vunpack.c.h.b16 %v4384
    %v5092 = vunpack.c.l.b16 %v4385
    %v5093 = vunpack.c.h.b16 %v4385
    %v5094 = vunpack.c.l.b16 %v4386
    %v5095 = vunpack.c.h.b16 %v4386
    %v5096 = vunpack.c.l.b16 %v4387
    %v5097 = vunpack.c.h.b16 %v4387
    %v5098 = vunpack.c.l.b16 %v4388
    %v5099 = vunpack.c.h.b16 %v4388
    %v5100 = vunpack.c.l.b16 %v4389
    %v5101 = vunpack.c.h.b16 %v4389
    %v5102 = vunpack.c.l.b16 %v4390
    %v5103 = vunpack.c.h.b16 %v4390
    %v5104 = vunpack.c.l.b16 %v4391
    %v5105 = vunpack.c.h.b16 %v4391
    %v5106 = vunpack.c.l.b16 %v4392
    %v5107 = vunpack.c.h.b16 %v4392
    %v5108 = vunpack.c.l.b16 %v4393
    %v5109 = vunpack.c.h.b16 %v4393
    %v5110 = vunpack.c.l.b16 %v4394
    %v5111 = vunpack.c.h.b16 %v4394
    %v5112 = vunpack.c.l.b16 %v4395
    %v5113 = vunpack.c.h.b16 %v4395
    %v5114 = vunpack.c.l.b16 %v4396
    %v5115 = vunpack.c.h.b16 %v4396
    %v5116 = vunpack.c.l.b16 %v4397
    %v5117 = vunpack.c.h.b16 %v4397
    %v5118 = vunpack.c.l.b16 %v4398
    %v5119 = vunpack.c.h.b16 %v4398
    %v5120 = vunpack.c.l.b16 %v4399
    %v5121 = vunpack.c.h.b16 %v4399
    %v5122 = vunpack.c.l.b16 %v4400
    %v5123 = vunpack.c.h.b16 %v4400
    %v5124 = vunpack.c.l.b16 %v4401
    %v5125 = vunpack.c.h.b16 %v4401
    %v5126 = vunpack.c.l.b16 %v4402
    %v5127 = vunpack.c.h.b16 %v4402
    %v5128 = vunpack.c.l.b16 %v4403
    %v5129 = vunpack.c.h.b16 %v4403
    %v5130 = vunpack.c.l.b16 %v4404
    %v5131 = vunpack.c.h.b16 %v4404
    %v5132 = vunpack.c.l.b16 %v4405
    %v5133 = vunpack.c.h.b16 %v4405
    %v5134 = vunpack.c.l.b16 %v4406
    %v5135 = vunpack.c.h.b16 %v4406
    %v5136 = vunpack.c.l.b16 %v4407
    %v5137 = vunpack.c.h.b16 %v4407
    %v5138 = vunpack.c.l.b16 %v4408
    %v5139 = vunpack.c.h.b16 %v4408
    %v5140 = vunpack.c.l.b16 %v4409
    %v5141 = vunpack.c.h.b16 %v4409
    %v5142 = vunpack.c.l.b16 %v4410
    %v5143 = vunpack.c.h.b16 %v4410
    %v5144 = vunpack.c.l.b16 %v4411
    %v5145 = vunpack.c.h.b16 %v4411
    %v5146 = vunpack.c.l.b16 %v4412
    %v5147 = vunpack.c.h.b16 %v4412
    %v5148 = vunpack.c.l.b16 %v4413
    %v5149 = vunpack.c.h.b16 %v4413
    %v5150 = vunpack.c.l.b16 %v4414
    %v5151 = vunpack.c.h.b16 %v4414
    %v5152 = vunpack.c.l.b16 %v4415
    %v5153 = vunpack.c.h.b16 %v4415
    %v5154 = vunpack.c.l.b16 %v4416
    %v5155 = vunpack.c.h.b16 %v4416
    %v5156 = vunpack.c.l.b16 %v4417
    %v5157 = vunpack.c.h.b16 %v4417
    %v5158 = vunpack.c.l.b16 %v4418
    %v5159 = vunpack.c.h.b16 %v4418
    %v5160 = vunpack.c.l.b16 %v4419
    %v5161 = vunpack.c.h.b16 %v4419
    %v5162 = vunpack.c.l.b16 %v4420
    %v5163 = vunpack.c.h.b16 %v4420
    %v5164 = vunpack.c.l.b16 %v4421
    %v5165 = vunpack.c.h.b16 %v4421
    %v5166 = vunpack.c.l.b16 %v4422
    %v5167 = vunpack.c.h.b16 %v4422
    %v5168 = vunpack.c.l.b16 %v4423
    %v5169 = vunpack.c.h.b16 %v4423
    %v5170 = vunpack.c.l.b16 %v4424
    %v5171 = vunpack.c.h.b16 %v4424
    %v5172 = vunpack.c.l.b16 %v4425
    %v5173 = vunpack.c.h.b16 %v4425
    %v5174 = vunpack.c.l.b16 %v4426
    %v5175 = vunpack.c.h.b16 %v4426
    %v5176 = vunpack.c.l.b16 %v4427
    %v5177 = vunpack.c.h.b16 %v4427
    %v5178 = vunpack.c.l.b16 %v4428
    %v5179 = vunpack.c.h.b16 %v4428
    %v5180 = vunpack.c.l.b16 %v4429
    %v5181 = vunpack.c.h.b16 %v4429
    %v5182 = vunpack.c.l.b16 %v4430
    %v5183 = vunpack.c.h.b16 %v4430
    %v5184 = vunpack.c.l.b16 %v4431
    %v5185 = vunpack.c.h.b16 %v4431
    %v5186 = vunpack.c.l.b16 %v4432
    %v5187 = vunpack.c.h.b16 %v4432
    %v5188 = vunpack.c.l.b16 %v4433
    %v5189 = vunpack.c.h.b16 %v4433
    %v5190 = vunpack.c.l.b16 %v4434
    %v5191 = vunpack.c.h.b16 %v4434
    %v5192 = vunpack.c.l.b16 %v4435
    %v5193 = vunpack.c.h.b16 %v4435
    %v5194 = vunpack.c.l.b16 %v4436
    %v5195 = vunpack.c.h.b16 %v4436
    %v5196 = vunpack.c.l.b16 %v4437
    %v5197 = vunpack.c.h.b16 %v4437
    %v5198 = vunpack.c.l.b16 %v4438
    %v5199 = vunpack.c.h.b16 %v4438
    %v5200 = vunpack.c.l.b16 %v4439
    %v5201 = vunpack.c.h.b16 %v4439
    %v5202 = vunpack.c.l.b16 %v4440
    %v5203 = vunpack.c.h.b16 %v4440
    %v5204 = vunpack.c.l.b16 %v4441
    %v5205 = vunpack.c.h.b16 %v4441
    %v5206 = vunpack.c.l.b16 %v4442
    %v5207 = vunpack.c.h.b16 %v4442
    %v5208 = vunpack.c.l.b16 %v4443
    %v5209 = vunpack.c.h.b16 %v4443
    %v5210 = vunpack.c.l.b16 %v4444
    %v5211 = vunpack.c.h.b16 %v4444
    %v5212 = vunpack.c.l.b16 %v4445
    %v5213 = vunpack.c.h.b16 %v4445
    %v5214 = vpack.c.b16 %v4710, %v4702
    %v5215 = vpack.c.b16 %v4711, %v4703
    %v5216 = vpack.c.b16 %v4712, %v4704
    %v5217 = vpack.c.b16 %v4713, %v4705
    %v5218 = vpack.c.b16 %v4714, %v4706
    %v5219 = vpack.c.b16 %v4715, %v4707
    %v5220 = vpack.c.b16 %v4716, %v4708
    %v5221 = vpack.c.b16 %v4717, %v4709
    %v5222 = vpack.c.b16 %v4726, %v4718
    %v5223 = vpack.c.b16 %v4727, %v4719
    %v5224 = vpack.c.b16 %v4728, %v4720
    %v5225 = vpack.c.b16 %v4729, %v4721
    %v5226 = vpack.c.b16 %v4730, %v4722
    %v5227 = vpack.c.b16 %v4731, %v4723
    %v5228 = vpack.c.b16 %v4732, %v4724
    %v5229 = vpack.c.b16 %v4733, %v4725
    %v5230 = vpack.c.b16 %v4742, %v4734
    %v5231 = vpack.c.b16 %v4743, %v4735
    %v5232 = vpack.c.b16 %v4744, %v4736
    %v5233 = vpack.c.b16 %v4745, %v4737
    %v5234 = vpack.c.b16 %v4746, %v4738
    %v5235 = vpack.c.b16 %v4747, %v4739
    %v5236 = vpack.c.b16 %v4748, %v4740
    %v5237 = vpack.c.b16 %v4749, %v4741
    %v5238 = vpack.c.b16 %v4758, %v4750
    %v5239 = vpack.c.b16 %v4759, %v4751
    %v5240 = vpack.c.b16 %v4760, %v4752
    %v5241 = vpack.c.b16 %v4761, %v4753
    %v5242 = vpack.c.b16 %v4762, %v4754
    %v5243 = vpack.c.b16 %v4763, %v4755
    %v5244 = vpack.c.b16 %v4764, %v4756
    %v5245 = vpack.c.b16 %v4765, %v4757
    %v5246 = vpack.c.b16 %v4774, %v4766
    %v5247 = vpack.c.b16 %v4775, %v4767
    %v5248 = vpack.c.b16 %v4776, %v4768
    %v5249 = vpack.c.b16 %v4777, %v4769
    %v5250 = vpack.c.b16 %v4778, %v4770
    %v5251 = vpack.c.b16 %v4779, %v4771
    %v5252 = vpack.c.b16 %v4780, %v4772
    %v5253 = vpack.c.b16 %v4781, %v4773
    %v5254 = vpack.c.b16 %v4790, %v4782
    %v5255 = vpack.c.b16 %v4791, %v4783
    %v5256 = vpack.c.b16 %v4792, %v4784
    %v5257 = vpack.c.b16 %v4793, %v4785
    %v5258 = vpack.c.b16 %v4794, %v4786
    %v5259 = vpack.c.b16 %v4795, %v4787
    %v5260 = vpack.c.b16 %v4796, %v4788
    %v5261 = vpack.c.b16 %v4797, %v4789
    %v5262 = vpack.c.b16 %v4806, %v4798
    %v5263 = vpack.c.b16 %v4807, %v4799
    %v5264 = vpack.c.b16 %v4808, %v4800
    %v5265 = vpack.c.b16 %v4809, %v4801
    %v5266 = vpack.c.b16 %v4810, %v4802
    %v5267 = vpack.c.b16 %v4811, %v4803
    %v5268 = vpack.c.b16 %v4812, %v4804
    %v5269 = vpack.c.b16 %v4813, %v4805
    %v5270 = vpack.c.b16 %v4822, %v4814
    %v5271 = vpack.c.b16 %v4823, %v4815
    %v5272 = vpack.c.b16 %v4824, %v4816
    %v5273 = vpack.c.b16 %v4825, %v4817
    %v5274 = vpack.c.b16 %v4826, %v4818
    %v5275 = vpack.c.b16 %v4827, %v4819
    %v5276 = vpack.c.b16 %v4828, %v4820
    %v5277 = vpack.c.b16 %v4829, %v4821
    %v5278 = vpack.c.b16 %v4838, %v4830
    %v5279 = vpack.c.b16 %v4839, %v4831
    %v5280 = vpack.c.b16 %v4840, %v4832
    %v5281 = vpack.c.b16 %v4841, %v4833
    %v5282 = vpack.c.b16 %v4842, %v4834
    %v5283 = vpack.c.b16 %v4843, %v4835
    %v5284 = vpack.c.b16 %v4844, %v4836
    %v5285 = vpack.c.b16 %v4845, %v4837
    %v5286 = vpack.c.b16 %v4854, %v4846
    %v5287 = vpack.c.b16 %v4855, %v4847
    %v5288 = vpack.c.b16 %v4856, %v4848
    %v5289 = vpack.c.b16 %v4857, %v4849
    %v5290 = vpack.c.b16 %v4858, %v4850
    %v5291 = vpack.c.b16 %v4859, %v4851
    %v5292 = vpack.c.b16 %v4860, %v4852
    %v5293 = vpack.c.b16 %v4861, %v4853
    %v5294 = vpack.c.b16 %v4870, %v4862
    %v5295 = vpack.c.b16 %v4871, %v4863
    %v5296 = vpack.c.b16 %v4872, %v4864
    %v5297 = vpack.c.b16 %v4873, %v4865
    %v5298 = vpack.c.b16 %v4874, %v4866
    %v5299 = vpack.c.b16 %v4875, %v4867
    %v5300 = vpack.c.b16 %v4876, %v4868
    %v5301 = vpack.c.b16 %v4877, %v4869
    %v5302 = vpack.c.b16 %v4886, %v4878
    %v5303 = vpack.c.b16 %v4887, %v4879
    %v5304 = vpack.c.b16 %v4888, %v4880
    %v5305 = vpack.c.b16 %v4889, %v4881
    %v5306 = vpack.c.b16 %v4890, %v4882
    %v5307 = vpack.c.b16 %v4891, %v4883
    %v5308 = vpack.c.b16 %v4892, %v4884
    %v5309 = vpack.c.b16 %v4893, %v4885
    %v5310 = vpack.c.b16 %v4902, %v4894
    %v5311 = vpack.c.b16 %v4903, %v4895
    %v5312 = vpack.c.b16 %v4904, %v4896
    %v5313 = vpack.c.b16 %v4905, %v4897
    %v5314 = vpack.c.b16 %v4906, %v4898
    %v5315 = vpack.c.b16 %v4907, %v4899
    %v5316 = vpack.c.b16 %v4908, %v4900
    %v5317 = vpack.c.b16 %v4909, %v4901
    %v5318 = vpack.c.b16 %v4918, %v4910
    %v5319 = vpack.c.b16 %v4919, %v4911
    %v5320 = vpack.c.b16 %v4920, %v4912
    %v5321 = vpack.c.b16 %v4921, %v4913
    %v5322 = vpack.c.b16 %v4922, %v4914
    %v5323 = vpack.c.b16 %v4923, %v4915
    %v5324 = vpack.c.b16 %v4924, %v4916
    %v5325 = vpack.c.b16 %v4925, %v4917
    %v5326 = vpack.c.b16 %v4934, %v4926
    %v5327 = vpack.c.b16 %v4935, %v4927
    %v5328 = vpack.c.b16 %v4936, %v4928
    %v5329 = vpack.c.b16 %v4937, %v4929
    %v5330 = vpack.c.b16 %v4938, %v4930
    %v5331 = vpack.c.b16 %v4939, %v4931
    %v5332 = vpack.c.b16 %v4940, %v4932
    %v5333 = vpack.c.b16 %v4941, %v4933
    %v5334 = vpack.c.b16 %v4950, %v4942
    %v5335 = vpack.c.b16 %v4951, %v4943
    %v5336 = vpack.c.b16 %v4952, %v4944
    %v5337 = vpack.c.b16 %v4953, %v4945
    %v5338 = vpack.c.b16 %v4954, %v4946
    %v5339 = vpack.c.b16 %v4955, %v4947
    %v5340 = vpack.c.b16 %v4956, %v4948
    %v5341 = vpack.c.b16 %v4957, %v4949
    %v5342 = vpack.c.b16 %v4966, %v4958
    %v5343 = vpack.c.b16 %v4967, %v4959
    %v5344 = vpack.c.b16 %v4968, %v4960
    %v5345 = vpack.c.b16 %v4969, %v4961
    %v5346 = vpack.c.b16 %v4970, %v4962
    %v5347 = vpack.c.b16 %v4971, %v4963
    %v5348 = vpack.c.b16 %v4972, %v4964
    %v5349 = vpack.c.b16 %v4973, %v4965
    %v5350 = vpack.c.b16 %v4982, %v4974
    %v5351 = vpack.c.b16 %v4983, %v4975
    %v5352 = vpack.c.b16 %v4984, %v4976
    %v5353 = vpack.c.b16 %v4985, %v4977
    %v5354 = vpack.c.b16 %v4986, %v4978
    %v5355 = vpack.c.b16 %v4987, %v4979
    %v5356 = vpack.c.b16 %v4988, %v4980
    %v5357 = vpack.c.b16 %v4989, %v4981
    %v5358 = vpack.c.b16 %v4998, %v4990
    %v5359 = vpack.c.b16 %v4999, %v4991
    %v5360 = vpack.c.b16 %v5000, %v4992
    %v5361 = vpack.c.b16 %v5001, %v4993
    %v5362 = vpack.c.b16 %v5002, %v4994
    %v5363 = vpack.c.b16 %v5003, %v4995
    %v5364 = vpack.c.b16 %v5004, %v4996
    %v5365 = vpack.c.b16 %v5005, %v4997
    %v5366 = vpack.c.b16 %v5014, %v5006
    %v5367 = vpack.c.b16 %v5015, %v5007
    %v5368 = vpack.c.b16 %v5016, %v5008
    %v5369 = vpack.c.b16 %v5017, %v5009
    %v5370 = vpack.c.b16 %v5018, %v5010
    %v5371 = vpack.c.b16 %v5019, %v5011
    %v5372 = vpack.c.b16 %v5020, %v5012
    %v5373 = vpack.c.b16 %v5021, %v5013
    %v5374 = vpack.c.b16 %v5030, %v5022
    %v5375 = vpack.c.b16 %v5031, %v5023
    %v5376 = vpack.c.b16 %v5032, %v5024
    %v5377 = vpack.c.b16 %v5033, %v5025
    %v5378 = vpack.c.b16 %v5034, %v5026
    %v5379 = vpack.c.b16 %v5035, %v5027
    %v5380 = vpack.c.b16 %v5036, %v5028
    %v5381 = vpack.c.b16 %v5037, %v5029
    %v5382 = vpack.c.b16 %v5046, %v5038
    %v5383 = vpack.c.b16 %v5047, %v5039
    %v5384 = vpack.c.b16 %v5048, %v5040
    %v5385 = vpack.c.b16 %v5049, %v5041
    %v5386 = vpack.c.b16 %v5050, %v5042
    %v5387 = vpack.c.b16 %v5051, %v5043
    %v5388 = vpack.c.b16 %v5052, %v5044
    %v5389 = vpack.c.b16 %v5053, %v5045
    %v5390 = vpack.c.b16 %v5062, %v5054
    %v5391 = vpack.c.b16 %v5063, %v5055
    %v5392 = vpack.c.b16 %v5064, %v5056
    %v5393 = vpack.c.b16 %v5065, %v5057
    %v5394 = vpack.c.b16 %v5066, %v5058
    %v5395 = vpack.c.b16 %v5067, %v5059
    %v5396 = vpack.c.b16 %v5068, %v5060
    %v5397 = vpack.c.b16 %v5069, %v5061
    %v5398 = vpack.c.b16 %v5078, %v5070
    %v5399 = vpack.c.b16 %v5079, %v5071
    %v5400 = vpack.c.b16 %v5080, %v5072
    %v5401 = vpack.c.b16 %v5081, %v5073
    %v5402 = vpack.c.b16 %v5082, %v5074
    %v5403 = vpack.c.b16 %v5083, %v5075
    %v5404 = vpack.c.b16 %v5084, %v5076
    %v5405 = vpack.c.b16 %v5085, %v5077
    %v5406 = vpack.c.b16 %v5094, %v5086
    %v5407 = vpack.c.b16 %v5095, %v5087
    %v5408 = vpack.c.b16 %v5096, %v5088
    %v5409 = vpack.c.b16 %v5097, %v5089
    %v5410 = vpack.c.b16 %v5098, %v5090
    %v5411 = vpack.c.b16 %v5099, %v5091
    %v5412 = vpack.c.b16 %v5100, %v5092
    %v5413 = vpack.c.b16 %v5101, %v5093
    %v5414 = vpack.c.b16 %v5110, %v5102
    %v5415 = vpack.c.b16 %v5111, %v5103
    %v5416 = vpack.c.b16 %v5112, %v5104
    %v5417 = vpack.c.b16 %v5113, %v5105
    %v5418 = vpack.c.b16 %v5114, %v5106
    %v5419 = vpack.c.b16 %v5115, %v5107
    %v5420 = vpack.c.b16 %v5116, %v5108
    %v5421 = vpack.c.b16 %v5117, %v5109
    %v5422 = vpack.c.b16 %v5126, %v5118
    %v5423 = vpack.c.b16 %v5127, %v5119
    %v5424 = vpack.c.b16 %v5128, %v5120
    %v5425 = vpack.c.b16 %v5129, %v5121
    %v5426 = vpack.c.b16 %v5130, %v5122
    %v5427 = vpack.c.b16 %v5131, %v5123
    %v5428 = vpack.c.b16 %v5132, %v5124
    %v5429 = vpack.c.b16 %v5133, %v5125
    %v5430 = vpack.c.b16 %v5142, %v5134
    %v5431 = vpack.c.b16 %v5143, %v5135
    %v5432 = vpack.c.b16 %v5144, %v5136
    %v5433 = vpack.c.b16 %v5145, %v5137
    %v5434 = vpack.c.b16 %v5146, %v5138
    %v5435 = vpack.c.b16 %v5147, %v5139
    %v5436 = vpack.c.b16 %v5148, %v5140
    %v5437 = vpack.c.b16 %v5149, %v5141
    %v5438 = vpack.c.b16 %v5158, %v5150
    %v5439 = vpack.c.b16 %v5159, %v5151
    %v5440 = vpack.c.b16 %v5160, %v5152
    %v5441 = vpack.c.b16 %v5161, %v5153
    %v5442 = vpack.c.b16 %v5162, %v5154
    %v5443 = vpack.c.b16 %v5163, %v5155
    %v5444 = vpack.c.b16 %v5164, %v5156
    %v5445 = vpack.c.b16 %v5165, %v5157
    %v5446 = vpack.c.b16 %v5174, %v5166
    %v5447 = vpack.c.b16 %v5175, %v5167
    %v5448 = vpack.c.b16 %v5176, %v5168
    %v5449 = vpack.c.b16 %v5177, %v5169
    %v5450 = vpack.c.b16 %v5178, %v5170
    %v5451 = vpack.c.b16 %v5179, %v5171
    %v5452 = vpack.c.b16 %v5180, %v5172
    %v5453 = vpack.c.b16 %v5181, %v5173
    %v5454 = vpack.c.b16 %v5190, %v5182
    %v5455 = vpack.c.b16 %v5191, %v5183
    %v5456 = vpack.c.b16 %v5192, %v5184
    %v5457 = vpack.c.b16 %v5193, %v5185
    %v5458 = vpack.c.b16 %v5194, %v5186
    %v5459 = vpack.c.b16 %v5195, %v5187
    %v5460 = vpack.c.b16 %v5196, %v5188
    %v5461 = vpack.c.b16 %v5197, %v5189
    %v5462 = vpack.c.b16 %v5206, %v5198
    %v5463 = vpack.c.b16 %v5207, %v5199
    %v5464 = vpack.c.b16 %v5208, %v5200
    %v5465 = vpack.c.b16 %v5209, %v5201
    %v5466 = vpack.c.b16 %v5210, %v5202
    %v5467 = vpack.c.b16 %v5211, %v5203
    %v5468 = vpack.c.b16 %v5212, %v5204
    %v5469 = vpack.c.b16 %v5213, %v5205
    %5726 = vmatpush.bf16.msra.mxu0 %v5270
    %5727 = vmatpush.bf16.msra.mxu0 %v5262
    %5728 = vmatpush.bf16.msra.mxu0 %v5254
    %5729 = vmatpush.bf16.msra.mxu0 %v5246
    %5730 = vmatpush.bf16.msra.mxu0 %v5238
    %5731 = vmatpush.bf16.msra.mxu0 %v5230
    %5732 = vmatpush.bf16.msra.mxu0 %v5222
    %5733 = vmatpush.bf16.msra.mxu0 %v5214
    %5734 = vmatmul.bf16.gmra.mxu0 %v2709
    %v5735 = vpop.f32.mrf.mxu0
    %v5736 = vadd.f32 0.0, %v5735
    %v5737 = vpop.f32.mrf.mxu0
    %v5738 = vadd.f32 0.0, %v5737
    %5739 = vdwg.mxu0
    %5740 = vmatpush.bf16.msra.mxu0 %v5334
    %5741 = vmatpush.bf16.msra.mxu0 %v5326
    %5742 = vmatpush.bf16.msra.mxu0 %v5318
    %5743 = vmatpush.bf16.msra.mxu0 %v5310
    %5744 = vmatpush.bf16.msra.mxu0 %v5302
    %5745 = vmatpush.bf16.msra.mxu0 %v5294
    %5746 = vmatpush.bf16.msra.mxu0 %v5286
    %5747 = vmatpush.bf16.msra.mxu0 %v5278
    %5748 = vmatmul.bf16.gmra.mxu0 %v2710
    %v5749 = vpop.f32.mrf.mxu0
    %v5750 = vadd.f32 %v5736, %v5749
    %v5751 = vpop.f32.mrf.mxu0
    %v5752 = vadd.f32 %v5738, %v5751
    %5753 = vdwg.mxu0
    %5754 = vmatpush.bf16.msra.mxu0 %v5398
    %5755 = vmatpush.bf16.msra.mxu0 %v5390
    %5756 = vmatpush.bf16.msra.mxu0 %v5382
    %5757 = vmatpush.bf16.msra.mxu0 %v5374
    %5758 = vmatpush.bf16.msra.mxu0 %v5366
    %5759 = vmatpush.bf16.msra.mxu0 %v5358
    %5760 = vmatpush.bf16.msra.mxu0 %v5350
    %5761 = vmatpush.bf16.msra.mxu0 %v5342
    %5762 = vmatmul.bf16.gmra.mxu0 %v2711
    %v5763 = vpop.f32.mrf.mxu0
    %v5764 = vadd.f32 %v5750, %v5763
    %v5765 = vpop.f32.mrf.mxu0
    %v5766 = vadd.f32 %v5752, %v5765
    %5767 = vdwg.mxu0
    %5768 = vmatpush.bf16.msra.mxu0 %v5462
    %5769 = vmatpush.bf16.msra.mxu0 %v5454
    %5770 = vmatpush.bf16.msra.mxu0 %v5446
    %5771 = vmatpush.bf16.msra.mxu0 %v5438
    %5772 = vmatpush.bf16.msra.mxu0 %v5430
    %5773 = vmatpush.bf16.msra.mxu0 %v5422
    %5774 = vmatpush.bf16.msra.mxu0 %v5414
    %5775 = vmatpush.bf16.msra.mxu0 %v5406
    %5776 = vmatmul.bf16.gmra.mxu0 %v2712
    %v5777 = vpop.f32.mrf.mxu0
    %v5778 = vadd.f32 %v5764, %v5777
    %v5779 = vpop.f32.mrf.mxu0
    %v5780 = vadd.f32 %v5766, %v5779
    %5781 = vdwg.mxu0
    %5782 = vmatpush.bf16.msra.mxu0 %v5271
    %5783 = vmatpush.bf16.msra.mxu0 %v5263
    %5784 = vmatpush.bf16.msra.mxu0 %v5255
    %5785 = vmatpush.bf16.msra.mxu0 %v5247
    %5786 = vmatpush.bf16.msra.mxu0 %v5239
    %5787 = vmatpush.bf16.msra.mxu0 %v5231
    %5788 = vmatpush.bf16.msra.mxu0 %v5223
    %5789 = vmatpush.bf16.msra.mxu0 %v5215
    %5790 = vmatmul.bf16.gmra.mxu0 %v2709
    %v5791 = vpop.f32.mrf.mxu0
    %v5792 = vadd.f32 0.0, %v5791
    %v5793 = vpop.f32.mrf.mxu0
    %v5794 = vadd.f32 0.0, %v5793
    %5795 = vdwg.mxu0
    %5796 = vmatpush.bf16.msra.mxu0 %v5335
    %5797 = vmatpush.bf16.msra.mxu0 %v5327
    %5798 = vmatpush.bf16.msra.mxu0 %v5319
    %5799 = vmatpush.bf16.msra.mxu0 %v5311
    %5800 = vmatpush.bf16.msra.mxu0 %v5303
    %5801 = vmatpush.bf16.msra.mxu0 %v5295
    %5802 = vmatpush.bf16.msra.mxu0 %v5287
    %5803 = vmatpush.bf16.msra.mxu0 %v5279
    %5804 = vmatmul.bf16.gmra.mxu0 %v2710
    %v5805 = vpop.f32.mrf.mxu0
    %v5806 = vadd.f32 %v5792, %v5805
    %v5807 = vpop.f32.mrf.mxu0
    %v5808 = vadd.f32 %v5794, %v5807
    %5809 = vdwg.mxu0
    %5810 = vmatpush.bf16.msra.mxu0 %v5399
    %5811 = vmatpush.bf16.msra.mxu0 %v5391
    %5812 = vmatpush.bf16.msra.mxu0 %v5383
    %5813 = vmatpush.bf16.msra.mxu0 %v5375
    %5814 = vmatpush.bf16.msra.mxu0 %v5367
    %5815 = vmatpush.bf16.msra.mxu0 %v5359
    %5816 = vmatpush.bf16.msra.mxu0 %v5351
    %5817 = vmatpush.bf16.msra.mxu0 %v5343
    %5818 = vmatmul.bf16.gmra.mxu0 %v2711
    %v5819 = vpop.f32.mrf.mxu0
    %v5820 = vadd.f32 %v5806, %v5819
    %v5821 = vpop.f32.mrf.mxu0
    %v5822 = vadd.f32 %v5808, %v5821
    %5823 = vdwg.mxu0
    %5824 = vmatpush.bf16.msra.mxu0 %v5463
    %5825 = vmatpush.bf16.msra.mxu0 %v5455
    %5826 = vmatpush.bf16.msra.mxu0 %v5447
    %5827 = vmatpush.bf16.msra.mxu0 %v5439
    %5828 = vmatpush.bf16.msra.mxu0 %v5431
    %5829 = vmatpush.bf16.msra.mxu0 %v5423
    %5830 = vmatpush.bf16.msra.mxu0 %v5415
    %5831 = vmatpush.bf16.msra.mxu0 %v5407
    %5832 = vmatmul.bf16.gmra.mxu0 %v2712
    %v5833 = vpop.f32.mrf.mxu0
    %v5834 = vadd.f32 %v5820, %v5833
    %v5835 = vpop.f32.mrf.mxu0
    %v5836 = vadd.f32 %v5822, %v5835
    %5837 = vdwg.mxu0
    %5838 = vmatpush.bf16.msra.mxu0 %v5272
    %5839 = vmatpush.bf16.msra.mxu0 %v5264
    %5840 = vmatpush.bf16.msra.mxu0 %v5256
    %5841 = vmatpush.bf16.msra.mxu0 %v5248
    %5842 = vmatpush.bf16.msra.mxu0 %v5240
    %5843 = vmatpush.bf16.msra.mxu0 %v5232
    %5844 = vmatpush.bf16.msra.mxu0 %v5224
    %5845 = vmatpush.bf16.msra.mxu0 %v5216
    %5846 = vmatmul.bf16.gmra.mxu0 %v2709
    %v5847 = vpop.f32.mrf.mxu0
    %v5848 = vadd.f32 0.0, %v5847
    %v5849 = vpop.f32.mrf.mxu0
    %v5850 = vadd.f32 0.0, %v5849
    %5851 = vdwg.mxu0
    %5852 = vmatpush.bf16.msra.mxu0 %v5336
    %5853 = vmatpush.bf16.msra.mxu0 %v5328
    %5854 = vmatpush.bf16.msra.mxu0 %v5320
    %5855 = vmatpush.bf16.msra.mxu0 %v5312
    %5856 = vmatpush.bf16.msra.mxu0 %v5304
    %5857 = vmatpush.bf16.msra.mxu0 %v5296
    %5858 = vmatpush.bf16.msra.mxu0 %v5288
    %5859 = vmatpush.bf16.msra.mxu0 %v5280
    %5860 = vmatmul.bf16.gmra.mxu0 %v2710
    %v5861 = vpop.f32.mrf.mxu0
    %v5862 = vadd.f32 %v5848, %v5861
    %v5863 = vpop.f32.mrf.mxu0
    %v5864 = vadd.f32 %v5850, %v5863
    %5865 = vdwg.mxu0
    %5866 = vmatpush.bf16.msra.mxu0 %v5400
    %5867 = vmatpush.bf16.msra.mxu0 %v5392
    %5868 = vmatpush.bf16.msra.mxu0 %v5384
    %5869 = vmatpush.bf16.msra.mxu0 %v5376
    %5870 = vmatpush.bf16.msra.mxu0 %v5368
    %5871 = vmatpush.bf16.msra.mxu0 %v5360
    %5872 = vmatpush.bf16.msra.mxu0 %v5352
    %5873 = vmatpush.bf16.msra.mxu0 %v5344
    %5874 = vmatmul.bf16.gmra.mxu0 %v2711
    %v5875 = vpop.f32.mrf.mxu0
    %v5876 = vadd.f32 %v5862, %v5875
    %v5877 = vpop.f32.mrf.mxu0
    %v5878 = vadd.f32 %v5864, %v5877
    %5879 = vdwg.mxu0
    %5880 = vmatpush.bf16.msra.mxu0 %v5464
    %5881 = vmatpush.bf16.msra.mxu0 %v5456
    %5882 = vmatpush.bf16.msra.mxu0 %v5448
    %5883 = vmatpush.bf16.msra.mxu0 %v5440
    %5884 = vmatpush.bf16.msra.mxu0 %v5432
    %5885 = vmatpush.bf16.msra.mxu0 %v5424
    %5886 = vmatpush.bf16.msra.mxu0 %v5416
    %5887 = vmatpush.bf16.msra.mxu0 %v5408
    %5888 = vmatmul.bf16.gmra.mxu0 %v2712
    %v5889 = vpop.f32.mrf.mxu0
    %v5890 = vadd.f32 %v5876, %v5889
    %v5891 = vpop.f32.mrf.mxu0
    %v5892 = vadd.f32 %v5878, %v5891
    %5893 = vdwg.mxu0
    %5894 = vmatpush.bf16.msra.mxu0 %v5273
    %5895 = vmatpush.bf16.msra.mxu0 %v5265
    %5896 = vmatpush.bf16.msra.mxu0 %v5257
    %5897 = vmatpush.bf16.msra.mxu0 %v5249
    %5898 = vmatpush.bf16.msra.mxu0 %v5241
    %5899 = vmatpush.bf16.msra.mxu0 %v5233
    %5900 = vmatpush.bf16.msra.mxu0 %v5225
    %5901 = vmatpush.bf16.msra.mxu0 %v5217
    %5902 = vmatmul.bf16.gmra.mxu0 %v2709
    %v5903 = vpop.f32.mrf.mxu0
    %v5904 = vadd.f32 0.0, %v5903
    %v5905 = vpop.f32.mrf.mxu0
    %v5906 = vadd.f32 0.0, %v5905
    %5907 = vdwg.mxu0
    %5908 = vmatpush.bf16.msra.mxu0 %v5337
    %5909 = vmatpush.bf16.msra.mxu0 %v5329
    %5910 = vmatpush.bf16.msra.mxu0 %v5321
    %5911 = vmatpush.bf16.msra.mxu0 %v5313
    %5912 = vmatpush.bf16.msra.mxu0 %v5305
    %5913 = vmatpush.bf16.msra.mxu0 %v5297
    %5914 = vmatpush.bf16.msra.mxu0 %v5289
    %5915 = vmatpush.bf16.msra.mxu0 %v5281
    %5916 = vmatmul.bf16.gmra.mxu0 %v2710
    %v5917 = vpop.f32.mrf.mxu0
    %v5918 = vadd.f32 %v5904, %v5917
    %v5919 = vpop.f32.mrf.mxu0
    %v5920 = vadd.f32 %v5906, %v5919
    %5921 = vdwg.mxu0
    %5922 = vmatpush.bf16.msra.mxu0 %v5401
    %5923 = vmatpush.bf16.msra.mxu0 %v5393
    %5924 = vmatpush.bf16.msra.mxu0 %v5385
    %5925 = vmatpush.bf16.msra.mxu0 %v5377
    %5926 = vmatpush.bf16.msra.mxu0 %v5369
    %5927 = vmatpush.bf16.msra.mxu0 %v5361
    %5928 = vmatpush.bf16.msra.mxu0 %v5353
    %5929 = vmatpush.bf16.msra.mxu0 %v5345
    %5930 = vmatmul.bf16.gmra.mxu0 %v2711
    %v5931 = vpop.f32.mrf.mxu0
    %v5932 = vadd.f32 %v5918, %v5931
    %v5933 = vpop.f32.mrf.mxu0
    %v5934 = vadd.f32 %v5920, %v5933
    %5935 = vdwg.mxu0
    %5936 = vmatpush.bf16.msra.mxu0 %v5465
    %5937 = vmatpush.bf16.msra.mxu0 %v5457
    %5938 = vmatpush.bf16.msra.mxu0 %v5449
    %5939 = vmatpush.bf16.msra.mxu0 %v5441
    %5940 = vmatpush.bf16.msra.mxu0 %v5433
    %5941 = vmatpush.bf16.msra.mxu0 %v5425
    %5942 = vmatpush.bf16.msra.mxu0 %v5417
    %5943 = vmatpush.bf16.msra.mxu0 %v5409
    %5944 = vmatmul.bf16.gmra.mxu0 %v2712
    %v5945 = vpop.f32.mrf.mxu0
    %v5946 = vadd.f32 %v5932, %v5945
    %v5947 = vpop.f32.mrf.mxu0
    %v5948 = vadd.f32 %v5934, %v5947
    %5949 = vdwg.mxu0
    %5950 = vmatpush.bf16.msra.mxu0 %v5274
    %5951 = vmatpush.bf16.msra.mxu0 %v5266
    %5952 = vmatpush.bf16.msra.mxu0 %v5258
    %5953 = vmatpush.bf16.msra.mxu0 %v5250
    %5954 = vmatpush.bf16.msra.mxu0 %v5242
    %5955 = vmatpush.bf16.msra.mxu0 %v5234
    %5956 = vmatpush.bf16.msra.mxu0 %v5226
    %5957 = vmatpush.bf16.msra.mxu0 %v5218
    %5958 = vmatmul.bf16.gmra.mxu0 %v2709
    %v5959 = vpop.f32.mrf.mxu0
    %v5960 = vadd.f32 0.0, %v5959
    %v5961 = vpop.f32.mrf.mxu0
    %v5962 = vadd.f32 0.0, %v5961
    %5963 = vdwg.mxu0
    %5964 = vmatpush.bf16.msra.mxu0 %v5338
    %5965 = vmatpush.bf16.msra.mxu0 %v5330
    %5966 = vmatpush.bf16.msra.mxu0 %v5322
    %5967 = vmatpush.bf16.msra.mxu0 %v5314
    %5968 = vmatpush.bf16.msra.mxu0 %v5306
    %5969 = vmatpush.bf16.msra.mxu0 %v5298
    %5970 = vmatpush.bf16.msra.mxu0 %v5290
    %5971 = vmatpush.bf16.msra.mxu0 %v5282
    %5972 = vmatmul.bf16.gmra.mxu0 %v2710
    %v5973 = vpop.f32.mrf.mxu0
    %v5974 = vadd.f32 %v5960, %v5973
    %v5975 = vpop.f32.mrf.mxu0
    %v5976 = vadd.f32 %v5962, %v5975
    %5977 = vdwg.mxu0
    %5978 = vmatpush.bf16.msra.mxu0 %v5402
    %5979 = vmatpush.bf16.msra.mxu0 %v5394
    %5980 = vmatpush.bf16.msra.mxu0 %v5386
    %5981 = vmatpush.bf16.msra.mxu0 %v5378
    %5982 = vmatpush.bf16.msra.mxu0 %v5370
    %5983 = vmatpush.bf16.msra.mxu0 %v5362
    %5984 = vmatpush.bf16.msra.mxu0 %v5354
    %5985 = vmatpush.bf16.msra.mxu0 %v5346
    %5986 = vmatmul.bf16.gmra.mxu0 %v2711
    %v5987 = vpop.f32.mrf.mxu0
    %v5988 = vadd.f32 %v5974, %v5987
    %v5989 = vpop.f32.mrf.mxu0
    %v5990 = vadd.f32 %v5976, %v5989
    %5991 = vdwg.mxu0
    %5992 = vmatpush.bf16.msra.mxu0 %v5466
    %5993 = vmatpush.bf16.msra.mxu0 %v5458
    %5994 = vmatpush.bf16.msra.mxu0 %v5450
    %5995 = vmatpush.bf16.msra.mxu0 %v5442
    %5996 = vmatpush.bf16.msra.mxu0 %v5434
    %5997 = vmatpush.bf16.msra.mxu0 %v5426
    %5998 = vmatpush.bf16.msra.mxu0 %v5418
    %5999 = vmatpush.bf16.msra.mxu0 %v5410
    %6000 = vmatmul.bf16.gmra.mxu0 %v2712
    %v6001 = vpop.f32.mrf.mxu0
    %v6002 = vadd.f32 %v5988, %v6001
    %v6003 = vpop.f32.mrf.mxu0
    %v6004 = vadd.f32 %v5990, %v6003
    %6005 = vdwg.mxu0
    %6006 = vmatpush.bf16.msra.mxu0 %v5275
    %6007 = vmatpush.bf16.msra.mxu0 %v5267
    %6008 = vmatpush.bf16.msra.mxu0 %v5259
    %6009 = vmatpush.bf16.msra.mxu0 %v5251
    %6010 = vmatpush.bf16.msra.mxu0 %v5243
    %6011 = vmatpush.bf16.msra.mxu0 %v5235
    %6012 = vmatpush.bf16.msra.mxu0 %v5227
    %6013 = vmatpush.bf16.msra.mxu0 %v5219
    %6014 = vmatmul.bf16.gmra.mxu0 %v2709
    %v6015 = vpop.f32.mrf.mxu0
    %v6016 = vadd.f32 0.0, %v6015
    %v6017 = vpop.f32.mrf.mxu0
    %v6018 = vadd.f32 0.0, %v6017
    %6019 = vdwg.mxu0
    %6020 = vmatpush.bf16.msra.mxu0 %v5339
    %6021 = vmatpush.bf16.msra.mxu0 %v5331
    %6022 = vmatpush.bf16.msra.mxu0 %v5323
    %6023 = vmatpush.bf16.msra.mxu0 %v5315
    %6024 = vmatpush.bf16.msra.mxu0 %v5307
    %6025 = vmatpush.bf16.msra.mxu0 %v5299
    %6026 = vmatpush.bf16.msra.mxu0 %v5291
    %6027 = vmatpush.bf16.msra.mxu0 %v5283
    %6028 = vmatmul.bf16.gmra.mxu0 %v2710
    %v6029 = vpop.f32.mrf.mxu0
    %v6030 = vadd.f32 %v6016, %v6029
    %v6031 = vpop.f32.mrf.mxu0
    %v6032 = vadd.f32 %v6018, %v6031
    %6033 = vdwg.mxu0
    %6034 = vmatpush.bf16.msra.mxu0 %v5403
    %6035 = vmatpush.bf16.msra.mxu0 %v5395
    %6036 = vmatpush.bf16.msra.mxu0 %v5387
    %6037 = vmatpush.bf16.msra.mxu0 %v5379
    %6038 = vmatpush.bf16.msra.mxu0 %v5371
    %6039 = vmatpush.bf16.msra.mxu0 %v5363
    %6040 = vmatpush.bf16.msra.mxu0 %v5355
    %6041 = vmatpush.bf16.msra.mxu0 %v5347
    %6042 = vmatmul.bf16.gmra.mxu0 %v2711
    %v6043 = vpop.f32.mrf.mxu0
    %v6044 = vadd.f32 %v6030, %v6043
    %v6045 = vpop.f32.mrf.mxu0
    %v6046 = vadd.f32 %v6032, %v6045
    %6047 = vdwg.mxu0
    %6048 = vmatpush.bf16.msra.mxu0 %v5467
    %6049 = vmatpush.bf16.msra.mxu0 %v5459
    %6050 = vmatpush.bf16.msra.mxu0 %v5451
    %6051 = vmatpush.bf16.msra.mxu0 %v5443
    %6052 = vmatpush.bf16.msra.mxu0 %v5435
    %6053 = vmatpush.bf16.msra.mxu0 %v5427
    %6054 = vmatpush.bf16.msra.mxu0 %v5419
    %6055 = vmatpush.bf16.msra.mxu0 %v5411
    %6056 = vmatmul.bf16.gmra.mxu0 %v2712
    %v6057 = vpop.f32.mrf.mxu0
    %v6058 = vadd.f32 %v6044, %v6057
    %v6059 = vpop.f32.mrf.mxu0
    %v6060 = vadd.f32 %v6046, %v6059
    %6061 = vdwg.mxu0
    %6062 = vmatpush.bf16.msra.mxu0 %v5276
    %6063 = vmatpush.bf16.msra.mxu0 %v5268
    %6064 = vmatpush.bf16.msra.mxu0 %v5260
    %6065 = vmatpush.bf16.msra.mxu0 %v5252
    %6066 = vmatpush.bf16.msra.mxu0 %v5244
    %6067 = vmatpush.bf16.msra.mxu0 %v5236
    %6068 = vmatpush.bf16.msra.mxu0 %v5228
    %6069 = vmatpush.bf16.msra.mxu0 %v5220
    %6070 = vmatmul.bf16.gmra.mxu0 %v2709
    %v6071 = vpop.f32.mrf.mxu0
    %v6072 = vadd.f32 0.0, %v6071
    %v6073 = vpop.f32.mrf.mxu0
    %v6074 = vadd.f32 0.0, %v6073
    %6075 = vdwg.mxu0
    %6076 = vmatpush.bf16.msra.mxu0 %v5340
    %6077 = vmatpush.bf16.msra.mxu0 %v5332
    %6078 = vmatpush.bf16.msra.mxu0 %v5324
    %6079 = vmatpush.bf16.msra.mxu0 %v5316
    %6080 = vmatpush.bf16.msra.mxu0 %v5308
    %6081 = vmatpush.bf16.msra.mxu0 %v5300
    %6082 = vmatpush.bf16.msra.mxu0 %v5292
    %6083 = vmatpush.bf16.msra.mxu0 %v5284
    %6084 = vmatmul.bf16.gmra.mxu0 %v2710
    %v6085 = vpop.f32.mrf.mxu0
    %v6086 = vadd.f32 %v6072, %v6085
    %v6087 = vpop.f32.mrf.mxu0
    %v6088 = vadd.f32 %v6074, %v6087
    %6089 = vdwg.mxu0
    %6090 = vmatpush.bf16.msra.mxu0 %v5404
    %6091 = vmatpush.bf16.msra.mxu0 %v5396
    %6092 = vmatpush.bf16.msra.mxu0 %v5388
    %6093 = vmatpush.bf16.msra.mxu0 %v5380
    %6094 = vmatpush.bf16.msra.mxu0 %v5372
    %6095 = vmatpush.bf16.msra.mxu0 %v5364
    %6096 = vmatpush.bf16.msra.mxu0 %v5356
    %6097 = vmatpush.bf16.msra.mxu0 %v5348
    %6098 = vmatmul.bf16.gmra.mxu0 %v2711
    %v6099 = vpop.f32.mrf.mxu0
    %v6100 = vadd.f32 %v6086, %v6099
    %v6101 = vpop.f32.mrf.mxu0
    %v6102 = vadd.f32 %v6088, %v6101
    %6103 = vdwg.mxu0
    %6104 = vmatpush.bf16.msra.mxu0 %v5468
    %6105 = vmatpush.bf16.msra.mxu0 %v5460
    %6106 = vmatpush.bf16.msra.mxu0 %v5452
    %6107 = vmatpush.bf16.msra.mxu0 %v5444
    %6108 = vmatpush.bf16.msra.mxu0 %v5436
    %6109 = vmatpush.bf16.msra.mxu0 %v5428
    %6110 = vmatpush.bf16.msra.mxu0 %v5420
    %6111 = vmatpush.bf16.msra.mxu0 %v5412
    %6112 = vmatmul.bf16.gmra.mxu0 %v2712
    %v6113 = vpop.f32.mrf.mxu0
    %v6114 = vadd.f32 %v6100, %v6113
    %v6115 = vpop.f32.mrf.mxu0
    %v6116 = vadd.f32 %v6102, %v6115
    %6117 = vdwg.mxu0
    %6118 = vmatpush.bf16.msra.mxu0 %v5277
    %6119 = vmatpush.bf16.msra.mxu0 %v5269
    %6120 = vmatpush.bf16.msra.mxu0 %v5261
    %6121 = vmatpush.bf16.msra.mxu0 %v5253
    %6122 = vmatpush.bf16.msra.mxu0 %v5245
    %6123 = vmatpush.bf16.msra.mxu0 %v5237
    %6124 = vmatpush.bf16.msra.mxu0 %v5229
    %6125 = vmatpush.bf16.msra.mxu0 %v5221
    %6126 = vmatmul.bf16.gmra.mxu0 %v2709
    %v6127 = vpop.f32.mrf.mxu0
    %v6128 = vadd.f32 0.0, %v6127
    %v6129 = vpop.f32.mrf.mxu0
    %v6130 = vadd.f32 0.0, %v6129
    %6131 = vdwg.mxu0
    %6132 = vmatpush.bf16.msra.mxu0 %v5341
    %6133 = vmatpush.bf16.msra.mxu0 %v5333
    %6134 = vmatpush.bf16.msra.mxu0 %v5325
    %6135 = vmatpush.bf16.msra.mxu0 %v5317
    %6136 = vmatpush.bf16.msra.mxu0 %v5309
    %6137 = vmatpush.bf16.msra.mxu0 %v5301
    %6138 = vmatpush.bf16.msra.mxu0 %v5293
    %6139 = vmatpush.bf16.msra.mxu0 %v5285
    %6140 = vmatmul.bf16.gmra.mxu0 %v2710
    %v6141 = vpop.f32.mrf.mxu0
    %v6142 = vadd.f32 %v6128, %v6141
    %v6143 = vpop.f32.mrf.mxu0
    %v6144 = vadd.f32 %v6130, %v6143
    %6145 = vdwg.mxu0
    %6146 = vmatpush.bf16.msra.mxu0 %v5405
    %6147 = vmatpush.bf16.msra.mxu0 %v5397
    %6148 = vmatpush.bf16.msra.mxu0 %v5389
    %6149 = vmatpush.bf16.msra.mxu0 %v5381
    %6150 = vmatpush.bf16.msra.mxu0 %v5373
    %6151 = vmatpush.bf16.msra.mxu0 %v5365
    %6152 = vmatpush.bf16.msra.mxu0 %v5357
    %6153 = vmatpush.bf16.msra.mxu0 %v5349
    %6154 = vmatmul.bf16.gmra.mxu0 %v2711
    %v6155 = vpop.f32.mrf.mxu0
    %v6156 = vadd.f32 %v6142, %v6155
    %v6157 = vpop.f32.mrf.mxu0
    %v6158 = vadd.f32 %v6144, %v6157
    %6159 = vdwg.mxu0
    %6160 = vmatpush.bf16.msra.mxu0 %v5469
    %6161 = vmatpush.bf16.msra.mxu0 %v5461
    %6162 = vmatpush.bf16.msra.mxu0 %v5453
    %6163 = vmatpush.bf16.msra.mxu0 %v5445
    %6164 = vmatpush.bf16.msra.mxu0 %v5437
    %6165 = vmatpush.bf16.msra.mxu0 %v5429
    %6166 = vmatpush.bf16.msra.mxu0 %v5421
    %6167 = vmatpush.bf16.msra.mxu0 %v5413
    %6168 = vmatmul.bf16.gmra.mxu0 %v2712
    %v6169 = vpop.f32.mrf.mxu0
    %v6170 = vadd.f32 %v6156, %v6169
    %v6171 = vpop.f32.mrf.mxu0
    %v6172 = vadd.f32 %v6158, %v6171
    %6173 = vdwg.mxu0
    %v6175 = vperm.slane %v4189, 0
    %v6176 = vperm.slane %v4189, 1
    %v6177 = vperm.slane %v4189, 2
    %v6178 = vperm.slane %v4189, 3
    %v6179 = vperm.slane %v4189, 4
    %v6180 = vperm.slane %v4189, 5
    %v6181 = vperm.slane %v4189, 6
    %v6182 = vperm.slane %v4189, 7
    %v6191 = vadd.f32 %v6175, %v5778
    %v6192 = vadd.f32 %v6176, %v5834
    %v6193 = vadd.f32 %v6177, %v5890
    %v6194 = vadd.f32 %v6178, %v5946
    %v6195 = vadd.f32 %v6179, %v6002
    %v6196 = vadd.f32 %v6180, %v6058
    %v6197 = vadd.f32 %v6181, %v6114
    %v6198 = vadd.f32 %v6182, %v6170
    %v6199 = vadd.f32 %v6175, %v5780
    %v6200 = vadd.f32 %v6176, %v5836
    %v6201 = vadd.f32 %v6177, %v5892
    %v6202 = vadd.f32 %v6178, %v5948
    %v6203 = vadd.f32 %v6179, %v6004
    %v6204 = vadd.f32 %v6180, %v6060
    %v6205 = vadd.f32 %v6181, %v6116
    %v6206 = vadd.f32 %v6182, %v6172
    %s6207 = scalar_lea.vmem [#allocation9], 2048
    %v6208 = vld [vmem:[%s6207] sm:$0xff]
    %v6209 = vld [vmem:[%s6207 + $0x8] sm:$0xff]
    %v6210 = vld [vmem:[%s6207 + $0x10] sm:$0xff]
    %v6211 = vld [vmem:[%s6207 + $0x18] sm:$0xff]
    %v6212 = vld [vmem:[%s6207 + $0x20] sm:$0xff]
    %v6213 = vld [vmem:[%s6207 + $0x28] sm:$0xff]
    %v6214 = vld [vmem:[%s6207 + $0x30] sm:$0xff]
    %v6215 = vld [vmem:[%s6207 + $0x38] sm:$0xff]
    %v6216 = vld [vmem:[%s6207 + $0x40] sm:$0xff]
    %v6217 = vld [vmem:[%s6207 + $0x48] sm:$0xff]
    %v6218 = vld [vmem:[%s6207 + $0x50] sm:$0xff]
    %v6219 = vld [vmem:[%s6207 + $0x58] sm:$0xff]
    %v6220 = vld [vmem:[%s6207 + $0x60] sm:$0xff]
    %v6221 = vld [vmem:[%s6207 + $0x68] sm:$0xff]
    %v6222 = vld [vmem:[%s6207 + $0x70] sm:$0xff]
    %v6223 = vld [vmem:[%s6207 + $0x78] sm:$0xff]
    %v6224 = vld [vmem:[%s6207 + $0x80] sm:$0xff]
    %v6225 = vld [vmem:[%s6207 + $0x88] sm:$0xff]
    %v6226 = vld [vmem:[%s6207 + $0x90] sm:$0xff]
    %v6227 = vld [vmem:[%s6207 + $0x98] sm:$0xff]
    %v6228 = vld [vmem:[%s6207 + $0xa0] sm:$0xff]
    %v6229 = vld [vmem:[%s6207 + $0xa8] sm:$0xff]
    %v6230 = vld [vmem:[%s6207 + $0xb0] sm:$0xff]
    %v6231 = vld [vmem:[%s6207 + $0xb8] sm:$0xff]
    %v6232 = vld [vmem:[%s6207 + $0xc0] sm:$0xff]
    %v6233 = vld [vmem:[%s6207 + $0xc8] sm:$0xff]
    %v6234 = vld [vmem:[%s6207 + $0xd0] sm:$0xff]
    %v6235 = vld [vmem:[%s6207 + $0xd8] sm:$0xff]
    %v6236 = vld [vmem:[%s6207 + $0xe0] sm:$0xff]
    %v6237 = vld [vmem:[%s6207 + $0xe8] sm:$0xff]
    %v6238 = vld [vmem:[%s6207 + $0xf0] sm:$0xff]
    %v6239 = vld [vmem:[%s6207 + $0xf8] sm:$0xff]
    %v6240 = vld [vmem:[%s6207 + $0x100] sm:$0xff]
    %v6241 = vld [vmem:[%s6207 + $0x108] sm:$0xff]
    %v6242 = vld [vmem:[%s6207 + $0x110] sm:$0xff]
    %v6243 = vld [vmem:[%s6207 + $0x118] sm:$0xff]
    %v6244 = vld [vmem:[%s6207 + $0x120] sm:$0xff]
    %v6245 = vld [vmem:[%s6207 + $0x128] sm:$0xff]
    %v6246 = vld [vmem:[%s6207 + $0x130] sm:$0xff]
    %v6247 = vld [vmem:[%s6207 + $0x138] sm:$0xff]
    %v6248 = vld [vmem:[%s6207 + $0x140] sm:$0xff]
    %v6249 = vld [vmem:[%s6207 + $0x148] sm:$0xff]
    %v6250 = vld [vmem:[%s6207 + $0x150] sm:$0xff]
    %v6251 = vld [vmem:[%s6207 + $0x158] sm:$0xff]
    %v6252 = vld [vmem:[%s6207 + $0x160] sm:$0xff]
    %v6253 = vld [vmem:[%s6207 + $0x168] sm:$0xff]
    %v6254 = vld [vmem:[%s6207 + $0x170] sm:$0xff]
    %v6255 = vld [vmem:[%s6207 + $0x178] sm:$0xff]
    %v6256 = vld [vmem:[%s6207 + $0x180] sm:$0xff]
    %v6257 = vld [vmem:[%s6207 + $0x188] sm:$0xff]
    %v6258 = vld [vmem:[%s6207 + $0x190] sm:$0xff]
    %v6259 = vld [vmem:[%s6207 + $0x198] sm:$0xff]
    %v6260 = vld [vmem:[%s6207 + $0x1a0] sm:$0xff]
    %v6261 = vld [vmem:[%s6207 + $0x1a8] sm:$0xff]
    %v6262 = vld [vmem:[%s6207 + $0x1b0] sm:$0xff]
    %v6263 = vld [vmem:[%s6207 + $0x1b8] sm:$0xff]
    %v6264 = vld [vmem:[%s6207 + $0x1c0] sm:$0xff]
    %v6265 = vld [vmem:[%s6207 + $0x1c8] sm:$0xff]
    %v6266 = vld [vmem:[%s6207 + $0x1d0] sm:$0xff]
    %v6267 = vld [vmem:[%s6207 + $0x1d8] sm:$0xff]
    %v6268 = vld [vmem:[%s6207 + $0x1e0] sm:$0xff]
    %v6269 = vld [vmem:[%s6207 + $0x1e8] sm:$0xff]
    %v6270 = vld [vmem:[%s6207 + $0x1f0] sm:$0xff]
    %v6271 = vld [vmem:[%s6207 + $0x1f8] sm:$0xff]
    %v6272 = vld [vmem:[%s6207 + $0x200] sm:$0xff]
    %v6273 = vld [vmem:[%s6207 + $0x208] sm:$0xff]
    %v6274 = vld [vmem:[%s6207 + $0x210] sm:$0xff]
    %v6275 = vld [vmem:[%s6207 + $0x218] sm:$0xff]
    %v6276 = vld [vmem:[%s6207 + $0x220] sm:$0xff]
    %v6277 = vld [vmem:[%s6207 + $0x228] sm:$0xff]
    %v6278 = vld [vmem:[%s6207 + $0x230] sm:$0xff]
    %v6279 = vld [vmem:[%s6207 + $0x238] sm:$0xff]
    %v6280 = vld [vmem:[%s6207 + $0x240] sm:$0xff]
    %v6281 = vld [vmem:[%s6207 + $0x248] sm:$0xff]
    %v6282 = vld [vmem:[%s6207 + $0x250] sm:$0xff]
    %v6283 = vld [vmem:[%s6207 + $0x258] sm:$0xff]
    %v6284 = vld [vmem:[%s6207 + $0x260] sm:$0xff]
    %v6285 = vld [vmem:[%s6207 + $0x268] sm:$0xff]
    %v6286 = vld [vmem:[%s6207 + $0x270] sm:$0xff]
    %v6287 = vld [vmem:[%s6207 + $0x278] sm:$0xff]
    %v6288 = vld [vmem:[%s6207 + $0x280] sm:$0xff]
    %v6289 = vld [vmem:[%s6207 + $0x288] sm:$0xff]
    %v6290 = vld [vmem:[%s6207 + $0x290] sm:$0xff]
    %v6291 = vld [vmem:[%s6207 + $0x298] sm:$0xff]
    %v6292 = vld [vmem:[%s6207 + $0x2a0] sm:$0xff]
    %v6293 = vld [vmem:[%s6207 + $0x2a8] sm:$0xff]
    %v6294 = vld [vmem:[%s6207 + $0x2b0] sm:$0xff]
    %v6295 = vld [vmem:[%s6207 + $0x2b8] sm:$0xff]
    %v6296 = vld [vmem:[%s6207 + $0x2c0] sm:$0xff]
    %v6297 = vld [vmem:[%s6207 + $0x2c8] sm:$0xff]
    %v6298 = vld [vmem:[%s6207 + $0x2d0] sm:$0xff]
    %v6299 = vld [vmem:[%s6207 + $0x2d8] sm:$0xff]
    %v6300 = vld [vmem:[%s6207 + $0x2e0] sm:$0xff]
    %v6301 = vld [vmem:[%s6207 + $0x2e8] sm:$0xff]
    %v6302 = vld [vmem:[%s6207 + $0x2f0] sm:$0xff]
    %v6303 = vld [vmem:[%s6207 + $0x2f8] sm:$0xff]
    %v6304 = vld [vmem:[%s6207 + $0x300] sm:$0xff]
    %v6305 = vld [vmem:[%s6207 + $0x308] sm:$0xff]
    %v6306 = vld [vmem:[%s6207 + $0x310] sm:$0xff]
    %v6307 = vld [vmem:[%s6207 + $0x318] sm:$0xff]
    %v6308 = vld [vmem:[%s6207 + $0x320] sm:$0xff]
    %v6309 = vld [vmem:[%s6207 + $0x328] sm:$0xff]
    %v6310 = vld [vmem:[%s6207 + $0x330] sm:$0xff]
    %v6311 = vld [vmem:[%s6207 + $0x338] sm:$0xff]
    %v6312 = vld [vmem:[%s6207 + $0x340] sm:$0xff]
    %v6313 = vld [vmem:[%s6207 + $0x348] sm:$0xff]
    %v6314 = vld [vmem:[%s6207 + $0x350] sm:$0xff]
    %v6315 = vld [vmem:[%s6207 + $0x358] sm:$0xff]
    %v6316 = vld [vmem:[%s6207 + $0x360] sm:$0xff]
    %v6317 = vld [vmem:[%s6207 + $0x368] sm:$0xff]
    %v6318 = vld [vmem:[%s6207 + $0x370] sm:$0xff]
    %v6319 = vld [vmem:[%s6207 + $0x378] sm:$0xff]
    %v6320 = vld [vmem:[%s6207 + $0x380] sm:$0xff]
    %v6321 = vld [vmem:[%s6207 + $0x388] sm:$0xff]
    %v6322 = vld [vmem:[%s6207 + $0x390] sm:$0xff]
    %v6323 = vld [vmem:[%s6207 + $0x398] sm:$0xff]
    %v6324 = vld [vmem:[%s6207 + $0x3a0] sm:$0xff]
    %v6325 = vld [vmem:[%s6207 + $0x3a8] sm:$0xff]
    %v6326 = vld [vmem:[%s6207 + $0x3b0] sm:$0xff]
    %v6327 = vld [vmem:[%s6207 + $0x3b8] sm:$0xff]
    %v6328 = vld [vmem:[%s6207 + $0x3c0] sm:$0xff]
    %v6329 = vld [vmem:[%s6207 + $0x3c8] sm:$0xff]
    %v6330 = vld [vmem:[%s6207 + $0x3d0] sm:$0xff]
    %v6331 = vld [vmem:[%s6207 + $0x3d8] sm:$0xff]
    %v6332 = vld [vmem:[%s6207 + $0x3e0] sm:$0xff]
    %v6333 = vld [vmem:[%s6207 + $0x3e8] sm:$0xff]
    %v6334 = vld [vmem:[%s6207 + $0x3f0] sm:$0xff]
    %v6335 = vld [vmem:[%s6207 + $0x3f8] sm:$0xff]
    %v6336 = vld [vmem:[%s6207 + $0x400] sm:$0xff]
    %v6337 = vld [vmem:[%s6207 + $0x408] sm:$0xff]
    %v6338 = vld [vmem:[%s6207 + $0x410] sm:$0xff]
    %v6339 = vld [vmem:[%s6207 + $0x418] sm:$0xff]
    %v6340 = vld [vmem:[%s6207 + $0x420] sm:$0xff]
    %v6341 = vld [vmem:[%s6207 + $0x428] sm:$0xff]
    %v6342 = vld [vmem:[%s6207 + $0x430] sm:$0xff]
    %v6343 = vld [vmem:[%s6207 + $0x438] sm:$0xff]
    %v6344 = vld [vmem:[%s6207 + $0x440] sm:$0xff]
    %v6345 = vld [vmem:[%s6207 + $0x448] sm:$0xff]
    %v6346 = vld [vmem:[%s6207 + $0x450] sm:$0xff]
    %v6347 = vld [vmem:[%s6207 + $0x458] sm:$0xff]
    %v6348 = vld [vmem:[%s6207 + $0x460] sm:$0xff]
    %v6349 = vld [vmem:[%s6207 + $0x468] sm:$0xff]
    %v6350 = vld [vmem:[%s6207 + $0x470] sm:$0xff]
    %v6351 = vld [vmem:[%s6207 + $0x478] sm:$0xff]
    %v6352 = vld [vmem:[%s6207 + $0x480] sm:$0xff]
    %v6353 = vld [vmem:[%s6207 + $0x488] sm:$0xff]
    %v6354 = vld [vmem:[%s6207 + $0x490] sm:$0xff]
    %v6355 = vld [vmem:[%s6207 + $0x498] sm:$0xff]
    %v6356 = vld [vmem:[%s6207 + $0x4a0] sm:$0xff]
    %v6357 = vld [vmem:[%s6207 + $0x4a8] sm:$0xff]
    %v6358 = vld [vmem:[%s6207 + $0x4b0] sm:$0xff]
    %v6359 = vld [vmem:[%s6207 + $0x4b8] sm:$0xff]
    %v6360 = vld [vmem:[%s6207 + $0x4c0] sm:$0xff]
    %v6361 = vld [vmem:[%s6207 + $0x4c8] sm:$0xff]
    %v6362 = vld [vmem:[%s6207 + $0x4d0] sm:$0xff]
    %v6363 = vld [vmem:[%s6207 + $0x4d8] sm:$0xff]
    %v6364 = vld [vmem:[%s6207 + $0x4e0] sm:$0xff]
    %v6365 = vld [vmem:[%s6207 + $0x4e8] sm:$0xff]
    %v6366 = vld [vmem:[%s6207 + $0x4f0] sm:$0xff]
    %v6367 = vld [vmem:[%s6207 + $0x4f8] sm:$0xff]
    %v6368 = vld [vmem:[%s6207 + $0x500] sm:$0xff]
    %v6369 = vld [vmem:[%s6207 + $0x508] sm:$0xff]
    %v6370 = vld [vmem:[%s6207 + $0x510] sm:$0xff]
    %v6371 = vld [vmem:[%s6207 + $0x518] sm:$0xff]
    %v6372 = vld [vmem:[%s6207 + $0x520] sm:$0xff]
    %v6373 = vld [vmem:[%s6207 + $0x528] sm:$0xff]
    %v6374 = vld [vmem:[%s6207 + $0x530] sm:$0xff]
    %v6375 = vld [vmem:[%s6207 + $0x538] sm:$0xff]
    %v6376 = vld [vmem:[%s6207 + $0x540] sm:$0xff]
    %v6377 = vld [vmem:[%s6207 + $0x548] sm:$0xff]
    %v6378 = vld [vmem:[%s6207 + $0x550] sm:$0xff]
    %v6379 = vld [vmem:[%s6207 + $0x558] sm:$0xff]
    %v6380 = vld [vmem:[%s6207 + $0x560] sm:$0xff]
    %v6381 = vld [vmem:[%s6207 + $0x568] sm:$0xff]
    %v6382 = vld [vmem:[%s6207 + $0x570] sm:$0xff]
    %v6383 = vld [vmem:[%s6207 + $0x578] sm:$0xff]
    %v6384 = vld [vmem:[%s6207 + $0x580] sm:$0xff]
    %v6385 = vld [vmem:[%s6207 + $0x588] sm:$0xff]
    %v6386 = vld [vmem:[%s6207 + $0x590] sm:$0xff]
    %v6387 = vld [vmem:[%s6207 + $0x598] sm:$0xff]
    %v6388 = vld [vmem:[%s6207 + $0x5a0] sm:$0xff]
    %v6389 = vld [vmem:[%s6207 + $0x5a8] sm:$0xff]
    %v6390 = vld [vmem:[%s6207 + $0x5b0] sm:$0xff]
    %v6391 = vld [vmem:[%s6207 + $0x5b8] sm:$0xff]
    %v6392 = vld [vmem:[%s6207 + $0x5c0] sm:$0xff]
    %v6393 = vld [vmem:[%s6207 + $0x5c8] sm:$0xff]
    %v6394 = vld [vmem:[%s6207 + $0x5d0] sm:$0xff]
    %v6395 = vld [vmem:[%s6207 + $0x5d8] sm:$0xff]
    %v6396 = vld [vmem:[%s6207 + $0x5e0] sm:$0xff]
    %v6397 = vld [vmem:[%s6207 + $0x5e8] sm:$0xff]
    %v6398 = vld [vmem:[%s6207 + $0x5f0] sm:$0xff]
    %v6399 = vld [vmem:[%s6207 + $0x5f8] sm:$0xff]
    %v6400 = vld [vmem:[%s6207 + $0x600] sm:$0xff]
    %v6401 = vld [vmem:[%s6207 + $0x608] sm:$0xff]
    %v6402 = vld [vmem:[%s6207 + $0x610] sm:$0xff]
    %v6403 = vld [vmem:[%s6207 + $0x618] sm:$0xff]
    %v6404 = vld [vmem:[%s6207 + $0x620] sm:$0xff]
    %v6405 = vld [vmem:[%s6207 + $0x628] sm:$0xff]
    %v6406 = vld [vmem:[%s6207 + $0x630] sm:$0xff]
    %v6407 = vld [vmem:[%s6207 + $0x638] sm:$0xff]
    %v6408 = vld [vmem:[%s6207 + $0x640] sm:$0xff]
    %v6409 = vld [vmem:[%s6207 + $0x648] sm:$0xff]
    %v6410 = vld [vmem:[%s6207 + $0x650] sm:$0xff]
    %v6411 = vld [vmem:[%s6207 + $0x658] sm:$0xff]
    %v6412 = vld [vmem:[%s6207 + $0x660] sm:$0xff]
    %v6413 = vld [vmem:[%s6207 + $0x668] sm:$0xff]
    %v6414 = vld [vmem:[%s6207 + $0x670] sm:$0xff]
    %v6415 = vld [vmem:[%s6207 + $0x678] sm:$0xff]
    %v6416 = vld [vmem:[%s6207 + $0x680] sm:$0xff]
    %v6417 = vld [vmem:[%s6207 + $0x688] sm:$0xff]
    %v6418 = vld [vmem:[%s6207 + $0x690] sm:$0xff]
    %v6419 = vld [vmem:[%s6207 + $0x698] sm:$0xff]
    %v6420 = vld [vmem:[%s6207 + $0x6a0] sm:$0xff]
    %v6421 = vld [vmem:[%s6207 + $0x6a8] sm:$0xff]
    %v6422 = vld [vmem:[%s6207 + $0x6b0] sm:$0xff]
    %v6423 = vld [vmem:[%s6207 + $0x6b8] sm:$0xff]
    %v6424 = vld [vmem:[%s6207 + $0x6c0] sm:$0xff]
    %v6425 = vld [vmem:[%s6207 + $0x6c8] sm:$0xff]
    %v6426 = vld [vmem:[%s6207 + $0x6d0] sm:$0xff]
    %v6427 = vld [vmem:[%s6207 + $0x6d8] sm:$0xff]
    %v6428 = vld [vmem:[%s6207 + $0x6e0] sm:$0xff]
    %v6429 = vld [vmem:[%s6207 + $0x6e8] sm:$0xff]
    %v6430 = vld [vmem:[%s6207 + $0x6f0] sm:$0xff]
    %v6431 = vld [vmem:[%s6207 + $0x6f8] sm:$0xff]
    %v6432 = vld [vmem:[%s6207 + $0x700] sm:$0xff]
    %v6433 = vld [vmem:[%s6207 + $0x708] sm:$0xff]
    %v6434 = vld [vmem:[%s6207 + $0x710] sm:$0xff]
    %v6435 = vld [vmem:[%s6207 + $0x718] sm:$0xff]
    %v6436 = vld [vmem:[%s6207 + $0x720] sm:$0xff]
    %v6437 = vld [vmem:[%s6207 + $0x728] sm:$0xff]
    %v6438 = vld [vmem:[%s6207 + $0x730] sm:$0xff]
    %v6439 = vld [vmem:[%s6207 + $0x738] sm:$0xff]
    %v6440 = vld [vmem:[%s6207 + $0x740] sm:$0xff]
    %v6441 = vld [vmem:[%s6207 + $0x748] sm:$0xff]
    %v6442 = vld [vmem:[%s6207 + $0x750] sm:$0xff]
    %v6443 = vld [vmem:[%s6207 + $0x758] sm:$0xff]
    %v6444 = vld [vmem:[%s6207 + $0x760] sm:$0xff]
    %v6445 = vld [vmem:[%s6207 + $0x768] sm:$0xff]
    %v6446 = vld [vmem:[%s6207 + $0x770] sm:$0xff]
    %v6447 = vld [vmem:[%s6207 + $0x778] sm:$0xff]
    %v6448 = vld [vmem:[%s6207 + $0x780] sm:$0xff]
    %v6449 = vld [vmem:[%s6207 + $0x788] sm:$0xff]
    %v6450 = vld [vmem:[%s6207 + $0x790] sm:$0xff]
    %v6451 = vld [vmem:[%s6207 + $0x798] sm:$0xff]
    %v6452 = vld [vmem:[%s6207 + $0x7a0] sm:$0xff]
    %v6453 = vld [vmem:[%s6207 + $0x7a8] sm:$0xff]
    %v6454 = vld [vmem:[%s6207 + $0x7b0] sm:$0xff]
    %v6455 = vld [vmem:[%s6207 + $0x7b8] sm:$0xff]
    %v6456 = vld [vmem:[%s6207 + $0x7c0] sm:$0xff]
    %v6457 = vld [vmem:[%s6207 + $0x7c8] sm:$0xff]
    %v6458 = vld [vmem:[%s6207 + $0x7d0] sm:$0xff]
    %v6459 = vld [vmem:[%s6207 + $0x7d8] sm:$0xff]
    %v6460 = vld [vmem:[%s6207 + $0x7e0] sm:$0xff]
    %v6461 = vld [vmem:[%s6207 + $0x7e8] sm:$0xff]
    %v6462 = vld [vmem:[%s6207 + $0x7f0] sm:$0xff]
    %v6463 = vld [vmem:[%s6207 + $0x7f8] sm:$0xff]
    %v6720 = vunpack.c.l.b16 %v6208
    %v6721 = vunpack.c.h.b16 %v6208
    %v6722 = vunpack.c.l.b16 %v6209
    %v6723 = vunpack.c.h.b16 %v6209
    %v6724 = vunpack.c.l.b16 %v6210
    %v6725 = vunpack.c.h.b16 %v6210
    %v6726 = vunpack.c.l.b16 %v6211
    %v6727 = vunpack.c.h.b16 %v6211
    %v6728 = vunpack.c.l.b16 %v6212
    %v6729 = vunpack.c.h.b16 %v6212
    %v6730 = vunpack.c.l.b16 %v6213
    %v6731 = vunpack.c.h.b16 %v6213
    %v6732 = vunpack.c.l.b16 %v6214
    %v6733 = vunpack.c.h.b16 %v6214
    %v6734 = vunpack.c.l.b16 %v6215
    %v6735 = vunpack.c.h.b16 %v6215
    %v6736 = vunpack.c.l.b16 %v6216
    %v6737 = vunpack.c.h.b16 %v6216
    %v6738 = vunpack.c.l.b16 %v6217
    %v6739 = vunpack.c.h.b16 %v6217
    %v6740 = vunpack.c.l.b16 %v6218
    %v6741 = vunpack.c.h.b16 %v6218
    %v6742 = vunpack.c.l.b16 %v6219
    %v6743 = vunpack.c.h.b16 %v6219
    %v6744 = vunpack.c.l.b16 %v6220
    %v6745 = vunpack.c.h.b16 %v6220
    %v6746 = vunpack.c.l.b16 %v6221
    %v6747 = vunpack.c.h.b16 %v6221
    %v6748 = vunpack.c.l.b16 %v6222
    %v6749 = vunpack.c.h.b16 %v6222
    %v6750 = vunpack.c.l.b16 %v6223
    %v6751 = vunpack.c.h.b16 %v6223
    %v6752 = vunpack.c.l.b16 %v6224
    %v6753 = vunpack.c.h.b16 %v6224
    %v6754 = vunpack.c.l.b16 %v6225
    %v6755 = vunpack.c.h.b16 %v6225
    %v6756 = vunpack.c.l.b16 %v6226
    %v6757 = vunpack.c.h.b16 %v6226
    %v6758 = vunpack.c.l.b16 %v6227
    %v6759 = vunpack.c.h.b16 %v6227
    %v6760 = vunpack.c.l.b16 %v6228
    %v6761 = vunpack.c.h.b16 %v6228
    %v6762 = vunpack.c.l.b16 %v6229
    %v6763 = vunpack.c.h.b16 %v6229
    %v6764 = vunpack.c.l.b16 %v6230
    %v6765 = vunpack.c.h.b16 %v6230
    %v6766 = vunpack.c.l.b16 %v6231
    %v6767 = vunpack.c.h.b16 %v6231
    %v6768 = vunpack.c.l.b16 %v6232
    %v6769 = vunpack.c.h.b16 %v6232
    %v6770 = vunpack.c.l.b16 %v6233
    %v6771 = vunpack.c.h.b16 %v6233
    %v6772 = vunpack.c.l.b16 %v6234
    %v6773 = vunpack.c.h.b16 %v6234
    %v6774 = vunpack.c.l.b16 %v6235
    %v6775 = vunpack.c.h.b16 %v6235
    %v6776 = vunpack.c.l.b16 %v6236
    %v6777 = vunpack.c.h.b16 %v6236
    %v6778 = vunpack.c.l.b16 %v6237
    %v6779 = vunpack.c.h.b16 %v6237
    %v6780 = vunpack.c.l.b16 %v6238
    %v6781 = vunpack.c.h.b16 %v6238
    %v6782 = vunpack.c.l.b16 %v6239
    %v6783 = vunpack.c.h.b16 %v6239
    %v6784 = vunpack.c.l.b16 %v6240
    %v6785 = vunpack.c.h.b16 %v6240
    %v6786 = vunpack.c.l.b16 %v6241
    %v6787 = vunpack.c.h.b16 %v6241
    %v6788 = vunpack.c.l.b16 %v6242
    %v6789 = vunpack.c.h.b16 %v6242
    %v6790 = vunpack.c.l.b16 %v6243
    %v6791 = vunpack.c.h.b16 %v6243
    %v6792 = vunpack.c.l.b16 %v6244
    %v6793 = vunpack.c.h.b16 %v6244
    %v6794 = vunpack.c.l.b16 %v6245
    %v6795 = vunpack.c.h.b16 %v6245
    %v6796 = vunpack.c.l.b16 %v6246
    %v6797 = vunpack.c.h.b16 %v6246
    %v6798 = vunpack.c.l.b16 %v6247
    %v6799 = vunpack.c.h.b16 %v6247
    %v6800 = vunpack.c.l.b16 %v6248
    %v6801 = vunpack.c.h.b16 %v6248
    %v6802 = vunpack.c.l.b16 %v6249
    %v6803 = vunpack.c.h.b16 %v6249
    %v6804 = vunpack.c.l.b16 %v6250
    %v6805 = vunpack.c.h.b16 %v6250
    %v6806 = vunpack.c.l.b16 %v6251
    %v6807 = vunpack.c.h.b16 %v6251
    %v6808 = vunpack.c.l.b16 %v6252
    %v6809 = vunpack.c.h.b16 %v6252
    %v6810 = vunpack.c.l.b16 %v6253
    %v6811 = vunpack.c.h.b16 %v6253
    %v6812 = vunpack.c.l.b16 %v6254
    %v6813 = vunpack.c.h.b16 %v6254
    %v6814 = vunpack.c.l.b16 %v6255
    %v6815 = vunpack.c.h.b16 %v6255
    %v6816 = vunpack.c.l.b16 %v6256
    %v6817 = vunpack.c.h.b16 %v6256
    %v6818 = vunpack.c.l.b16 %v6257
    %v6819 = vunpack.c.h.b16 %v6257
    %v6820 = vunpack.c.l.b16 %v6258
    %v6821 = vunpack.c.h.b16 %v6258
    %v6822 = vunpack.c.l.b16 %v6259
    %v6823 = vunpack.c.h.b16 %v6259
    %v6824 = vunpack.c.l.b16 %v6260
    %v6825 = vunpack.c.h.b16 %v6260
    %v6826 = vunpack.c.l.b16 %v6261
    %v6827 = vunpack.c.h.b16 %v6261
    %v6828 = vunpack.c.l.b16 %v6262
    %v6829 = vunpack.c.h.b16 %v6262
    %v6830 = vunpack.c.l.b16 %v6263
    %v6831 = vunpack.c.h.b16 %v6263
    %v6832 = vunpack.c.l.b16 %v6264
    %v6833 = vunpack.c.h.b16 %v6264
    %v6834 = vunpack.c.l.b16 %v6265
    %v6835 = vunpack.c.h.b16 %v6265
    %v6836 = vunpack.c.l.b16 %v6266
    %v6837 = vunpack.c.h.b16 %v6266
    %v6838 = vunpack.c.l.b16 %v6267
    %v6839 = vunpack.c.h.b16 %v6267
    %v6840 = vunpack.c.l.b16 %v6268
    %v6841 = vunpack.c.h.b16 %v6268
    %v6842 = vunpack.c.l.b16 %v6269
    %v6843 = vunpack.c.h.b16 %v6269
    %v6844 = vunpack.c.l.b16 %v6270
    %v6845 = vunpack.c.h.b16 %v6270
    %v6846 = vunpack.c.l.b16 %v6271
    %v6847 = vunpack.c.h.b16 %v6271
    %v6848 = vunpack.c.l.b16 %v6272
    %v6849 = vunpack.c.h.b16 %v6272
    %v6850 = vunpack.c.l.b16 %v6273
    %v6851 = vunpack.c.h.b16 %v6273
    %v6852 = vunpack.c.l.b16 %v6274
    %v6853 = vunpack.c.h.b16 %v6274
    %v6854 = vunpack.c.l.b16 %v6275
    %v6855 = vunpack.c.h.b16 %v6275
    %v6856 = vunpack.c.l.b16 %v6276
    %v6857 = vunpack.c.h.b16 %v6276
    %v6858 = vunpack.c.l.b16 %v6277
    %v6859 = vunpack.c.h.b16 %v6277
    %v6860 = vunpack.c.l.b16 %v6278
    %v6861 = vunpack.c.h.b16 %v6278
    %v6862 = vunpack.c.l.b16 %v6279
    %v6863 = vunpack.c.h.b16 %v6279
    %v6864 = vunpack.c.l.b16 %v6280
    %v6865 = vunpack.c.h.b16 %v6280
    %v6866 = vunpack.c.l.b16 %v6281
    %v6867 = vunpack.c.h.b16 %v6281
    %v6868 = vunpack.c.l.b16 %v6282
    %v6869 = vunpack.c.h.b16 %v6282
    %v6870 = vunpack.c.l.b16 %v6283
    %v6871 = vunpack.c.h.b16 %v6283
    %v6872 = vunpack.c.l.b16 %v6284
    %v6873 = vunpack.c.h.b16 %v6284
    %v6874 = vunpack.c.l.b16 %v6285
    %v6875 = vunpack.c.h.b16 %v6285
    %v6876 = vunpack.c.l.b16 %v6286
    %v6877 = vunpack.c.h.b16 %v6286
    %v6878 = vunpack.c.l.b16 %v6287
    %v6879 = vunpack.c.h.b16 %v6287
    %v6880 = vunpack.c.l.b16 %v6288
    %v6881 = vunpack.c.h.b16 %v6288
    %v6882 = vunpack.c.l.b16 %v6289
    %v6883 = vunpack.c.h.b16 %v6289
    %v6884 = vunpack.c.l.b16 %v6290
    %v6885 = vunpack.c.h.b16 %v6290
    %v6886 = vunpack.c.l.b16 %v6291
    %v6887 = vunpack.c.h.b16 %v6291
    %v6888 = vunpack.c.l.b16 %v6292
    %v6889 = vunpack.c.h.b16 %v6292
    %v6890 = vunpack.c.l.b16 %v6293
    %v6891 = vunpack.c.h.b16 %v6293
    %v6892 = vunpack.c.l.b16 %v6294
    %v6893 = vunpack.c.h.b16 %v6294
    %v6894 = vunpack.c.l.b16 %v6295
    %v6895 = vunpack.c.h.b16 %v6295
    %v6896 = vunpack.c.l.b16 %v6296
    %v6897 = vunpack.c.h.b16 %v6296
    %v6898 = vunpack.c.l.b16 %v6297
    %v6899 = vunpack.c.h.b16 %v6297
    %v6900 = vunpack.c.l.b16 %v6298
    %v6901 = vunpack.c.h.b16 %v6298
    %v6902 = vunpack.c.l.b16 %v6299
    %v6903 = vunpack.c.h.b16 %v6299
    %v6904 = vunpack.c.l.b16 %v6300
    %v6905 = vunpack.c.h.b16 %v6300
    %v6906 = vunpack.c.l.b16 %v6301
    %v6907 = vunpack.c.h.b16 %v6301
    %v6908 = vunpack.c.l.b16 %v6302
    %v6909 = vunpack.c.h.b16 %v6302
    %v6910 = vunpack.c.l.b16 %v6303
    %v6911 = vunpack.c.h.b16 %v6303
    %v6912 = vunpack.c.l.b16 %v6304
    %v6913 = vunpack.c.h.b16 %v6304
    %v6914 = vunpack.c.l.b16 %v6305
    %v6915 = vunpack.c.h.b16 %v6305
    %v6916 = vunpack.c.l.b16 %v6306
    %v6917 = vunpack.c.h.b16 %v6306
    %v6918 = vunpack.c.l.b16 %v6307
    %v6919 = vunpack.c.h.b16 %v6307
    %v6920 = vunpack.c.l.b16 %v6308
    %v6921 = vunpack.c.h.b16 %v6308
    %v6922 = vunpack.c.l.b16 %v6309
    %v6923 = vunpack.c.h.b16 %v6309
    %v6924 = vunpack.c.l.b16 %v6310
    %v6925 = vunpack.c.h.b16 %v6310
    %v6926 = vunpack.c.l.b16 %v6311
    %v6927 = vunpack.c.h.b16 %v6311
    %v6928 = vunpack.c.l.b16 %v6312
    %v6929 = vunpack.c.h.b16 %v6312
    %v6930 = vunpack.c.l.b16 %v6313
    %v6931 = vunpack.c.h.b16 %v6313
    %v6932 = vunpack.c.l.b16 %v6314
    %v6933 = vunpack.c.h.b16 %v6314
    %v6934 = vunpack.c.l.b16 %v6315
    %v6935 = vunpack.c.h.b16 %v6315
    %v6936 = vunpack.c.l.b16 %v6316
    %v6937 = vunpack.c.h.b16 %v6316
    %v6938 = vunpack.c.l.b16 %v6317
    %v6939 = vunpack.c.h.b16 %v6317
    %v6940 = vunpack.c.l.b16 %v6318
    %v6941 = vunpack.c.h.b16 %v6318
    %v6942 = vunpack.c.l.b16 %v6319
    %v6943 = vunpack.c.h.b16 %v6319
    %v6944 = vunpack.c.l.b16 %v6320
    %v6945 = vunpack.c.h.b16 %v6320
    %v6946 = vunpack.c.l.b16 %v6321
    %v6947 = vunpack.c.h.b16 %v6321
    %v6948 = vunpack.c.l.b16 %v6322
    %v6949 = vunpack.c.h.b16 %v6322
    %v6950 = vunpack.c.l.b16 %v6323
    %v6951 = vunpack.c.h.b16 %v6323
    %v6952 = vunpack.c.l.b16 %v6324
    %v6953 = vunpack.c.h.b16 %v6324
    %v6954 = vunpack.c.l.b16 %v6325
    %v6955 = vunpack.c.h.b16 %v6325
    %v6956 = vunpack.c.l.b16 %v6326
    %v6957 = vunpack.c.h.b16 %v6326
    %v6958 = vunpack.c.l.b16 %v6327
    %v6959 = vunpack.c.h.b16 %v6327
    %v6960 = vunpack.c.l.b16 %v6328
    %v6961 = vunpack.c.h.b16 %v6328
    %v6962 = vunpack.c.l.b16 %v6329
    %v6963 = vunpack.c.h.b16 %v6329
    %v6964 = vunpack.c.l.b16 %v6330
    %v6965 = vunpack.c.h.b16 %v6330
    %v6966 = vunpack.c.l.b16 %v6331
    %v6967 = vunpack.c.h.b16 %v6331
    %v6968 = vunpack.c.l.b16 %v6332
    %v6969 = vunpack.c.h.b16 %v6332
    %v6970 = vunpack.c.l.b16 %v6333
    %v6971 = vunpack.c.h.b16 %v6333
    %v6972 = vunpack.c.l.b16 %v6334
    %v6973 = vunpack.c.h.b16 %v6334
    %v6974 = vunpack.c.l.b16 %v6335
    %v6975 = vunpack.c.h.b16 %v6335
    %v6976 = vunpack.c.l.b16 %v6336
    %v6977 = vunpack.c.h.b16 %v6336
    %v6978 = vunpack.c.l.b16 %v6337
    %v6979 = vunpack.c.h.b16 %v6337
    %v6980 = vunpack.c.l.b16 %v6338
    %v6981 = vunpack.c.h.b16 %v6338
    %v6982 = vunpack.c.l.b16 %v6339
    %v6983 = vunpack.c.h.b16 %v6339
    %v6984 = vunpack.c.l.b16 %v6340
    %v6985 = vunpack.c.h.b16 %v6340
    %v6986 = vunpack.c.l.b16 %v6341
    %v6987 = vunpack.c.h.b16 %v6341
    %v6988 = vunpack.c.l.b16 %v6342
    %v6989 = vunpack.c.h.b16 %v6342
    %v6990 = vunpack.c.l.b16 %v6343
    %v6991 = vunpack.c.h.b16 %v6343
    %v6992 = vunpack.c.l.b16 %v6344
    %v6993 = vunpack.c.h.b16 %v6344
    %v6994 = vunpack.c.l.b16 %v6345
    %v6995 = vunpack.c.h.b16 %v6345
    %v6996 = vunpack.c.l.b16 %v6346
    %v6997 = vunpack.c.h.b16 %v6346
    %v6998 = vunpack.c.l.b16 %v6347
    %v6999 = vunpack.c.h.b16 %v6347
    %v7000 = vunpack.c.l.b16 %v6348
    %v7001 = vunpack.c.h.b16 %v6348
    %v7002 = vunpack.c.l.b16 %v6349
    %v7003 = vunpack.c.h.b16 %v6349
    %v7004 = vunpack.c.l.b16 %v6350
    %v7005 = vunpack.c.h.b16 %v6350
    %v7006 = vunpack.c.l.b16 %v6351
    %v7007 = vunpack.c.h.b16 %v6351
    %v7008 = vunpack.c.l.b16 %v6352
    %v7009 = vunpack.c.h.b16 %v6352
    %v7010 = vunpack.c.l.b16 %v6353
    %v7011 = vunpack.c.h.b16 %v6353
    %v7012 = vunpack.c.l.b16 %v6354
    %v7013 = vunpack.c.h.b16 %v6354
    %v7014 = vunpack.c.l.b16 %v6355
    %v7015 = vunpack.c.h.b16 %v6355
    %v7016 = vunpack.c.l.b16 %v6356
    %v7017 = vunpack.c.h.b16 %v6356
    %v7018 = vunpack.c.l.b16 %v6357
    %v7019 = vunpack.c.h.b16 %v6357
    %v7020 = vunpack.c.l.b16 %v6358
    %v7021 = vunpack.c.h.b16 %v6358
    %v7022 = vunpack.c.l.b16 %v6359
    %v7023 = vunpack.c.h.b16 %v6359
    %v7024 = vunpack.c.l.b16 %v6360
    %v7025 = vunpack.c.h.b16 %v6360
    %v7026 = vunpack.c.l.b16 %v6361
    %v7027 = vunpack.c.h.b16 %v6361
    %v7028 = vunpack.c.l.b16 %v6362
    %v7029 = vunpack.c.h.b16 %v6362
    %v7030 = vunpack.c.l.b16 %v6363
    %v7031 = vunpack.c.h.b16 %v6363
    %v7032 = vunpack.c.l.b16 %v6364
    %v7033 = vunpack.c.h.b16 %v6364
    %v7034 = vunpack.c.l.b16 %v6365
    %v7035 = vunpack.c.h.b16 %v6365
    %v7036 = vunpack.c.l.b16 %v6366
    %v7037 = vunpack.c.h.b16 %v6366
    %v7038 = vunpack.c.l.b16 %v6367
    %v7039 = vunpack.c.h.b16 %v6367
    %v7040 = vunpack.c.l.b16 %v6368
    %v7041 = vunpack.c.h.b16 %v6368
    %v7042 = vunpack.c.l.b16 %v6369
    %v7043 = vunpack.c.h.b16 %v6369
    %v7044 = vunpack.c.l.b16 %v6370
    %v7045 = vunpack.c.h.b16 %v6370
    %v7046 = vunpack.c.l.b16 %v6371
    %v7047 = vunpack.c.h.b16 %v6371
    %v7048 = vunpack.c.l.b16 %v6372
    %v7049 = vunpack.c.h.b16 %v6372
    %v7050 = vunpack.c.l.b16 %v6373
    %v7051 = vunpack.c.h.b16 %v6373
    %v7052 = vunpack.c.l.b16 %v6374
    %v7053 = vunpack.c.h.b16 %v6374
    %v7054 = vunpack.c.l.b16 %v6375
    %v7055 = vunpack.c.h.b16 %v6375
    %v7056 = vunpack.c.l.b16 %v6376
    %v7057 = vunpack.c.h.b16 %v6376
    %v7058 = vunpack.c.l.b16 %v6377
    %v7059 = vunpack.c.h.b16 %v6377
    %v7060 = vunpack.c.l.b16 %v6378
    %v7061 = vunpack.c.h.b16 %v6378
    %v7062 = vunpack.c.l.b16 %v6379
    %v7063 = vunpack.c.h.b16 %v6379
    %v7064 = vunpack.c.l.b16 %v6380
    %v7065 = vunpack.c.h.b16 %v6380
    %v7066 = vunpack.c.l.b16 %v6381
    %v7067 = vunpack.c.h.b16 %v6381
    %v7068 = vunpack.c.l.b16 %v6382
    %v7069 = vunpack.c.h.b16 %v6382
    %v7070 = vunpack.c.l.b16 %v6383
    %v7071 = vunpack.c.h.b16 %v6383
    %v7072 = vunpack.c.l.b16 %v6384
    %v7073 = vunpack.c.h.b16 %v6384
    %v7074 = vunpack.c.l.b16 %v6385
    %v7075 = vunpack.c.h.b16 %v6385
    %v7076 = vunpack.c.l.b16 %v6386
    %v7077 = vunpack.c.h.b16 %v6386
    %v7078 = vunpack.c.l.b16 %v6387
    %v7079 = vunpack.c.h.b16 %v6387
    %v7080 = vunpack.c.l.b16 %v6388
    %v7081 = vunpack.c.h.b16 %v6388
    %v7082 = vunpack.c.l.b16 %v6389
    %v7083 = vunpack.c.h.b16 %v6389
    %v7084 = vunpack.c.l.b16 %v6390
    %v7085 = vunpack.c.h.b16 %v6390
    %v7086 = vunpack.c.l.b16 %v6391
    %v7087 = vunpack.c.h.b16 %v6391
    %v7088 = vunpack.c.l.b16 %v6392
    %v7089 = vunpack.c.h.b16 %v6392
    %v7090 = vunpack.c.l.b16 %v6393
    %v7091 = vunpack.c.h.b16 %v6393
    %v7092 = vunpack.c.l.b16 %v6394
    %v7093 = vunpack.c.h.b16 %v6394
    %v7094 = vunpack.c.l.b16 %v6395
    %v7095 = vunpack.c.h.b16 %v6395
    %v7096 = vunpack.c.l.b16 %v6396
    %v7097 = vunpack.c.h.b16 %v6396
    %v7098 = vunpack.c.l.b16 %v6397
    %v7099 = vunpack.c.h.b16 %v6397
    %v7100 = vunpack.c.l.b16 %v6398
    %v7101 = vunpack.c.h.b16 %v6398
    %v7102 = vunpack.c.l.b16 %v6399
    %v7103 = vunpack.c.h.b16 %v6399
    %v7104 = vunpack.c.l.b16 %v6400
    %v7105 = vunpack.c.h.b16 %v6400
    %v7106 = vunpack.c.l.b16 %v6401
    %v7107 = vunpack.c.h.b16 %v6401
    %v7108 = vunpack.c.l.b16 %v6402
    %v7109 = vunpack.c.h.b16 %v6402
    %v7110 = vunpack.c.l.b16 %v6403
    %v7111 = vunpack.c.h.b16 %v6403
    %v7112 = vunpack.c.l.b16 %v6404
    %v7113 = vunpack.c.h.b16 %v6404
    %v7114 = vunpack.c.l.b16 %v6405
    %v7115 = vunpack.c.h.b16 %v6405
    %v7116 = vunpack.c.l.b16 %v6406
    %v7117 = vunpack.c.h.b16 %v6406
    %v7118 = vunpack.c.l.b16 %v6407
    %v7119 = vunpack.c.h.b16 %v6407
    %v7120 = vunpack.c.l.b16 %v6408
    %v7121 = vunpack.c.h.b16 %v6408
    %v7122 = vunpack.c.l.b16 %v6409
    %v7123 = vunpack.c.h.b16 %v6409
    %v7124 = vunpack.c.l.b16 %v6410
    %v7125 = vunpack.c.h.b16 %v6410
    %v7126 = vunpack.c.l.b16 %v6411
    %v7127 = vunpack.c.h.b16 %v6411
    %v7128 = vunpack.c.l.b16 %v6412
    %v7129 = vunpack.c.h.b16 %v6412
    %v7130 = vunpack.c.l.b16 %v6413
    %v7131 = vunpack.c.h.b16 %v6413
    %v7132 = vunpack.c.l.b16 %v6414
    %v7133 = vunpack.c.h.b16 %v6414
    %v7134 = vunpack.c.l.b16 %v6415
    %v7135 = vunpack.c.h.b16 %v6415
    %v7136 = vunpack.c.l.b16 %v6416
    %v7137 = vunpack.c.h.b16 %v6416
    %v7138 = vunpack.c.l.b16 %v6417
    %v7139 = vunpack.c.h.b16 %v6417
    %v7140 = vunpack.c.l.b16 %v6418
    %v7141 = vunpack.c.h.b16 %v6418
    %v7142 = vunpack.c.l.b16 %v6419
    %v7143 = vunpack.c.h.b16 %v6419
    %v7144 = vunpack.c.l.b16 %v6420
    %v7145 = vunpack.c.h.b16 %v6420
    %v7146 = vunpack.c.l.b16 %v6421
    %v7147 = vunpack.c.h.b16 %v6421
    %v7148 = vunpack.c.l.b16 %v6422
    %v7149 = vunpack.c.h.b16 %v6422
    %v7150 = vunpack.c.l.b16 %v6423
    %v7151 = vunpack.c.h.b16 %v6423
    %v7152 = vunpack.c.l.b16 %v6424
    %v7153 = vunpack.c.h.b16 %v6424
    %v7154 = vunpack.c.l.b16 %v6425
    %v7155 = vunpack.c.h.b16 %v6425
    %v7156 = vunpack.c.l.b16 %v6426
    %v7157 = vunpack.c.h.b16 %v6426
    %v7158 = vunpack.c.l.b16 %v6427
    %v7159 = vunpack.c.h.b16 %v6427
    %v7160 = vunpack.c.l.b16 %v6428
    %v7161 = vunpack.c.h.b16 %v6428
    %v7162 = vunpack.c.l.b16 %v6429
    %v7163 = vunpack.c.h.b16 %v6429
    %v7164 = vunpack.c.l.b16 %v6430
    %v7165 = vunpack.c.h.b16 %v6430
    %v7166 = vunpack.c.l.b16 %v6431
    %v7167 = vunpack.c.h.b16 %v6431
    %v7168 = vunpack.c.l.b16 %v6432
    %v7169 = vunpack.c.h.b16 %v6432
    %v7170 = vunpack.c.l.b16 %v6433
    %v7171 = vunpack.c.h.b16 %v6433
    %v7172 = vunpack.c.l.b16 %v6434
    %v7173 = vunpack.c.h.b16 %v6434
    %v7174 = vunpack.c.l.b16 %v6435
    %v7175 = vunpack.c.h.b16 %v6435
    %v7176 = vunpack.c.l.b16 %v6436
    %v7177 = vunpack.c.h.b16 %v6436
    %v7178 = vunpack.c.l.b16 %v6437
    %v7179 = vunpack.c.h.b16 %v6437
    %v7180 = vunpack.c.l.b16 %v6438
    %v7181 = vunpack.c.h.b16 %v6438
    %v7182 = vunpack.c.l.b16 %v6439
    %v7183 = vunpack.c.h.b16 %v6439
    %v7184 = vunpack.c.l.b16 %v6440
    %v7185 = vunpack.c.h.b16 %v6440
    %v7186 = vunpack.c.l.b16 %v6441
    %v7187 = vunpack.c.h.b16 %v6441
    %v7188 = vunpack.c.l.b16 %v6442
    %v7189 = vunpack.c.h.b16 %v6442
    %v7190 = vunpack.c.l.b16 %v6443
    %v7191 = vunpack.c.h.b16 %v6443
    %v7192 = vunpack.c.l.b16 %v6444
    %v7193 = vunpack.c.h.b16 %v6444
    %v7194 = vunpack.c.l.b16 %v6445
    %v7195 = vunpack.c.h.b16 %v6445
    %v7196 = vunpack.c.l.b16 %v6446
    %v7197 = vunpack.c.h.b16 %v6446
    %v7198 = vunpack.c.l.b16 %v6447
    %v7199 = vunpack.c.h.b16 %v6447
    %v7200 = vunpack.c.l.b16 %v6448
    %v7201 = vunpack.c.h.b16 %v6448
    %v7202 = vunpack.c.l.b16 %v6449
    %v7203 = vunpack.c.h.b16 %v6449
    %v7204 = vunpack.c.l.b16 %v6450
    %v7205 = vunpack.c.h.b16 %v6450
    %v7206 = vunpack.c.l.b16 %v6451
    %v7207 = vunpack.c.h.b16 %v6451
    %v7208 = vunpack.c.l.b16 %v6452
    %v7209 = vunpack.c.h.b16 %v6452
    %v7210 = vunpack.c.l.b16 %v6453
    %v7211 = vunpack.c.h.b16 %v6453
    %v7212 = vunpack.c.l.b16 %v6454
    %v7213 = vunpack.c.h.b16 %v6454
    %v7214 = vunpack.c.l.b16 %v6455
    %v7215 = vunpack.c.h.b16 %v6455
    %v7216 = vunpack.c.l.b16 %v6456
    %v7217 = vunpack.c.h.b16 %v6456
    %v7218 = vunpack.c.l.b16 %v6457
    %v7219 = vunpack.c.h.b16 %v6457
    %v7220 = vunpack.c.l.b16 %v6458
    %v7221 = vunpack.c.h.b16 %v6458
    %v7222 = vunpack.c.l.b16 %v6459
    %v7223 = vunpack.c.h.b16 %v6459
    %v7224 = vunpack.c.l.b16 %v6460
    %v7225 = vunpack.c.h.b16 %v6460
    %v7226 = vunpack.c.l.b16 %v6461
    %v7227 = vunpack.c.h.b16 %v6461
    %v7228 = vunpack.c.l.b16 %v6462
    %v7229 = vunpack.c.h.b16 %v6462
    %v7230 = vunpack.c.l.b16 %v6463
    %v7231 = vunpack.c.h.b16 %v6463
    %v7232 = vpack.c.b16 %v6728, %v6720
    %v7233 = vpack.c.b16 %v6729, %v6721
    %v7234 = vpack.c.b16 %v6730, %v6722
    %v7235 = vpack.c.b16 %v6731, %v6723
    %v7236 = vpack.c.b16 %v6732, %v6724
    %v7237 = vpack.c.b16 %v6733, %v6725
    %v7238 = vpack.c.b16 %v6734, %v6726
    %v7239 = vpack.c.b16 %v6735, %v6727
    %v7240 = vpack.c.b16 %v6744, %v6736
    %v7241 = vpack.c.b16 %v6745, %v6737
    %v7242 = vpack.c.b16 %v6746, %v6738
    %v7243 = vpack.c.b16 %v6747, %v6739
    %v7244 = vpack.c.b16 %v6748, %v6740
    %v7245 = vpack.c.b16 %v6749, %v6741
    %v7246 = vpack.c.b16 %v6750, %v6742
    %v7247 = vpack.c.b16 %v6751, %v6743
    %v7248 = vpack.c.b16 %v6760, %v6752
    %v7249 = vpack.c.b16 %v6761, %v6753
    %v7250 = vpack.c.b16 %v6762, %v6754
    %v7251 = vpack.c.b16 %v6763, %v6755
    %v7252 = vpack.c.b16 %v6764, %v6756
    %v7253 = vpack.c.b16 %v6765, %v6757
    %v7254 = vpack.c.b16 %v6766, %v6758
    %v7255 = vpack.c.b16 %v6767, %v6759
    %v7256 = vpack.c.b16 %v6776, %v6768
    %v7257 = vpack.c.b16 %v6777, %v6769
    %v7258 = vpack.c.b16 %v6778, %v6770
    %v7259 = vpack.c.b16 %v6779, %v6771
    %v7260 = vpack.c.b16 %v6780, %v6772
    %v7261 = vpack.c.b16 %v6781, %v6773
    %v7262 = vpack.c.b16 %v6782, %v6774
    %v7263 = vpack.c.b16 %v6783, %v6775
    %v7264 = vpack.c.b16 %v6792, %v6784
    %v7265 = vpack.c.b16 %v6793, %v6785
    %v7266 = vpack.c.b16 %v6794, %v6786
    %v7267 = vpack.c.b16 %v6795, %v6787
    %v7268 = vpack.c.b16 %v6796, %v6788
    %v7269 = vpack.c.b16 %v6797, %v6789
    %v7270 = vpack.c.b16 %v6798, %v6790
    %v7271 = vpack.c.b16 %v6799, %v6791
    %v7272 = vpack.c.b16 %v6808, %v6800
    %v7273 = vpack.c.b16 %v6809, %v6801
    %v7274 = vpack.c.b16 %v6810, %v6802
    %v7275 = vpack.c.b16 %v6811, %v6803
    %v7276 = vpack.c.b16 %v6812, %v6804
    %v7277 = vpack.c.b16 %v6813, %v6805
    %v7278 = vpack.c.b16 %v6814, %v6806
    %v7279 = vpack.c.b16 %v6815, %v6807
    %v7280 = vpack.c.b16 %v6824, %v6816
    %v7281 = vpack.c.b16 %v6825, %v6817
    %v7282 = vpack.c.b16 %v6826, %v6818
    %v7283 = vpack.c.b16 %v6827, %v6819
    %v7284 = vpack.c.b16 %v6828, %v6820
    %v7285 = vpack.c.b16 %v6829, %v6821
    %v7286 = vpack.c.b16 %v6830, %v6822
    %v7287 = vpack.c.b16 %v6831, %v6823
    %v7288 = vpack.c.b16 %v6840, %v6832
    %v7289 = vpack.c.b16 %v6841, %v6833
    %v7290 = vpack.c.b16 %v6842, %v6834
    %v7291 = vpack.c.b16 %v6843, %v6835
    %v7292 = vpack.c.b16 %v6844, %v6836
    %v7293 = vpack.c.b16 %v6845, %v6837
    %v7294 = vpack.c.b16 %v6846, %v6838
    %v7295 = vpack.c.b16 %v6847, %v6839
    %v7296 = vpack.c.b16 %v6856, %v6848
    %v7297 = vpack.c.b16 %v6857, %v6849
    %v7298 = vpack.c.b16 %v6858, %v6850
    %v7299 = vpack.c.b16 %v6859, %v6851
    %v7300 = vpack.c.b16 %v6860, %v6852
    %v7301 = vpack.c.b16 %v6861, %v6853
    %v7302 = vpack.c.b16 %v6862, %v6854
    %v7303 = vpack.c.b16 %v6863, %v6855
    %v7304 = vpack.c.b16 %v6872, %v6864
    %v7305 = vpack.c.b16 %v6873, %v6865
    %v7306 = vpack.c.b16 %v6874, %v6866
    %v7307 = vpack.c.b16 %v6875, %v6867
    %v7308 = vpack.c.b16 %v6876, %v6868
    %v7309 = vpack.c.b16 %v6877, %v6869
    %v7310 = vpack.c.b16 %v6878, %v6870
    %v7311 = vpack.c.b16 %v6879, %v6871
    %v7312 = vpack.c.b16 %v6888, %v6880
    %v7313 = vpack.c.b16 %v6889, %v6881
    %v7314 = vpack.c.b16 %v6890, %v6882
    %v7315 = vpack.c.b16 %v6891, %v6883
    %v7316 = vpack.c.b16 %v6892, %v6884
    %v7317 = vpack.c.b16 %v6893, %v6885
    %v7318 = vpack.c.b16 %v6894, %v6886
    %v7319 = vpack.c.b16 %v6895, %v6887
    %v7320 = vpack.c.b16 %v6904, %v6896
    %v7321 = vpack.c.b16 %v6905, %v6897
    %v7322 = vpack.c.b16 %v6906, %v6898
    %v7323 = vpack.c.b16 %v6907, %v6899
    %v7324 = vpack.c.b16 %v6908, %v6900
    %v7325 = vpack.c.b16 %v6909, %v6901
    %v7326 = vpack.c.b16 %v6910, %v6902
    %v7327 = vpack.c.b16 %v6911, %v6903
    %v7328 = vpack.c.b16 %v6920, %v6912
    %v7329 = vpack.c.b16 %v6921, %v6913
    %v7330 = vpack.c.b16 %v6922, %v6914
    %v7331 = vpack.c.b16 %v6923, %v6915
    %v7332 = vpack.c.b16 %v6924, %v6916
    %v7333 = vpack.c.b16 %v6925, %v6917
    %v7334 = vpack.c.b16 %v6926, %v6918
    %v7335 = vpack.c.b16 %v6927, %v6919
    %v7336 = vpack.c.b16 %v6936, %v6928
    %v7337 = vpack.c.b16 %v6937, %v6929
    %v7338 = vpack.c.b16 %v6938, %v6930
    %v7339 = vpack.c.b16 %v6939, %v6931
    %v7340 = vpack.c.b16 %v6940, %v6932
    %v7341 = vpack.c.b16 %v6941, %v6933
    %v7342 = vpack.c.b16 %v6942, %v6934
    %v7343 = vpack.c.b16 %v6943, %v6935
    %v7344 = vpack.c.b16 %v6952, %v6944
    %v7345 = vpack.c.b16 %v6953, %v6945
    %v7346 = vpack.c.b16 %v6954, %v6946
    %v7347 = vpack.c.b16 %v6955, %v6947
    %v7348 = vpack.c.b16 %v6956, %v6948
    %v7349 = vpack.c.b16 %v6957, %v6949
    %v7350 = vpack.c.b16 %v6958, %v6950
    %v7351 = vpack.c.b16 %v6959, %v6951
    %v7352 = vpack.c.b16 %v6968, %v6960
    %v7353 = vpack.c.b16 %v6969, %v6961
    %v7354 = vpack.c.b16 %v6970, %v6962
    %v7355 = vpack.c.b16 %v6971, %v6963
    %v7356 = vpack.c.b16 %v6972, %v6964
    %v7357 = vpack.c.b16 %v6973, %v6965
    %v7358 = vpack.c.b16 %v6974, %v6966
    %v7359 = vpack.c.b16 %v6975, %v6967
    %v7360 = vpack.c.b16 %v6984, %v6976
    %v7361 = vpack.c.b16 %v6985, %v6977
    %v7362 = vpack.c.b16 %v6986, %v6978
    %v7363 = vpack.c.b16 %v6987, %v6979
    %v7364 = vpack.c.b16 %v6988, %v6980
    %v7365 = vpack.c.b16 %v6989, %v6981
    %v7366 = vpack.c.b16 %v6990, %v6982
    %v7367 = vpack.c.b16 %v6991, %v6983
    %v7368 = vpack.c.b16 %v7000, %v6992
    %v7369 = vpack.c.b16 %v7001, %v6993
    %v7370 = vpack.c.b16 %v7002, %v6994
    %v7371 = vpack.c.b16 %v7003, %v6995
    %v7372 = vpack.c.b16 %v7004, %v6996
    %v7373 = vpack.c.b16 %v7005, %v6997
    %v7374 = vpack.c.b16 %v7006, %v6998
    %v7375 = vpack.c.b16 %v7007, %v6999
    %v7376 = vpack.c.b16 %v7016, %v7008
    %v7377 = vpack.c.b16 %v7017, %v7009
    %v7378 = vpack.c.b16 %v7018, %v7010
    %v7379 = vpack.c.b16 %v7019, %v7011
    %v7380 = vpack.c.b16 %v7020, %v7012
    %v7381 = vpack.c.b16 %v7021, %v7013
    %v7382 = vpack.c.b16 %v7022, %v7014
    %v7383 = vpack.c.b16 %v7023, %v7015
    %v7384 = vpack.c.b16 %v7032, %v7024
    %v7385 = vpack.c.b16 %v7033, %v7025
    %v7386 = vpack.c.b16 %v7034, %v7026
    %v7387 = vpack.c.b16 %v7035, %v7027
    %v7388 = vpack.c.b16 %v7036, %v7028
    %v7389 = vpack.c.b16 %v7037, %v7029
    %v7390 = vpack.c.b16 %v7038, %v7030
    %v7391 = vpack.c.b16 %v7039, %v7031
    %v7392 = vpack.c.b16 %v7048, %v7040
    %v7393 = vpack.c.b16 %v7049, %v7041
    %v7394 = vpack.c.b16 %v7050, %v7042
    %v7395 = vpack.c.b16 %v7051, %v7043
    %v7396 = vpack.c.b16 %v7052, %v7044
    %v7397 = vpack.c.b16 %v7053, %v7045
    %v7398 = vpack.c.b16 %v7054, %v7046
    %v7399 = vpack.c.b16 %v7055, %v7047
    %v7400 = vpack.c.b16 %v7064, %v7056
    %v7401 = vpack.c.b16 %v7065, %v7057
    %v7402 = vpack.c.b16 %v7066, %v7058
    %v7403 = vpack.c.b16 %v7067, %v7059
    %v7404 = vpack.c.b16 %v7068, %v7060
    %v7405 = vpack.c.b16 %v7069, %v7061
    %v7406 = vpack.c.b16 %v7070, %v7062
    %v7407 = vpack.c.b16 %v7071, %v7063
    %v7408 = vpack.c.b16 %v7080, %v7072
    %v7409 = vpack.c.b16 %v7081, %v7073
    %v7410 = vpack.c.b16 %v7082, %v7074
    %v7411 = vpack.c.b16 %v7083, %v7075
    %v7412 = vpack.c.b16 %v7084, %v7076
    %v7413 = vpack.c.b16 %v7085, %v7077
    %v7414 = vpack.c.b16 %v7086, %v7078
    %v7415 = vpack.c.b16 %v7087, %v7079
    %v7416 = vpack.c.b16 %v7096, %v7088
    %v7417 = vpack.c.b16 %v7097, %v7089
    %v7418 = vpack.c.b16 %v7098, %v7090
    %v7419 = vpack.c.b16 %v7099, %v7091
    %v7420 = vpack.c.b16 %v7100, %v7092
    %v7421 = vpack.c.b16 %v7101, %v7093
    %v7422 = vpack.c.b16 %v7102, %v7094
    %v7423 = vpack.c.b16 %v7103, %v7095
    %v7424 = vpack.c.b16 %v7112, %v7104
    %v7425 = vpack.c.b16 %v7113, %v7105
    %v7426 = vpack.c.b16 %v7114, %v7106
    %v7427 = vpack.c.b16 %v7115, %v7107
    %v7428 = vpack.c.b16 %v7116, %v7108
    %v7429 = vpack.c.b16 %v7117, %v7109
    %v7430 = vpack.c.b16 %v7118, %v7110
    %v7431 = vpack.c.b16 %v7119, %v7111
    %v7432 = vpack.c.b16 %v7128, %v7120
    %v7433 = vpack.c.b16 %v7129, %v7121
    %v7434 = vpack.c.b16 %v7130, %v7122
    %v7435 = vpack.c.b16 %v7131, %v7123
    %v7436 = vpack.c.b16 %v7132, %v7124
    %v7437 = vpack.c.b16 %v7133, %v7125
    %v7438 = vpack.c.b16 %v7134, %v7126
    %v7439 = vpack.c.b16 %v7135, %v7127
    %v7440 = vpack.c.b16 %v7144, %v7136
    %v7441 = vpack.c.b16 %v7145, %v7137
    %v7442 = vpack.c.b16 %v7146, %v7138
    %v7443 = vpack.c.b16 %v7147, %v7139
    %v7444 = vpack.c.b16 %v7148, %v7140
    %v7445 = vpack.c.b16 %v7149, %v7141
    %v7446 = vpack.c.b16 %v7150, %v7142
    %v7447 = vpack.c.b16 %v7151, %v7143
    %v7448 = vpack.c.b16 %v7160, %v7152
    %v7449 = vpack.c.b16 %v7161, %v7153
    %v7450 = vpack.c.b16 %v7162, %v7154
    %v7451 = vpack.c.b16 %v7163, %v7155
    %v7452 = vpack.c.b16 %v7164, %v7156
    %v7453 = vpack.c.b16 %v7165, %v7157
    %v7454 = vpack.c.b16 %v7166, %v7158
    %v7455 = vpack.c.b16 %v7167, %v7159
    %v7456 = vpack.c.b16 %v7176, %v7168
    %v7457 = vpack.c.b16 %v7177, %v7169
    %v7458 = vpack.c.b16 %v7178, %v7170
    %v7459 = vpack.c.b16 %v7179, %v7171
    %v7460 = vpack.c.b16 %v7180, %v7172
    %v7461 = vpack.c.b16 %v7181, %v7173
    %v7462 = vpack.c.b16 %v7182, %v7174
    %v7463 = vpack.c.b16 %v7183, %v7175
    %v7464 = vpack.c.b16 %v7192, %v7184
    %v7465 = vpack.c.b16 %v7193, %v7185
    %v7466 = vpack.c.b16 %v7194, %v7186
    %v7467 = vpack.c.b16 %v7195, %v7187
    %v7468 = vpack.c.b16 %v7196, %v7188
    %v7469 = vpack.c.b16 %v7197, %v7189
    %v7470 = vpack.c.b16 %v7198, %v7190
    %v7471 = vpack.c.b16 %v7199, %v7191
    %v7472 = vpack.c.b16 %v7208, %v7200
    %v7473 = vpack.c.b16 %v7209, %v7201
    %v7474 = vpack.c.b16 %v7210, %v7202
    %v7475 = vpack.c.b16 %v7211, %v7203
    %v7476 = vpack.c.b16 %v7212, %v7204
    %v7477 = vpack.c.b16 %v7213, %v7205
    %v7478 = vpack.c.b16 %v7214, %v7206
    %v7479 = vpack.c.b16 %v7215, %v7207
    %v7480 = vpack.c.b16 %v7224, %v7216
    %v7481 = vpack.c.b16 %v7225, %v7217
    %v7482 = vpack.c.b16 %v7226, %v7218
    %v7483 = vpack.c.b16 %v7227, %v7219
    %v7484 = vpack.c.b16 %v7228, %v7220
    %v7485 = vpack.c.b16 %v7229, %v7221
    %v7486 = vpack.c.b16 %v7230, %v7222
    %v7487 = vpack.c.b16 %v7231, %v7223
    %7744 = vmatpush.bf16.msra.mxu0 %v7288
    %7745 = vmatpush.bf16.msra.mxu0 %v7280
    %7746 = vmatpush.bf16.msra.mxu0 %v7272
    %7747 = vmatpush.bf16.msra.mxu0 %v7264
    %7748 = vmatpush.bf16.msra.mxu0 %v7256
    %7749 = vmatpush.bf16.msra.mxu0 %v7248
    %7750 = vmatpush.bf16.msra.mxu0 %v7240
    %7751 = vmatpush.bf16.msra.mxu0 %v7232
    %7752 = vmatmul.bf16.gmra.mxu0 %v3201
    %v7753 = vpop.f32.mrf.mxu0
    %v7754 = vadd.f32 0.0, %v7753
    %v7755 = vpop.f32.mrf.mxu0
    %v7756 = vadd.f32 0.0, %v7755
    %7757 = vdwg.mxu0
    %7758 = vmatpush.bf16.msra.mxu0 %v7352
    %7759 = vmatpush.bf16.msra.mxu0 %v7344
    %7760 = vmatpush.bf16.msra.mxu0 %v7336
    %7761 = vmatpush.bf16.msra.mxu0 %v7328
    %7762 = vmatpush.bf16.msra.mxu0 %v7320
    %7763 = vmatpush.bf16.msra.mxu0 %v7312
    %7764 = vmatpush.bf16.msra.mxu0 %v7304
    %7765 = vmatpush.bf16.msra.mxu0 %v7296
    %7766 = vmatmul.bf16.gmra.mxu0 %v3202
    %v7767 = vpop.f32.mrf.mxu0
    %v7768 = vadd.f32 %v7754, %v7767
    %v7769 = vpop.f32.mrf.mxu0
    %v7770 = vadd.f32 %v7756, %v7769
    %7771 = vdwg.mxu0
    %7772 = vmatpush.bf16.msra.mxu0 %v7416
    %7773 = vmatpush.bf16.msra.mxu0 %v7408
    %7774 = vmatpush.bf16.msra.mxu0 %v7400
    %7775 = vmatpush.bf16.msra.mxu0 %v7392
    %7776 = vmatpush.bf16.msra.mxu0 %v7384
    %7777 = vmatpush.bf16.msra.mxu0 %v7376
    %7778 = vmatpush.bf16.msra.mxu0 %v7368
    %7779 = vmatpush.bf16.msra.mxu0 %v7360
    %7780 = vmatmul.bf16.gmra.mxu0 %v3203
    %v7781 = vpop.f32.mrf.mxu0
    %v7782 = vadd.f32 %v7768, %v7781
    %v7783 = vpop.f32.mrf.mxu0
    %v7784 = vadd.f32 %v7770, %v7783
    %7785 = vdwg.mxu0
    %7786 = vmatpush.bf16.msra.mxu0 %v7480
    %7787 = vmatpush.bf16.msra.mxu0 %v7472
    %7788 = vmatpush.bf16.msra.mxu0 %v7464
    %7789 = vmatpush.bf16.msra.mxu0 %v7456
    %7790 = vmatpush.bf16.msra.mxu0 %v7448
    %7791 = vmatpush.bf16.msra.mxu0 %v7440
    %7792 = vmatpush.bf16.msra.mxu0 %v7432
    %7793 = vmatpush.bf16.msra.mxu0 %v7424
    %7794 = vmatmul.bf16.gmra.mxu0 %v3204
    %v7795 = vpop.f32.mrf.mxu0
    %v7796 = vadd.f32 %v7782, %v7795
    %v7797 = vpop.f32.mrf.mxu0
    %v7798 = vadd.f32 %v7784, %v7797
    %7799 = vdwg.mxu0
    %7800 = vmatpush.bf16.msra.mxu0 %v7289
    %7801 = vmatpush.bf16.msra.mxu0 %v7281
    %7802 = vmatpush.bf16.msra.mxu0 %v7273
    %7803 = vmatpush.bf16.msra.mxu0 %v7265
    %7804 = vmatpush.bf16.msra.mxu0 %v7257
    %7805 = vmatpush.bf16.msra.mxu0 %v7249
    %7806 = vmatpush.bf16.msra.mxu0 %v7241
    %7807 = vmatpush.bf16.msra.mxu0 %v7233
    %7808 = vmatmul.bf16.gmra.mxu0 %v3201
    %v7809 = vpop.f32.mrf.mxu0
    %v7810 = vadd.f32 0.0, %v7809
    %v7811 = vpop.f32.mrf.mxu0
    %v7812 = vadd.f32 0.0, %v7811
    %7813 = vdwg.mxu0
    %7814 = vmatpush.bf16.msra.mxu0 %v7353
    %7815 = vmatpush.bf16.msra.mxu0 %v7345
    %7816 = vmatpush.bf16.msra.mxu0 %v7337
    %7817 = vmatpush.bf16.msra.mxu0 %v7329
    %7818 = vmatpush.bf16.msra.mxu0 %v7321
    %7819 = vmatpush.bf16.msra.mxu0 %v7313
    %7820 = vmatpush.bf16.msra.mxu0 %v7305
    %7821 = vmatpush.bf16.msra.mxu0 %v7297
    %7822 = vmatmul.bf16.gmra.mxu0 %v3202
    %v7823 = vpop.f32.mrf.mxu0
    %v7824 = vadd.f32 %v7810, %v7823
    %v7825 = vpop.f32.mrf.mxu0
    %v7826 = vadd.f32 %v7812, %v7825
    %7827 = vdwg.mxu0
    %7828 = vmatpush.bf16.msra.mxu0 %v7417
    %7829 = vmatpush.bf16.msra.mxu0 %v7409
    %7830 = vmatpush.bf16.msra.mxu0 %v7401
    %7831 = vmatpush.bf16.msra.mxu0 %v7393
    %7832 = vmatpush.bf16.msra.mxu0 %v7385
    %7833 = vmatpush.bf16.msra.mxu0 %v7377
    %7834 = vmatpush.bf16.msra.mxu0 %v7369
    %7835 = vmatpush.bf16.msra.mxu0 %v7361
    %7836 = vmatmul.bf16.gmra.mxu0 %v3203
    %v7837 = vpop.f32.mrf.mxu0
    %v7838 = vadd.f32 %v7824, %v7837
    %v7839 = vpop.f32.mrf.mxu0
    %v7840 = vadd.f32 %v7826, %v7839
    %7841 = vdwg.mxu0
    %7842 = vmatpush.bf16.msra.mxu0 %v7481
    %7843 = vmatpush.bf16.msra.mxu0 %v7473
    %7844 = vmatpush.bf16.msra.mxu0 %v7465
    %7845 = vmatpush.bf16.msra.mxu0 %v7457
    %7846 = vmatpush.bf16.msra.mxu0 %v7449
    %7847 = vmatpush.bf16.msra.mxu0 %v7441
    %7848 = vmatpush.bf16.msra.mxu0 %v7433
    %7849 = vmatpush.bf16.msra.mxu0 %v7425
    %7850 = vmatmul.bf16.gmra.mxu0 %v3204
    %v7851 = vpop.f32.mrf.mxu0
    %v7852 = vadd.f32 %v7838, %v7851
    %v7853 = vpop.f32.mrf.mxu0
    %v7854 = vadd.f32 %v7840, %v7853
    %7855 = vdwg.mxu0
    %7856 = vmatpush.bf16.msra.mxu0 %v7290
    %7857 = vmatpush.bf16.msra.mxu0 %v7282
    %7858 = vmatpush.bf16.msra.mxu0 %v7274
    %7859 = vmatpush.bf16.msra.mxu0 %v7266
    %7860 = vmatpush.bf16.msra.mxu0 %v7258
    %7861 = vmatpush.bf16.msra.mxu0 %v7250
    %7862 = vmatpush.bf16.msra.mxu0 %v7242
    %7863 = vmatpush.bf16.msra.mxu0 %v7234
    %7864 = vmatmul.bf16.gmra.mxu0 %v3201
    %v7865 = vpop.f32.mrf.mxu0
    %v7866 = vadd.f32 0.0, %v7865
    %v7867 = vpop.f32.mrf.mxu0
    %v7868 = vadd.f32 0.0, %v7867
    %7869 = vdwg.mxu0
    %7870 = vmatpush.bf16.msra.mxu0 %v7354
    %7871 = vmatpush.bf16.msra.mxu0 %v7346
    %7872 = vmatpush.bf16.msra.mxu0 %v7338
    %7873 = vmatpush.bf16.msra.mxu0 %v7330
    %7874 = vmatpush.bf16.msra.mxu0 %v7322
    %7875 = vmatpush.bf16.msra.mxu0 %v7314
    %7876 = vmatpush.bf16.msra.mxu0 %v7306
    %7877 = vmatpush.bf16.msra.mxu0 %v7298
    %7878 = vmatmul.bf16.gmra.mxu0 %v3202
    %v7879 = vpop.f32.mrf.mxu0
    %v7880 = vadd.f32 %v7866, %v7879
    %v7881 = vpop.f32.mrf.mxu0
    %v7882 = vadd.f32 %v7868, %v7881
    %7883 = vdwg.mxu0
    %7884 = vmatpush.bf16.msra.mxu0 %v7418
    %7885 = vmatpush.bf16.msra.mxu0 %v7410
    %7886 = vmatpush.bf16.msra.mxu0 %v7402
    %7887 = vmatpush.bf16.msra.mxu0 %v7394
    %7888 = vmatpush.bf16.msra.mxu0 %v7386
    %7889 = vmatpush.bf16.msra.mxu0 %v7378
    %7890 = vmatpush.bf16.msra.mxu0 %v7370
    %7891 = vmatpush.bf16.msra.mxu0 %v7362
    %7892 = vmatmul.bf16.gmra.mxu0 %v3203
    %v7893 = vpop.f32.mrf.mxu0
    %v7894 = vadd.f32 %v7880, %v7893
    %v7895 = vpop.f32.mrf.mxu0
    %v7896 = vadd.f32 %v7882, %v7895
    %7897 = vdwg.mxu0
    %7898 = vmatpush.bf16.msra.mxu0 %v7482
    %7899 = vmatpush.bf16.msra.mxu0 %v7474
    %7900 = vmatpush.bf16.msra.mxu0 %v7466
    %7901 = vmatpush.bf16.msra.mxu0 %v7458
    %7902 = vmatpush.bf16.msra.mxu0 %v7450
    %7903 = vmatpush.bf16.msra.mxu0 %v7442
    %7904 = vmatpush.bf16.msra.mxu0 %v7434
    %7905 = vmatpush.bf16.msra.mxu0 %v7426
    %7906 = vmatmul.bf16.gmra.mxu0 %v3204
    %v7907 = vpop.f32.mrf.mxu0
    %v7908 = vadd.f32 %v7894, %v7907
    %v7909 = vpop.f32.mrf.mxu0
    %v7910 = vadd.f32 %v7896, %v7909
    %7911 = vdwg.mxu0
    %7912 = vmatpush.bf16.msra.mxu0 %v7291
    %7913 = vmatpush.bf16.msra.mxu0 %v7283
    %7914 = vmatpush.bf16.msra.mxu0 %v7275
    %7915 = vmatpush.bf16.msra.mxu0 %v7267
    %7916 = vmatpush.bf16.msra.mxu0 %v7259
    %7917 = vmatpush.bf16.msra.mxu0 %v7251
    %7918 = vmatpush.bf16.msra.mxu0 %v7243
    %7919 = vmatpush.bf16.msra.mxu0 %v7235
    %7920 = vmatmul.bf16.gmra.mxu0 %v3201
    %v7921 = vpop.f32.mrf.mxu0
    %v7922 = vadd.f32 0.0, %v7921
    %v7923 = vpop.f32.mrf.mxu0
    %v7924 = vadd.f32 0.0, %v7923
    %7925 = vdwg.mxu0
    %7926 = vmatpush.bf16.msra.mxu0 %v7355
    %7927 = vmatpush.bf16.msra.mxu0 %v7347
    %7928 = vmatpush.bf16.msra.mxu0 %v7339
    %7929 = vmatpush.bf16.msra.mxu0 %v7331
    %7930 = vmatpush.bf16.msra.mxu0 %v7323
    %7931 = vmatpush.bf16.msra.mxu0 %v7315
    %7932 = vmatpush.bf16.msra.mxu0 %v7307
    %7933 = vmatpush.bf16.msra.mxu0 %v7299
    %7934 = vmatmul.bf16.gmra.mxu0 %v3202
    %v7935 = vpop.f32.mrf.mxu0
    %v7936 = vadd.f32 %v7922, %v7935
    %v7937 = vpop.f32.mrf.mxu0
    %v7938 = vadd.f32 %v7924, %v7937
    %7939 = vdwg.mxu0
    %7940 = vmatpush.bf16.msra.mxu0 %v7419
    %7941 = vmatpush.bf16.msra.mxu0 %v7411
    %7942 = vmatpush.bf16.msra.mxu0 %v7403
    %7943 = vmatpush.bf16.msra.mxu0 %v7395
    %7944 = vmatpush.bf16.msra.mxu0 %v7387
    %7945 = vmatpush.bf16.msra.mxu0 %v7379
    %7946 = vmatpush.bf16.msra.mxu0 %v7371
    %7947 = vmatpush.bf16.msra.mxu0 %v7363
    %7948 = vmatmul.bf16.gmra.mxu0 %v3203
    %v7949 = vpop.f32.mrf.mxu0
    %v7950 = vadd.f32 %v7936, %v7949
    %v7951 = vpop.f32.mrf.mxu0
    %v7952 = vadd.f32 %v7938, %v7951
    %7953 = vdwg.mxu0
    %7954 = vmatpush.bf16.msra.mxu0 %v7483
    %7955 = vmatpush.bf16.msra.mxu0 %v7475
    %7956 = vmatpush.bf16.msra.mxu0 %v7467
    %7957 = vmatpush.bf16.msra.mxu0 %v7459
    %7958 = vmatpush.bf16.msra.mxu0 %v7451
    %7959 = vmatpush.bf16.msra.mxu0 %v7443
    %7960 = vmatpush.bf16.msra.mxu0 %v7435
    %7961 = vmatpush.bf16.msra.mxu0 %v7427
    %7962 = vmatmul.bf16.gmra.mxu0 %v3204
    %v7963 = vpop.f32.mrf.mxu0
    %v7964 = vadd.f32 %v7950, %v7963
    %v7965 = vpop.f32.mrf.mxu0
    %v7966 = vadd.f32 %v7952, %v7965
    %7967 = vdwg.mxu0
    %7968 = vmatpush.bf16.msra.mxu0 %v7292
    %7969 = vmatpush.bf16.msra.mxu0 %v7284
    %7970 = vmatpush.bf16.msra.mxu0 %v7276
    %7971 = vmatpush.bf16.msra.mxu0 %v7268
    %7972 = vmatpush.bf16.msra.mxu0 %v7260
    %7973 = vmatpush.bf16.msra.mxu0 %v7252
    %7974 = vmatpush.bf16.msra.mxu0 %v7244
    %7975 = vmatpush.bf16.msra.mxu0 %v7236
    %7976 = vmatmul.bf16.gmra.mxu0 %v3201
    %v7977 = vpop.f32.mrf.mxu0
    %v7978 = vadd.f32 0.0, %v7977
    %v7979 = vpop.f32.mrf.mxu0
    %v7980 = vadd.f32 0.0, %v7979
    %7981 = vdwg.mxu0
    %7982 = vmatpush.bf16.msra.mxu0 %v7356
    %7983 = vmatpush.bf16.msra.mxu0 %v7348
    %7984 = vmatpush.bf16.msra.mxu0 %v7340
    %7985 = vmatpush.bf16.msra.mxu0 %v7332
    %7986 = vmatpush.bf16.msra.mxu0 %v7324
    %7987 = vmatpush.bf16.msra.mxu0 %v7316
    %7988 = vmatpush.bf16.msra.mxu0 %v7308
    %7989 = vmatpush.bf16.msra.mxu0 %v7300
    %7990 = vmatmul.bf16.gmra.mxu0 %v3202
    %v7991 = vpop.f32.mrf.mxu0
    %v7992 = vadd.f32 %v7978, %v7991
    %v7993 = vpop.f32.mrf.mxu0
    %v7994 = vadd.f32 %v7980, %v7993
    %7995 = vdwg.mxu0
    %7996 = vmatpush.bf16.msra.mxu0 %v7420
    %7997 = vmatpush.bf16.msra.mxu0 %v7412
    %7998 = vmatpush.bf16.msra.mxu0 %v7404
    %7999 = vmatpush.bf16.msra.mxu0 %v7396
    %8000 = vmatpush.bf16.msra.mxu0 %v7388
    %8001 = vmatpush.bf16.msra.mxu0 %v7380
    %8002 = vmatpush.bf16.msra.mxu0 %v7372
    %8003 = vmatpush.bf16.msra.mxu0 %v7364
    %8004 = vmatmul.bf16.gmra.mxu0 %v3203
    %v8005 = vpop.f32.mrf.mxu0
    %v8006 = vadd.f32 %v7992, %v8005
    %v8007 = vpop.f32.mrf.mxu0
    %v8008 = vadd.f32 %v7994, %v8007
    %8009 = vdwg.mxu0
    %8010 = vmatpush.bf16.msra.mxu0 %v7484
    %8011 = vmatpush.bf16.msra.mxu0 %v7476
    %8012 = vmatpush.bf16.msra.mxu0 %v7468
    %8013 = vmatpush.bf16.msra.mxu0 %v7460
    %8014 = vmatpush.bf16.msra.mxu0 %v7452
    %8015 = vmatpush.bf16.msra.mxu0 %v7444
    %8016 = vmatpush.bf16.msra.mxu0 %v7436
    %8017 = vmatpush.bf16.msra.mxu0 %v7428
    %8018 = vmatmul.bf16.gmra.mxu0 %v3204
    %v8019 = vpop.f32.mrf.mxu0
    %v8020 = vadd.f32 %v8006, %v8019
    %v8021 = vpop.f32.mrf.mxu0
    %v8022 = vadd.f32 %v8008, %v8021
    %8023 = vdwg.mxu0
    %8024 = vmatpush.bf16.msra.mxu0 %v7293
    %8025 = vmatpush.bf16.msra.mxu0 %v7285
    %8026 = vmatpush.bf16.msra.mxu0 %v7277
    %8027 = vmatpush.bf16.msra.mxu0 %v7269
    %8028 = vmatpush.bf16.msra.mxu0 %v7261
    %8029 = vmatpush.bf16.msra.mxu0 %v7253
    %8030 = vmatpush.bf16.msra.mxu0 %v7245
    %8031 = vmatpush.bf16.msra.mxu0 %v7237
    %8032 = vmatmul.bf16.gmra.mxu0 %v3201
    %v8033 = vpop.f32.mrf.mxu0
    %v8034 = vadd.f32 0.0, %v8033
    %v8035 = vpop.f32.mrf.mxu0
    %v8036 = vadd.f32 0.0, %v8035
    %8037 = vdwg.mxu0
    %8038 = vmatpush.bf16.msra.mxu0 %v7357
    %8039 = vmatpush.bf16.msra.mxu0 %v7349
    %8040 = vmatpush.bf16.msra.mxu0 %v7341
    %8041 = vmatpush.bf16.msra.mxu0 %v7333
    %8042 = vmatpush.bf16.msra.mxu0 %v7325
    %8043 = vmatpush.bf16.msra.mxu0 %v7317
    %8044 = vmatpush.bf16.msra.mxu0 %v7309
    %8045 = vmatpush.bf16.msra.mxu0 %v7301
    %8046 = vmatmul.bf16.gmra.mxu0 %v3202
    %v8047 = vpop.f32.mrf.mxu0
    %v8048 = vadd.f32 %v8034, %v8047
    %v8049 = vpop.f32.mrf.mxu0
    %v8050 = vadd.f32 %v8036, %v8049
    %8051 = vdwg.mxu0
    %8052 = vmatpush.bf16.msra.mxu0 %v7421
    %8053 = vmatpush.bf16.msra.mxu0 %v7413
    %8054 = vmatpush.bf16.msra.mxu0 %v7405
    %8055 = vmatpush.bf16.msra.mxu0 %v7397
    %8056 = vmatpush.bf16.msra.mxu0 %v7389
    %8057 = vmatpush.bf16.msra.mxu0 %v7381
    %8058 = vmatpush.bf16.msra.mxu0 %v7373
    %8059 = vmatpush.bf16.msra.mxu0 %v7365
    %8060 = vmatmul.bf16.gmra.mxu0 %v3203
    %v8061 = vpop.f32.mrf.mxu0
    %v8062 = vadd.f32 %v8048, %v8061
    %v8063 = vpop.f32.mrf.mxu0
    %v8064 = vadd.f32 %v8050, %v8063
    %8065 = vdwg.mxu0
    %8066 = vmatpush.bf16.msra.mxu0 %v7485
    %8067 = vmatpush.bf16.msra.mxu0 %v7477
    %8068 = vmatpush.bf16.msra.mxu0 %v7469
    %8069 = vmatpush.bf16.msra.mxu0 %v7461
    %8070 = vmatpush.bf16.msra.mxu0 %v7453
    %8071 = vmatpush.bf16.msra.mxu0 %v7445
    %8072 = vmatpush.bf16.msra.mxu0 %v7437
    %8073 = vmatpush.bf16.msra.mxu0 %v7429
    %8074 = vmatmul.bf16.gmra.mxu0 %v3204
    %v8075 = vpop.f32.mrf.mxu0
    %v8076 = vadd.f32 %v8062, %v8075
    %v8077 = vpop.f32.mrf.mxu0
    %v8078 = vadd.f32 %v8064, %v8077
    %8079 = vdwg.mxu0
    %8080 = vmatpush.bf16.msra.mxu0 %v7294
    %8081 = vmatpush.bf16.msra.mxu0 %v7286
    %8082 = vmatpush.bf16.msra.mxu0 %v7278
    %8083 = vmatpush.bf16.msra.mxu0 %v7270
    %8084 = vmatpush.bf16.msra.mxu0 %v7262
    %8085 = vmatpush.bf16.msra.mxu0 %v7254
    %8086 = vmatpush.bf16.msra.mxu0 %v7246
    %8087 = vmatpush.bf16.msra.mxu0 %v7238
    %8088 = vmatmul.bf16.gmra.mxu0 %v3201
    %v8089 = vpop.f32.mrf.mxu0
    %v8090 = vadd.f32 0.0, %v8089
    %v8091 = vpop.f32.mrf.mxu0
    %v8092 = vadd.f32 0.0, %v8091
    %8093 = vdwg.mxu0
    %8094 = vmatpush.bf16.msra.mxu0 %v7358
    %8095 = vmatpush.bf16.msra.mxu0 %v7350
    %8096 = vmatpush.bf16.msra.mxu0 %v7342
    %8097 = vmatpush.bf16.msra.mxu0 %v7334
    %8098 = vmatpush.bf16.msra.mxu0 %v7326
    %8099 = vmatpush.bf16.msra.mxu0 %v7318
    %8100 = vmatpush.bf16.msra.mxu0 %v7310
    %8101 = vmatpush.bf16.msra.mxu0 %v7302
    %8102 = vmatmul.bf16.gmra.mxu0 %v3202
    %v8103 = vpop.f32.mrf.mxu0
    %v8104 = vadd.f32 %v8090, %v8103
    %v8105 = vpop.f32.mrf.mxu0
    %v8106 = vadd.f32 %v8092, %v8105
    %8107 = vdwg.mxu0
    %8108 = vmatpush.bf16.msra.mxu0 %v7422
    %8109 = vmatpush.bf16.msra.mxu0 %v7414
    %8110 = vmatpush.bf16.msra.mxu0 %v7406
    %8111 = vmatpush.bf16.msra.mxu0 %v7398
    %8112 = vmatpush.bf16.msra.mxu0 %v7390
    %8113 = vmatpush.bf16.msra.mxu0 %v7382
    %8114 = vmatpush.bf16.msra.mxu0 %v7374
    %8115 = vmatpush.bf16.msra.mxu0 %v7366
    %8116 = vmatmul.bf16.gmra.mxu0 %v3203
    %v8117 = vpop.f32.mrf.mxu0
    %v8118 = vadd.f32 %v8104, %v8117
    %v8119 = vpop.f32.mrf.mxu0
    %v8120 = vadd.f32 %v8106, %v8119
    %8121 = vdwg.mxu0
    %8122 = vmatpush.bf16.msra.mxu0 %v7486
    %8123 = vmatpush.bf16.msra.mxu0 %v7478
    %8124 = vmatpush.bf16.msra.mxu0 %v7470
    %8125 = vmatpush.bf16.msra.mxu0 %v7462
    %8126 = vmatpush.bf16.msra.mxu0 %v7454
    %8127 = vmatpush.bf16.msra.mxu0 %v7446
    %8128 = vmatpush.bf16.msra.mxu0 %v7438
    %8129 = vmatpush.bf16.msra.mxu0 %v7430
    %8130 = vmatmul.bf16.gmra.mxu0 %v3204
    %v8131 = vpop.f32.mrf.mxu0
    %v8132 = vadd.f32 %v8118, %v8131
    %v8133 = vpop.f32.mrf.mxu0
    %v8134 = vadd.f32 %v8120, %v8133
    %8135 = vdwg.mxu0
    %8136 = vmatpush.bf16.msra.mxu0 %v7295
    %8137 = vmatpush.bf16.msra.mxu0 %v7287
    %8138 = vmatpush.bf16.msra.mxu0 %v7279
    %8139 = vmatpush.bf16.msra.mxu0 %v7271
    %8140 = vmatpush.bf16.msra.mxu0 %v7263
    %8141 = vmatpush.bf16.msra.mxu0 %v7255
    %8142 = vmatpush.bf16.msra.mxu0 %v7247
    %8143 = vmatpush.bf16.msra.mxu0 %v7239
    %8144 = vmatmul.bf16.gmra.mxu0 %v3201
    %v8145 = vpop.f32.mrf.mxu0
    %v8146 = vadd.f32 0.0, %v8145
    %v8147 = vpop.f32.mrf.mxu0
    %v8148 = vadd.f32 0.0, %v8147
    %8149 = vdwg.mxu0
    %8150 = vmatpush.bf16.msra.mxu0 %v7359
    %8151 = vmatpush.bf16.msra.mxu0 %v7351
    %8152 = vmatpush.bf16.msra.mxu0 %v7343
    %8153 = vmatpush.bf16.msra.mxu0 %v7335
    %8154 = vmatpush.bf16.msra.mxu0 %v7327
    %8155 = vmatpush.bf16.msra.mxu0 %v7319
    %8156 = vmatpush.bf16.msra.mxu0 %v7311
    %8157 = vmatpush.bf16.msra.mxu0 %v7303
    %8158 = vmatmul.bf16.gmra.mxu0 %v3202
    %v8159 = vpop.f32.mrf.mxu0
    %v8160 = vadd.f32 %v8146, %v8159
    %v8161 = vpop.f32.mrf.mxu0
    %v8162 = vadd.f32 %v8148, %v8161
    %8163 = vdwg.mxu0
    %8164 = vmatpush.bf16.msra.mxu0 %v7423
    %8165 = vmatpush.bf16.msra.mxu0 %v7415
    %8166 = vmatpush.bf16.msra.mxu0 %v7407
    %8167 = vmatpush.bf16.msra.mxu0 %v7399
    %8168 = vmatpush.bf16.msra.mxu0 %v7391
    %8169 = vmatpush.bf16.msra.mxu0 %v7383
    %8170 = vmatpush.bf16.msra.mxu0 %v7375
    %8171 = vmatpush.bf16.msra.mxu0 %v7367
    %8172 = vmatmul.bf16.gmra.mxu0 %v3203
    %v8173 = vpop.f32.mrf.mxu0
    %v8174 = vadd.f32 %v8160, %v8173
    %v8175 = vpop.f32.mrf.mxu0
    %v8176 = vadd.f32 %v8162, %v8175
    %8177 = vdwg.mxu0
    %8178 = vmatpush.bf16.msra.mxu0 %v7487
    %8179 = vmatpush.bf16.msra.mxu0 %v7479
    %8180 = vmatpush.bf16.msra.mxu0 %v7471
    %8181 = vmatpush.bf16.msra.mxu0 %v7463
    %8182 = vmatpush.bf16.msra.mxu0 %v7455
    %8183 = vmatpush.bf16.msra.mxu0 %v7447
    %8184 = vmatpush.bf16.msra.mxu0 %v7439
    %8185 = vmatpush.bf16.msra.mxu0 %v7431
    %8186 = vmatmul.bf16.gmra.mxu0 %v3204
    %v8187 = vpop.f32.mrf.mxu0
    %v8188 = vadd.f32 %v8174, %v8187
    %v8189 = vpop.f32.mrf.mxu0
    %v8190 = vadd.f32 %v8176, %v8189
    %8191 = vdwg.mxu0
    %v8192 = vadd.f32 %v6191, %v7796
    %v8193 = vadd.f32 %v6192, %v7852
    %v8194 = vadd.f32 %v6193, %v7908
    %v8195 = vadd.f32 %v6194, %v7964
    %v8196 = vadd.f32 %v6195, %v8020
    %v8197 = vadd.f32 %v6196, %v8076
    %v8198 = vadd.f32 %v6197, %v8132
    %v8199 = vadd.f32 %v6198, %v8188
    %v8200 = vadd.f32 %v6199, %v7798
    %v8201 = vadd.f32 %v6200, %v7854
    %v8202 = vadd.f32 %v6201, %v7910
    %v8203 = vadd.f32 %v6202, %v7966
    %v8204 = vadd.f32 %v6203, %v8022
    %v8205 = vadd.f32 %v6204, %v8078
    %v8206 = vadd.f32 %v6205, %v8134
    %v8207 = vadd.f32 %v6206, %v8190
    %s8208 = scalar_lea.vmem [#allocation9], 4096
    %v8209 = vld [vmem:[%s8208] sm:$0xff]
    %v8210 = vld [vmem:[%s8208 + $0x8] sm:$0xff]
    %v8211 = vld [vmem:[%s8208 + $0x10] sm:$0xff]
    %v8212 = vld [vmem:[%s8208 + $0x18] sm:$0xff]
    %v8213 = vld [vmem:[%s8208 + $0x20] sm:$0xff]
    %v8214 = vld [vmem:[%s8208 + $0x28] sm:$0xff]
    %v8215 = vld [vmem:[%s8208 + $0x30] sm:$0xff]
    %v8216 = vld [vmem:[%s8208 + $0x38] sm:$0xff]
    %v8217 = vld [vmem:[%s8208 + $0x40] sm:$0xff]
    %v8218 = vld [vmem:[%s8208 + $0x48] sm:$0xff]
    %v8219 = vld [vmem:[%s8208 + $0x50] sm:$0xff]
    %v8220 = vld [vmem:[%s8208 + $0x58] sm:$0xff]
    %v8221 = vld [vmem:[%s8208 + $0x60] sm:$0xff]
    %v8222 = vld [vmem:[%s8208 + $0x68] sm:$0xff]
    %v8223 = vld [vmem:[%s8208 + $0x70] sm:$0xff]
    %v8224 = vld [vmem:[%s8208 + $0x78] sm:$0xff]
    %v8225 = vld [vmem:[%s8208 + $0x80] sm:$0xff]
    %v8226 = vld [vmem:[%s8208 + $0x88] sm:$0xff]
    %v8227 = vld [vmem:[%s8208 + $0x90] sm:$0xff]
    %v8228 = vld [vmem:[%s8208 + $0x98] sm:$0xff]
    %v8229 = vld [vmem:[%s8208 + $0xa0] sm:$0xff]
    %v8230 = vld [vmem:[%s8208 + $0xa8] sm:$0xff]
    %v8231 = vld [vmem:[%s8208 + $0xb0] sm:$0xff]
    %v8232 = vld [vmem:[%s8208 + $0xb8] sm:$0xff]
    %v8233 = vld [vmem:[%s8208 + $0xc0] sm:$0xff]
    %v8234 = vld [vmem:[%s8208 + $0xc8] sm:$0xff]
    %v8235 = vld [vmem:[%s8208 + $0xd0] sm:$0xff]
    %v8236 = vld [vmem:[%s8208 + $0xd8] sm:$0xff]
    %v8237 = vld [vmem:[%s8208 + $0xe0] sm:$0xff]
    %v8238 = vld [vmem:[%s8208 + $0xe8] sm:$0xff]
    %v8239 = vld [vmem:[%s8208 + $0xf0] sm:$0xff]
    %v8240 = vld [vmem:[%s8208 + $0xf8] sm:$0xff]
    %v8241 = vld [vmem:[%s8208 + $0x100] sm:$0xff]
    %v8242 = vld [vmem:[%s8208 + $0x108] sm:$0xff]
    %v8243 = vld [vmem:[%s8208 + $0x110] sm:$0xff]
    %v8244 = vld [vmem:[%s8208 + $0x118] sm:$0xff]
    %v8245 = vld [vmem:[%s8208 + $0x120] sm:$0xff]
    %v8246 = vld [vmem:[%s8208 + $0x128] sm:$0xff]
    %v8247 = vld [vmem:[%s8208 + $0x130] sm:$0xff]
    %v8248 = vld [vmem:[%s8208 + $0x138] sm:$0xff]
    %v8249 = vld [vmem:[%s8208 + $0x140] sm:$0xff]
    %v8250 = vld [vmem:[%s8208 + $0x148] sm:$0xff]
    %v8251 = vld [vmem:[%s8208 + $0x150] sm:$0xff]
    %v8252 = vld [vmem:[%s8208 + $0x158] sm:$0xff]
    %v8253 = vld [vmem:[%s8208 + $0x160] sm:$0xff]
    %v8254 = vld [vmem:[%s8208 + $0x168] sm:$0xff]
    %v8255 = vld [vmem:[%s8208 + $0x170] sm:$0xff]
    %v8256 = vld [vmem:[%s8208 + $0x178] sm:$0xff]
    %v8257 = vld [vmem:[%s8208 + $0x180] sm:$0xff]
    %v8258 = vld [vmem:[%s8208 + $0x188] sm:$0xff]
    %v8259 = vld [vmem:[%s8208 + $0x190] sm:$0xff]
    %v8260 = vld [vmem:[%s8208 + $0x198] sm:$0xff]
    %v8261 = vld [vmem:[%s8208 + $0x1a0] sm:$0xff]
    %v8262 = vld [vmem:[%s8208 + $0x1a8] sm:$0xff]
    %v8263 = vld [vmem:[%s8208 + $0x1b0] sm:$0xff]
    %v8264 = vld [vmem:[%s8208 + $0x1b8] sm:$0xff]
    %v8265 = vld [vmem:[%s8208 + $0x1c0] sm:$0xff]
    %v8266 = vld [vmem:[%s8208 + $0x1c8] sm:$0xff]
    %v8267 = vld [vmem:[%s8208 + $0x1d0] sm:$0xff]
    %v8268 = vld [vmem:[%s8208 + $0x1d8] sm:$0xff]
    %v8269 = vld [vmem:[%s8208 + $0x1e0] sm:$0xff]
    %v8270 = vld [vmem:[%s8208 + $0x1e8] sm:$0xff]
    %v8271 = vld [vmem:[%s8208 + $0x1f0] sm:$0xff]
    %v8272 = vld [vmem:[%s8208 + $0x1f8] sm:$0xff]
    %v8273 = vld [vmem:[%s8208 + $0x200] sm:$0xff]
    %v8274 = vld [vmem:[%s8208 + $0x208] sm:$0xff]
    %v8275 = vld [vmem:[%s8208 + $0x210] sm:$0xff]
    %v8276 = vld [vmem:[%s8208 + $0x218] sm:$0xff]
    %v8277 = vld [vmem:[%s8208 + $0x220] sm:$0xff]
    %v8278 = vld [vmem:[%s8208 + $0x228] sm:$0xff]
    %v8279 = vld [vmem:[%s8208 + $0x230] sm:$0xff]
    %v8280 = vld [vmem:[%s8208 + $0x238] sm:$0xff]
    %v8281 = vld [vmem:[%s8208 + $0x240] sm:$0xff]
    %v8282 = vld [vmem:[%s8208 + $0x248] sm:$0xff]
    %v8283 = vld [vmem:[%s8208 + $0x250] sm:$0xff]
    %v8284 = vld [vmem:[%s8208 + $0x258] sm:$0xff]
    %v8285 = vld [vmem:[%s8208 + $0x260] sm:$0xff]
    %v8286 = vld [vmem:[%s8208 + $0x268] sm:$0xff]
    %v8287 = vld [vmem:[%s8208 + $0x270] sm:$0xff]
    %v8288 = vld [vmem:[%s8208 + $0x278] sm:$0xff]
    %v8289 = vld [vmem:[%s8208 + $0x280] sm:$0xff]
    %v8290 = vld [vmem:[%s8208 + $0x288] sm:$0xff]
    %v8291 = vld [vmem:[%s8208 + $0x290] sm:$0xff]
    %v8292 = vld [vmem:[%s8208 + $0x298] sm:$0xff]
    %v8293 = vld [vmem:[%s8208 + $0x2a0] sm:$0xff]
    %v8294 = vld [vmem:[%s8208 + $0x2a8] sm:$0xff]
    %v8295 = vld [vmem:[%s8208 + $0x2b0] sm:$0xff]
    %v8296 = vld [vmem:[%s8208 + $0x2b8] sm:$0xff]
    %v8297 = vld [vmem:[%s8208 + $0x2c0] sm:$0xff]
    %v8298 = vld [vmem:[%s8208 + $0x2c8] sm:$0xff]
    %v8299 = vld [vmem:[%s8208 + $0x2d0] sm:$0xff]
    %v8300 = vld [vmem:[%s8208 + $0x2d8] sm:$0xff]
    %v8301 = vld [vmem:[%s8208 + $0x2e0] sm:$0xff]
    %v8302 = vld [vmem:[%s8208 + $0x2e8] sm:$0xff]
    %v8303 = vld [vmem:[%s8208 + $0x2f0] sm:$0xff]
    %v8304 = vld [vmem:[%s8208 + $0x2f8] sm:$0xff]
    %v8305 = vld [vmem:[%s8208 + $0x300] sm:$0xff]
    %v8306 = vld [vmem:[%s8208 + $0x308] sm:$0xff]
    %v8307 = vld [vmem:[%s8208 + $0x310] sm:$0xff]
    %v8308 = vld [vmem:[%s8208 + $0x318] sm:$0xff]
    %v8309 = vld [vmem:[%s8208 + $0x320] sm:$0xff]
    %v8310 = vld [vmem:[%s8208 + $0x328] sm:$0xff]
    %v8311 = vld [vmem:[%s8208 + $0x330] sm:$0xff]
    %v8312 = vld [vmem:[%s8208 + $0x338] sm:$0xff]
    %v8313 = vld [vmem:[%s8208 + $0x340] sm:$0xff]
    %v8314 = vld [vmem:[%s8208 + $0x348] sm:$0xff]
    %v8315 = vld [vmem:[%s8208 + $0x350] sm:$0xff]
    %v8316 = vld [vmem:[%s8208 + $0x358] sm:$0xff]
    %v8317 = vld [vmem:[%s8208 + $0x360] sm:$0xff]
    %v8318 = vld [vmem:[%s8208 + $0x368] sm:$0xff]
    %v8319 = vld [vmem:[%s8208 + $0x370] sm:$0xff]
    %v8320 = vld [vmem:[%s8208 + $0x378] sm:$0xff]
    %v8321 = vld [vmem:[%s8208 + $0x380] sm:$0xff]
    %v8322 = vld [vmem:[%s8208 + $0x388] sm:$0xff]
    %v8323 = vld [vmem:[%s8208 + $0x390] sm:$0xff]
    %v8324 = vld [vmem:[%s8208 + $0x398] sm:$0xff]
    %v8325 = vld [vmem:[%s8208 + $0x3a0] sm:$0xff]
    %v8326 = vld [vmem:[%s8208 + $0x3a8] sm:$0xff]
    %v8327 = vld [vmem:[%s8208 + $0x3b0] sm:$0xff]
    %v8328 = vld [vmem:[%s8208 + $0x3b8] sm:$0xff]
    %v8329 = vld [vmem:[%s8208 + $0x3c0] sm:$0xff]
    %v8330 = vld [vmem:[%s8208 + $0x3c8] sm:$0xff]
    %v8331 = vld [vmem:[%s8208 + $0x3d0] sm:$0xff]
    %v8332 = vld [vmem:[%s8208 + $0x3d8] sm:$0xff]
    %v8333 = vld [vmem:[%s8208 + $0x3e0] sm:$0xff]
    %v8334 = vld [vmem:[%s8208 + $0x3e8] sm:$0xff]
    %v8335 = vld [vmem:[%s8208 + $0x3f0] sm:$0xff]
    %v8336 = vld [vmem:[%s8208 + $0x3f8] sm:$0xff]
    %v8337 = vld [vmem:[%s8208 + $0x400] sm:$0xff]
    %v8338 = vld [vmem:[%s8208 + $0x408] sm:$0xff]
    %v8339 = vld [vmem:[%s8208 + $0x410] sm:$0xff]
    %v8340 = vld [vmem:[%s8208 + $0x418] sm:$0xff]
    %v8341 = vld [vmem:[%s8208 + $0x420] sm:$0xff]
    %v8342 = vld [vmem:[%s8208 + $0x428] sm:$0xff]
    %v8343 = vld [vmem:[%s8208 + $0x430] sm:$0xff]
    %v8344 = vld [vmem:[%s8208 + $0x438] sm:$0xff]
    %v8345 = vld [vmem:[%s8208 + $0x440] sm:$0xff]
    %v8346 = vld [vmem:[%s8208 + $0x448] sm:$0xff]
    %v8347 = vld [vmem:[%s8208 + $0x450] sm:$0xff]
    %v8348 = vld [vmem:[%s8208 + $0x458] sm:$0xff]
    %v8349 = vld [vmem:[%s8208 + $0x460] sm:$0xff]
    %v8350 = vld [vmem:[%s8208 + $0x468] sm:$0xff]
    %v8351 = vld [vmem:[%s8208 + $0x470] sm:$0xff]
    %v8352 = vld [vmem:[%s8208 + $0x478] sm:$0xff]
    %v8353 = vld [vmem:[%s8208 + $0x480] sm:$0xff]
    %v8354 = vld [vmem:[%s8208 + $0x488] sm:$0xff]
    %v8355 = vld [vmem:[%s8208 + $0x490] sm:$0xff]
    %v8356 = vld [vmem:[%s8208 + $0x498] sm:$0xff]
    %v8357 = vld [vmem:[%s8208 + $0x4a0] sm:$0xff]
    %v8358 = vld [vmem:[%s8208 + $0x4a8] sm:$0xff]
    %v8359 = vld [vmem:[%s8208 + $0x4b0] sm:$0xff]
    %v8360 = vld [vmem:[%s8208 + $0x4b8] sm:$0xff]
    %v8361 = vld [vmem:[%s8208 + $0x4c0] sm:$0xff]
    %v8362 = vld [vmem:[%s8208 + $0x4c8] sm:$0xff]
    %v8363 = vld [vmem:[%s8208 + $0x4d0] sm:$0xff]
    %v8364 = vld [vmem:[%s8208 + $0x4d8] sm:$0xff]
    %v8365 = vld [vmem:[%s8208 + $0x4e0] sm:$0xff]
    %v8366 = vld [vmem:[%s8208 + $0x4e8] sm:$0xff]
    %v8367 = vld [vmem:[%s8208 + $0x4f0] sm:$0xff]
    %v8368 = vld [vmem:[%s8208 + $0x4f8] sm:$0xff]
    %v8369 = vld [vmem:[%s8208 + $0x500] sm:$0xff]
    %v8370 = vld [vmem:[%s8208 + $0x508] sm:$0xff]
    %v8371 = vld [vmem:[%s8208 + $0x510] sm:$0xff]
    %v8372 = vld [vmem:[%s8208 + $0x518] sm:$0xff]
    %v8373 = vld [vmem:[%s8208 + $0x520] sm:$0xff]
    %v8374 = vld [vmem:[%s8208 + $0x528] sm:$0xff]
    %v8375 = vld [vmem:[%s8208 + $0x530] sm:$0xff]
    %v8376 = vld [vmem:[%s8208 + $0x538] sm:$0xff]
    %v8377 = vld [vmem:[%s8208 + $0x540] sm:$0xff]
    %v8378 = vld [vmem:[%s8208 + $0x548] sm:$0xff]
    %v8379 = vld [vmem:[%s8208 + $0x550] sm:$0xff]
    %v8380 = vld [vmem:[%s8208 + $0x558] sm:$0xff]
    %v8381 = vld [vmem:[%s8208 + $0x560] sm:$0xff]
    %v8382 = vld [vmem:[%s8208 + $0x568] sm:$0xff]
    %v8383 = vld [vmem:[%s8208 + $0x570] sm:$0xff]
    %v8384 = vld [vmem:[%s8208 + $0x578] sm:$0xff]
    %v8385 = vld [vmem:[%s8208 + $0x580] sm:$0xff]
    %v8386 = vld [vmem:[%s8208 + $0x588] sm:$0xff]
    %v8387 = vld [vmem:[%s8208 + $0x590] sm:$0xff]
    %v8388 = vld [vmem:[%s8208 + $0x598] sm:$0xff]
    %v8389 = vld [vmem:[%s8208 + $0x5a0] sm:$0xff]
    %v8390 = vld [vmem:[%s8208 + $0x5a8] sm:$0xff]
    %v8391 = vld [vmem:[%s8208 + $0x5b0] sm:$0xff]
    %v8392 = vld [vmem:[%s8208 + $0x5b8] sm:$0xff]
    %v8393 = vld [vmem:[%s8208 + $0x5c0] sm:$0xff]
    %v8394 = vld [vmem:[%s8208 + $0x5c8] sm:$0xff]
    %v8395 = vld [vmem:[%s8208 + $0x5d0] sm:$0xff]
    %v8396 = vld [vmem:[%s8208 + $0x5d8] sm:$0xff]
    %v8397 = vld [vmem:[%s8208 + $0x5e0] sm:$0xff]
    %v8398 = vld [vmem:[%s8208 + $0x5e8] sm:$0xff]
    %v8399 = vld [vmem:[%s8208 + $0x5f0] sm:$0xff]
    %v8400 = vld [vmem:[%s8208 + $0x5f8] sm:$0xff]
    %v8401 = vld [vmem:[%s8208 + $0x600] sm:$0xff]
    %v8402 = vld [vmem:[%s8208 + $0x608] sm:$0xff]
    %v8403 = vld [vmem:[%s8208 + $0x610] sm:$0xff]
    %v8404 = vld [vmem:[%s8208 + $0x618] sm:$0xff]
    %v8405 = vld [vmem:[%s8208 + $0x620] sm:$0xff]
    %v8406 = vld [vmem:[%s8208 + $0x628] sm:$0xff]
    %v8407 = vld [vmem:[%s8208 + $0x630] sm:$0xff]
    %v8408 = vld [vmem:[%s8208 + $0x638] sm:$0xff]
    %v8409 = vld [vmem:[%s8208 + $0x640] sm:$0xff]
    %v8410 = vld [vmem:[%s8208 + $0x648] sm:$0xff]
    %v8411 = vld [vmem:[%s8208 + $0x650] sm:$0xff]
    %v8412 = vld [vmem:[%s8208 + $0x658] sm:$0xff]
    %v8413 = vld [vmem:[%s8208 + $0x660] sm:$0xff]
    %v8414 = vld [vmem:[%s8208 + $0x668] sm:$0xff]
    %v8415 = vld [vmem:[%s8208 + $0x670] sm:$0xff]
    %v8416 = vld [vmem:[%s8208 + $0x678] sm:$0xff]
    %v8417 = vld [vmem:[%s8208 + $0x680] sm:$0xff]
    %v8418 = vld [vmem:[%s8208 + $0x688] sm:$0xff]
    %v8419 = vld [vmem:[%s8208 + $0x690] sm:$0xff]
    %v8420 = vld [vmem:[%s8208 + $0x698] sm:$0xff]
    %v8421 = vld [vmem:[%s8208 + $0x6a0] sm:$0xff]
    %v8422 = vld [vmem:[%s8208 + $0x6a8] sm:$0xff]
    %v8423 = vld [vmem:[%s8208 + $0x6b0] sm:$0xff]
    %v8424 = vld [vmem:[%s8208 + $0x6b8] sm:$0xff]
    %v8425 = vld [vmem:[%s8208 + $0x6c0] sm:$0xff]
    %v8426 = vld [vmem:[%s8208 + $0x6c8] sm:$0xff]
    %v8427 = vld [vmem:[%s8208 + $0x6d0] sm:$0xff]
    %v8428 = vld [vmem:[%s8208 + $0x6d8] sm:$0xff]
    %v8429 = vld [vmem:[%s8208 + $0x6e0] sm:$0xff]
    %v8430 = vld [vmem:[%s8208 + $0x6e8] sm:$0xff]
    %v8431 = vld [vmem:[%s8208 + $0x6f0] sm:$0xff]
    %v8432 = vld [vmem:[%s8208 + $0x6f8] sm:$0xff]
    %v8433 = vld [vmem:[%s8208 + $0x700] sm:$0xff]
    %v8434 = vld [vmem:[%s8208 + $0x708] sm:$0xff]
    %v8435 = vld [vmem:[%s8208 + $0x710] sm:$0xff]
    %v8436 = vld [vmem:[%s8208 + $0x718] sm:$0xff]
    %v8437 = vld [vmem:[%s8208 + $0x720] sm:$0xff]
    %v8438 = vld [vmem:[%s8208 + $0x728] sm:$0xff]
    %v8439 = vld [vmem:[%s8208 + $0x730] sm:$0xff]
    %v8440 = vld [vmem:[%s8208 + $0x738] sm:$0xff]
    %v8441 = vld [vmem:[%s8208 + $0x740] sm:$0xff]
    %v8442 = vld [vmem:[%s8208 + $0x748] sm:$0xff]
    %v8443 = vld [vmem:[%s8208 + $0x750] sm:$0xff]
    %v8444 = vld [vmem:[%s8208 + $0x758] sm:$0xff]
    %v8445 = vld [vmem:[%s8208 + $0x760] sm:$0xff]
    %v8446 = vld [vmem:[%s8208 + $0x768] sm:$0xff]
    %v8447 = vld [vmem:[%s8208 + $0x770] sm:$0xff]
    %v8448 = vld [vmem:[%s8208 + $0x778] sm:$0xff]
    %v8449 = vld [vmem:[%s8208 + $0x780] sm:$0xff]
    %v8450 = vld [vmem:[%s8208 + $0x788] sm:$0xff]
    %v8451 = vld [vmem:[%s8208 + $0x790] sm:$0xff]
    %v8452 = vld [vmem:[%s8208 + $0x798] sm:$0xff]
    %v8453 = vld [vmem:[%s8208 + $0x7a0] sm:$0xff]
    %v8454 = vld [vmem:[%s8208 + $0x7a8] sm:$0xff]
    %v8455 = vld [vmem:[%s8208 + $0x7b0] sm:$0xff]
    %v8456 = vld [vmem:[%s8208 + $0x7b8] sm:$0xff]
    %v8457 = vld [vmem:[%s8208 + $0x7c0] sm:$0xff]
    %v8458 = vld [vmem:[%s8208 + $0x7c8] sm:$0xff]
    %v8459 = vld [vmem:[%s8208 + $0x7d0] sm:$0xff]
    %v8460 = vld [vmem:[%s8208 + $0x7d8] sm:$0xff]
    %v8461 = vld [vmem:[%s8208 + $0x7e0] sm:$0xff]
    %v8462 = vld [vmem:[%s8208 + $0x7e8] sm:$0xff]
    %v8463 = vld [vmem:[%s8208 + $0x7f0] sm:$0xff]
    %v8464 = vld [vmem:[%s8208 + $0x7f8] sm:$0xff]
    %v8721 = vunpack.c.l.b16 %v8209
    %v8722 = vunpack.c.h.b16 %v8209
    %v8723 = vunpack.c.l.b16 %v8210
    %v8724 = vunpack.c.h.b16 %v8210
    %v8725 = vunpack.c.l.b16 %v8211
    %v8726 = vunpack.c.h.b16 %v8211
    %v8727 = vunpack.c.l.b16 %v8212
    %v8728 = vunpack.c.h.b16 %v8212
    %v8729 = vunpack.c.l.b16 %v8213
    %v8730 = vunpack.c.h.b16 %v8213
    %v8731 = vunpack.c.l.b16 %v8214
    %v8732 = vunpack.c.h.b16 %v8214
    %v8733 = vunpack.c.l.b16 %v8215
    %v8734 = vunpack.c.h.b16 %v8215
    %v8735 = vunpack.c.l.b16 %v8216
    %v8736 = vunpack.c.h.b16 %v8216
    %v8737 = vunpack.c.l.b16 %v8217
    %v8738 = vunpack.c.h.b16 %v8217
    %v8739 = vunpack.c.l.b16 %v8218
    %v8740 = vunpack.c.h.b16 %v8218
    %v8741 = vunpack.c.l.b16 %v8219
    %v8742 = vunpack.c.h.b16 %v8219
    %v8743 = vunpack.c.l.b16 %v8220
    %v8744 = vunpack.c.h.b16 %v8220
    %v8745 = vunpack.c.l.b16 %v8221
    %v8746 = vunpack.c.h.b16 %v8221
    %v8747 = vunpack.c.l.b16 %v8222
    %v8748 = vunpack.c.h.b16 %v8222
    %v8749 = vunpack.c.l.b16 %v8223
    %v8750 = vunpack.c.h.b16 %v8223
    %v8751 = vunpack.c.l.b16 %v8224
    %v8752 = vunpack.c.h.b16 %v8224
    %v8753 = vunpack.c.l.b16 %v8225
    %v8754 = vunpack.c.h.b16 %v8225
    %v8755 = vunpack.c.l.b16 %v8226
    %v8756 = vunpack.c.h.b16 %v8226
    %v8757 = vunpack.c.l.b16 %v8227
    %v8758 = vunpack.c.h.b16 %v8227
    %v8759 = vunpack.c.l.b16 %v8228
    %v8760 = vunpack.c.h.b16 %v8228
    %v8761 = vunpack.c.l.b16 %v8229
    %v8762 = vunpack.c.h.b16 %v8229
    %v8763 = vunpack.c.l.b16 %v8230
    %v8764 = vunpack.c.h.b16 %v8230
    %v8765 = vunpack.c.l.b16 %v8231
    %v8766 = vunpack.c.h.b16 %v8231
    %v8767 = vunpack.c.l.b16 %v8232
    %v8768 = vunpack.c.h.b16 %v8232
    %v8769 = vunpack.c.l.b16 %v8233
    %v8770 = vunpack.c.h.b16 %v8233
    %v8771 = vunpack.c.l.b16 %v8234
    %v8772 = vunpack.c.h.b16 %v8234
    %v8773 = vunpack.c.l.b16 %v8235
    %v8774 = vunpack.c.h.b16 %v8235
    %v8775 = vunpack.c.l.b16 %v8236
    %v8776 = vunpack.c.h.b16 %v8236
    %v8777 = vunpack.c.l.b16 %v8237
    %v8778 = vunpack.c.h.b16 %v8237
    %v8779 = vunpack.c.l.b16 %v8238
    %v8780 = vunpack.c.h.b16 %v8238
    %v8781 = vunpack.c.l.b16 %v8239
    %v8782 = vunpack.c.h.b16 %v8239
    %v8783 = vunpack.c.l.b16 %v8240
    %v8784 = vunpack.c.h.b16 %v8240
    %v8785 = vunpack.c.l.b16 %v8241
    %v8786 = vunpack.c.h.b16 %v8241
    %v8787 = vunpack.c.l.b16 %v8242
    %v8788 = vunpack.c.h.b16 %v8242
    %v8789 = vunpack.c.l.b16 %v8243
    %v8790 = vunpack.c.h.b16 %v8243
    %v8791 = vunpack.c.l.b16 %v8244
    %v8792 = vunpack.c.h.b16 %v8244
    %v8793 = vunpack.c.l.b16 %v8245
    %v8794 = vunpack.c.h.b16 %v8245
    %v8795 = vunpack.c.l.b16 %v8246
    %v8796 = vunpack.c.h.b16 %v8246
    %v8797 = vunpack.c.l.b16 %v8247
    %v8798 = vunpack.c.h.b16 %v8247
    %v8799 = vunpack.c.l.b16 %v8248
    %v8800 = vunpack.c.h.b16 %v8248
    %v8801 = vunpack.c.l.b16 %v8249
    %v8802 = vunpack.c.h.b16 %v8249
    %v8803 = vunpack.c.l.b16 %v8250
    %v8804 = vunpack.c.h.b16 %v8250
    %v8805 = vunpack.c.l.b16 %v8251
    %v8806 = vunpack.c.h.b16 %v8251
    %v8807 = vunpack.c.l.b16 %v8252
    %v8808 = vunpack.c.h.b16 %v8252
    %v8809 = vunpack.c.l.b16 %v8253
    %v8810 = vunpack.c.h.b16 %v8253
    %v8811 = vunpack.c.l.b16 %v8254
    %v8812 = vunpack.c.h.b16 %v8254
    %v8813 = vunpack.c.l.b16 %v8255
    %v8814 = vunpack.c.h.b16 %v8255
    %v8815 = vunpack.c.l.b16 %v8256
    %v8816 = vunpack.c.h.b16 %v8256
    %v8817 = vunpack.c.l.b16 %v8257
    %v8818 = vunpack.c.h.b16 %v8257
    %v8819 = vunpack.c.l.b16 %v8258
    %v8820 = vunpack.c.h.b16 %v8258
    %v8821 = vunpack.c.l.b16 %v8259
    %v8822 = vunpack.c.h.b16 %v8259
    %v8823 = vunpack.c.l.b16 %v8260
    %v8824 = vunpack.c.h.b16 %v8260
    %v8825 = vunpack.c.l.b16 %v8261
    %v8826 = vunpack.c.h.b16 %v8261
    %v8827 = vunpack.c.l.b16 %v8262
    %v8828 = vunpack.c.h.b16 %v8262
    %v8829 = vunpack.c.l.b16 %v8263
    %v8830 = vunpack.c.h.b16 %v8263
    %v8831 = vunpack.c.l.b16 %v8264
    %v8832 = vunpack.c.h.b16 %v8264
    %v8833 = vunpack.c.l.b16 %v8265
    %v8834 = vunpack.c.h.b16 %v8265
    %v8835 = vunpack.c.l.b16 %v8266
    %v8836 = vunpack.c.h.b16 %v8266
    %v8837 = vunpack.c.l.b16 %v8267
    %v8838 = vunpack.c.h.b16 %v8267
    %v8839 = vunpack.c.l.b16 %v8268
    %v8840 = vunpack.c.h.b16 %v8268
    %v8841 = vunpack.c.l.b16 %v8269
    %v8842 = vunpack.c.h.b16 %v8269
    %v8843 = vunpack.c.l.b16 %v8270
    %v8844 = vunpack.c.h.b16 %v8270
    %v8845 = vunpack.c.l.b16 %v8271
    %v8846 = vunpack.c.h.b16 %v8271
    %v8847 = vunpack.c.l.b16 %v8272
    %v8848 = vunpack.c.h.b16 %v8272
    %v8849 = vunpack.c.l.b16 %v8273
    %v8850 = vunpack.c.h.b16 %v8273
    %v8851 = vunpack.c.l.b16 %v8274
    %v8852 = vunpack.c.h.b16 %v8274
    %v8853 = vunpack.c.l.b16 %v8275
    %v8854 = vunpack.c.h.b16 %v8275
    %v8855 = vunpack.c.l.b16 %v8276
    %v8856 = vunpack.c.h.b16 %v8276
    %v8857 = vunpack.c.l.b16 %v8277
    %v8858 = vunpack.c.h.b16 %v8277
    %v8859 = vunpack.c.l.b16 %v8278
    %v8860 = vunpack.c.h.b16 %v8278
    %v8861 = vunpack.c.l.b16 %v8279
    %v8862 = vunpack.c.h.b16 %v8279
    %v8863 = vunpack.c.l.b16 %v8280
    %v8864 = vunpack.c.h.b16 %v8280
    %v8865 = vunpack.c.l.b16 %v8281
    %v8866 = vunpack.c.h.b16 %v8281
    %v8867 = vunpack.c.l.b16 %v8282
    %v8868 = vunpack.c.h.b16 %v8282
    %v8869 = vunpack.c.l.b16 %v8283
    %v8870 = vunpack.c.h.b16 %v8283
    %v8871 = vunpack.c.l.b16 %v8284
    %v8872 = vunpack.c.h.b16 %v8284
    %v8873 = vunpack.c.l.b16 %v8285
    %v8874 = vunpack.c.h.b16 %v8285
    %v8875 = vunpack.c.l.b16 %v8286
    %v8876 = vunpack.c.h.b16 %v8286
    %v8877 = vunpack.c.l.b16 %v8287
    %v8878 = vunpack.c.h.b16 %v8287
    %v8879 = vunpack.c.l.b16 %v8288
    %v8880 = vunpack.c.h.b16 %v8288
    %v8881 = vunpack.c.l.b16 %v8289
    %v8882 = vunpack.c.h.b16 %v8289
    %v8883 = vunpack.c.l.b16 %v8290
    %v8884 = vunpack.c.h.b16 %v8290
    %v8885 = vunpack.c.l.b16 %v8291
    %v8886 = vunpack.c.h.b16 %v8291
    %v8887 = vunpack.c.l.b16 %v8292
    %v8888 = vunpack.c.h.b16 %v8292
    %v8889 = vunpack.c.l.b16 %v8293
    %v8890 = vunpack.c.h.b16 %v8293
    %v8891 = vunpack.c.l.b16 %v8294
    %v8892 = vunpack.c.h.b16 %v8294
    %v8893 = vunpack.c.l.b16 %v8295
    %v8894 = vunpack.c.h.b16 %v8295
    %v8895 = vunpack.c.l.b16 %v8296
    %v8896 = vunpack.c.h.b16 %v8296
    %v8897 = vunpack.c.l.b16 %v8297
    %v8898 = vunpack.c.h.b16 %v8297
    %v8899 = vunpack.c.l.b16 %v8298
    %v8900 = vunpack.c.h.b16 %v8298
    %v8901 = vunpack.c.l.b16 %v8299
    %v8902 = vunpack.c.h.b16 %v8299
    %v8903 = vunpack.c.l.b16 %v8300
    %v8904 = vunpack.c.h.b16 %v8300
    %v8905 = vunpack.c.l.b16 %v8301
    %v8906 = vunpack.c.h.b16 %v8301
    %v8907 = vunpack.c.l.b16 %v8302
    %v8908 = vunpack.c.h.b16 %v8302
    %v8909 = vunpack.c.l.b16 %v8303
    %v8910 = vunpack.c.h.b16 %v8303
    %v8911 = vunpack.c.l.b16 %v8304
    %v8912 = vunpack.c.h.b16 %v8304
    %v8913 = vunpack.c.l.b16 %v8305
    %v8914 = vunpack.c.h.b16 %v8305
    %v8915 = vunpack.c.l.b16 %v8306
    %v8916 = vunpack.c.h.b16 %v8306
    %v8917 = vunpack.c.l.b16 %v8307
    %v8918 = vunpack.c.h.b16 %v8307
    %v8919 = vunpack.c.l.b16 %v8308
    %v8920 = vunpack.c.h.b16 %v8308
    %v8921 = vunpack.c.l.b16 %v8309
    %v8922 = vunpack.c.h.b16 %v8309
    %v8923 = vunpack.c.l.b16 %v8310
    %v8924 = vunpack.c.h.b16 %v8310
    %v8925 = vunpack.c.l.b16 %v8311
    %v8926 = vunpack.c.h.b16 %v8311
    %v8927 = vunpack.c.l.b16 %v8312
    %v8928 = vunpack.c.h.b16 %v8312
    %v8929 = vunpack.c.l.b16 %v8313
    %v8930 = vunpack.c.h.b16 %v8313
    %v8931 = vunpack.c.l.b16 %v8314
    %v8932 = vunpack.c.h.b16 %v8314
    %v8933 = vunpack.c.l.b16 %v8315
    %v8934 = vunpack.c.h.b16 %v8315
    %v8935 = vunpack.c.l.b16 %v8316
    %v8936 = vunpack.c.h.b16 %v8316
    %v8937 = vunpack.c.l.b16 %v8317
    %v8938 = vunpack.c.h.b16 %v8317
    %v8939 = vunpack.c.l.b16 %v8318
    %v8940 = vunpack.c.h.b16 %v8318
    %v8941 = vunpack.c.l.b16 %v8319
    %v8942 = vunpack.c.h.b16 %v8319
    %v8943 = vunpack.c.l.b16 %v8320
    %v8944 = vunpack.c.h.b16 %v8320
    %v8945 = vunpack.c.l.b16 %v8321
    %v8946 = vunpack.c.h.b16 %v8321
    %v8947 = vunpack.c.l.b16 %v8322
    %v8948 = vunpack.c.h.b16 %v8322
    %v8949 = vunpack.c.l.b16 %v8323
    %v8950 = vunpack.c.h.b16 %v8323
    %v8951 = vunpack.c.l.b16 %v8324
    %v8952 = vunpack.c.h.b16 %v8324
    %v8953 = vunpack.c.l.b16 %v8325
    %v8954 = vunpack.c.h.b16 %v8325
    %v8955 = vunpack.c.l.b16 %v8326
    %v8956 = vunpack.c.h.b16 %v8326
    %v8957 = vunpack.c.l.b16 %v8327
    %v8958 = vunpack.c.h.b16 %v8327
    %v8959 = vunpack.c.l.b16 %v8328
    %v8960 = vunpack.c.h.b16 %v8328
    %v8961 = vunpack.c.l.b16 %v8329
    %v8962 = vunpack.c.h.b16 %v8329
    %v8963 = vunpack.c.l.b16 %v8330
    %v8964 = vunpack.c.h.b16 %v8330
    %v8965 = vunpack.c.l.b16 %v8331
    %v8966 = vunpack.c.h.b16 %v8331
    %v8967 = vunpack.c.l.b16 %v8332
    %v8968 = vunpack.c.h.b16 %v8332
    %v8969 = vunpack.c.l.b16 %v8333
    %v8970 = vunpack.c.h.b16 %v8333
    %v8971 = vunpack.c.l.b16 %v8334
    %v8972 = vunpack.c.h.b16 %v8334
    %v8973 = vunpack.c.l.b16 %v8335
    %v8974 = vunpack.c.h.b16 %v8335
    %v8975 = vunpack.c.l.b16 %v8336
    %v8976 = vunpack.c.h.b16 %v8336
    %v8977 = vunpack.c.l.b16 %v8337
    %v8978 = vunpack.c.h.b16 %v8337
    %v8979 = vunpack.c.l.b16 %v8338
    %v8980 = vunpack.c.h.b16 %v8338
    %v8981 = vunpack.c.l.b16 %v8339
    %v8982 = vunpack.c.h.b16 %v8339
    %v8983 = vunpack.c.l.b16 %v8340
    %v8984 = vunpack.c.h.b16 %v8340
    %v8985 = vunpack.c.l.b16 %v8341
    %v8986 = vunpack.c.h.b16 %v8341
    %v8987 = vunpack.c.l.b16 %v8342
    %v8988 = vunpack.c.h.b16 %v8342
    %v8989 = vunpack.c.l.b16 %v8343
    %v8990 = vunpack.c.h.b16 %v8343
    %v8991 = vunpack.c.l.b16 %v8344
    %v8992 = vunpack.c.h.b16 %v8344
    %v8993 = vunpack.c.l.b16 %v8345
    %v8994 = vunpack.c.h.b16 %v8345
    %v8995 = vunpack.c.l.b16 %v8346
    %v8996 = vunpack.c.h.b16 %v8346
    %v8997 = vunpack.c.l.b16 %v8347
    %v8998 = vunpack.c.h.b16 %v8347
    %v8999 = vunpack.c.l.b16 %v8348
    %v9000 = vunpack.c.h.b16 %v8348
    %v9001 = vunpack.c.l.b16 %v8349
    %v9002 = vunpack.c.h.b16 %v8349
    %v9003 = vunpack.c.l.b16 %v8350
    %v9004 = vunpack.c.h.b16 %v8350
    %v9005 = vunpack.c.l.b16 %v8351
    %v9006 = vunpack.c.h.b16 %v8351
    %v9007 = vunpack.c.l.b16 %v8352
    %v9008 = vunpack.c.h.b16 %v8352
    %v9009 = vunpack.c.l.b16 %v8353
    %v9010 = vunpack.c.h.b16 %v8353
    %v9011 = vunpack.c.l.b16 %v8354
    %v9012 = vunpack.c.h.b16 %v8354
    %v9013 = vunpack.c.l.b16 %v8355
    %v9014 = vunpack.c.h.b16 %v8355
    %v9015 = vunpack.c.l.b16 %v8356
    %v9016 = vunpack.c.h.b16 %v8356
    %v9017 = vunpack.c.l.b16 %v8357
    %v9018 = vunpack.c.h.b16 %v8357
    %v9019 = vunpack.c.l.b16 %v8358
    %v9020 = vunpack.c.h.b16 %v8358
    %v9021 = vunpack.c.l.b16 %v8359
    %v9022 = vunpack.c.h.b16 %v8359
    %v9023 = vunpack.c.l.b16 %v8360
    %v9024 = vunpack.c.h.b16 %v8360
    %v9025 = vunpack.c.l.b16 %v8361
    %v9026 = vunpack.c.h.b16 %v8361
    %v9027 = vunpack.c.l.b16 %v8362
    %v9028 = vunpack.c.h.b16 %v8362
    %v9029 = vunpack.c.l.b16 %v8363
    %v9030 = vunpack.c.h.b16 %v8363
    %v9031 = vunpack.c.l.b16 %v8364
    %v9032 = vunpack.c.h.b16 %v8364
    %v9033 = vunpack.c.l.b16 %v8365
    %v9034 = vunpack.c.h.b16 %v8365
    %v9035 = vunpack.c.l.b16 %v8366
    %v9036 = vunpack.c.h.b16 %v8366
    %v9037 = vunpack.c.l.b16 %v8367
    %v9038 = vunpack.c.h.b16 %v8367
    %v9039 = vunpack.c.l.b16 %v8368
    %v9040 = vunpack.c.h.b16 %v8368
    %v9041 = vunpack.c.l.b16 %v8369
    %v9042 = vunpack.c.h.b16 %v8369
    %v9043 = vunpack.c.l.b16 %v8370
    %v9044 = vunpack.c.h.b16 %v8370
    %v9045 = vunpack.c.l.b16 %v8371
    %v9046 = vunpack.c.h.b16 %v8371
    %v9047 = vunpack.c.l.b16 %v8372
    %v9048 = vunpack.c.h.b16 %v8372
    %v9049 = vunpack.c.l.b16 %v8373
    %v9050 = vunpack.c.h.b16 %v8373
    %v9051 = vunpack.c.l.b16 %v8374
    %v9052 = vunpack.c.h.b16 %v8374
    %v9053 = vunpack.c.l.b16 %v8375
    %v9054 = vunpack.c.h.b16 %v8375
    %v9055 = vunpack.c.l.b16 %v8376
    %v9056 = vunpack.c.h.b16 %v8376
    %v9057 = vunpack.c.l.b16 %v8377
    %v9058 = vunpack.c.h.b16 %v8377
    %v9059 = vunpack.c.l.b16 %v8378
    %v9060 = vunpack.c.h.b16 %v8378
    %v9061 = vunpack.c.l.b16 %v8379
    %v9062 = vunpack.c.h.b16 %v8379
    %v9063 = vunpack.c.l.b16 %v8380
    %v9064 = vunpack.c.h.b16 %v8380
    %v9065 = vunpack.c.l.b16 %v8381
    %v9066 = vunpack.c.h.b16 %v8381
    %v9067 = vunpack.c.l.b16 %v8382
    %v9068 = vunpack.c.h.b16 %v8382
    %v9069 = vunpack.c.l.b16 %v8383
    %v9070 = vunpack.c.h.b16 %v8383
    %v9071 = vunpack.c.l.b16 %v8384
    %v9072 = vunpack.c.h.b16 %v8384
    %v9073 = vunpack.c.l.b16 %v8385
    %v9074 = vunpack.c.h.b16 %v8385
    %v9075 = vunpack.c.l.b16 %v8386
    %v9076 = vunpack.c.h.b16 %v8386
    %v9077 = vunpack.c.l.b16 %v8387
    %v9078 = vunpack.c.h.b16 %v8387
    %v9079 = vunpack.c.l.b16 %v8388
    %v9080 = vunpack.c.h.b16 %v8388
    %v9081 = vunpack.c.l.b16 %v8389
    %v9082 = vunpack.c.h.b16 %v8389
    %v9083 = vunpack.c.l.b16 %v8390
    %v9084 = vunpack.c.h.b16 %v8390
    %v9085 = vunpack.c.l.b16 %v8391
    %v9086 = vunpack.c.h.b16 %v8391
    %v9087 = vunpack.c.l.b16 %v8392
    %v9088 = vunpack.c.h.b16 %v8392
    %v9089 = vunpack.c.l.b16 %v8393
    %v9090 = vunpack.c.h.b16 %v8393
    %v9091 = vunpack.c.l.b16 %v8394
    %v9092 = vunpack.c.h.b16 %v8394
    %v9093 = vunpack.c.l.b16 %v8395
    %v9094 = vunpack.c.h.b16 %v8395
    %v9095 = vunpack.c.l.b16 %v8396
    %v9096 = vunpack.c.h.b16 %v8396
    %v9097 = vunpack.c.l.b16 %v8397
    %v9098 = vunpack.c.h.b16 %v8397
    %v9099 = vunpack.c.l.b16 %v8398
    %v9100 = vunpack.c.h.b16 %v8398
    %v9101 = vunpack.c.l.b16 %v8399
    %v9102 = vunpack.c.h.b16 %v8399
    %v9103 = vunpack.c.l.b16 %v8400
    %v9104 = vunpack.c.h.b16 %v8400
    %v9105 = vunpack.c.l.b16 %v8401
    %v9106 = vunpack.c.h.b16 %v8401
    %v9107 = vunpack.c.l.b16 %v8402
    %v9108 = vunpack.c.h.b16 %v8402
    %v9109 = vunpack.c.l.b16 %v8403
    %v9110 = vunpack.c.h.b16 %v8403
    %v9111 = vunpack.c.l.b16 %v8404
    %v9112 = vunpack.c.h.b16 %v8404
    %v9113 = vunpack.c.l.b16 %v8405
    %v9114 = vunpack.c.h.b16 %v8405
    %v9115 = vunpack.c.l.b16 %v8406
    %v9116 = vunpack.c.h.b16 %v8406
    %v9117 = vunpack.c.l.b16 %v8407
    %v9118 = vunpack.c.h.b16 %v8407
    %v9119 = vunpack.c.l.b16 %v8408
    %v9120 = vunpack.c.h.b16 %v8408
    %v9121 = vunpack.c.l.b16 %v8409
    %v9122 = vunpack.c.h.b16 %v8409
    %v9123 = vunpack.c.l.b16 %v8410
    %v9124 = vunpack.c.h.b16 %v8410
    %v9125 = vunpack.c.l.b16 %v8411
    %v9126 = vunpack.c.h.b16 %v8411
    %v9127 = vunpack.c.l.b16 %v8412
    %v9128 = vunpack.c.h.b16 %v8412
    %v9129 = vunpack.c.l.b16 %v8413
    %v9130 = vunpack.c.h.b16 %v8413
    %v9131 = vunpack.c.l.b16 %v8414
    %v9132 = vunpack.c.h.b16 %v8414
    %v9133 = vunpack.c.l.b16 %v8415
    %v9134 = vunpack.c.h.b16 %v8415
    %v9135 = vunpack.c.l.b16 %v8416
    %v9136 = vunpack.c.h.b16 %v8416
    %v9137 = vunpack.c.l.b16 %v8417
    %v9138 = vunpack.c.h.b16 %v8417
    %v9139 = vunpack.c.l.b16 %v8418
    %v9140 = vunpack.c.h.b16 %v8418
    %v9141 = vunpack.c.l.b16 %v8419
    %v9142 = vunpack.c.h.b16 %v8419
    %v9143 = vunpack.c.l.b16 %v8420
    %v9144 = vunpack.c.h.b16 %v8420
    %v9145 = vunpack.c.l.b16 %v8421
    %v9146 = vunpack.c.h.b16 %v8421
    %v9147 = vunpack.c.l.b16 %v8422
    %v9148 = vunpack.c.h.b16 %v8422
    %v9149 = vunpack.c.l.b16 %v8423
    %v9150 = vunpack.c.h.b16 %v8423
    %v9151 = vunpack.c.l.b16 %v8424
    %v9152 = vunpack.c.h.b16 %v8424
    %v9153 = vunpack.c.l.b16 %v8425
    %v9154 = vunpack.c.h.b16 %v8425
    %v9155 = vunpack.c.l.b16 %v8426
    %v9156 = vunpack.c.h.b16 %v8426
    %v9157 = vunpack.c.l.b16 %v8427
    %v9158 = vunpack.c.h.b16 %v8427
    %v9159 = vunpack.c.l.b16 %v8428
    %v9160 = vunpack.c.h.b16 %v8428
    %v9161 = vunpack.c.l.b16 %v8429
    %v9162 = vunpack.c.h.b16 %v8429
    %v9163 = vunpack.c.l.b16 %v8430
    %v9164 = vunpack.c.h.b16 %v8430
    %v9165 = vunpack.c.l.b16 %v8431
    %v9166 = vunpack.c.h.b16 %v8431
    %v9167 = vunpack.c.l.b16 %v8432
    %v9168 = vunpack.c.h.b16 %v8432
    %v9169 = vunpack.c.l.b16 %v8433
    %v9170 = vunpack.c.h.b16 %v8433
    %v9171 = vunpack.c.l.b16 %v8434
    %v9172 = vunpack.c.h.b16 %v8434
    %v9173 = vunpack.c.l.b16 %v8435
    %v9174 = vunpack.c.h.b16 %v8435
    %v9175 = vunpack.c.l.b16 %v8436
    %v9176 = vunpack.c.h.b16 %v8436
    %v9177 = vunpack.c.l.b16 %v8437
    %v9178 = vunpack.c.h.b16 %v8437
    %v9179 = vunpack.c.l.b16 %v8438
    %v9180 = vunpack.c.h.b16 %v8438
    %v9181 = vunpack.c.l.b16 %v8439
    %v9182 = vunpack.c.h.b16 %v8439
    %v9183 = vunpack.c.l.b16 %v8440
    %v9184 = vunpack.c.h.b16 %v8440
    %v9185 = vunpack.c.l.b16 %v8441
    %v9186 = vunpack.c.h.b16 %v8441
    %v9187 = vunpack.c.l.b16 %v8442
    %v9188 = vunpack.c.h.b16 %v8442
    %v9189 = vunpack.c.l.b16 %v8443
    %v9190 = vunpack.c.h.b16 %v8443
    %v9191 = vunpack.c.l.b16 %v8444
    %v9192 = vunpack.c.h.b16 %v8444
    %v9193 = vunpack.c.l.b16 %v8445
    %v9194 = vunpack.c.h.b16 %v8445
    %v9195 = vunpack.c.l.b16 %v8446
    %v9196 = vunpack.c.h.b16 %v8446
    %v9197 = vunpack.c.l.b16 %v8447
    %v9198 = vunpack.c.h.b16 %v8447
    %v9199 = vunpack.c.l.b16 %v8448
    %v9200 = vunpack.c.h.b16 %v8448
    %v9201 = vunpack.c.l.b16 %v8449
    %v9202 = vunpack.c.h.b16 %v8449
    %v9203 = vunpack.c.l.b16 %v8450
    %v9204 = vunpack.c.h.b16 %v8450
    %v9205 = vunpack.c.l.b16 %v8451
    %v9206 = vunpack.c.h.b16 %v8451
    %v9207 = vunpack.c.l.b16 %v8452
    %v9208 = vunpack.c.h.b16 %v8452
    %v9209 = vunpack.c.l.b16 %v8453
    %v9210 = vunpack.c.h.b16 %v8453
    %v9211 = vunpack.c.l.b16 %v8454
    %v9212 = vunpack.c.h.b16 %v8454
    %v9213 = vunpack.c.l.b16 %v8455
    %v9214 = vunpack.c.h.b16 %v8455
    %v9215 = vunpack.c.l.b16 %v8456
    %v9216 = vunpack.c.h.b16 %v8456
    %v9217 = vunpack.c.l.b16 %v8457
    %v9218 = vunpack.c.h.b16 %v8457
    %v9219 = vunpack.c.l.b16 %v8458
    %v9220 = vunpack.c.h.b16 %v8458
    %v9221 = vunpack.c.l.b16 %v8459
    %v9222 = vunpack.c.h.b16 %v8459
    %v9223 = vunpack.c.l.b16 %v8460
    %v9224 = vunpack.c.h.b16 %v8460
    %v9225 = vunpack.c.l.b16 %v8461
    %v9226 = vunpack.c.h.b16 %v8461
    %v9227 = vunpack.c.l.b16 %v8462
    %v9228 = vunpack.c.h.b16 %v8462
    %v9229 = vunpack.c.l.b16 %v8463
    %v9230 = vunpack.c.h.b16 %v8463
    %v9231 = vunpack.c.l.b16 %v8464
    %v9232 = vunpack.c.h.b16 %v8464
    %v9233 = vpack.c.b16 %v8729, %v8721
    %v9234 = vpack.c.b16 %v8730, %v8722
    %v9235 = vpack.c.b16 %v8731, %v8723
    %v9236 = vpack.c.b16 %v8732, %v8724
    %v9237 = vpack.c.b16 %v8733, %v8725
    %v9238 = vpack.c.b16 %v8734, %v8726
    %v9239 = vpack.c.b16 %v8735, %v8727
    %v9240 = vpack.c.b16 %v8736, %v8728
    %v9241 = vpack.c.b16 %v8745, %v8737
    %v9242 = vpack.c.b16 %v8746, %v8738
    %v9243 = vpack.c.b16 %v8747, %v8739
    %v9244 = vpack.c.b16 %v8748, %v8740
    %v9245 = vpack.c.b16 %v8749, %v8741
    %v9246 = vpack.c.b16 %v8750, %v8742
    %v9247 = vpack.c.b16 %v8751, %v8743
    %v9248 = vpack.c.b16 %v8752, %v8744
    %v9249 = vpack.c.b16 %v8761, %v8753
    %v9250 = vpack.c.b16 %v8762, %v8754
    %v9251 = vpack.c.b16 %v8763, %v8755
    %v9252 = vpack.c.b16 %v8764, %v8756
    %v9253 = vpack.c.b16 %v8765, %v8757
    %v9254 = vpack.c.b16 %v8766, %v8758
    %v9255 = vpack.c.b16 %v8767, %v8759
    %v9256 = vpack.c.b16 %v8768, %v8760
    %v9257 = vpack.c.b16 %v8777, %v8769
    %v9258 = vpack.c.b16 %v8778, %v8770
    %v9259 = vpack.c.b16 %v8779, %v8771
    %v9260 = vpack.c.b16 %v8780, %v8772
    %v9261 = vpack.c.b16 %v8781, %v8773
    %v9262 = vpack.c.b16 %v8782, %v8774
    %v9263 = vpack.c.b16 %v8783, %v8775
    %v9264 = vpack.c.b16 %v8784, %v8776
    %v9265 = vpack.c.b16 %v8793, %v8785
    %v9266 = vpack.c.b16 %v8794, %v8786
    %v9267 = vpack.c.b16 %v8795, %v8787
    %v9268 = vpack.c.b16 %v8796, %v8788
    %v9269 = vpack.c.b16 %v8797, %v8789
    %v9270 = vpack.c.b16 %v8798, %v8790
    %v9271 = vpack.c.b16 %v8799, %v8791
    %v9272 = vpack.c.b16 %v8800, %v8792
    %v9273 = vpack.c.b16 %v8809, %v8801
    %v9274 = vpack.c.b16 %v8810, %v8802
    %v9275 = vpack.c.b16 %v8811, %v8803
    %v9276 = vpack.c.b16 %v8812, %v8804
    %v9277 = vpack.c.b16 %v8813, %v8805
    %v9278 = vpack.c.b16 %v8814, %v8806
    %v9279 = vpack.c.b16 %v8815, %v8807
    %v9280 = vpack.c.b16 %v8816, %v8808
    %v9281 = vpack.c.b16 %v8825, %v8817
    %v9282 = vpack.c.b16 %v8826, %v8818
    %v9283 = vpack.c.b16 %v8827, %v8819
    %v9284 = vpack.c.b16 %v8828, %v8820
    %v9285 = vpack.c.b16 %v8829, %v8821
    %v9286 = vpack.c.b16 %v8830, %v8822
    %v9287 = vpack.c.b16 %v8831, %v8823
    %v9288 = vpack.c.b16 %v8832, %v8824
    %v9289 = vpack.c.b16 %v8841, %v8833
    %v9290 = vpack.c.b16 %v8842, %v8834
    %v9291 = vpack.c.b16 %v8843, %v8835
    %v9292 = vpack.c.b16 %v8844, %v8836
    %v9293 = vpack.c.b16 %v8845, %v8837
    %v9294 = vpack.c.b16 %v8846, %v8838
    %v9295 = vpack.c.b16 %v8847, %v8839
    %v9296 = vpack.c.b16 %v8848, %v8840
    %v9297 = vpack.c.b16 %v8857, %v8849
    %v9298 = vpack.c.b16 %v8858, %v8850
    %v9299 = vpack.c.b16 %v8859, %v8851
    %v9300 = vpack.c.b16 %v8860, %v8852
    %v9301 = vpack.c.b16 %v8861, %v8853
    %v9302 = vpack.c.b16 %v8862, %v8854
    %v9303 = vpack.c.b16 %v8863, %v8855
    %v9304 = vpack.c.b16 %v8864, %v8856
    %v9305 = vpack.c.b16 %v8873, %v8865
    %v9306 = vpack.c.b16 %v8874, %v8866
    %v9307 = vpack.c.b16 %v8875, %v8867
    %v9308 = vpack.c.b16 %v8876, %v8868
    %v9309 = vpack.c.b16 %v8877, %v8869
    %v9310 = vpack.c.b16 %v8878, %v8870
    %v9311 = vpack.c.b16 %v8879, %v8871
    %v9312 = vpack.c.b16 %v8880, %v8872
    %v9313 = vpack.c.b16 %v8889, %v8881
    %v9314 = vpack.c.b16 %v8890, %v8882
    %v9315 = vpack.c.b16 %v8891, %v8883
    %v9316 = vpack.c.b16 %v8892, %v8884
    %v9317 = vpack.c.b16 %v8893, %v8885
    %v9318 = vpack.c.b16 %v8894, %v8886
    %v9319 = vpack.c.b16 %v8895, %v8887
    %v9320 = vpack.c.b16 %v8896, %v8888
    %v9321 = vpack.c.b16 %v8905, %v8897
    %v9322 = vpack.c.b16 %v8906, %v8898
    %v9323 = vpack.c.b16 %v8907, %v8899
    %v9324 = vpack.c.b16 %v8908, %v8900
    %v9325 = vpack.c.b16 %v8909, %v8901
    %v9326 = vpack.c.b16 %v8910, %v8902
    %v9327 = vpack.c.b16 %v8911, %v8903
    %v9328 = vpack.c.b16 %v8912, %v8904
    %v9329 = vpack.c.b16 %v8921, %v8913
    %v9330 = vpack.c.b16 %v8922, %v8914
    %v9331 = vpack.c.b16 %v8923, %v8915
    %v9332 = vpack.c.b16 %v8924, %v8916
    %v9333 = vpack.c.b16 %v8925, %v8917
    %v9334 = vpack.c.b16 %v8926, %v8918
    %v9335 = vpack.c.b16 %v8927, %v8919
    %v9336 = vpack.c.b16 %v8928, %v8920
    %v9337 = vpack.c.b16 %v8937, %v8929
    %v9338 = vpack.c.b16 %v8938, %v8930
    %v9339 = vpack.c.b16 %v8939, %v8931
    %v9340 = vpack.c.b16 %v8940, %v8932
    %v9341 = vpack.c.b16 %v8941, %v8933
    %v9342 = vpack.c.b16 %v8942, %v8934
    %v9343 = vpack.c.b16 %v8943, %v8935
    %v9344 = vpack.c.b16 %v8944, %v8936
    %v9345 = vpack.c.b16 %v8953, %v8945
    %v9346 = vpack.c.b16 %v8954, %v8946
    %v9347 = vpack.c.b16 %v8955, %v8947
    %v9348 = vpack.c.b16 %v8956, %v8948
    %v9349 = vpack.c.b16 %v8957, %v8949
    %v9350 = vpack.c.b16 %v8958, %v8950
    %v9351 = vpack.c.b16 %v8959, %v8951
    %v9352 = vpack.c.b16 %v8960, %v8952
    %v9353 = vpack.c.b16 %v8969, %v8961
    %v9354 = vpack.c.b16 %v8970, %v8962
    %v9355 = vpack.c.b16 %v8971, %v8963
    %v9356 = vpack.c.b16 %v8972, %v8964
    %v9357 = vpack.c.b16 %v8973, %v8965
    %v9358 = vpack.c.b16 %v8974, %v8966
    %v9359 = vpack.c.b16 %v8975, %v8967
    %v9360 = vpack.c.b16 %v8976, %v8968
    %v9361 = vpack.c.b16 %v8985, %v8977
    %v9362 = vpack.c.b16 %v8986, %v8978
    %v9363 = vpack.c.b16 %v8987, %v8979
    %v9364 = vpack.c.b16 %v8988, %v8980
    %v9365 = vpack.c.b16 %v8989, %v8981
    %v9366 = vpack.c.b16 %v8990, %v8982
    %v9367 = vpack.c.b16 %v8991, %v8983
    %v9368 = vpack.c.b16 %v8992, %v8984
    %v9369 = vpack.c.b16 %v9001, %v8993
    %v9370 = vpack.c.b16 %v9002, %v8994
    %v9371 = vpack.c.b16 %v9003, %v8995
    %v9372 = vpack.c.b16 %v9004, %v8996
    %v9373 = vpack.c.b16 %v9005, %v8997
    %v9374 = vpack.c.b16 %v9006, %v8998
    %v9375 = vpack.c.b16 %v9007, %v8999
    %v9376 = vpack.c.b16 %v9008, %v9000
    %v9377 = vpack.c.b16 %v9017, %v9009
    %v9378 = vpack.c.b16 %v9018, %v9010
    %v9379 = vpack.c.b16 %v9019, %v9011
    %v9380 = vpack.c.b16 %v9020, %v9012
    %v9381 = vpack.c.b16 %v9021, %v9013
    %v9382 = vpack.c.b16 %v9022, %v9014
    %v9383 = vpack.c.b16 %v9023, %v9015
    %v9384 = vpack.c.b16 %v9024, %v9016
    %v9385 = vpack.c.b16 %v9033, %v9025
    %v9386 = vpack.c.b16 %v9034, %v9026
    %v9387 = vpack.c.b16 %v9035, %v9027
    %v9388 = vpack.c.b16 %v9036, %v9028
    %v9389 = vpack.c.b16 %v9037, %v9029
    %v9390 = vpack.c.b16 %v9038, %v9030
    %v9391 = vpack.c.b16 %v9039, %v9031
    %v9392 = vpack.c.b16 %v9040, %v9032
    %v9393 = vpack.c.b16 %v9049, %v9041
    %v9394 = vpack.c.b16 %v9050, %v9042
    %v9395 = vpack.c.b16 %v9051, %v9043
    %v9396 = vpack.c.b16 %v9052, %v9044
    %v9397 = vpack.c.b16 %v9053, %v9045
    %v9398 = vpack.c.b16 %v9054, %v9046
    %v9399 = vpack.c.b16 %v9055, %v9047
    %v9400 = vpack.c.b16 %v9056, %v9048
    %v9401 = vpack.c.b16 %v9065, %v9057
    %v9402 = vpack.c.b16 %v9066, %v9058
    %v9403 = vpack.c.b16 %v9067, %v9059
    %v9404 = vpack.c.b16 %v9068, %v9060
    %v9405 = vpack.c.b16 %v9069, %v9061
    %v9406 = vpack.c.b16 %v9070, %v9062
    %v9407 = vpack.c.b16 %v9071, %v9063
    %v9408 = vpack.c.b16 %v9072, %v9064
    %v9409 = vpack.c.b16 %v9081, %v9073
    %v9410 = vpack.c.b16 %v9082, %v9074
    %v9411 = vpack.c.b16 %v9083, %v9075
    %v9412 = vpack.c.b16 %v9084, %v9076
    %v9413 = vpack.c.b16 %v9085, %v9077
    %v9414 = vpack.c.b16 %v9086, %v9078
    %v9415 = vpack.c.b16 %v9087, %v9079
    %v9416 = vpack.c.b16 %v9088, %v9080
    %v9417 = vpack.c.b16 %v9097, %v9089
    %v9418 = vpack.c.b16 %v9098, %v9090
    %v9419 = vpack.c.b16 %v9099, %v9091
    %v9420 = vpack.c.b16 %v9100, %v9092
    %v9421 = vpack.c.b16 %v9101, %v9093
    %v9422 = vpack.c.b16 %v9102, %v9094
    %v9423 = vpack.c.b16 %v9103, %v9095
    %v9424 = vpack.c.b16 %v9104, %v9096
    %v9425 = vpack.c.b16 %v9113, %v9105
    %v9426 = vpack.c.b16 %v9114, %v9106
    %v9427 = vpack.c.b16 %v9115, %v9107
    %v9428 = vpack.c.b16 %v9116, %v9108
    %v9429 = vpack.c.b16 %v9117, %v9109
    %v9430 = vpack.c.b16 %v9118, %v9110
    %v9431 = vpack.c.b16 %v9119, %v9111
    %v9432 = vpack.c.b16 %v9120, %v9112
    %v9433 = vpack.c.b16 %v9129, %v9121
    %v9434 = vpack.c.b16 %v9130, %v9122
    %v9435 = vpack.c.b16 %v9131, %v9123
    %v9436 = vpack.c.b16 %v9132, %v9124
    %v9437 = vpack.c.b16 %v9133, %v9125
    %v9438 = vpack.c.b16 %v9134, %v9126
    %v9439 = vpack.c.b16 %v9135, %v9127
    %v9440 = vpack.c.b16 %v9136, %v9128
    %v9441 = vpack.c.b16 %v9145, %v9137
    %v9442 = vpack.c.b16 %v9146, %v9138
    %v9443 = vpack.c.b16 %v9147, %v9139
    %v9444 = vpack.c.b16 %v9148, %v9140
    %v9445 = vpack.c.b16 %v9149, %v9141
    %v9446 = vpack.c.b16 %v9150, %v9142
    %v9447 = vpack.c.b16 %v9151, %v9143
    %v9448 = vpack.c.b16 %v9152, %v9144
    %v9449 = vpack.c.b16 %v9161, %v9153
    %v9450 = vpack.c.b16 %v9162, %v9154
    %v9451 = vpack.c.b16 %v9163, %v9155
    %v9452 = vpack.c.b16 %v9164, %v9156
    %v9453 = vpack.c.b16 %v9165, %v9157
    %v9454 = vpack.c.b16 %v9166, %v9158
    %v9455 = vpack.c.b16 %v9167, %v9159
    %v9456 = vpack.c.b16 %v9168, %v9160
    %v9457 = vpack.c.b16 %v9177, %v9169
    %v9458 = vpack.c.b16 %v9178, %v9170
    %v9459 = vpack.c.b16 %v9179, %v9171
    %v9460 = vpack.c.b16 %v9180, %v9172
    %v9461 = vpack.c.b16 %v9181, %v9173
    %v9462 = vpack.c.b16 %v9182, %v9174
    %v9463 = vpack.c.b16 %v9183, %v9175
    %v9464 = vpack.c.b16 %v9184, %v9176
    %v9465 = vpack.c.b16 %v9193, %v9185
    %v9466 = vpack.c.b16 %v9194, %v9186
    %v9467 = vpack.c.b16 %v9195, %v9187
    %v9468 = vpack.c.b16 %v9196, %v9188
    %v9469 = vpack.c.b16 %v9197, %v9189
    %v9470 = vpack.c.b16 %v9198, %v9190
    %v9471 = vpack.c.b16 %v9199, %v9191
    %v9472 = vpack.c.b16 %v9200, %v9192
    %v9473 = vpack.c.b16 %v9209, %v9201
    %v9474 = vpack.c.b16 %v9210, %v9202
    %v9475 = vpack.c.b16 %v9211, %v9203
    %v9476 = vpack.c.b16 %v9212, %v9204
    %v9477 = vpack.c.b16 %v9213, %v9205
    %v9478 = vpack.c.b16 %v9214, %v9206
    %v9479 = vpack.c.b16 %v9215, %v9207
    %v9480 = vpack.c.b16 %v9216, %v9208
    %v9481 = vpack.c.b16 %v9225, %v9217
    %v9482 = vpack.c.b16 %v9226, %v9218
    %v9483 = vpack.c.b16 %v9227, %v9219
    %v9484 = vpack.c.b16 %v9228, %v9220
    %v9485 = vpack.c.b16 %v9229, %v9221
    %v9486 = vpack.c.b16 %v9230, %v9222
    %v9487 = vpack.c.b16 %v9231, %v9223
    %v9488 = vpack.c.b16 %v9232, %v9224
    %9745 = vmatpush.bf16.msra.mxu0 %v9289
    %9746 = vmatpush.bf16.msra.mxu0 %v9281
    %9747 = vmatpush.bf16.msra.mxu0 %v9273
    %9748 = vmatpush.bf16.msra.mxu0 %v9265
    %9749 = vmatpush.bf16.msra.mxu0 %v9257
    %9750 = vmatpush.bf16.msra.mxu0 %v9249
    %9751 = vmatpush.bf16.msra.mxu0 %v9241
    %9752 = vmatpush.bf16.msra.mxu0 %v9233
    %9753 = vmatmul.bf16.gmra.mxu0 %v3693
    %v9754 = vpop.f32.mrf.mxu0
    %v9755 = vadd.f32 0.0, %v9754
    %v9756 = vpop.f32.mrf.mxu0
    %v9757 = vadd.f32 0.0, %v9756
    %9758 = vdwg.mxu0
    %9759 = vmatpush.bf16.msra.mxu0 %v9353
    %9760 = vmatpush.bf16.msra.mxu0 %v9345
    %9761 = vmatpush.bf16.msra.mxu0 %v9337
    %9762 = vmatpush.bf16.msra.mxu0 %v9329
    %9763 = vmatpush.bf16.msra.mxu0 %v9321
    %9764 = vmatpush.bf16.msra.mxu0 %v9313
    %9765 = vmatpush.bf16.msra.mxu0 %v9305
    %9766 = vmatpush.bf16.msra.mxu0 %v9297
    %9767 = vmatmul.bf16.gmra.mxu0 %v3694
    %v9768 = vpop.f32.mrf.mxu0
    %v9769 = vadd.f32 %v9755, %v9768
    %v9770 = vpop.f32.mrf.mxu0
    %v9771 = vadd.f32 %v9757, %v9770
    %9772 = vdwg.mxu0
    %9773 = vmatpush.bf16.msra.mxu0 %v9417
    %9774 = vmatpush.bf16.msra.mxu0 %v9409
    %9775 = vmatpush.bf16.msra.mxu0 %v9401
    %9776 = vmatpush.bf16.msra.mxu0 %v9393
    %9777 = vmatpush.bf16.msra.mxu0 %v9385
    %9778 = vmatpush.bf16.msra.mxu0 %v9377
    %9779 = vmatpush.bf16.msra.mxu0 %v9369
    %9780 = vmatpush.bf16.msra.mxu0 %v9361
    %9781 = vmatmul.bf16.gmra.mxu0 %v3695
    %v9782 = vpop.f32.mrf.mxu0
    %v9783 = vadd.f32 %v9769, %v9782
    %v9784 = vpop.f32.mrf.mxu0
    %v9785 = vadd.f32 %v9771, %v9784
    %9786 = vdwg.mxu0
    %9787 = vmatpush.bf16.msra.mxu0 %v9481
    %9788 = vmatpush.bf16.msra.mxu0 %v9473
    %9789 = vmatpush.bf16.msra.mxu0 %v9465
    %9790 = vmatpush.bf16.msra.mxu0 %v9457
    %9791 = vmatpush.bf16.msra.mxu0 %v9449
    %9792 = vmatpush.bf16.msra.mxu0 %v9441
    %9793 = vmatpush.bf16.msra.mxu0 %v9433
    %9794 = vmatpush.bf16.msra.mxu0 %v9425
    %9795 = vmatmul.bf16.gmra.mxu0 %v3696
    %v9796 = vpop.f32.mrf.mxu0
    %v9797 = vadd.f32 %v9783, %v9796
    %v9798 = vpop.f32.mrf.mxu0
    %v9799 = vadd.f32 %v9785, %v9798
    %9800 = vdwg.mxu0
    %9801 = vmatpush.bf16.msra.mxu0 %v9290
    %9802 = vmatpush.bf16.msra.mxu0 %v9282
    %9803 = vmatpush.bf16.msra.mxu0 %v9274
    %9804 = vmatpush.bf16.msra.mxu0 %v9266
    %9805 = vmatpush.bf16.msra.mxu0 %v9258
    %9806 = vmatpush.bf16.msra.mxu0 %v9250
    %9807 = vmatpush.bf16.msra.mxu0 %v9242
    %9808 = vmatpush.bf16.msra.mxu0 %v9234
    %9809 = vmatmul.bf16.gmra.mxu0 %v3693
    %v9810 = vpop.f32.mrf.mxu0
    %v9811 = vadd.f32 0.0, %v9810
    %v9812 = vpop.f32.mrf.mxu0
    %v9813 = vadd.f32 0.0, %v9812
    %9814 = vdwg.mxu0
    %9815 = vmatpush.bf16.msra.mxu0 %v9354
    %9816 = vmatpush.bf16.msra.mxu0 %v9346
    %9817 = vmatpush.bf16.msra.mxu0 %v9338
    %9818 = vmatpush.bf16.msra.mxu0 %v9330
    %9819 = vmatpush.bf16.msra.mxu0 %v9322
    %9820 = vmatpush.bf16.msra.mxu0 %v9314
    %9821 = vmatpush.bf16.msra.mxu0 %v9306
    %9822 = vmatpush.bf16.msra.mxu0 %v9298
    %9823 = vmatmul.bf16.gmra.mxu0 %v3694
    %v9824 = vpop.f32.mrf.mxu0
    %v9825 = vadd.f32 %v9811, %v9824
    %v9826 = vpop.f32.mrf.mxu0
    %v9827 = vadd.f32 %v9813, %v9826
    %9828 = vdwg.mxu0
    %9829 = vmatpush.bf16.msra.mxu0 %v9418
    %9830 = vmatpush.bf16.msra.mxu0 %v9410
    %9831 = vmatpush.bf16.msra.mxu0 %v9402
    %9832 = vmatpush.bf16.msra.mxu0 %v9394
    %9833 = vmatpush.bf16.msra.mxu0 %v9386
    %9834 = vmatpush.bf16.msra.mxu0 %v9378
    %9835 = vmatpush.bf16.msra.mxu0 %v9370
    %9836 = vmatpush.bf16.msra.mxu0 %v9362
    %9837 = vmatmul.bf16.gmra.mxu0 %v3695
    %v9838 = vpop.f32.mrf.mxu0
    %v9839 = vadd.f32 %v9825, %v9838
    %v9840 = vpop.f32.mrf.mxu0
    %v9841 = vadd.f32 %v9827, %v9840
    %9842 = vdwg.mxu0
    %9843 = vmatpush.bf16.msra.mxu0 %v9482
    %9844 = vmatpush.bf16.msra.mxu0 %v9474
    %9845 = vmatpush.bf16.msra.mxu0 %v9466
    %9846 = vmatpush.bf16.msra.mxu0 %v9458
    %9847 = vmatpush.bf16.msra.mxu0 %v9450
    %9848 = vmatpush.bf16.msra.mxu0 %v9442
    %9849 = vmatpush.bf16.msra.mxu0 %v9434
    %9850 = vmatpush.bf16.msra.mxu0 %v9426
    %9851 = vmatmul.bf16.gmra.mxu0 %v3696
    %v9852 = vpop.f32.mrf.mxu0
    %v9853 = vadd.f32 %v9839, %v9852
    %v9854 = vpop.f32.mrf.mxu0
    %v9855 = vadd.f32 %v9841, %v9854
    %9856 = vdwg.mxu0
    %9857 = vmatpush.bf16.msra.mxu0 %v9291
    %9858 = vmatpush.bf16.msra.mxu0 %v9283
    %9859 = vmatpush.bf16.msra.mxu0 %v9275
    %9860 = vmatpush.bf16.msra.mxu0 %v9267
    %9861 = vmatpush.bf16.msra.mxu0 %v9259
    %9862 = vmatpush.bf16.msra.mxu0 %v9251
    %9863 = vmatpush.bf16.msra.mxu0 %v9243
    %9864 = vmatpush.bf16.msra.mxu0 %v9235
    %9865 = vmatmul.bf16.gmra.mxu0 %v3693
    %v9866 = vpop.f32.mrf.mxu0
    %v9867 = vadd.f32 0.0, %v9866
    %v9868 = vpop.f32.mrf.mxu0
    %v9869 = vadd.f32 0.0, %v9868
    %9870 = vdwg.mxu0
    %9871 = vmatpush.bf16.msra.mxu0 %v9355
    %9872 = vmatpush.bf16.msra.mxu0 %v9347
    %9873 = vmatpush.bf16.msra.mxu0 %v9339
    %9874 = vmatpush.bf16.msra.mxu0 %v9331
    %9875 = vmatpush.bf16.msra.mxu0 %v9323
    %9876 = vmatpush.bf16.msra.mxu0 %v9315
    %9877 = vmatpush.bf16.msra.mxu0 %v9307
    %9878 = vmatpush.bf16.msra.mxu0 %v9299
    %9879 = vmatmul.bf16.gmra.mxu0 %v3694
    %v9880 = vpop.f32.mrf.mxu0
    %v9881 = vadd.f32 %v9867, %v9880
    %v9882 = vpop.f32.mrf.mxu0
    %v9883 = vadd.f32 %v9869, %v9882
    %9884 = vdwg.mxu0
    %9885 = vmatpush.bf16.msra.mxu0 %v9419
    %9886 = vmatpush.bf16.msra.mxu0 %v9411
    %9887 = vmatpush.bf16.msra.mxu0 %v9403
    %9888 = vmatpush.bf16.msra.mxu0 %v9395
    %9889 = vmatpush.bf16.msra.mxu0 %v9387
    %9890 = vmatpush.bf16.msra.mxu0 %v9379
    %9891 = vmatpush.bf16.msra.mxu0 %v9371
    %9892 = vmatpush.bf16.msra.mxu0 %v9363
    %9893 = vmatmul.bf16.gmra.mxu0 %v3695
    %v9894 = vpop.f32.mrf.mxu0
    %v9895 = vadd.f32 %v9881, %v9894
    %v9896 = vpop.f32.mrf.mxu0
    %v9897 = vadd.f32 %v9883, %v9896
    %9898 = vdwg.mxu0
    %9899 = vmatpush.bf16.msra.mxu0 %v9483
    %9900 = vmatpush.bf16.msra.mxu0 %v9475
    %9901 = vmatpush.bf16.msra.mxu0 %v9467
    %9902 = vmatpush.bf16.msra.mxu0 %v9459
    %9903 = vmatpush.bf16.msra.mxu0 %v9451
    %9904 = vmatpush.bf16.msra.mxu0 %v9443
    %9905 = vmatpush.bf16.msra.mxu0 %v9435
    %9906 = vmatpush.bf16.msra.mxu0 %v9427
    %9907 = vmatmul.bf16.gmra.mxu0 %v3696
    %v9908 = vpop.f32.mrf.mxu0
    %v9909 = vadd.f32 %v9895, %v9908
    %v9910 = vpop.f32.mrf.mxu0
    %v9911 = vadd.f32 %v9897, %v9910
    %9912 = vdwg.mxu0
    %9913 = vmatpush.bf16.msra.mxu0 %v9292
    %9914 = vmatpush.bf16.msra.mxu0 %v9284
    %9915 = vmatpush.bf16.msra.mxu0 %v9276
    %9916 = vmatpush.bf16.msra.mxu0 %v9268
    %9917 = vmatpush.bf16.msra.mxu0 %v9260
    %9918 = vmatpush.bf16.msra.mxu0 %v9252
    %9919 = vmatpush.bf16.msra.mxu0 %v9244
    %9920 = vmatpush.bf16.msra.mxu0 %v9236
    %9921 = vmatmul.bf16.gmra.mxu0 %v3693
    %v9922 = vpop.f32.mrf.mxu0
    %v9923 = vadd.f32 0.0, %v9922
    %v9924 = vpop.f32.mrf.mxu0
    %v9925 = vadd.f32 0.0, %v9924
    %9926 = vdwg.mxu0
    %9927 = vmatpush.bf16.msra.mxu0 %v9356
    %9928 = vmatpush.bf16.msra.mxu0 %v9348
    %9929 = vmatpush.bf16.msra.mxu0 %v9340
    %9930 = vmatpush.bf16.msra.mxu0 %v9332
    %9931 = vmatpush.bf16.msra.mxu0 %v9324
    %9932 = vmatpush.bf16.msra.mxu0 %v9316
    %9933 = vmatpush.bf16.msra.mxu0 %v9308
    %9934 = vmatpush.bf16.msra.mxu0 %v9300
    %9935 = vmatmul.bf16.gmra.mxu0 %v3694
    %v9936 = vpop.f32.mrf.mxu0
    %v9937 = vadd.f32 %v9923, %v9936
    %v9938 = vpop.f32.mrf.mxu0
    %v9939 = vadd.f32 %v9925, %v9938
    %9940 = vdwg.mxu0
    %9941 = vmatpush.bf16.msra.mxu0 %v9420
    %9942 = vmatpush.bf16.msra.mxu0 %v9412
    %9943 = vmatpush.bf16.msra.mxu0 %v9404
    %9944 = vmatpush.bf16.msra.mxu0 %v9396
    %9945 = vmatpush.bf16.msra.mxu0 %v9388
    %9946 = vmatpush.bf16.msra.mxu0 %v9380
    %9947 = vmatpush.bf16.msra.mxu0 %v9372
    %9948 = vmatpush.bf16.msra.mxu0 %v9364
    %9949 = vmatmul.bf16.gmra.mxu0 %v3695
    %v9950 = vpop.f32.mrf.mxu0
    %v9951 = vadd.f32 %v9937, %v9950
    %v9952 = vpop.f32.mrf.mxu0
    %v9953 = vadd.f32 %v9939, %v9952
    %9954 = vdwg.mxu0
    %9955 = vmatpush.bf16.msra.mxu0 %v9484
    %9956 = vmatpush.bf16.msra.mxu0 %v9476
    %9957 = vmatpush.bf16.msra.mxu0 %v9468
    %9958 = vmatpush.bf16.msra.mxu0 %v9460
    %9959 = vmatpush.bf16.msra.mxu0 %v9452
    %9960 = vmatpush.bf16.msra.mxu0 %v9444
    %9961 = vmatpush.bf16.msra.mxu0 %v9436
    %9962 = vmatpush.bf16.msra.mxu0 %v9428
    %9963 = vmatmul.bf16.gmra.mxu0 %v3696
    %v9964 = vpop.f32.mrf.mxu0
    %v9965 = vadd.f32 %v9951, %v9964
    %v9966 = vpop.f32.mrf.mxu0
    %v9967 = vadd.f32 %v9953, %v9966
    %9968 = vdwg.mxu0
    %9969 = vmatpush.bf16.msra.mxu0 %v9293
    %9970 = vmatpush.bf16.msra.mxu0 %v9285
    %9971 = vmatpush.bf16.msra.mxu0 %v9277
    %9972 = vmatpush.bf16.msra.mxu0 %v9269
    %9973 = vmatpush.bf16.msra.mxu0 %v9261
    %9974 = vmatpush.bf16.msra.mxu0 %v9253
    %9975 = vmatpush.bf16.msra.mxu0 %v9245
    %9976 = vmatpush.bf16.msra.mxu0 %v9237
    %9977 = vmatmul.bf16.gmra.mxu0 %v3693
    %v9978 = vpop.f32.mrf.mxu0
    %v9979 = vadd.f32 0.0, %v9978
    %v9980 = vpop.f32.mrf.mxu0
    %v9981 = vadd.f32 0.0, %v9980
    %9982 = vdwg.mxu0
    %9983 = vmatpush.bf16.msra.mxu0 %v9357
    %9984 = vmatpush.bf16.msra.mxu0 %v9349
    %9985 = vmatpush.bf16.msra.mxu0 %v9341
    %9986 = vmatpush.bf16.msra.mxu0 %v9333
    %9987 = vmatpush.bf16.msra.mxu0 %v9325
    %9988 = vmatpush.bf16.msra.mxu0 %v9317
    %9989 = vmatpush.bf16.msra.mxu0 %v9309
    %9990 = vmatpush.bf16.msra.mxu0 %v9301
    %9991 = vmatmul.bf16.gmra.mxu0 %v3694
    %v9992 = vpop.f32.mrf.mxu0
    %v9993 = vadd.f32 %v9979, %v9992
    %v9994 = vpop.f32.mrf.mxu0
    %v9995 = vadd.f32 %v9981, %v9994
    %9996 = vdwg.mxu0
    %9997 = vmatpush.bf16.msra.mxu0 %v9421
    %9998 = vmatpush.bf16.msra.mxu0 %v9413
    %9999 = vmatpush.bf16.msra.mxu0 %v9405
    %10000 = vmatpush.bf16.msra.mxu0 %v9397
    %10001 = vmatpush.bf16.msra.mxu0 %v9389
    %10002 = vmatpush.bf16.msra.mxu0 %v9381
    %10003 = vmatpush.bf16.msra.mxu0 %v9373
    %10004 = vmatpush.bf16.msra.mxu0 %v9365
    %10005 = vmatmul.bf16.gmra.mxu0 %v3695
    %v10006 = vpop.f32.mrf.mxu0
    %v10007 = vadd.f32 %v9993, %v10006
    %v10008 = vpop.f32.mrf.mxu0
    %v10009 = vadd.f32 %v9995, %v10008
    %10010 = vdwg.mxu0
    %10011 = vmatpush.bf16.msra.mxu0 %v9485
    %10012 = vmatpush.bf16.msra.mxu0 %v9477
    %10013 = vmatpush.bf16.msra.mxu0 %v9469
    %10014 = vmatpush.bf16.msra.mxu0 %v9461
    %10015 = vmatpush.bf16.msra.mxu0 %v9453
    %10016 = vmatpush.bf16.msra.mxu0 %v9445
    %10017 = vmatpush.bf16.msra.mxu0 %v9437
    %10018 = vmatpush.bf16.msra.mxu0 %v9429
    %10019 = vmatmul.bf16.gmra.mxu0 %v3696
    %v10020 = vpop.f32.mrf.mxu0
    %v10021 = vadd.f32 %v10007, %v10020
    %v10022 = vpop.f32.mrf.mxu0
    %v10023 = vadd.f32 %v10009, %v10022
    %10024 = vdwg.mxu0
    %10025 = vmatpush.bf16.msra.mxu0 %v9294
    %10026 = vmatpush.bf16.msra.mxu0 %v9286
    %10027 = vmatpush.bf16.msra.mxu0 %v9278
    %10028 = vmatpush.bf16.msra.mxu0 %v9270
    %10029 = vmatpush.bf16.msra.mxu0 %v9262
    %10030 = vmatpush.bf16.msra.mxu0 %v9254
    %10031 = vmatpush.bf16.msra.mxu0 %v9246
    %10032 = vmatpush.bf16.msra.mxu0 %v9238
    %10033 = vmatmul.bf16.gmra.mxu0 %v3693
    %v10034 = vpop.f32.mrf.mxu0
    %v10035 = vadd.f32 0.0, %v10034
    %v10036 = vpop.f32.mrf.mxu0
    %v10037 = vadd.f32 0.0, %v10036
    %10038 = vdwg.mxu0
    %10039 = vmatpush.bf16.msra.mxu0 %v9358
    %10040 = vmatpush.bf16.msra.mxu0 %v9350
    %10041 = vmatpush.bf16.msra.mxu0 %v9342
    %10042 = vmatpush.bf16.msra.mxu0 %v9334
    %10043 = vmatpush.bf16.msra.mxu0 %v9326
    %10044 = vmatpush.bf16.msra.mxu0 %v9318
    %10045 = vmatpush.bf16.msra.mxu0 %v9310
    %10046 = vmatpush.bf16.msra.mxu0 %v9302
    %10047 = vmatmul.bf16.gmra.mxu0 %v3694
    %v10048 = vpop.f32.mrf.mxu0
    %v10049 = vadd.f32 %v10035, %v10048
    %v10050 = vpop.f32.mrf.mxu0
    %v10051 = vadd.f32 %v10037, %v10050
    %10052 = vdwg.mxu0
    %10053 = vmatpush.bf16.msra.mxu0 %v9422
    %10054 = vmatpush.bf16.msra.mxu0 %v9414
    %10055 = vmatpush.bf16.msra.mxu0 %v9406
    %10056 = vmatpush.bf16.msra.mxu0 %v9398
    %10057 = vmatpush.bf16.msra.mxu0 %v9390
    %10058 = vmatpush.bf16.msra.mxu0 %v9382
    %10059 = vmatpush.bf16.msra.mxu0 %v9374
    %10060 = vmatpush.bf16.msra.mxu0 %v9366
    %10061 = vmatmul.bf16.gmra.mxu0 %v3695
    %v10062 = vpop.f32.mrf.mxu0
    %v10063 = vadd.f32 %v10049, %v10062
    %v10064 = vpop.f32.mrf.mxu0
    %v10065 = vadd.f32 %v10051, %v10064
    %10066 = vdwg.mxu0
    %10067 = vmatpush.bf16.msra.mxu0 %v9486
    %10068 = vmatpush.bf16.msra.mxu0 %v9478
    %10069 = vmatpush.bf16.msra.mxu0 %v9470
    %10070 = vmatpush.bf16.msra.mxu0 %v9462
    %10071 = vmatpush.bf16.msra.mxu0 %v9454
    %10072 = vmatpush.bf16.msra.mxu0 %v9446
    %10073 = vmatpush.bf16.msra.mxu0 %v9438
    %10074 = vmatpush.bf16.msra.mxu0 %v9430
    %10075 = vmatmul.bf16.gmra.mxu0 %v3696
    %v10076 = vpop.f32.mrf.mxu0
    %v10077 = vadd.f32 %v10063, %v10076
    %v10078 = vpop.f32.mrf.mxu0
    %v10079 = vadd.f32 %v10065, %v10078
    %10080 = vdwg.mxu0
    %10081 = vmatpush.bf16.msra.mxu0 %v9295
    %10082 = vmatpush.bf16.msra.mxu0 %v9287
    %10083 = vmatpush.bf16.msra.mxu0 %v9279
    %10084 = vmatpush.bf16.msra.mxu0 %v9271
    %10085 = vmatpush.bf16.msra.mxu0 %v9263
    %10086 = vmatpush.bf16.msra.mxu0 %v9255
    %10087 = vmatpush.bf16.msra.mxu0 %v9247
    %10088 = vmatpush.bf16.msra.mxu0 %v9239
    %10089 = vmatmul.bf16.gmra.mxu0 %v3693
    %v10090 = vpop.f32.mrf.mxu0
    %v10091 = vadd.f32 0.0, %v10090
    %v10092 = vpop.f32.mrf.mxu0
    %v10093 = vadd.f32 0.0, %v10092
    %10094 = vdwg.mxu0
    %10095 = vmatpush.bf16.msra.mxu0 %v9359
    %10096 = vmatpush.bf16.msra.mxu0 %v9351
    %10097 = vmatpush.bf16.msra.mxu0 %v9343
    %10098 = vmatpush.bf16.msra.mxu0 %v9335
    %10099 = vmatpush.bf16.msra.mxu0 %v9327
    %10100 = vmatpush.bf16.msra.mxu0 %v9319
    %10101 = vmatpush.bf16.msra.mxu0 %v9311
    %10102 = vmatpush.bf16.msra.mxu0 %v9303
    %10103 = vmatmul.bf16.gmra.mxu0 %v3694
    %v10104 = vpop.f32.mrf.mxu0
    %v10105 = vadd.f32 %v10091, %v10104
    %v10106 = vpop.f32.mrf.mxu0
    %v10107 = vadd.f32 %v10093, %v10106
    %10108 = vdwg.mxu0
    %10109 = vmatpush.bf16.msra.mxu0 %v9423
    %10110 = vmatpush.bf16.msra.mxu0 %v9415
    %10111 = vmatpush.bf16.msra.mxu0 %v9407
    %10112 = vmatpush.bf16.msra.mxu0 %v9399
    %10113 = vmatpush.bf16.msra.mxu0 %v9391
    %10114 = vmatpush.bf16.msra.mxu0 %v9383
    %10115 = vmatpush.bf16.msra.mxu0 %v9375
    %10116 = vmatpush.bf16.msra.mxu0 %v9367
    %10117 = vmatmul.bf16.gmra.mxu0 %v3695
    %v10118 = vpop.f32.mrf.mxu0
    %v10119 = vadd.f32 %v10105, %v10118
    %v10120 = vpop.f32.mrf.mxu0
    %v10121 = vadd.f32 %v10107, %v10120
    %10122 = vdwg.mxu0
    %10123 = vmatpush.bf16.msra.mxu0 %v9487
    %10124 = vmatpush.bf16.msra.mxu0 %v9479
    %10125 = vmatpush.bf16.msra.mxu0 %v9471
    %10126 = vmatpush.bf16.msra.mxu0 %v9463
    %10127 = vmatpush.bf16.msra.mxu0 %v9455
    %10128 = vmatpush.bf16.msra.mxu0 %v9447
    %10129 = vmatpush.bf16.msra.mxu0 %v9439
    %10130 = vmatpush.bf16.msra.mxu0 %v9431
    %10131 = vmatmul.bf16.gmra.mxu0 %v3696
    %v10132 = vpop.f32.mrf.mxu0
    %v10133 = vadd.f32 %v10119, %v10132
    %v10134 = vpop.f32.mrf.mxu0
    %v10135 = vadd.f32 %v10121, %v10134
    %10136 = vdwg.mxu0
    %10137 = vmatpush.bf16.msra.mxu0 %v9296
    %10138 = vmatpush.bf16.msra.mxu0 %v9288
    %10139 = vmatpush.bf16.msra.mxu0 %v9280
    %10140 = vmatpush.bf16.msra.mxu0 %v9272
    %10141 = vmatpush.bf16.msra.mxu0 %v9264
    %10142 = vmatpush.bf16.msra.mxu0 %v9256
    %10143 = vmatpush.bf16.msra.mxu0 %v9248
    %10144 = vmatpush.bf16.msra.mxu0 %v9240
    %10145 = vmatmul.bf16.gmra.mxu0 %v3693
    %v10146 = vpop.f32.mrf.mxu0
    %v10147 = vadd.f32 0.0, %v10146
    %v10148 = vpop.f32.mrf.mxu0
    %v10149 = vadd.f32 0.0, %v10148
    %10150 = vdwg.mxu0
    %10151 = vmatpush.bf16.msra.mxu0 %v9360
    %10152 = vmatpush.bf16.msra.mxu0 %v9352
    %10153 = vmatpush.bf16.msra.mxu0 %v9344
    %10154 = vmatpush.bf16.msra.mxu0 %v9336
    %10155 = vmatpush.bf16.msra.mxu0 %v9328
    %10156 = vmatpush.bf16.msra.mxu0 %v9320
    %10157 = vmatpush.bf16.msra.mxu0 %v9312
    %10158 = vmatpush.bf16.msra.mxu0 %v9304
    %10159 = vmatmul.bf16.gmra.mxu0 %v3694
    %v10160 = vpop.f32.mrf.mxu0
    %v10161 = vadd.f32 %v10147, %v10160
    %v10162 = vpop.f32.mrf.mxu0
    %v10163 = vadd.f32 %v10149, %v10162
    %10164 = vdwg.mxu0
    %10165 = vmatpush.bf16.msra.mxu0 %v9424
    %10166 = vmatpush.bf16.msra.mxu0 %v9416
    %10167 = vmatpush.bf16.msra.mxu0 %v9408
    %10168 = vmatpush.bf16.msra.mxu0 %v9400
    %10169 = vmatpush.bf16.msra.mxu0 %v9392
    %10170 = vmatpush.bf16.msra.mxu0 %v9384
    %10171 = vmatpush.bf16.msra.mxu0 %v9376
    %10172 = vmatpush.bf16.msra.mxu0 %v9368
    %10173 = vmatmul.bf16.gmra.mxu0 %v3695
    %v10174 = vpop.f32.mrf.mxu0
    %v10175 = vadd.f32 %v10161, %v10174
    %v10176 = vpop.f32.mrf.mxu0
    %v10177 = vadd.f32 %v10163, %v10176
    %10178 = vdwg.mxu0
    %10179 = vmatpush.bf16.msra.mxu0 %v9488
    %10180 = vmatpush.bf16.msra.mxu0 %v9480
    %10181 = vmatpush.bf16.msra.mxu0 %v9472
    %10182 = vmatpush.bf16.msra.mxu0 %v9464
    %10183 = vmatpush.bf16.msra.mxu0 %v9456
    %10184 = vmatpush.bf16.msra.mxu0 %v9448
    %10185 = vmatpush.bf16.msra.mxu0 %v9440
    %10186 = vmatpush.bf16.msra.mxu0 %v9432
    %10187 = vmatmul.bf16.gmra.mxu0 %v3696
    %v10188 = vpop.f32.mrf.mxu0
    %v10189 = vadd.f32 %v10175, %v10188
    %v10190 = vpop.f32.mrf.mxu0
    %v10191 = vadd.f32 %v10177, %v10190
    %10192 = vdwg.mxu0
    %v10193 = vadd.f32 %v8192, %v9797
    %v10194 = vadd.f32 %v8193, %v9853
    %v10195 = vadd.f32 %v8194, %v9909
    %v10196 = vadd.f32 %v8195, %v9965
    %v10197 = vadd.f32 %v8196, %v10021
    %v10198 = vadd.f32 %v8197, %v10077
    %v10199 = vadd.f32 %v8198, %v10133
    %v10200 = vadd.f32 %v8199, %v10189
    %v10201 = vadd.f32 %v8200, %v9799
    %v10202 = vadd.f32 %v8201, %v9855
    %v10203 = vadd.f32 %v8202, %v9911
    %v10204 = vadd.f32 %v8203, %v9967
    %v10205 = vadd.f32 %v8204, %v10023
    %v10206 = vadd.f32 %v8205, %v10079
    %v10207 = vadd.f32 %v8206, %v10135
    %v10208 = vadd.f32 %v8207, %v10191
    %s10209 = scalar_lea.vmem [#allocation9], 6144
    %v10210 = vld [vmem:[%s10209] sm:$0xff]
    %v10211 = vld [vmem:[%s10209 + $0x8] sm:$0xff]
    %v10212 = vld [vmem:[%s10209 + $0x10] sm:$0xff]
    %v10213 = vld [vmem:[%s10209 + $0x18] sm:$0xff]
    %v10214 = vld [vmem:[%s10209 + $0x20] sm:$0xff]
    %v10215 = vld [vmem:[%s10209 + $0x28] sm:$0xff]
    %v10216 = vld [vmem:[%s10209 + $0x30] sm:$0xff]
    %v10217 = vld [vmem:[%s10209 + $0x38] sm:$0xff]
    %v10218 = vld [vmem:[%s10209 + $0x40] sm:$0xff]
    %v10219 = vld [vmem:[%s10209 + $0x48] sm:$0xff]
    %v10220 = vld [vmem:[%s10209 + $0x50] sm:$0xff]
    %v10221 = vld [vmem:[%s10209 + $0x58] sm:$0xff]
    %v10222 = vld [vmem:[%s10209 + $0x60] sm:$0xff]
    %v10223 = vld [vmem:[%s10209 + $0x68] sm:$0xff]
    %v10224 = vld [vmem:[%s10209 + $0x70] sm:$0xff]
    %v10225 = vld [vmem:[%s10209 + $0x78] sm:$0xff]
    %v10226 = vld [vmem:[%s10209 + $0x80] sm:$0xff]
    %v10227 = vld [vmem:[%s10209 + $0x88] sm:$0xff]
    %v10228 = vld [vmem:[%s10209 + $0x90] sm:$0xff]
    %v10229 = vld [vmem:[%s10209 + $0x98] sm:$0xff]
    %v10230 = vld [vmem:[%s10209 + $0xa0] sm:$0xff]
    %v10231 = vld [vmem:[%s10209 + $0xa8] sm:$0xff]
    %v10232 = vld [vmem:[%s10209 + $0xb0] sm:$0xff]
    %v10233 = vld [vmem:[%s10209 + $0xb8] sm:$0xff]
    %v10234 = vld [vmem:[%s10209 + $0xc0] sm:$0xff]
    %v10235 = vld [vmem:[%s10209 + $0xc8] sm:$0xff]
    %v10236 = vld [vmem:[%s10209 + $0xd0] sm:$0xff]
    %v10237 = vld [vmem:[%s10209 + $0xd8] sm:$0xff]
    %v10238 = vld [vmem:[%s10209 + $0xe0] sm:$0xff]
    %v10239 = vld [vmem:[%s10209 + $0xe8] sm:$0xff]
    %v10240 = vld [vmem:[%s10209 + $0xf0] sm:$0xff]
    %v10241 = vld [vmem:[%s10209 + $0xf8] sm:$0xff]
    %v10242 = vld [vmem:[%s10209 + $0x100] sm:$0xff]
    %v10243 = vld [vmem:[%s10209 + $0x108] sm:$0xff]
    %v10244 = vld [vmem:[%s10209 + $0x110] sm:$0xff]
    %v10245 = vld [vmem:[%s10209 + $0x118] sm:$0xff]
    %v10246 = vld [vmem:[%s10209 + $0x120] sm:$0xff]
    %v10247 = vld [vmem:[%s10209 + $0x128] sm:$0xff]
    %v10248 = vld [vmem:[%s10209 + $0x130] sm:$0xff]
    %v10249 = vld [vmem:[%s10209 + $0x138] sm:$0xff]
    %v10250 = vld [vmem:[%s10209 + $0x140] sm:$0xff]
    %v10251 = vld [vmem:[%s10209 + $0x148] sm:$0xff]
    %v10252 = vld [vmem:[%s10209 + $0x150] sm:$0xff]
    %v10253 = vld [vmem:[%s10209 + $0x158] sm:$0xff]
    %v10254 = vld [vmem:[%s10209 + $0x160] sm:$0xff]
    %v10255 = vld [vmem:[%s10209 + $0x168] sm:$0xff]
    %v10256 = vld [vmem:[%s10209 + $0x170] sm:$0xff]
    %v10257 = vld [vmem:[%s10209 + $0x178] sm:$0xff]
    %v10258 = vld [vmem:[%s10209 + $0x180] sm:$0xff]
    %v10259 = vld [vmem:[%s10209 + $0x188] sm:$0xff]
    %v10260 = vld [vmem:[%s10209 + $0x190] sm:$0xff]
    %v10261 = vld [vmem:[%s10209 + $0x198] sm:$0xff]
    %v10262 = vld [vmem:[%s10209 + $0x1a0] sm:$0xff]
    %v10263 = vld [vmem:[%s10209 + $0x1a8] sm:$0xff]
    %v10264 = vld [vmem:[%s10209 + $0x1b0] sm:$0xff]
    %v10265 = vld [vmem:[%s10209 + $0x1b8] sm:$0xff]
    %v10266 = vld [vmem:[%s10209 + $0x1c0] sm:$0xff]
    %v10267 = vld [vmem:[%s10209 + $0x1c8] sm:$0xff]
    %v10268 = vld [vmem:[%s10209 + $0x1d0] sm:$0xff]
    %v10269 = vld [vmem:[%s10209 + $0x1d8] sm:$0xff]
    %v10270 = vld [vmem:[%s10209 + $0x1e0] sm:$0xff]
    %v10271 = vld [vmem:[%s10209 + $0x1e8] sm:$0xff]
    %v10272 = vld [vmem:[%s10209 + $0x1f0] sm:$0xff]
    %v10273 = vld [vmem:[%s10209 + $0x1f8] sm:$0xff]
    %v10274 = vld [vmem:[%s10209 + $0x200] sm:$0xff]
    %v10275 = vld [vmem:[%s10209 + $0x208] sm:$0xff]
    %v10276 = vld [vmem:[%s10209 + $0x210] sm:$0xff]
    %v10277 = vld [vmem:[%s10209 + $0x218] sm:$0xff]
    %v10278 = vld [vmem:[%s10209 + $0x220] sm:$0xff]
    %v10279 = vld [vmem:[%s10209 + $0x228] sm:$0xff]
    %v10280 = vld [vmem:[%s10209 + $0x230] sm:$0xff]
    %v10281 = vld [vmem:[%s10209 + $0x238] sm:$0xff]
    %v10282 = vld [vmem:[%s10209 + $0x240] sm:$0xff]
    %v10283 = vld [vmem:[%s10209 + $0x248] sm:$0xff]
    %v10284 = vld [vmem:[%s10209 + $0x250] sm:$0xff]
    %v10285 = vld [vmem:[%s10209 + $0x258] sm:$0xff]
    %v10286 = vld [vmem:[%s10209 + $0x260] sm:$0xff]
    %v10287 = vld [vmem:[%s10209 + $0x268] sm:$0xff]
    %v10288 = vld [vmem:[%s10209 + $0x270] sm:$0xff]
    %v10289 = vld [vmem:[%s10209 + $0x278] sm:$0xff]
    %v10290 = vld [vmem:[%s10209 + $0x280] sm:$0xff]
    %v10291 = vld [vmem:[%s10209 + $0x288] sm:$0xff]
    %v10292 = vld [vmem:[%s10209 + $0x290] sm:$0xff]
    %v10293 = vld [vmem:[%s10209 + $0x298] sm:$0xff]
    %v10294 = vld [vmem:[%s10209 + $0x2a0] sm:$0xff]
    %v10295 = vld [vmem:[%s10209 + $0x2a8] sm:$0xff]
    %v10296 = vld [vmem:[%s10209 + $0x2b0] sm:$0xff]
    %v10297 = vld [vmem:[%s10209 + $0x2b8] sm:$0xff]
    %v10298 = vld [vmem:[%s10209 + $0x2c0] sm:$0xff]
    %v10299 = vld [vmem:[%s10209 + $0x2c8] sm:$0xff]
    %v10300 = vld [vmem:[%s10209 + $0x2d0] sm:$0xff]
    %v10301 = vld [vmem:[%s10209 + $0x2d8] sm:$0xff]
    %v10302 = vld [vmem:[%s10209 + $0x2e0] sm:$0xff]
    %v10303 = vld [vmem:[%s10209 + $0x2e8] sm:$0xff]
    %v10304 = vld [vmem:[%s10209 + $0x2f0] sm:$0xff]
    %v10305 = vld [vmem:[%s10209 + $0x2f8] sm:$0xff]
    %v10306 = vld [vmem:[%s10209 + $0x300] sm:$0xff]
    %v10307 = vld [vmem:[%s10209 + $0x308] sm:$0xff]
    %v10308 = vld [vmem:[%s10209 + $0x310] sm:$0xff]
    %v10309 = vld [vmem:[%s10209 + $0x318] sm:$0xff]
    %v10310 = vld [vmem:[%s10209 + $0x320] sm:$0xff]
    %v10311 = vld [vmem:[%s10209 + $0x328] sm:$0xff]
    %v10312 = vld [vmem:[%s10209 + $0x330] sm:$0xff]
    %v10313 = vld [vmem:[%s10209 + $0x338] sm:$0xff]
    %v10314 = vld [vmem:[%s10209 + $0x340] sm:$0xff]
    %v10315 = vld [vmem:[%s10209 + $0x348] sm:$0xff]
    %v10316 = vld [vmem:[%s10209 + $0x350] sm:$0xff]
    %v10317 = vld [vmem:[%s10209 + $0x358] sm:$0xff]
    %v10318 = vld [vmem:[%s10209 + $0x360] sm:$0xff]
    %v10319 = vld [vmem:[%s10209 + $0x368] sm:$0xff]
    %v10320 = vld [vmem:[%s10209 + $0x370] sm:$0xff]
    %v10321 = vld [vmem:[%s10209 + $0x378] sm:$0xff]
    %v10322 = vld [vmem:[%s10209 + $0x380] sm:$0xff]
    %v10323 = vld [vmem:[%s10209 + $0x388] sm:$0xff]
    %v10324 = vld [vmem:[%s10209 + $0x390] sm:$0xff]
    %v10325 = vld [vmem:[%s10209 + $0x398] sm:$0xff]
    %v10326 = vld [vmem:[%s10209 + $0x3a0] sm:$0xff]
    %v10327 = vld [vmem:[%s10209 + $0x3a8] sm:$0xff]
    %v10328 = vld [vmem:[%s10209 + $0x3b0] sm:$0xff]
    %v10329 = vld [vmem:[%s10209 + $0x3b8] sm:$0xff]
    %v10330 = vld [vmem:[%s10209 + $0x3c0] sm:$0xff]
    %v10331 = vld [vmem:[%s10209 + $0x3c8] sm:$0xff]
    %v10332 = vld [vmem:[%s10209 + $0x3d0] sm:$0xff]
    %v10333 = vld [vmem:[%s10209 + $0x3d8] sm:$0xff]
    %v10334 = vld [vmem:[%s10209 + $0x3e0] sm:$0xff]
    %v10335 = vld [vmem:[%s10209 + $0x3e8] sm:$0xff]
    %v10336 = vld [vmem:[%s10209 + $0x3f0] sm:$0xff]
    %v10337 = vld [vmem:[%s10209 + $0x3f8] sm:$0xff]
    %v10338 = vld [vmem:[%s10209 + $0x400] sm:$0xff]
    %v10339 = vld [vmem:[%s10209 + $0x408] sm:$0xff]
    %v10340 = vld [vmem:[%s10209 + $0x410] sm:$0xff]
    %v10341 = vld [vmem:[%s10209 + $0x418] sm:$0xff]
    %v10342 = vld [vmem:[%s10209 + $0x420] sm:$0xff]
    %v10343 = vld [vmem:[%s10209 + $0x428] sm:$0xff]
    %v10344 = vld [vmem:[%s10209 + $0x430] sm:$0xff]
    %v10345 = vld [vmem:[%s10209 + $0x438] sm:$0xff]
    %v10346 = vld [vmem:[%s10209 + $0x440] sm:$0xff]
    %v10347 = vld [vmem:[%s10209 + $0x448] sm:$0xff]
    %v10348 = vld [vmem:[%s10209 + $0x450] sm:$0xff]
    %v10349 = vld [vmem:[%s10209 + $0x458] sm:$0xff]
    %v10350 = vld [vmem:[%s10209 + $0x460] sm:$0xff]
    %v10351 = vld [vmem:[%s10209 + $0x468] sm:$0xff]
    %v10352 = vld [vmem:[%s10209 + $0x470] sm:$0xff]
    %v10353 = vld [vmem:[%s10209 + $0x478] sm:$0xff]
    %v10354 = vld [vmem:[%s10209 + $0x480] sm:$0xff]
    %v10355 = vld [vmem:[%s10209 + $0x488] sm:$0xff]
    %v10356 = vld [vmem:[%s10209 + $0x490] sm:$0xff]
    %v10357 = vld [vmem:[%s10209 + $0x498] sm:$0xff]
    %v10358 = vld [vmem:[%s10209 + $0x4a0] sm:$0xff]
    %v10359 = vld [vmem:[%s10209 + $0x4a8] sm:$0xff]
    %v10360 = vld [vmem:[%s10209 + $0x4b0] sm:$0xff]
    %v10361 = vld [vmem:[%s10209 + $0x4b8] sm:$0xff]
    %v10362 = vld [vmem:[%s10209 + $0x4c0] sm:$0xff]
    %v10363 = vld [vmem:[%s10209 + $0x4c8] sm:$0xff]
    %v10364 = vld [vmem:[%s10209 + $0x4d0] sm:$0xff]
    %v10365 = vld [vmem:[%s10209 + $0x4d8] sm:$0xff]
    %v10366 = vld [vmem:[%s10209 + $0x4e0] sm:$0xff]
    %v10367 = vld [vmem:[%s10209 + $0x4e8] sm:$0xff]
    %v10368 = vld [vmem:[%s10209 + $0x4f0] sm:$0xff]
    %v10369 = vld [vmem:[%s10209 + $0x4f8] sm:$0xff]
    %v10370 = vld [vmem:[%s10209 + $0x500] sm:$0xff]
    %v10371 = vld [vmem:[%s10209 + $0x508] sm:$0xff]
    %v10372 = vld [vmem:[%s10209 + $0x510] sm:$0xff]
    %v10373 = vld [vmem:[%s10209 + $0x518] sm:$0xff]
    %v10374 = vld [vmem:[%s10209 + $0x520] sm:$0xff]
    %v10375 = vld [vmem:[%s10209 + $0x528] sm:$0xff]
    %v10376 = vld [vmem:[%s10209 + $0x530] sm:$0xff]
    %v10377 = vld [vmem:[%s10209 + $0x538] sm:$0xff]
    %v10378 = vld [vmem:[%s10209 + $0x540] sm:$0xff]
    %v10379 = vld [vmem:[%s10209 + $0x548] sm:$0xff]
    %v10380 = vld [vmem:[%s10209 + $0x550] sm:$0xff]
    %v10381 = vld [vmem:[%s10209 + $0x558] sm:$0xff]
    %v10382 = vld [vmem:[%s10209 + $0x560] sm:$0xff]
    %v10383 = vld [vmem:[%s10209 + $0x568] sm:$0xff]
    %v10384 = vld [vmem:[%s10209 + $0x570] sm:$0xff]
    %v10385 = vld [vmem:[%s10209 + $0x578] sm:$0xff]
    %v10386 = vld [vmem:[%s10209 + $0x580] sm:$0xff]
    %v10387 = vld [vmem:[%s10209 + $0x588] sm:$0xff]
    %v10388 = vld [vmem:[%s10209 + $0x590] sm:$0xff]
    %v10389 = vld [vmem:[%s10209 + $0x598] sm:$0xff]
    %v10390 = vld [vmem:[%s10209 + $0x5a0] sm:$0xff]
    %v10391 = vld [vmem:[%s10209 + $0x5a8] sm:$0xff]
    %v10392 = vld [vmem:[%s10209 + $0x5b0] sm:$0xff]
    %v10393 = vld [vmem:[%s10209 + $0x5b8] sm:$0xff]
    %v10394 = vld [vmem:[%s10209 + $0x5c0] sm:$0xff]
    %v10395 = vld [vmem:[%s10209 + $0x5c8] sm:$0xff]
    %v10396 = vld [vmem:[%s10209 + $0x5d0] sm:$0xff]
    %v10397 = vld [vmem:[%s10209 + $0x5d8] sm:$0xff]
    %v10398 = vld [vmem:[%s10209 + $0x5e0] sm:$0xff]
    %v10399 = vld [vmem:[%s10209 + $0x5e8] sm:$0xff]
    %v10400 = vld [vmem:[%s10209 + $0x5f0] sm:$0xff]
    %v10401 = vld [vmem:[%s10209 + $0x5f8] sm:$0xff]
    %v10402 = vld [vmem:[%s10209 + $0x600] sm:$0xff]
    %v10403 = vld [vmem:[%s10209 + $0x608] sm:$0xff]
    %v10404 = vld [vmem:[%s10209 + $0x610] sm:$0xff]
    %v10405 = vld [vmem:[%s10209 + $0x618] sm:$0xff]
    %v10406 = vld [vmem:[%s10209 + $0x620] sm:$0xff]
    %v10407 = vld [vmem:[%s10209 + $0x628] sm:$0xff]
    %v10408 = vld [vmem:[%s10209 + $0x630] sm:$0xff]
    %v10409 = vld [vmem:[%s10209 + $0x638] sm:$0xff]
    %v10410 = vld [vmem:[%s10209 + $0x640] sm:$0xff]
    %v10411 = vld [vmem:[%s10209 + $0x648] sm:$0xff]
    %v10412 = vld [vmem:[%s10209 + $0x650] sm:$0xff]
    %v10413 = vld [vmem:[%s10209 + $0x658] sm:$0xff]
    %v10414 = vld [vmem:[%s10209 + $0x660] sm:$0xff]
    %v10415 = vld [vmem:[%s10209 + $0x668] sm:$0xff]
    %v10416 = vld [vmem:[%s10209 + $0x670] sm:$0xff]
    %v10417 = vld [vmem:[%s10209 + $0x678] sm:$0xff]
    %v10418 = vld [vmem:[%s10209 + $0x680] sm:$0xff]
    %v10419 = vld [vmem:[%s10209 + $0x688] sm:$0xff]
    %v10420 = vld [vmem:[%s10209 + $0x690] sm:$0xff]
    %v10421 = vld [vmem:[%s10209 + $0x698] sm:$0xff]
    %v10422 = vld [vmem:[%s10209 + $0x6a0] sm:$0xff]
    %v10423 = vld [vmem:[%s10209 + $0x6a8] sm:$0xff]
    %v10424 = vld [vmem:[%s10209 + $0x6b0] sm:$0xff]
    %v10425 = vld [vmem:[%s10209 + $0x6b8] sm:$0xff]
    %v10426 = vld [vmem:[%s10209 + $0x6c0] sm:$0xff]
    %v10427 = vld [vmem:[%s10209 + $0x6c8] sm:$0xff]
    %v10428 = vld [vmem:[%s10209 + $0x6d0] sm:$0xff]
    %v10429 = vld [vmem:[%s10209 + $0x6d8] sm:$0xff]
    %v10430 = vld [vmem:[%s10209 + $0x6e0] sm:$0xff]
    %v10431 = vld [vmem:[%s10209 + $0x6e8] sm:$0xff]
    %v10432 = vld [vmem:[%s10209 + $0x6f0] sm:$0xff]
    %v10433 = vld [vmem:[%s10209 + $0x6f8] sm:$0xff]
    %v10434 = vld [vmem:[%s10209 + $0x700] sm:$0xff]
    %v10435 = vld [vmem:[%s10209 + $0x708] sm:$0xff]
    %v10436 = vld [vmem:[%s10209 + $0x710] sm:$0xff]
    %v10437 = vld [vmem:[%s10209 + $0x718] sm:$0xff]
    %v10438 = vld [vmem:[%s10209 + $0x720] sm:$0xff]
    %v10439 = vld [vmem:[%s10209 + $0x728] sm:$0xff]
    %v10440 = vld [vmem:[%s10209 + $0x730] sm:$0xff]
    %v10441 = vld [vmem:[%s10209 + $0x738] sm:$0xff]
    %v10442 = vld [vmem:[%s10209 + $0x740] sm:$0xff]
    %v10443 = vld [vmem:[%s10209 + $0x748] sm:$0xff]
    %v10444 = vld [vmem:[%s10209 + $0x750] sm:$0xff]
    %v10445 = vld [vmem:[%s10209 + $0x758] sm:$0xff]
    %v10446 = vld [vmem:[%s10209 + $0x760] sm:$0xff]
    %v10447 = vld [vmem:[%s10209 + $0x768] sm:$0xff]
    %v10448 = vld [vmem:[%s10209 + $0x770] sm:$0xff]
    %v10449 = vld [vmem:[%s10209 + $0x778] sm:$0xff]
    %v10450 = vld [vmem:[%s10209 + $0x780] sm:$0xff]
    %v10451 = vld [vmem:[%s10209 + $0x788] sm:$0xff]
    %v10452 = vld [vmem:[%s10209 + $0x790] sm:$0xff]
    %v10453 = vld [vmem:[%s10209 + $0x798] sm:$0xff]
    %v10454 = vld [vmem:[%s10209 + $0x7a0] sm:$0xff]
    %v10455 = vld [vmem:[%s10209 + $0x7a8] sm:$0xff]
    %v10456 = vld [vmem:[%s10209 + $0x7b0] sm:$0xff]
    %v10457 = vld [vmem:[%s10209 + $0x7b8] sm:$0xff]
    %v10458 = vld [vmem:[%s10209 + $0x7c0] sm:$0xff]
    %v10459 = vld [vmem:[%s10209 + $0x7c8] sm:$0xff]
    %v10460 = vld [vmem:[%s10209 + $0x7d0] sm:$0xff]
    %v10461 = vld [vmem:[%s10209 + $0x7d8] sm:$0xff]
    %v10462 = vld [vmem:[%s10209 + $0x7e0] sm:$0xff]
    %v10463 = vld [vmem:[%s10209 + $0x7e8] sm:$0xff]
    %v10464 = vld [vmem:[%s10209 + $0x7f0] sm:$0xff]
    %v10465 = vld [vmem:[%s10209 + $0x7f8] sm:$0xff]
    %v10722 = vunpack.c.l.b16 %v10210
    %v10723 = vunpack.c.h.b16 %v10210
    %v10724 = vunpack.c.l.b16 %v10211
    %v10725 = vunpack.c.h.b16 %v10211
    %v10726 = vunpack.c.l.b16 %v10212
    %v10727 = vunpack.c.h.b16 %v10212
    %v10728 = vunpack.c.l.b16 %v10213
    %v10729 = vunpack.c.h.b16 %v10213
    %v10730 = vunpack.c.l.b16 %v10214
    %v10731 = vunpack.c.h.b16 %v10214
    %v10732 = vunpack.c.l.b16 %v10215
    %v10733 = vunpack.c.h.b16 %v10215
    %v10734 = vunpack.c.l.b16 %v10216
    %v10735 = vunpack.c.h.b16 %v10216
    %v10736 = vunpack.c.l.b16 %v10217
    %v10737 = vunpack.c.h.b16 %v10217
    %v10738 = vunpack.c.l.b16 %v10218
    %v10739 = vunpack.c.h.b16 %v10218
    %v10740 = vunpack.c.l.b16 %v10219
    %v10741 = vunpack.c.h.b16 %v10219
    %v10742 = vunpack.c.l.b16 %v10220
    %v10743 = vunpack.c.h.b16 %v10220
    %v10744 = vunpack.c.l.b16 %v10221
    %v10745 = vunpack.c.h.b16 %v10221
    %v10746 = vunpack.c.l.b16 %v10222
    %v10747 = vunpack.c.h.b16 %v10222
    %v10748 = vunpack.c.l.b16 %v10223
    %v10749 = vunpack.c.h.b16 %v10223
    %v10750 = vunpack.c.l.b16 %v10224
    %v10751 = vunpack.c.h.b16 %v10224
    %v10752 = vunpack.c.l.b16 %v10225
    %v10753 = vunpack.c.h.b16 %v10225
    %v10754 = vunpack.c.l.b16 %v10226
    %v10755 = vunpack.c.h.b16 %v10226
    %v10756 = vunpack.c.l.b16 %v10227
    %v10757 = vunpack.c.h.b16 %v10227
    %v10758 = vunpack.c.l.b16 %v10228
    %v10759 = vunpack.c.h.b16 %v10228
    %v10760 = vunpack.c.l.b16 %v10229
    %v10761 = vunpack.c.h.b16 %v10229
    %v10762 = vunpack.c.l.b16 %v10230
    %v10763 = vunpack.c.h.b16 %v10230
    %v10764 = vunpack.c.l.b16 %v10231
    %v10765 = vunpack.c.h.b16 %v10231
    %v10766 = vunpack.c.l.b16 %v10232
    %v10767 = vunpack.c.h.b16 %v10232
    %v10768 = vunpack.c.l.b16 %v10233
    %v10769 = vunpack.c.h.b16 %v10233
    %v10770 = vunpack.c.l.b16 %v10234
    %v10771 = vunpack.c.h.b16 %v10234
    %v10772 = vunpack.c.l.b16 %v10235
    %v10773 = vunpack.c.h.b16 %v10235
    %v10774 = vunpack.c.l.b16 %v10236
    %v10775 = vunpack.c.h.b16 %v10236
    %v10776 = vunpack.c.l.b16 %v10237
    %v10777 = vunpack.c.h.b16 %v10237
    %v10778 = vunpack.c.l.b16 %v10238
    %v10779 = vunpack.c.h.b16 %v10238
    %v10780 = vunpack.c.l.b16 %v10239
    %v10781 = vunpack.c.h.b16 %v10239
    %v10782 = vunpack.c.l.b16 %v10240
    %v10783 = vunpack.c.h.b16 %v10240
    %v10784 = vunpack.c.l.b16 %v10241
    %v10785 = vunpack.c.h.b16 %v10241
    %v10786 = vunpack.c.l.b16 %v10242
    %v10787 = vunpack.c.h.b16 %v10242
    %v10788 = vunpack.c.l.b16 %v10243
    %v10789 = vunpack.c.h.b16 %v10243
    %v10790 = vunpack.c.l.b16 %v10244
    %v10791 = vunpack.c.h.b16 %v10244
    %v10792 = vunpack.c.l.b16 %v10245
    %v10793 = vunpack.c.h.b16 %v10245
    %v10794 = vunpack.c.l.b16 %v10246
    %v10795 = vunpack.c.h.b16 %v10246
    %v10796 = vunpack.c.l.b16 %v10247
    %v10797 = vunpack.c.h.b16 %v10247
    %v10798 = vunpack.c.l.b16 %v10248
    %v10799 = vunpack.c.h.b16 %v10248
    %v10800 = vunpack.c.l.b16 %v10249
    %v10801 = vunpack.c.h.b16 %v10249
    %v10802 = vunpack.c.l.b16 %v10250
    %v10803 = vunpack.c.h.b16 %v10250
    %v10804 = vunpack.c.l.b16 %v10251
    %v10805 = vunpack.c.h.b16 %v10251
    %v10806 = vunpack.c.l.b16 %v10252
    %v10807 = vunpack.c.h.b16 %v10252
    %v10808 = vunpack.c.l.b16 %v10253
    %v10809 = vunpack.c.h.b16 %v10253
    %v10810 = vunpack.c.l.b16 %v10254
    %v10811 = vunpack.c.h.b16 %v10254
    %v10812 = vunpack.c.l.b16 %v10255
    %v10813 = vunpack.c.h.b16 %v10255
    %v10814 = vunpack.c.l.b16 %v10256
    %v10815 = vunpack.c.h.b16 %v10256
    %v10816 = vunpack.c.l.b16 %v10257
    %v10817 = vunpack.c.h.b16 %v10257
    %v10818 = vunpack.c.l.b16 %v10258
    %v10819 = vunpack.c.h.b16 %v10258
    %v10820 = vunpack.c.l.b16 %v10259
    %v10821 = vunpack.c.h.b16 %v10259
    %v10822 = vunpack.c.l.b16 %v10260
    %v10823 = vunpack.c.h.b16 %v10260
    %v10824 = vunpack.c.l.b16 %v10261
    %v10825 = vunpack.c.h.b16 %v10261
    %v10826 = vunpack.c.l.b16 %v10262
    %v10827 = vunpack.c.h.b16 %v10262
    %v10828 = vunpack.c.l.b16 %v10263
    %v10829 = vunpack.c.h.b16 %v10263
    %v10830 = vunpack.c.l.b16 %v10264
    %v10831 = vunpack.c.h.b16 %v10264
    %v10832 = vunpack.c.l.b16 %v10265
    %v10833 = vunpack.c.h.b16 %v10265
    %v10834 = vunpack.c.l.b16 %v10266
    %v10835 = vunpack.c.h.b16 %v10266
    %v10836 = vunpack.c.l.b16 %v10267
    %v10837 = vunpack.c.h.b16 %v10267
    %v10838 = vunpack.c.l.b16 %v10268
    %v10839 = vunpack.c.h.b16 %v10268
    %v10840 = vunpack.c.l.b16 %v10269
    %v10841 = vunpack.c.h.b16 %v10269
    %v10842 = vunpack.c.l.b16 %v10270
    %v10843 = vunpack.c.h.b16 %v10270
    %v10844 = vunpack.c.l.b16 %v10271
    %v10845 = vunpack.c.h.b16 %v10271
    %v10846 = vunpack.c.l.b16 %v10272
    %v10847 = vunpack.c.h.b16 %v10272
    %v10848 = vunpack.c.l.b16 %v10273
    %v10849 = vunpack.c.h.b16 %v10273
    %v10850 = vunpack.c.l.b16 %v10274
    %v10851 = vunpack.c.h.b16 %v10274
    %v10852 = vunpack.c.l.b16 %v10275
    %v10853 = vunpack.c.h.b16 %v10275
    %v10854 = vunpack.c.l.b16 %v10276
    %v10855 = vunpack.c.h.b16 %v10276
    %v10856 = vunpack.c.l.b16 %v10277
    %v10857 = vunpack.c.h.b16 %v10277
    %v10858 = vunpack.c.l.b16 %v10278
    %v10859 = vunpack.c.h.b16 %v10278
    %v10860 = vunpack.c.l.b16 %v10279
    %v10861 = vunpack.c.h.b16 %v10279
    %v10862 = vunpack.c.l.b16 %v10280
    %v10863 = vunpack.c.h.b16 %v10280
    %v10864 = vunpack.c.l.b16 %v10281
    %v10865 = vunpack.c.h.b16 %v10281
    %v10866 = vunpack.c.l.b16 %v10282
    %v10867 = vunpack.c.h.b16 %v10282
    %v10868 = vunpack.c.l.b16 %v10283
    %v10869 = vunpack.c.h.b16 %v10283
    %v10870 = vunpack.c.l.b16 %v10284
    %v10871 = vunpack.c.h.b16 %v10284
    %v10872 = vunpack.c.l.b16 %v10285
    %v10873 = vunpack.c.h.b16 %v10285
    %v10874 = vunpack.c.l.b16 %v10286
    %v10875 = vunpack.c.h.b16 %v10286
    %v10876 = vunpack.c.l.b16 %v10287
    %v10877 = vunpack.c.h.b16 %v10287
    %v10878 = vunpack.c.l.b16 %v10288
    %v10879 = vunpack.c.h.b16 %v10288
    %v10880 = vunpack.c.l.b16 %v10289
    %v10881 = vunpack.c.h.b16 %v10289
    %v10882 = vunpack.c.l.b16 %v10290
    %v10883 = vunpack.c.h.b16 %v10290
    %v10884 = vunpack.c.l.b16 %v10291
    %v10885 = vunpack.c.h.b16 %v10291
    %v10886 = vunpack.c.l.b16 %v10292
    %v10887 = vunpack.c.h.b16 %v10292
    %v10888 = vunpack.c.l.b16 %v10293
    %v10889 = vunpack.c.h.b16 %v10293
    %v10890 = vunpack.c.l.b16 %v10294
    %v10891 = vunpack.c.h.b16 %v10294
    %v10892 = vunpack.c.l.b16 %v10295
    %v10893 = vunpack.c.h.b16 %v10295
    %v10894 = vunpack.c.l.b16 %v10296
    %v10895 = vunpack.c.h.b16 %v10296
    %v10896 = vunpack.c.l.b16 %v10297
    %v10897 = vunpack.c.h.b16 %v10297
    %v10898 = vunpack.c.l.b16 %v10298
    %v10899 = vunpack.c.h.b16 %v10298
    %v10900 = vunpack.c.l.b16 %v10299
    %v10901 = vunpack.c.h.b16 %v10299
    %v10902 = vunpack.c.l.b16 %v10300
    %v10903 = vunpack.c.h.b16 %v10300
    %v10904 = vunpack.c.l.b16 %v10301
    %v10905 = vunpack.c.h.b16 %v10301
    %v10906 = vunpack.c.l.b16 %v10302
    %v10907 = vunpack.c.h.b16 %v10302
    %v10908 = vunpack.c.l.b16 %v10303
    %v10909 = vunpack.c.h.b16 %v10303
    %v10910 = vunpack.c.l.b16 %v10304
    %v10911 = vunpack.c.h.b16 %v10304
    %v10912 = vunpack.c.l.b16 %v10305
    %v10913 = vunpack.c.h.b16 %v10305
    %v10914 = vunpack.c.l.b16 %v10306
    %v10915 = vunpack.c.h.b16 %v10306
    %v10916 = vunpack.c.l.b16 %v10307
    %v10917 = vunpack.c.h.b16 %v10307
    %v10918 = vunpack.c.l.b16 %v10308
    %v10919 = vunpack.c.h.b16 %v10308
    %v10920 = vunpack.c.l.b16 %v10309
    %v10921 = vunpack.c.h.b16 %v10309
    %v10922 = vunpack.c.l.b16 %v10310
    %v10923 = vunpack.c.h.b16 %v10310
    %v10924 = vunpack.c.l.b16 %v10311
    %v10925 = vunpack.c.h.b16 %v10311
    %v10926 = vunpack.c.l.b16 %v10312
    %v10927 = vunpack.c.h.b16 %v10312
    %v10928 = vunpack.c.l.b16 %v10313
    %v10929 = vunpack.c.h.b16 %v10313
    %v10930 = vunpack.c.l.b16 %v10314
    %v10931 = vunpack.c.h.b16 %v10314
    %v10932 = vunpack.c.l.b16 %v10315
    %v10933 = vunpack.c.h.b16 %v10315
    %v10934 = vunpack.c.l.b16 %v10316
    %v10935 = vunpack.c.h.b16 %v10316
    %v10936 = vunpack.c.l.b16 %v10317
    %v10937 = vunpack.c.h.b16 %v10317
    %v10938 = vunpack.c.l.b16 %v10318
    %v10939 = vunpack.c.h.b16 %v10318
    %v10940 = vunpack.c.l.b16 %v10319
    %v10941 = vunpack.c.h.b16 %v10319
    %v10942 = vunpack.c.l.b16 %v10320
    %v10943 = vunpack.c.h.b16 %v10320
    %v10944 = vunpack.c.l.b16 %v10321
    %v10945 = vunpack.c.h.b16 %v10321
    %v10946 = vunpack.c.l.b16 %v10322
    %v10947 = vunpack.c.h.b16 %v10322
    %v10948 = vunpack.c.l.b16 %v10323
    %v10949 = vunpack.c.h.b16 %v10323
    %v10950 = vunpack.c.l.b16 %v10324
    %v10951 = vunpack.c.h.b16 %v10324
    %v10952 = vunpack.c.l.b16 %v10325
    %v10953 = vunpack.c.h.b16 %v10325
    %v10954 = vunpack.c.l.b16 %v10326
    %v10955 = vunpack.c.h.b16 %v10326
    %v10956 = vunpack.c.l.b16 %v10327
    %v10957 = vunpack.c.h.b16 %v10327
    %v10958 = vunpack.c.l.b16 %v10328
    %v10959 = vunpack.c.h.b16 %v10328
    %v10960 = vunpack.c.l.b16 %v10329
    %v10961 = vunpack.c.h.b16 %v10329
    %v10962 = vunpack.c.l.b16 %v10330
    %v10963 = vunpack.c.h.b16 %v10330
    %v10964 = vunpack.c.l.b16 %v10331
    %v10965 = vunpack.c.h.b16 %v10331
    %v10966 = vunpack.c.l.b16 %v10332
    %v10967 = vunpack.c.h.b16 %v10332
    %v10968 = vunpack.c.l.b16 %v10333
    %v10969 = vunpack.c.h.b16 %v10333
    %v10970 = vunpack.c.l.b16 %v10334
    %v10971 = vunpack.c.h.b16 %v10334
    %v10972 = vunpack.c.l.b16 %v10335
    %v10973 = vunpack.c.h.b16 %v10335
    %v10974 = vunpack.c.l.b16 %v10336
    %v10975 = vunpack.c.h.b16 %v10336
    %v10976 = vunpack.c.l.b16 %v10337
    %v10977 = vunpack.c.h.b16 %v10337
    %v10978 = vunpack.c.l.b16 %v10338
    %v10979 = vunpack.c.h.b16 %v10338
    %v10980 = vunpack.c.l.b16 %v10339
    %v10981 = vunpack.c.h.b16 %v10339
    %v10982 = vunpack.c.l.b16 %v10340
    %v10983 = vunpack.c.h.b16 %v10340
    %v10984 = vunpack.c.l.b16 %v10341
    %v10985 = vunpack.c.h.b16 %v10341
    %v10986 = vunpack.c.l.b16 %v10342
    %v10987 = vunpack.c.h.b16 %v10342
    %v10988 = vunpack.c.l.b16 %v10343
    %v10989 = vunpack.c.h.b16 %v10343
    %v10990 = vunpack.c.l.b16 %v10344
    %v10991 = vunpack.c.h.b16 %v10344
    %v10992 = vunpack.c.l.b16 %v10345
    %v10993 = vunpack.c.h.b16 %v10345
    %v10994 = vunpack.c.l.b16 %v10346
    %v10995 = vunpack.c.h.b16 %v10346
    %v10996 = vunpack.c.l.b16 %v10347
    %v10997 = vunpack.c.h.b16 %v10347
    %v10998 = vunpack.c.l.b16 %v10348
    %v10999 = vunpack.c.h.b16 %v10348
    %v11000 = vunpack.c.l.b16 %v10349
    %v11001 = vunpack.c.h.b16 %v10349
    %v11002 = vunpack.c.l.b16 %v10350
    %v11003 = vunpack.c.h.b16 %v10350
    %v11004 = vunpack.c.l.b16 %v10351
    %v11005 = vunpack.c.h.b16 %v10351
    %v11006 = vunpack.c.l.b16 %v10352
    %v11007 = vunpack.c.h.b16 %v10352
    %v11008 = vunpack.c.l.b16 %v10353
    %v11009 = vunpack.c.h.b16 %v10353
    %v11010 = vunpack.c.l.b16 %v10354
    %v11011 = vunpack.c.h.b16 %v10354
    %v11012 = vunpack.c.l.b16 %v10355
    %v11013 = vunpack.c.h.b16 %v10355
    %v11014 = vunpack.c.l.b16 %v10356
    %v11015 = vunpack.c.h.b16 %v10356
    %v11016 = vunpack.c.l.b16 %v10357
    %v11017 = vunpack.c.h.b16 %v10357
    %v11018 = vunpack.c.l.b16 %v10358
    %v11019 = vunpack.c.h.b16 %v10358
    %v11020 = vunpack.c.l.b16 %v10359
    %v11021 = vunpack.c.h.b16 %v10359
    %v11022 = vunpack.c.l.b16 %v10360
    %v11023 = vunpack.c.h.b16 %v10360
    %v11024 = vunpack.c.l.b16 %v10361
    %v11025 = vunpack.c.h.b16 %v10361
    %v11026 = vunpack.c.l.b16 %v10362
    %v11027 = vunpack.c.h.b16 %v10362
    %v11028 = vunpack.c.l.b16 %v10363
    %v11029 = vunpack.c.h.b16 %v10363
    %v11030 = vunpack.c.l.b16 %v10364
    %v11031 = vunpack.c.h.b16 %v10364
    %v11032 = vunpack.c.l.b16 %v10365
    %v11033 = vunpack.c.h.b16 %v10365
    %v11034 = vunpack.c.l.b16 %v10366
    %v11035 = vunpack.c.h.b16 %v10366
    %v11036 = vunpack.c.l.b16 %v10367
    %v11037 = vunpack.c.h.b16 %v10367
    %v11038 = vunpack.c.l.b16 %v10368
    %v11039 = vunpack.c.h.b16 %v10368
    %v11040 = vunpack.c.l.b16 %v10369
    %v11041 = vunpack.c.h.b16 %v10369
    %v11042 = vunpack.c.l.b16 %v10370
    %v11043 = vunpack.c.h.b16 %v10370
    %v11044 = vunpack.c.l.b16 %v10371
    %v11045 = vunpack.c.h.b16 %v10371
    %v11046 = vunpack.c.l.b16 %v10372
    %v11047 = vunpack.c.h.b16 %v10372
    %v11048 = vunpack.c.l.b16 %v10373
    %v11049 = vunpack.c.h.b16 %v10373
    %v11050 = vunpack.c.l.b16 %v10374
    %v11051 = vunpack.c.h.b16 %v10374
    %v11052 = vunpack.c.l.b16 %v10375
    %v11053 = vunpack.c.h.b16 %v10375
    %v11054 = vunpack.c.l.b16 %v10376
    %v11055 = vunpack.c.h.b16 %v10376
    %v11056 = vunpack.c.l.b16 %v10377
    %v11057 = vunpack.c.h.b16 %v10377
    %v11058 = vunpack.c.l.b16 %v10378
    %v11059 = vunpack.c.h.b16 %v10378
    %v11060 = vunpack.c.l.b16 %v10379
    %v11061 = vunpack.c.h.b16 %v10379
    %v11062 = vunpack.c.l.b16 %v10380
    %v11063 = vunpack.c.h.b16 %v10380
    %v11064 = vunpack.c.l.b16 %v10381
    %v11065 = vunpack.c.h.b16 %v10381
    %v11066 = vunpack.c.l.b16 %v10382
    %v11067 = vunpack.c.h.b16 %v10382
    %v11068 = vunpack.c.l.b16 %v10383
    %v11069 = vunpack.c.h.b16 %v10383
    %v11070 = vunpack.c.l.b16 %v10384
    %v11071 = vunpack.c.h.b16 %v10384
    %v11072 = vunpack.c.l.b16 %v10385
    %v11073 = vunpack.c.h.b16 %v10385
    %v11074 = vunpack.c.l.b16 %v10386
    %v11075 = vunpack.c.h.b16 %v10386
    %v11076 = vunpack.c.l.b16 %v10387
    %v11077 = vunpack.c.h.b16 %v10387
    %v11078 = vunpack.c.l.b16 %v10388
    %v11079 = vunpack.c.h.b16 %v10388
    %v11080 = vunpack.c.l.b16 %v10389
    %v11081 = vunpack.c.h.b16 %v10389
    %v11082 = vunpack.c.l.b16 %v10390
    %v11083 = vunpack.c.h.b16 %v10390
    %v11084 = vunpack.c.l.b16 %v10391
    %v11085 = vunpack.c.h.b16 %v10391
    %v11086 = vunpack.c.l.b16 %v10392
    %v11087 = vunpack.c.h.b16 %v10392
    %v11088 = vunpack.c.l.b16 %v10393
    %v11089 = vunpack.c.h.b16 %v10393
    %v11090 = vunpack.c.l.b16 %v10394
    %v11091 = vunpack.c.h.b16 %v10394
    %v11092 = vunpack.c.l.b16 %v10395
    %v11093 = vunpack.c.h.b16 %v10395
    %v11094 = vunpack.c.l.b16 %v10396
    %v11095 = vunpack.c.h.b16 %v10396
    %v11096 = vunpack.c.l.b16 %v10397
    %v11097 = vunpack.c.h.b16 %v10397
    %v11098 = vunpack.c.l.b16 %v10398
    %v11099 = vunpack.c.h.b16 %v10398
    %v11100 = vunpack.c.l.b16 %v10399
    %v11101 = vunpack.c.h.b16 %v10399
    %v11102 = vunpack.c.l.b16 %v10400
    %v11103 = vunpack.c.h.b16 %v10400
    %v11104 = vunpack.c.l.b16 %v10401
    %v11105 = vunpack.c.h.b16 %v10401
    %v11106 = vunpack.c.l.b16 %v10402
    %v11107 = vunpack.c.h.b16 %v10402
    %v11108 = vunpack.c.l.b16 %v10403
    %v11109 = vunpack.c.h.b16 %v10403
    %v11110 = vunpack.c.l.b16 %v10404
    %v11111 = vunpack.c.h.b16 %v10404
    %v11112 = vunpack.c.l.b16 %v10405
    %v11113 = vunpack.c.h.b16 %v10405
    %v11114 = vunpack.c.l.b16 %v10406
    %v11115 = vunpack.c.h.b16 %v10406
    %v11116 = vunpack.c.l.b16 %v10407
    %v11117 = vunpack.c.h.b16 %v10407
    %v11118 = vunpack.c.l.b16 %v10408
    %v11119 = vunpack.c.h.b16 %v10408
    %v11120 = vunpack.c.l.b16 %v10409
    %v11121 = vunpack.c.h.b16 %v10409
    %v11122 = vunpack.c.l.b16 %v10410
    %v11123 = vunpack.c.h.b16 %v10410
    %v11124 = vunpack.c.l.b16 %v10411
    %v11125 = vunpack.c.h.b16 %v10411
    %v11126 = vunpack.c.l.b16 %v10412
    %v11127 = vunpack.c.h.b16 %v10412
    %v11128 = vunpack.c.l.b16 %v10413
    %v11129 = vunpack.c.h.b16 %v10413
    %v11130 = vunpack.c.l.b16 %v10414
    %v11131 = vunpack.c.h.b16 %v10414
    %v11132 = vunpack.c.l.b16 %v10415
    %v11133 = vunpack.c.h.b16 %v10415
    %v11134 = vunpack.c.l.b16 %v10416
    %v11135 = vunpack.c.h.b16 %v10416
    %v11136 = vunpack.c.l.b16 %v10417
    %v11137 = vunpack.c.h.b16 %v10417
    %v11138 = vunpack.c.l.b16 %v10418
    %v11139 = vunpack.c.h.b16 %v10418
    %v11140 = vunpack.c.l.b16 %v10419
    %v11141 = vunpack.c.h.b16 %v10419
    %v11142 = vunpack.c.l.b16 %v10420
    %v11143 = vunpack.c.h.b16 %v10420
    %v11144 = vunpack.c.l.b16 %v10421
    %v11145 = vunpack.c.h.b16 %v10421
    %v11146 = vunpack.c.l.b16 %v10422
    %v11147 = vunpack.c.h.b16 %v10422
    %v11148 = vunpack.c.l.b16 %v10423
    %v11149 = vunpack.c.h.b16 %v10423
    %v11150 = vunpack.c.l.b16 %v10424
    %v11151 = vunpack.c.h.b16 %v10424
    %v11152 = vunpack.c.l.b16 %v10425
    %v11153 = vunpack.c.h.b16 %v10425
    %v11154 = vunpack.c.l.b16 %v10426
    %v11155 = vunpack.c.h.b16 %v10426
    %v11156 = vunpack.c.l.b16 %v10427
    %v11157 = vunpack.c.h.b16 %v10427
    %v11158 = vunpack.c.l.b16 %v10428
    %v11159 = vunpack.c.h.b16 %v10428
    %v11160 = vunpack.c.l.b16 %v10429
    %v11161 = vunpack.c.h.b16 %v10429
    %v11162 = vunpack.c.l.b16 %v10430
    %v11163 = vunpack.c.h.b16 %v10430
    %v11164 = vunpack.c.l.b16 %v10431
    %v11165 = vunpack.c.h.b16 %v10431
    %v11166 = vunpack.c.l.b16 %v10432
    %v11167 = vunpack.c.h.b16 %v10432
    %v11168 = vunpack.c.l.b16 %v10433
    %v11169 = vunpack.c.h.b16 %v10433
    %v11170 = vunpack.c.l.b16 %v10434
    %v11171 = vunpack.c.h.b16 %v10434
    %v11172 = vunpack.c.l.b16 %v10435
    %v11173 = vunpack.c.h.b16 %v10435
    %v11174 = vunpack.c.l.b16 %v10436
    %v11175 = vunpack.c.h.b16 %v10436
    %v11176 = vunpack.c.l.b16 %v10437
    %v11177 = vunpack.c.h.b16 %v10437
    %v11178 = vunpack.c.l.b16 %v10438
    %v11179 = vunpack.c.h.b16 %v10438
    %v11180 = vunpack.c.l.b16 %v10439
    %v11181 = vunpack.c.h.b16 %v10439
    %v11182 = vunpack.c.l.b16 %v10440
    %v11183 = vunpack.c.h.b16 %v10440
    %v11184 = vunpack.c.l.b16 %v10441
    %v11185 = vunpack.c.h.b16 %v10441
    %v11186 = vunpack.c.l.b16 %v10442
    %v11187 = vunpack.c.h.b16 %v10442
    %v11188 = vunpack.c.l.b16 %v10443
    %v11189 = vunpack.c.h.b16 %v10443
    %v11190 = vunpack.c.l.b16 %v10444
    %v11191 = vunpack.c.h.b16 %v10444
    %v11192 = vunpack.c.l.b16 %v10445
    %v11193 = vunpack.c.h.b16 %v10445
    %v11194 = vunpack.c.l.b16 %v10446
    %v11195 = vunpack.c.h.b16 %v10446
    %v11196 = vunpack.c.l.b16 %v10447
    %v11197 = vunpack.c.h.b16 %v10447
    %v11198 = vunpack.c.l.b16 %v10448
    %v11199 = vunpack.c.h.b16 %v10448
    %v11200 = vunpack.c.l.b16 %v10449
    %v11201 = vunpack.c.h.b16 %v10449
    %v11202 = vunpack.c.l.b16 %v10450
    %v11203 = vunpack.c.h.b16 %v10450
    %v11204 = vunpack.c.l.b16 %v10451
    %v11205 = vunpack.c.h.b16 %v10451
    %v11206 = vunpack.c.l.b16 %v10452
    %v11207 = vunpack.c.h.b16 %v10452
    %v11208 = vunpack.c.l.b16 %v10453
    %v11209 = vunpack.c.h.b16 %v10453
    %v11210 = vunpack.c.l.b16 %v10454
    %v11211 = vunpack.c.h.b16 %v10454
    %v11212 = vunpack.c.l.b16 %v10455
    %v11213 = vunpack.c.h.b16 %v10455
    %v11214 = vunpack.c.l.b16 %v10456
    %v11215 = vunpack.c.h.b16 %v10456
    %v11216 = vunpack.c.l.b16 %v10457
    %v11217 = vunpack.c.h.b16 %v10457
    %v11218 = vunpack.c.l.b16 %v10458
    %v11219 = vunpack.c.h.b16 %v10458
    %v11220 = vunpack.c.l.b16 %v10459
    %v11221 = vunpack.c.h.b16 %v10459
    %v11222 = vunpack.c.l.b16 %v10460
    %v11223 = vunpack.c.h.b16 %v10460
    %v11224 = vunpack.c.l.b16 %v10461
    %v11225 = vunpack.c.h.b16 %v10461
    %v11226 = vunpack.c.l.b16 %v10462
    %v11227 = vunpack.c.h.b16 %v10462
    %v11228 = vunpack.c.l.b16 %v10463
    %v11229 = vunpack.c.h.b16 %v10463
    %v11230 = vunpack.c.l.b16 %v10464
    %v11231 = vunpack.c.h.b16 %v10464
    %v11232 = vunpack.c.l.b16 %v10465
    %v11233 = vunpack.c.h.b16 %v10465
    %v11234 = vpack.c.b16 %v10730, %v10722
    %v11235 = vpack.c.b16 %v10731, %v10723
    %v11236 = vpack.c.b16 %v10732, %v10724
    %v11237 = vpack.c.b16 %v10733, %v10725
    %v11238 = vpack.c.b16 %v10734, %v10726
    %v11239 = vpack.c.b16 %v10735, %v10727
    %v11240 = vpack.c.b16 %v10736, %v10728
    %v11241 = vpack.c.b16 %v10737, %v10729
    %v11242 = vpack.c.b16 %v10746, %v10738
    %v11243 = vpack.c.b16 %v10747, %v10739
    %v11244 = vpack.c.b16 %v10748, %v10740
    %v11245 = vpack.c.b16 %v10749, %v10741
    %v11246 = vpack.c.b16 %v10750, %v10742
    %v11247 = vpack.c.b16 %v10751, %v10743
    %v11248 = vpack.c.b16 %v10752, %v10744
    %v11249 = vpack.c.b16 %v10753, %v10745
    %v11250 = vpack.c.b16 %v10762, %v10754
    %v11251 = vpack.c.b16 %v10763, %v10755
    %v11252 = vpack.c.b16 %v10764, %v10756
    %v11253 = vpack.c.b16 %v10765, %v10757
    %v11254 = vpack.c.b16 %v10766, %v10758
    %v11255 = vpack.c.b16 %v10767, %v10759
    %v11256 = vpack.c.b16 %v10768, %v10760
    %v11257 = vpack.c.b16 %v10769, %v10761
    %v11258 = vpack.c.b16 %v10778, %v10770
    %v11259 = vpack.c.b16 %v10779, %v10771
    %v11260 = vpack.c.b16 %v10780, %v10772
    %v11261 = vpack.c.b16 %v10781, %v10773
    %v11262 = vpack.c.b16 %v10782, %v10774
    %v11263 = vpack.c.b16 %v10783, %v10775
    %v11264 = vpack.c.b16 %v10784, %v10776
    %v11265 = vpack.c.b16 %v10785, %v10777
    %v11266 = vpack.c.b16 %v10794, %v10786
    %v11267 = vpack.c.b16 %v10795, %v10787
    %v11268 = vpack.c.b16 %v10796, %v10788
    %v11269 = vpack.c.b16 %v10797, %v10789
    %v11270 = vpack.c.b16 %v10798, %v10790
    %v11271 = vpack.c.b16 %v10799, %v10791
    %v11272 = vpack.c.b16 %v10800, %v10792
    %v11273 = vpack.c.b16 %v10801, %v10793
    %v11274 = vpack.c.b16 %v10810, %v10802
    %v11275 = vpack.c.b16 %v10811, %v10803
    %v11276 = vpack.c.b16 %v10812, %v10804
    %v11277 = vpack.c.b16 %v10813, %v10805
    %v11278 = vpack.c.b16 %v10814, %v10806
    %v11279 = vpack.c.b16 %v10815, %v10807
    %v11280 = vpack.c.b16 %v10816, %v10808
    %v11281 = vpack.c.b16 %v10817, %v10809
    %v11282 = vpack.c.b16 %v10826, %v10818
    %v11283 = vpack.c.b16 %v10827, %v10819
    %v11284 = vpack.c.b16 %v10828, %v10820
    %v11285 = vpack.c.b16 %v10829, %v10821
    %v11286 = vpack.c.b16 %v10830, %v10822
    %v11287 = vpack.c.b16 %v10831, %v10823
    %v11288 = vpack.c.b16 %v10832, %v10824
    %v11289 = vpack.c.b16 %v10833, %v10825
    %v11290 = vpack.c.b16 %v10842, %v10834
    %v11291 = vpack.c.b16 %v10843, %v10835
    %v11292 = vpack.c.b16 %v10844, %v10836
    %v11293 = vpack.c.b16 %v10845, %v10837
    %v11294 = vpack.c.b16 %v10846, %v10838
    %v11295 = vpack.c.b16 %v10847, %v10839
    %v11296 = vpack.c.b16 %v10848, %v10840
    %v11297 = vpack.c.b16 %v10849, %v10841
    %v11298 = vpack.c.b16 %v10858, %v10850
    %v11299 = vpack.c.b16 %v10859, %v10851
    %v11300 = vpack.c.b16 %v10860, %v10852
    %v11301 = vpack.c.b16 %v10861, %v10853
    %v11302 = vpack.c.b16 %v10862, %v10854
    %v11303 = vpack.c.b16 %v10863, %v10855
    %v11304 = vpack.c.b16 %v10864, %v10856
    %v11305 = vpack.c.b16 %v10865, %v10857
    %v11306 = vpack.c.b16 %v10874, %v10866
    %v11307 = vpack.c.b16 %v10875, %v10867
    %v11308 = vpack.c.b16 %v10876, %v10868
    %v11309 = vpack.c.b16 %v10877, %v10869
    %v11310 = vpack.c.b16 %v10878, %v10870
    %v11311 = vpack.c.b16 %v10879, %v10871
    %v11312 = vpack.c.b16 %v10880, %v10872
    %v11313 = vpack.c.b16 %v10881, %v10873
    %v11314 = vpack.c.b16 %v10890, %v10882
    %v11315 = vpack.c.b16 %v10891, %v10883
    %v11316 = vpack.c.b16 %v10892, %v10884
    %v11317 = vpack.c.b16 %v10893, %v10885
    %v11318 = vpack.c.b16 %v10894, %v10886
    %v11319 = vpack.c.b16 %v10895, %v10887
    %v11320 = vpack.c.b16 %v10896, %v10888
    %v11321 = vpack.c.b16 %v10897, %v10889
    %v11322 = vpack.c.b16 %v10906, %v10898
    %v11323 = vpack.c.b16 %v10907, %v10899
    %v11324 = vpack.c.b16 %v10908, %v10900
    %v11325 = vpack.c.b16 %v10909, %v10901
    %v11326 = vpack.c.b16 %v10910, %v10902
    %v11327 = vpack.c.b16 %v10911, %v10903
    %v11328 = vpack.c.b16 %v10912, %v10904
    %v11329 = vpack.c.b16 %v10913, %v10905
    %v11330 = vpack.c.b16 %v10922, %v10914
    %v11331 = vpack.c.b16 %v10923, %v10915
    %v11332 = vpack.c.b16 %v10924, %v10916
    %v11333 = vpack.c.b16 %v10925, %v10917
    %v11334 = vpack.c.b16 %v10926, %v10918
    %v11335 = vpack.c.b16 %v10927, %v10919
    %v11336 = vpack.c.b16 %v10928, %v10920
    %v11337 = vpack.c.b16 %v10929, %v10921
    %v11338 = vpack.c.b16 %v10938, %v10930
    %v11339 = vpack.c.b16 %v10939, %v10931
    %v11340 = vpack.c.b16 %v10940, %v10932
    %v11341 = vpack.c.b16 %v10941, %v10933
    %v11342 = vpack.c.b16 %v10942, %v10934
    %v11343 = vpack.c.b16 %v10943, %v10935
    %v11344 = vpack.c.b16 %v10944, %v10936
    %v11345 = vpack.c.b16 %v10945, %v10937
    %v11346 = vpack.c.b16 %v10954, %v10946
    %v11347 = vpack.c.b16 %v10955, %v10947
    %v11348 = vpack.c.b16 %v10956, %v10948
    %v11349 = vpack.c.b16 %v10957, %v10949
    %v11350 = vpack.c.b16 %v10958, %v10950
    %v11351 = vpack.c.b16 %v10959, %v10951
    %v11352 = vpack.c.b16 %v10960, %v10952
    %v11353 = vpack.c.b16 %v10961, %v10953
    %v11354 = vpack.c.b16 %v10970, %v10962
    %v11355 = vpack.c.b16 %v10971, %v10963
    %v11356 = vpack.c.b16 %v10972, %v10964
    %v11357 = vpack.c.b16 %v10973, %v10965
    %v11358 = vpack.c.b16 %v10974, %v10966
    %v11359 = vpack.c.b16 %v10975, %v10967
    %v11360 = vpack.c.b16 %v10976, %v10968
    %v11361 = vpack.c.b16 %v10977, %v10969
    %v11362 = vpack.c.b16 %v10986, %v10978
    %v11363 = vpack.c.b16 %v10987, %v10979
    %v11364 = vpack.c.b16 %v10988, %v10980
    %v11365 = vpack.c.b16 %v10989, %v10981
    %v11366 = vpack.c.b16 %v10990, %v10982
    %v11367 = vpack.c.b16 %v10991, %v10983
    %v11368 = vpack.c.b16 %v10992, %v10984
    %v11369 = vpack.c.b16 %v10993, %v10985
    %v11370 = vpack.c.b16 %v11002, %v10994
    %v11371 = vpack.c.b16 %v11003, %v10995
    %v11372 = vpack.c.b16 %v11004, %v10996
    %v11373 = vpack.c.b16 %v11005, %v10997
    %v11374 = vpack.c.b16 %v11006, %v10998
    %v11375 = vpack.c.b16 %v11007, %v10999
    %v11376 = vpack.c.b16 %v11008, %v11000
    %v11377 = vpack.c.b16 %v11009, %v11001
    %v11378 = vpack.c.b16 %v11018, %v11010
    %v11379 = vpack.c.b16 %v11019, %v11011
    %v11380 = vpack.c.b16 %v11020, %v11012
    %v11381 = vpack.c.b16 %v11021, %v11013
    %v11382 = vpack.c.b16 %v11022, %v11014
    %v11383 = vpack.c.b16 %v11023, %v11015
    %v11384 = vpack.c.b16 %v11024, %v11016
    %v11385 = vpack.c.b16 %v11025, %v11017
    %v11386 = vpack.c.b16 %v11034, %v11026
    %v11387 = vpack.c.b16 %v11035, %v11027
    %v11388 = vpack.c.b16 %v11036, %v11028
    %v11389 = vpack.c.b16 %v11037, %v11029
    %v11390 = vpack.c.b16 %v11038, %v11030
    %v11391 = vpack.c.b16 %v11039, %v11031
    %v11392 = vpack.c.b16 %v11040, %v11032
    %v11393 = vpack.c.b16 %v11041, %v11033
    %v11394 = vpack.c.b16 %v11050, %v11042
    %v11395 = vpack.c.b16 %v11051, %v11043
    %v11396 = vpack.c.b16 %v11052, %v11044
    %v11397 = vpack.c.b16 %v11053, %v11045
    %v11398 = vpack.c.b16 %v11054, %v11046
    %v11399 = vpack.c.b16 %v11055, %v11047
    %v11400 = vpack.c.b16 %v11056, %v11048
    %v11401 = vpack.c.b16 %v11057, %v11049
    %v11402 = vpack.c.b16 %v11066, %v11058
    %v11403 = vpack.c.b16 %v11067, %v11059
    %v11404 = vpack.c.b16 %v11068, %v11060
    %v11405 = vpack.c.b16 %v11069, %v11061
    %v11406 = vpack.c.b16 %v11070, %v11062
    %v11407 = vpack.c.b16 %v11071, %v11063
    %v11408 = vpack.c.b16 %v11072, %v11064
    %v11409 = vpack.c.b16 %v11073, %v11065
    %v11410 = vpack.c.b16 %v11082, %v11074
    %v11411 = vpack.c.b16 %v11083, %v11075
    %v11412 = vpack.c.b16 %v11084, %v11076
    %v11413 = vpack.c.b16 %v11085, %v11077
    %v11414 = vpack.c.b16 %v11086, %v11078
    %v11415 = vpack.c.b16 %v11087, %v11079
    %v11416 = vpack.c.b16 %v11088, %v11080
    %v11417 = vpack.c.b16 %v11089, %v11081
    %v11418 = vpack.c.b16 %v11098, %v11090
    %v11419 = vpack.c.b16 %v11099, %v11091
    %v11420 = vpack.c.b16 %v11100, %v11092
    %v11421 = vpack.c.b16 %v11101, %v11093
    %v11422 = vpack.c.b16 %v11102, %v11094
    %v11423 = vpack.c.b16 %v11103, %v11095
    %v11424 = vpack.c.b16 %v11104, %v11096
    %v11425 = vpack.c.b16 %v11105, %v11097
    %v11426 = vpack.c.b16 %v11114, %v11106
    %v11427 = vpack.c.b16 %v11115, %v11107
    %v11428 = vpack.c.b16 %v11116, %v11108
    %v11429 = vpack.c.b16 %v11117, %v11109
    %v11430 = vpack.c.b16 %v11118, %v11110
    %v11431 = vpack.c.b16 %v11119, %v11111
    %v11432 = vpack.c.b16 %v11120, %v11112
    %v11433 = vpack.c.b16 %v11121, %v11113
    %v11434 = vpack.c.b16 %v11130, %v11122
    %v11435 = vpack.c.b16 %v11131, %v11123
    %v11436 = vpack.c.b16 %v11132, %v11124
    %v11437 = vpack.c.b16 %v11133, %v11125
    %v11438 = vpack.c.b16 %v11134, %v11126
    %v11439 = vpack.c.b16 %v11135, %v11127
    %v11440 = vpack.c.b16 %v11136, %v11128
    %v11441 = vpack.c.b16 %v11137, %v11129
    %v11442 = vpack.c.b16 %v11146, %v11138
    %v11443 = vpack.c.b16 %v11147, %v11139
    %v11444 = vpack.c.b16 %v11148, %v11140
    %v11445 = vpack.c.b16 %v11149, %v11141
    %v11446 = vpack.c.b16 %v11150, %v11142
    %v11447 = vpack.c.b16 %v11151, %v11143
    %v11448 = vpack.c.b16 %v11152, %v11144
    %v11449 = vpack.c.b16 %v11153, %v11145
    %v11450 = vpack.c.b16 %v11162, %v11154
    %v11451 = vpack.c.b16 %v11163, %v11155
    %v11452 = vpack.c.b16 %v11164, %v11156
    %v11453 = vpack.c.b16 %v11165, %v11157
    %v11454 = vpack.c.b16 %v11166, %v11158
    %v11455 = vpack.c.b16 %v11167, %v11159
    %v11456 = vpack.c.b16 %v11168, %v11160
    %v11457 = vpack.c.b16 %v11169, %v11161
    %v11458 = vpack.c.b16 %v11178, %v11170
    %v11459 = vpack.c.b16 %v11179, %v11171
    %v11460 = vpack.c.b16 %v11180, %v11172
    %v11461 = vpack.c.b16 %v11181, %v11173
    %v11462 = vpack.c.b16 %v11182, %v11174
    %v11463 = vpack.c.b16 %v11183, %v11175
    %v11464 = vpack.c.b16 %v11184, %v11176
    %v11465 = vpack.c.b16 %v11185, %v11177
    %v11466 = vpack.c.b16 %v11194, %v11186
    %v11467 = vpack.c.b16 %v11195, %v11187
    %v11468 = vpack.c.b16 %v11196, %v11188
    %v11469 = vpack.c.b16 %v11197, %v11189
    %v11470 = vpack.c.b16 %v11198, %v11190
    %v11471 = vpack.c.b16 %v11199, %v11191
    %v11472 = vpack.c.b16 %v11200, %v11192
    %v11473 = vpack.c.b16 %v11201, %v11193
    %v11474 = vpack.c.b16 %v11210, %v11202
    %v11475 = vpack.c.b16 %v11211, %v11203
    %v11476 = vpack.c.b16 %v11212, %v11204
    %v11477 = vpack.c.b16 %v11213, %v11205
    %v11478 = vpack.c.b16 %v11214, %v11206
    %v11479 = vpack.c.b16 %v11215, %v11207
    %v11480 = vpack.c.b16 %v11216, %v11208
    %v11481 = vpack.c.b16 %v11217, %v11209
    %v11482 = vpack.c.b16 %v11226, %v11218
    %v11483 = vpack.c.b16 %v11227, %v11219
    %v11484 = vpack.c.b16 %v11228, %v11220
    %v11485 = vpack.c.b16 %v11229, %v11221
    %v11486 = vpack.c.b16 %v11230, %v11222
    %v11487 = vpack.c.b16 %v11231, %v11223
    %v11488 = vpack.c.b16 %v11232, %v11224
    %v11489 = vpack.c.b16 %v11233, %v11225
    %11746 = vmatpush.bf16.msra.mxu0 %v11290
    %11747 = vmatpush.bf16.msra.mxu0 %v11282
    %11748 = vmatpush.bf16.msra.mxu0 %v11274
    %11749 = vmatpush.bf16.msra.mxu0 %v11266
    %11750 = vmatpush.bf16.msra.mxu0 %v11258
    %11751 = vmatpush.bf16.msra.mxu0 %v11250
    %11752 = vmatpush.bf16.msra.mxu0 %v11242
    %11753 = vmatpush.bf16.msra.mxu0 %v11234
    %11754 = vmatmul.bf16.gmra.mxu0 %v4185
    %v11755 = vpop.f32.mrf.mxu0
    %v11756 = vadd.f32 0.0, %v11755
    %v11757 = vpop.f32.mrf.mxu0
    %v11758 = vadd.f32 0.0, %v11757
    %11759 = vdwg.mxu0
    %11760 = vmatpush.bf16.msra.mxu0 %v11354
    %11761 = vmatpush.bf16.msra.mxu0 %v11346
    %11762 = vmatpush.bf16.msra.mxu0 %v11338
    %11763 = vmatpush.bf16.msra.mxu0 %v11330
    %11764 = vmatpush.bf16.msra.mxu0 %v11322
    %11765 = vmatpush.bf16.msra.mxu0 %v11314
    %11766 = vmatpush.bf16.msra.mxu0 %v11306
    %11767 = vmatpush.bf16.msra.mxu0 %v11298
    %11768 = vmatmul.bf16.gmra.mxu0 %v4186
    %v11769 = vpop.f32.mrf.mxu0
    %v11770 = vadd.f32 %v11756, %v11769
    %v11771 = vpop.f32.mrf.mxu0
    %v11772 = vadd.f32 %v11758, %v11771
    %11773 = vdwg.mxu0
    %11774 = vmatpush.bf16.msra.mxu0 %v11418
    %11775 = vmatpush.bf16.msra.mxu0 %v11410
    %11776 = vmatpush.bf16.msra.mxu0 %v11402
    %11777 = vmatpush.bf16.msra.mxu0 %v11394
    %11778 = vmatpush.bf16.msra.mxu0 %v11386
    %11779 = vmatpush.bf16.msra.mxu0 %v11378
    %11780 = vmatpush.bf16.msra.mxu0 %v11370
    %11781 = vmatpush.bf16.msra.mxu0 %v11362
    %11782 = vmatmul.bf16.gmra.mxu0 %v4187
    %v11783 = vpop.f32.mrf.mxu0
    %v11784 = vadd.f32 %v11770, %v11783
    %v11785 = vpop.f32.mrf.mxu0
    %v11786 = vadd.f32 %v11772, %v11785
    %11787 = vdwg.mxu0
    %11788 = vmatpush.bf16.msra.mxu0 %v11482
    %11789 = vmatpush.bf16.msra.mxu0 %v11474
    %11790 = vmatpush.bf16.msra.mxu0 %v11466
    %11791 = vmatpush.bf16.msra.mxu0 %v11458
    %11792 = vmatpush.bf16.msra.mxu0 %v11450
    %11793 = vmatpush.bf16.msra.mxu0 %v11442
    %11794 = vmatpush.bf16.msra.mxu0 %v11434
    %11795 = vmatpush.bf16.msra.mxu0 %v11426
    %11796 = vmatmul.bf16.gmra.mxu0 %v4188
    %v11797 = vpop.f32.mrf.mxu0
    %v11798 = vadd.f32 %v11784, %v11797
    %v11799 = vpop.f32.mrf.mxu0
    %v11800 = vadd.f32 %v11786, %v11799
    %11801 = vdwg.mxu0
    %11802 = vmatpush.bf16.msra.mxu0 %v11291
    %11803 = vmatpush.bf16.msra.mxu0 %v11283
    %11804 = vmatpush.bf16.msra.mxu0 %v11275
    %11805 = vmatpush.bf16.msra.mxu0 %v11267
    %11806 = vmatpush.bf16.msra.mxu0 %v11259
    %11807 = vmatpush.bf16.msra.mxu0 %v11251
    %11808 = vmatpush.bf16.msra.mxu0 %v11243
    %11809 = vmatpush.bf16.msra.mxu0 %v11235
    %11810 = vmatmul.bf16.gmra.mxu0 %v4185
    %v11811 = vpop.f32.mrf.mxu0
    %v11812 = vadd.f32 0.0, %v11811
    %v11813 = vpop.f32.mrf.mxu0
    %v11814 = vadd.f32 0.0, %v11813
    %11815 = vdwg.mxu0
    %11816 = vmatpush.bf16.msra.mxu0 %v11355
    %11817 = vmatpush.bf16.msra.mxu0 %v11347
    %11818 = vmatpush.bf16.msra.mxu0 %v11339
    %11819 = vmatpush.bf16.msra.mxu0 %v11331
    %11820 = vmatpush.bf16.msra.mxu0 %v11323
    %11821 = vmatpush.bf16.msra.mxu0 %v11315
    %11822 = vmatpush.bf16.msra.mxu0 %v11307
    %11823 = vmatpush.bf16.msra.mxu0 %v11299
    %11824 = vmatmul.bf16.gmra.mxu0 %v4186
    %v11825 = vpop.f32.mrf.mxu0
    %v11826 = vadd.f32 %v11812, %v11825
    %v11827 = vpop.f32.mrf.mxu0
    %v11828 = vadd.f32 %v11814, %v11827
    %11829 = vdwg.mxu0
    %11830 = vmatpush.bf16.msra.mxu0 %v11419
    %11831 = vmatpush.bf16.msra.mxu0 %v11411
    %11832 = vmatpush.bf16.msra.mxu0 %v11403
    %11833 = vmatpush.bf16.msra.mxu0 %v11395
    %11834 = vmatpush.bf16.msra.mxu0 %v11387
    %11835 = vmatpush.bf16.msra.mxu0 %v11379
    %11836 = vmatpush.bf16.msra.mxu0 %v11371
    %11837 = vmatpush.bf16.msra.mxu0 %v11363
    %11838 = vmatmul.bf16.gmra.mxu0 %v4187
    %v11839 = vpop.f32.mrf.mxu0
    %v11840 = vadd.f32 %v11826, %v11839
    %v11841 = vpop.f32.mrf.mxu0
    %v11842 = vadd.f32 %v11828, %v11841
    %11843 = vdwg.mxu0
    %11844 = vmatpush.bf16.msra.mxu0 %v11483
    %11845 = vmatpush.bf16.msra.mxu0 %v11475
    %11846 = vmatpush.bf16.msra.mxu0 %v11467
    %11847 = vmatpush.bf16.msra.mxu0 %v11459
    %11848 = vmatpush.bf16.msra.mxu0 %v11451
    %11849 = vmatpush.bf16.msra.mxu0 %v11443
    %11850 = vmatpush.bf16.msra.mxu0 %v11435
    %11851 = vmatpush.bf16.msra.mxu0 %v11427
    %11852 = vmatmul.bf16.gmra.mxu0 %v4188
    %v11853 = vpop.f32.mrf.mxu0
    %v11854 = vadd.f32 %v11840, %v11853
    %v11855 = vpop.f32.mrf.mxu0
    %v11856 = vadd.f32 %v11842, %v11855
    %11857 = vdwg.mxu0
    %11858 = vmatpush.bf16.msra.mxu0 %v11292
    %11859 = vmatpush.bf16.msra.mxu0 %v11284
    %11860 = vmatpush.bf16.msra.mxu0 %v11276
    %11861 = vmatpush.bf16.msra.mxu0 %v11268
    %11862 = vmatpush.bf16.msra.mxu0 %v11260
    %11863 = vmatpush.bf16.msra.mxu0 %v11252
    %11864 = vmatpush.bf16.msra.mxu0 %v11244
    %11865 = vmatpush.bf16.msra.mxu0 %v11236
    %11866 = vmatmul.bf16.gmra.mxu0 %v4185
    %v11867 = vpop.f32.mrf.mxu0
    %v11868 = vadd.f32 0.0, %v11867
    %v11869 = vpop.f32.mrf.mxu0
    %v11870 = vadd.f32 0.0, %v11869
    %11871 = vdwg.mxu0
    %11872 = vmatpush.bf16.msra.mxu0 %v11356
    %11873 = vmatpush.bf16.msra.mxu0 %v11348
    %11874 = vmatpush.bf16.msra.mxu0 %v11340
    %11875 = vmatpush.bf16.msra.mxu0 %v11332
    %11876 = vmatpush.bf16.msra.mxu0 %v11324
    %11877 = vmatpush.bf16.msra.mxu0 %v11316
    %11878 = vmatpush.bf16.msra.mxu0 %v11308
    %11879 = vmatpush.bf16.msra.mxu0 %v11300
    %11880 = vmatmul.bf16.gmra.mxu0 %v4186
    %v11881 = vpop.f32.mrf.mxu0
    %v11882 = vadd.f32 %v11868, %v11881
    %v11883 = vpop.f32.mrf.mxu0
    %v11884 = vadd.f32 %v11870, %v11883
    %11885 = vdwg.mxu0
    %11886 = vmatpush.bf16.msra.mxu0 %v11420
    %11887 = vmatpush.bf16.msra.mxu0 %v11412
    %11888 = vmatpush.bf16.msra.mxu0 %v11404
    %11889 = vmatpush.bf16.msra.mxu0 %v11396
    %11890 = vmatpush.bf16.msra.mxu0 %v11388
    %11891 = vmatpush.bf16.msra.mxu0 %v11380
    %11892 = vmatpush.bf16.msra.mxu0 %v11372
    %11893 = vmatpush.bf16.msra.mxu0 %v11364
    %11894 = vmatmul.bf16.gmra.mxu0 %v4187
    %v11895 = vpop.f32.mrf.mxu0
    %v11896 = vadd.f32 %v11882, %v11895
    %v11897 = vpop.f32.mrf.mxu0
    %v11898 = vadd.f32 %v11884, %v11897
    %11899 = vdwg.mxu0
    %11900 = vmatpush.bf16.msra.mxu0 %v11484
    %11901 = vmatpush.bf16.msra.mxu0 %v11476
    %11902 = vmatpush.bf16.msra.mxu0 %v11468
    %11903 = vmatpush.bf16.msra.mxu0 %v11460
    %11904 = vmatpush.bf16.msra.mxu0 %v11452
    %11905 = vmatpush.bf16.msra.mxu0 %v11444
    %11906 = vmatpush.bf16.msra.mxu0 %v11436
    %11907 = vmatpush.bf16.msra.mxu0 %v11428
    %11908 = vmatmul.bf16.gmra.mxu0 %v4188
    %v11909 = vpop.f32.mrf.mxu0
    %v11910 = vadd.f32 %v11896, %v11909
    %v11911 = vpop.f32.mrf.mxu0
    %v11912 = vadd.f32 %v11898, %v11911
    %11913 = vdwg.mxu0
    %11914 = vmatpush.bf16.msra.mxu0 %v11293
    %11915 = vmatpush.bf16.msra.mxu0 %v11285
    %11916 = vmatpush.bf16.msra.mxu0 %v11277
    %11917 = vmatpush.bf16.msra.mxu0 %v11269
    %11918 = vmatpush.bf16.msra.mxu0 %v11261
    %11919 = vmatpush.bf16.msra.mxu0 %v11253
    %11920 = vmatpush.bf16.msra.mxu0 %v11245
    %11921 = vmatpush.bf16.msra.mxu0 %v11237
    %11922 = vmatmul.bf16.gmra.mxu0 %v4185
    %v11923 = vpop.f32.mrf.mxu0
    %v11924 = vadd.f32 0.0, %v11923
    %v11925 = vpop.f32.mrf.mxu0
    %v11926 = vadd.f32 0.0, %v11925
    %11927 = vdwg.mxu0
    %11928 = vmatpush.bf16.msra.mxu0 %v11357
    %11929 = vmatpush.bf16.msra.mxu0 %v11349
    %11930 = vmatpush.bf16.msra.mxu0 %v11341
    %11931 = vmatpush.bf16.msra.mxu0 %v11333
    %11932 = vmatpush.bf16.msra.mxu0 %v11325
    %11933 = vmatpush.bf16.msra.mxu0 %v11317
    %11934 = vmatpush.bf16.msra.mxu0 %v11309
    %11935 = vmatpush.bf16.msra.mxu0 %v11301
    %11936 = vmatmul.bf16.gmra.mxu0 %v4186
    %v11937 = vpop.f32.mrf.mxu0
    %v11938 = vadd.f32 %v11924, %v11937
    %v11939 = vpop.f32.mrf.mxu0
    %v11940 = vadd.f32 %v11926, %v11939
    %11941 = vdwg.mxu0
    %11942 = vmatpush.bf16.msra.mxu0 %v11421
    %11943 = vmatpush.bf16.msra.mxu0 %v11413
    %11944 = vmatpush.bf16.msra.mxu0 %v11405
    %11945 = vmatpush.bf16.msra.mxu0 %v11397
    %11946 = vmatpush.bf16.msra.mxu0 %v11389
    %11947 = vmatpush.bf16.msra.mxu0 %v11381
    %11948 = vmatpush.bf16.msra.mxu0 %v11373
    %11949 = vmatpush.bf16.msra.mxu0 %v11365
    %11950 = vmatmul.bf16.gmra.mxu0 %v4187
    %v11951 = vpop.f32.mrf.mxu0
    %v11952 = vadd.f32 %v11938, %v11951
    %v11953 = vpop.f32.mrf.mxu0
    %v11954 = vadd.f32 %v11940, %v11953
    %11955 = vdwg.mxu0
    %11956 = vmatpush.bf16.msra.mxu0 %v11485
    %11957 = vmatpush.bf16.msra.mxu0 %v11477
    %11958 = vmatpush.bf16.msra.mxu0 %v11469
    %11959 = vmatpush.bf16.msra.mxu0 %v11461
    %11960 = vmatpush.bf16.msra.mxu0 %v11453
    %11961 = vmatpush.bf16.msra.mxu0 %v11445
    %11962 = vmatpush.bf16.msra.mxu0 %v11437
    %11963 = vmatpush.bf16.msra.mxu0 %v11429
    %11964 = vmatmul.bf16.gmra.mxu0 %v4188
    %v11965 = vpop.f32.mrf.mxu0
    %v11966 = vadd.f32 %v11952, %v11965
    %v11967 = vpop.f32.mrf.mxu0
    %v11968 = vadd.f32 %v11954, %v11967
    %11969 = vdwg.mxu0
    %11970 = vmatpush.bf16.msra.mxu0 %v11294
    %11971 = vmatpush.bf16.msra.mxu0 %v11286
    %11972 = vmatpush.bf16.msra.mxu0 %v11278
    %11973 = vmatpush.bf16.msra.mxu0 %v11270
    %11974 = vmatpush.bf16.msra.mxu0 %v11262
    %11975 = vmatpush.bf16.msra.mxu0 %v11254
    %11976 = vmatpush.bf16.msra.mxu0 %v11246
    %11977 = vmatpush.bf16.msra.mxu0 %v11238
    %11978 = vmatmul.bf16.gmra.mxu0 %v4185
    %v11979 = vpop.f32.mrf.mxu0
    %v11980 = vadd.f32 0.0, %v11979
    %v11981 = vpop.f32.mrf.mxu0
    %v11982 = vadd.f32 0.0, %v11981
    %11983 = vdwg.mxu0
    %11984 = vmatpush.bf16.msra.mxu0 %v11358
    %11985 = vmatpush.bf16.msra.mxu0 %v11350
    %11986 = vmatpush.bf16.msra.mxu0 %v11342
    %11987 = vmatpush.bf16.msra.mxu0 %v11334
    %11988 = vmatpush.bf16.msra.mxu0 %v11326
    %11989 = vmatpush.bf16.msra.mxu0 %v11318
    %11990 = vmatpush.bf16.msra.mxu0 %v11310
    %11991 = vmatpush.bf16.msra.mxu0 %v11302
    %11992 = vmatmul.bf16.gmra.mxu0 %v4186
    %v11993 = vpop.f32.mrf.mxu0
    %v11994 = vadd.f32 %v11980, %v11993
    %v11995 = vpop.f32.mrf.mxu0
    %v11996 = vadd.f32 %v11982, %v11995
    %11997 = vdwg.mxu0
    %11998 = vmatpush.bf16.msra.mxu0 %v11422
    %11999 = vmatpush.bf16.msra.mxu0 %v11414
    %12000 = vmatpush.bf16.msra.mxu0 %v11406
    %12001 = vmatpush.bf16.msra.mxu0 %v11398
    %12002 = vmatpush.bf16.msra.mxu0 %v11390
    %12003 = vmatpush.bf16.msra.mxu0 %v11382
    %12004 = vmatpush.bf16.msra.mxu0 %v11374
    %12005 = vmatpush.bf16.msra.mxu0 %v11366
    %12006 = vmatmul.bf16.gmra.mxu0 %v4187
    %v12007 = vpop.f32.mrf.mxu0
    %v12008 = vadd.f32 %v11994, %v12007
    %v12009 = vpop.f32.mrf.mxu0
    %v12010 = vadd.f32 %v11996, %v12009
    %12011 = vdwg.mxu0
    %12012 = vmatpush.bf16.msra.mxu0 %v11486
    %12013 = vmatpush.bf16.msra.mxu0 %v11478
    %12014 = vmatpush.bf16.msra.mxu0 %v11470
    %12015 = vmatpush.bf16.msra.mxu0 %v11462
    %12016 = vmatpush.bf16.msra.mxu0 %v11454
    %12017 = vmatpush.bf16.msra.mxu0 %v11446
    %12018 = vmatpush.bf16.msra.mxu0 %v11438
    %12019 = vmatpush.bf16.msra.mxu0 %v11430
    %12020 = vmatmul.bf16.gmra.mxu0 %v4188
    %v12021 = vpop.f32.mrf.mxu0
    %v12022 = vadd.f32 %v12008, %v12021
    %v12023 = vpop.f32.mrf.mxu0
    %v12024 = vadd.f32 %v12010, %v12023
    %12025 = vdwg.mxu0
    %12026 = vmatpush.bf16.msra.mxu0 %v11295
    %12027 = vmatpush.bf16.msra.mxu0 %v11287
    %12028 = vmatpush.bf16.msra.mxu0 %v11279
    %12029 = vmatpush.bf16.msra.mxu0 %v11271
    %12030 = vmatpush.bf16.msra.mxu0 %v11263
    %12031 = vmatpush.bf16.msra.mxu0 %v11255
    %12032 = vmatpush.bf16.msra.mxu0 %v11247
    %12033 = vmatpush.bf16.msra.mxu0 %v11239
    %12034 = vmatmul.bf16.gmra.mxu0 %v4185
    %v12035 = vpop.f32.mrf.mxu0
    %v12036 = vadd.f32 0.0, %v12035
    %v12037 = vpop.f32.mrf.mxu0
    %v12038 = vadd.f32 0.0, %v12037
    %12039 = vdwg.mxu0
    %12040 = vmatpush.bf16.msra.mxu0 %v11359
    %12041 = vmatpush.bf16.msra.mxu0 %v11351
    %12042 = vmatpush.bf16.msra.mxu0 %v11343
    %12043 = vmatpush.bf16.msra.mxu0 %v11335
    %12044 = vmatpush.bf16.msra.mxu0 %v11327
    %12045 = vmatpush.bf16.msra.mxu0 %v11319
    %12046 = vmatpush.bf16.msra.mxu0 %v11311
    %12047 = vmatpush.bf16.msra.mxu0 %v11303
    %12048 = vmatmul.bf16.gmra.mxu0 %v4186
    %v12049 = vpop.f32.mrf.mxu0
    %v12050 = vadd.f32 %v12036, %v12049
    %v12051 = vpop.f32.mrf.mxu0
    %v12052 = vadd.f32 %v12038, %v12051
    %12053 = vdwg.mxu0
    %12054 = vmatpush.bf16.msra.mxu0 %v11423
    %12055 = vmatpush.bf16.msra.mxu0 %v11415
    %12056 = vmatpush.bf16.msra.mxu0 %v11407
    %12057 = vmatpush.bf16.msra.mxu0 %v11399
    %12058 = vmatpush.bf16.msra.mxu0 %v11391
    %12059 = vmatpush.bf16.msra.mxu0 %v11383
    %12060 = vmatpush.bf16.msra.mxu0 %v11375
    %12061 = vmatpush.bf16.msra.mxu0 %v11367
    %12062 = vmatmul.bf16.gmra.mxu0 %v4187
    %v12063 = vpop.f32.mrf.mxu0
    %v12064 = vadd.f32 %v12050, %v12063
    %v12065 = vpop.f32.mrf.mxu0
    %v12066 = vadd.f32 %v12052, %v12065
    %12067 = vdwg.mxu0
    %12068 = vmatpush.bf16.msra.mxu0 %v11487
    %12069 = vmatpush.bf16.msra.mxu0 %v11479
    %12070 = vmatpush.bf16.msra.mxu0 %v11471
    %12071 = vmatpush.bf16.msra.mxu0 %v11463
    %12072 = vmatpush.bf16.msra.mxu0 %v11455
    %12073 = vmatpush.bf16.msra.mxu0 %v11447
    %12074 = vmatpush.bf16.msra.mxu0 %v11439
    %12075 = vmatpush.bf16.msra.mxu0 %v11431
    %12076 = vmatmul.bf16.gmra.mxu0 %v4188
    %v12077 = vpop.f32.mrf.mxu0
    %v12078 = vadd.f32 %v12064, %v12077
    %v12079 = vpop.f32.mrf.mxu0
    %v12080 = vadd.f32 %v12066, %v12079
    %12081 = vdwg.mxu0
    %12082 = vmatpush.bf16.msra.mxu0 %v11296
    %12083 = vmatpush.bf16.msra.mxu0 %v11288
    %12084 = vmatpush.bf16.msra.mxu0 %v11280
    %12085 = vmatpush.bf16.msra.mxu0 %v11272
    %12086 = vmatpush.bf16.msra.mxu0 %v11264
    %12087 = vmatpush.bf16.msra.mxu0 %v11256
    %12088 = vmatpush.bf16.msra.mxu0 %v11248
    %12089 = vmatpush.bf16.msra.mxu0 %v11240
    %12090 = vmatmul.bf16.gmra.mxu0 %v4185
    %v12091 = vpop.f32.mrf.mxu0
    %v12092 = vadd.f32 0.0, %v12091
    %v12093 = vpop.f32.mrf.mxu0
    %v12094 = vadd.f32 0.0, %v12093
    %12095 = vdwg.mxu0
    %12096 = vmatpush.bf16.msra.mxu0 %v11360
    %12097 = vmatpush.bf16.msra.mxu0 %v11352
    %12098 = vmatpush.bf16.msra.mxu0 %v11344
    %12099 = vmatpush.bf16.msra.mxu0 %v11336
    %12100 = vmatpush.bf16.msra.mxu0 %v11328
    %12101 = vmatpush.bf16.msra.mxu0 %v11320
    %12102 = vmatpush.bf16.msra.mxu0 %v11312
    %12103 = vmatpush.bf16.msra.mxu0 %v11304
    %12104 = vmatmul.bf16.gmra.mxu0 %v4186
    %v12105 = vpop.f32.mrf.mxu0
    %v12106 = vadd.f32 %v12092, %v12105
    %v12107 = vpop.f32.mrf.mxu0
    %v12108 = vadd.f32 %v12094, %v12107
    %12109 = vdwg.mxu0
    %12110 = vmatpush.bf16.msra.mxu0 %v11424
    %12111 = vmatpush.bf16.msra.mxu0 %v11416
    %12112 = vmatpush.bf16.msra.mxu0 %v11408
    %12113 = vmatpush.bf16.msra.mxu0 %v11400
    %12114 = vmatpush.bf16.msra.mxu0 %v11392
    %12115 = vmatpush.bf16.msra.mxu0 %v11384
    %12116 = vmatpush.bf16.msra.mxu0 %v11376
    %12117 = vmatpush.bf16.msra.mxu0 %v11368
    %12118 = vmatmul.bf16.gmra.mxu0 %v4187
    %v12119 = vpop.f32.mrf.mxu0
    %v12120 = vadd.f32 %v12106, %v12119
    %v12121 = vpop.f32.mrf.mxu0
    %v12122 = vadd.f32 %v12108, %v12121
    %12123 = vdwg.mxu0
    %12124 = vmatpush.bf16.msra.mxu0 %v11488
    %12125 = vmatpush.bf16.msra.mxu0 %v11480
    %12126 = vmatpush.bf16.msra.mxu0 %v11472
    %12127 = vmatpush.bf16.msra.mxu0 %v11464
    %12128 = vmatpush.bf16.msra.mxu0 %v11456
    %12129 = vmatpush.bf16.msra.mxu0 %v11448
    %12130 = vmatpush.bf16.msra.mxu0 %v11440
    %12131 = vmatpush.bf16.msra.mxu0 %v11432
    %12132 = vmatmul.bf16.gmra.mxu0 %v4188
    %v12133 = vpop.f32.mrf.mxu0
    %v12134 = vadd.f32 %v12120, %v12133
    %v12135 = vpop.f32.mrf.mxu0
    %v12136 = vadd.f32 %v12122, %v12135
    %12137 = vdwg.mxu0
    %12138 = vmatpush.bf16.msra.mxu0 %v11297
    %12139 = vmatpush.bf16.msra.mxu0 %v11289
    %12140 = vmatpush.bf16.msra.mxu0 %v11281
    %12141 = vmatpush.bf16.msra.mxu0 %v11273
    %12142 = vmatpush.bf16.msra.mxu0 %v11265
    %12143 = vmatpush.bf16.msra.mxu0 %v11257
    %12144 = vmatpush.bf16.msra.mxu0 %v11249
    %12145 = vmatpush.bf16.msra.mxu0 %v11241
    %12146 = vmatmul.bf16.gmra.mxu0 %v4185
    %v12147 = vpop.f32.mrf.mxu0
    %v12148 = vadd.f32 0.0, %v12147
    %v12149 = vpop.f32.mrf.mxu0
    %v12150 = vadd.f32 0.0, %v12149
    %12151 = vdwg.mxu0
    %12152 = vmatpush.bf16.msra.mxu0 %v11361
    %12153 = vmatpush.bf16.msra.mxu0 %v11353
    %12154 = vmatpush.bf16.msra.mxu0 %v11345
    %12155 = vmatpush.bf16.msra.mxu0 %v11337
    %12156 = vmatpush.bf16.msra.mxu0 %v11329
    %12157 = vmatpush.bf16.msra.mxu0 %v11321
    %12158 = vmatpush.bf16.msra.mxu0 %v11313
    %12159 = vmatpush.bf16.msra.mxu0 %v11305
    %12160 = vmatmul.bf16.gmra.mxu0 %v4186
    %v12161 = vpop.f32.mrf.mxu0
    %v12162 = vadd.f32 %v12148, %v12161
    %v12163 = vpop.f32.mrf.mxu0
    %v12164 = vadd.f32 %v12150, %v12163
    %12165 = vdwg.mxu0
    %12166 = vmatpush.bf16.msra.mxu0 %v11425
    %12167 = vmatpush.bf16.msra.mxu0 %v11417
    %12168 = vmatpush.bf16.msra.mxu0 %v11409
    %12169 = vmatpush.bf16.msra.mxu0 %v11401
    %12170 = vmatpush.bf16.msra.mxu0 %v11393
    %12171 = vmatpush.bf16.msra.mxu0 %v11385
    %12172 = vmatpush.bf16.msra.mxu0 %v11377
    %12173 = vmatpush.bf16.msra.mxu0 %v11369
    %12174 = vmatmul.bf16.gmra.mxu0 %v4187
    %v12175 = vpop.f32.mrf.mxu0
    %v12176 = vadd.f32 %v12162, %v12175
    %v12177 = vpop.f32.mrf.mxu0
    %v12178 = vadd.f32 %v12164, %v12177
    %12179 = vdwg.mxu0
    %12180 = vmatpush.bf16.msra.mxu0 %v11489
    %12181 = vmatpush.bf16.msra.mxu0 %v11481
    %12182 = vmatpush.bf16.msra.mxu0 %v11473
    %12183 = vmatpush.bf16.msra.mxu0 %v11465
    %12184 = vmatpush.bf16.msra.mxu0 %v11457
    %12185 = vmatpush.bf16.msra.mxu0 %v11449
    %12186 = vmatpush.bf16.msra.mxu0 %v11441
    %12187 = vmatpush.bf16.msra.mxu0 %v11433
    %12188 = vmatmul.bf16.gmra.mxu0 %v4188
    %v12189 = vpop.f32.mrf.mxu0
    %v12190 = vadd.f32 %v12176, %v12189
    %v12191 = vpop.f32.mrf.mxu0
    %v12192 = vadd.f32 %v12178, %v12191
    %12193 = vdwg.mxu0
    %v12194 = vadd.f32 %v10193, %v11798
    %v12195 = vadd.f32 %v10194, %v11854
    %v12196 = vadd.f32 %v10195, %v11910
    %v12197 = vadd.f32 %v10196, %v11966
    %v12198 = vadd.f32 %v10197, %v12022
    %v12199 = vadd.f32 %v10198, %v12078
    %v12200 = vadd.f32 %v10199, %v12134
    %v12201 = vadd.f32 %v10200, %v12190
    %v12202 = vadd.f32 %v10201, %v11800
    %v12203 = vadd.f32 %v10202, %v11856
    %v12204 = vadd.f32 %v10203, %v11912
    %v12205 = vadd.f32 %v10204, %v11968
    %v12206 = vadd.f32 %v10205, %v12024
    %v12207 = vadd.f32 %v10206, %v12080
    %v12208 = vadd.f32 %v10207, %v12136
    %v12209 = vadd.f32 %v10208, %v12192
    %v12210 = vmax.f32 %v12194, 0.0
    %v12211 = vmax.f32 %v12195, 0.0
    %v12212 = vmax.f32 %v12196, 0.0
    %v12213 = vmax.f32 %v12197, 0.0
    %v12214 = vmax.f32 %v12198, 0.0
    %v12215 = vmax.f32 %v12199, 0.0
    %v12216 = vmax.f32 %v12200, 0.0
    %v12217 = vmax.f32 %v12201, 0.0
    %v12218 = vmax.f32 %v12202, 0.0
    %v12219 = vmax.f32 %v12203, 0.0
    %v12220 = vmax.f32 %v12204, 0.0
    %v12221 = vmax.f32 %v12205, 0.0
    %v12222 = vmax.f32 %v12206, 0.0
    %v12223 = vmax.f32 %v12207, 0.0
    %v12224 = vmax.f32 %v12208, 0.0
    %v12225 = vmax.f32 %v12209, 0.0
    %v12226 = vpack.c.bf16 %v12218, %v12210
    %v12227 = vpack.c.bf16 %v12219, %v12211
    %v12228 = vpack.c.bf16 %v12220, %v12212
    %v12229 = vpack.c.bf16 %v12221, %v12213
    %v12230 = vpack.c.bf16 %v12222, %v12214
    %v12231 = vpack.c.bf16 %v12223, %v12215
    %v12232 = vpack.c.bf16 %v12224, %v12216
    %v12233 = vpack.c.bf16 %v12225, %v12217
    %v12234 = vld [vmem:[#allocation12] sm:$0xff]
    %v12235 = vld [vmem:[#allocation12 + $0x8] sm:$0xff]
    %v12236 = vld [vmem:[#allocation12 + $0x10] sm:$0xff]
    %v12237 = vld [vmem:[#allocation12 + $0x18] sm:$0xff]
    %v12238 = vld [vmem:[#allocation12 + $0x20] sm:$0xff]
    %v12239 = vld [vmem:[#allocation12 + $0x28] sm:$0xff]
    %v12240 = vld [vmem:[#allocation12 + $0x30] sm:$0xff]
    %v12241 = vld [vmem:[#allocation12 + $0x38] sm:$0xff]
    %v12242 = vld [vmem:[#allocation12 + $0x40] sm:$0xff]
    %v12243 = vld [vmem:[#allocation12 + $0x48] sm:$0xff]
    %v12244 = vld [vmem:[#allocation12 + $0x50] sm:$0xff]
    %v12245 = vld [vmem:[#allocation12 + $0x58] sm:$0xff]
    %v12246 = vld [vmem:[#allocation12 + $0x60] sm:$0xff]
    %v12247 = vld [vmem:[#allocation12 + $0x68] sm:$0xff]
    %v12248 = vld [vmem:[#allocation12 + $0x70] sm:$0xff]
    %v12249 = vld [vmem:[#allocation12 + $0x78] sm:$0xff]
    %v12250 = vld [vmem:[#allocation12 + $0x80] sm:$0xff]
    %v12251 = vld [vmem:[#allocation12 + $0x88] sm:$0xff]
    %v12252 = vld [vmem:[#allocation12 + $0x90] sm:$0xff]
    %v12253 = vld [vmem:[#allocation12 + $0x98] sm:$0xff]
    %v12254 = vld [vmem:[#allocation12 + $0xa0] sm:$0xff]
    %v12255 = vld [vmem:[#allocation12 + $0xa8] sm:$0xff]
    %v12256 = vld [vmem:[#allocation12 + $0xb0] sm:$0xff]
    %v12257 = vld [vmem:[#allocation12 + $0xb8] sm:$0xff]
    %v12258 = vld [vmem:[#allocation12 + $0xc0] sm:$0xff]
    %v12259 = vld [vmem:[#allocation12 + $0xc8] sm:$0xff]
    %v12260 = vld [vmem:[#allocation12 + $0xd0] sm:$0xff]
    %v12261 = vld [vmem:[#allocation12 + $0xd8] sm:$0xff]
    %v12262 = vld [vmem:[#allocation12 + $0xe0] sm:$0xff]
    %v12263 = vld [vmem:[#allocation12 + $0xe8] sm:$0xff]
    %v12264 = vld [vmem:[#allocation12 + $0xf0] sm:$0xff]
    %v12265 = vld [vmem:[#allocation12 + $0xf8] sm:$0xff]
    %v12266 = vld [vmem:[#allocation12 + $0x100] sm:$0xff]
    %v12267 = vld [vmem:[#allocation12 + $0x108] sm:$0xff]
    %v12268 = vld [vmem:[#allocation12 + $0x110] sm:$0xff]
    %v12269 = vld [vmem:[#allocation12 + $0x118] sm:$0xff]
    %v12270 = vld [vmem:[#allocation12 + $0x120] sm:$0xff]
    %v12271 = vld [vmem:[#allocation12 + $0x128] sm:$0xff]
    %v12272 = vld [vmem:[#allocation12 + $0x130] sm:$0xff]
    %v12273 = vld [vmem:[#allocation12 + $0x138] sm:$0xff]
    %v12274 = vld [vmem:[#allocation12 + $0x140] sm:$0xff]
    %v12275 = vld [vmem:[#allocation12 + $0x148] sm:$0xff]
    %v12276 = vld [vmem:[#allocation12 + $0x150] sm:$0xff]
    %v12277 = vld [vmem:[#allocation12 + $0x158] sm:$0xff]
    %v12278 = vld [vmem:[#allocation12 + $0x160] sm:$0xff]
    %v12279 = vld [vmem:[#allocation12 + $0x168] sm:$0xff]
    %v12280 = vld [vmem:[#allocation12 + $0x170] sm:$0xff]
    %v12281 = vld [vmem:[#allocation12 + $0x178] sm:$0xff]
    %v12282 = vld [vmem:[#allocation12 + $0x180] sm:$0xff]
    %v12283 = vld [vmem:[#allocation12 + $0x188] sm:$0xff]
    %v12284 = vld [vmem:[#allocation12 + $0x190] sm:$0xff]
    %v12285 = vld [vmem:[#allocation12 + $0x198] sm:$0xff]
    %v12286 = vld [vmem:[#allocation12 + $0x1a0] sm:$0xff]
    %v12287 = vld [vmem:[#allocation12 + $0x1a8] sm:$0xff]
    %v12288 = vld [vmem:[#allocation12 + $0x1b0] sm:$0xff]
    %v12289 = vld [vmem:[#allocation12 + $0x1b8] sm:$0xff]
    %v12290 = vld [vmem:[#allocation12 + $0x1c0] sm:$0xff]
    %v12291 = vld [vmem:[#allocation12 + $0x1c8] sm:$0xff]
    %v12292 = vld [vmem:[#allocation12 + $0x1d0] sm:$0xff]
    %v12293 = vld [vmem:[#allocation12 + $0x1d8] sm:$0xff]
    %v12294 = vld [vmem:[#allocation12 + $0x1e0] sm:$0xff]
    %v12295 = vld [vmem:[#allocation12 + $0x1e8] sm:$0xff]
    %v12296 = vld [vmem:[#allocation12 + $0x1f0] sm:$0xff]
    %v12297 = vld [vmem:[#allocation12 + $0x1f8] sm:$0xff]
    %v12298 = vld [vmem:[#allocation12 + $0x200] sm:$0xff]
    %v12299 = vld [vmem:[#allocation12 + $0x208] sm:$0xff]
    %v12300 = vld [vmem:[#allocation12 + $0x210] sm:$0xff]
    %v12301 = vld [vmem:[#allocation12 + $0x218] sm:$0xff]
    %v12302 = vld [vmem:[#allocation12 + $0x220] sm:$0xff]
    %v12303 = vld [vmem:[#allocation12 + $0x228] sm:$0xff]
    %v12304 = vld [vmem:[#allocation12 + $0x230] sm:$0xff]
    %v12305 = vld [vmem:[#allocation12 + $0x238] sm:$0xff]
    %v12306 = vld [vmem:[#allocation12 + $0x240] sm:$0xff]
    %v12307 = vld [vmem:[#allocation12 + $0x248] sm:$0xff]
    %v12308 = vld [vmem:[#allocation12 + $0x250] sm:$0xff]
    %v12309 = vld [vmem:[#allocation12 + $0x258] sm:$0xff]
    %v12310 = vld [vmem:[#allocation12 + $0x260] sm:$0xff]
    %v12311 = vld [vmem:[#allocation12 + $0x268] sm:$0xff]
    %v12312 = vld [vmem:[#allocation12 + $0x270] sm:$0xff]
    %v12313 = vld [vmem:[#allocation12 + $0x278] sm:$0xff]
    %v12314 = vld [vmem:[#allocation12 + $0x280] sm:$0xff]
    %v12315 = vld [vmem:[#allocation12 + $0x288] sm:$0xff]
    %v12316 = vld [vmem:[#allocation12 + $0x290] sm:$0xff]
    %v12317 = vld [vmem:[#allocation12 + $0x298] sm:$0xff]
    %v12318 = vld [vmem:[#allocation12 + $0x2a0] sm:$0xff]
    %v12319 = vld [vmem:[#allocation12 + $0x2a8] sm:$0xff]
    %v12320 = vld [vmem:[#allocation12 + $0x2b0] sm:$0xff]
    %v12321 = vld [vmem:[#allocation12 + $0x2b8] sm:$0xff]
    %v12322 = vld [vmem:[#allocation12 + $0x2c0] sm:$0xff]
    %v12323 = vld [vmem:[#allocation12 + $0x2c8] sm:$0xff]
    %v12324 = vld [vmem:[#allocation12 + $0x2d0] sm:$0xff]
    %v12325 = vld [vmem:[#allocation12 + $0x2d8] sm:$0xff]
    %v12326 = vld [vmem:[#allocation12 + $0x2e0] sm:$0xff]
    %v12327 = vld [vmem:[#allocation12 + $0x2e8] sm:$0xff]
    %v12328 = vld [vmem:[#allocation12 + $0x2f0] sm:$0xff]
    %v12329 = vld [vmem:[#allocation12 + $0x2f8] sm:$0xff]
    %v12330 = vld [vmem:[#allocation12 + $0x300] sm:$0xff]
    %v12331 = vld [vmem:[#allocation12 + $0x308] sm:$0xff]
    %v12332 = vld [vmem:[#allocation12 + $0x310] sm:$0xff]
    %v12333 = vld [vmem:[#allocation12 + $0x318] sm:$0xff]
    %v12334 = vld [vmem:[#allocation12 + $0x320] sm:$0xff]
    %v12335 = vld [vmem:[#allocation12 + $0x328] sm:$0xff]
    %v12336 = vld [vmem:[#allocation12 + $0x330] sm:$0xff]
    %v12337 = vld [vmem:[#allocation12 + $0x338] sm:$0xff]
    %v12338 = vld [vmem:[#allocation12 + $0x340] sm:$0xff]
    %v12339 = vld [vmem:[#allocation12 + $0x348] sm:$0xff]
    %v12340 = vld [vmem:[#allocation12 + $0x350] sm:$0xff]
    %v12341 = vld [vmem:[#allocation12 + $0x358] sm:$0xff]
    %v12342 = vld [vmem:[#allocation12 + $0x360] sm:$0xff]
    %v12343 = vld [vmem:[#allocation12 + $0x368] sm:$0xff]
    %v12344 = vld [vmem:[#allocation12 + $0x370] sm:$0xff]
    %v12345 = vld [vmem:[#allocation12 + $0x378] sm:$0xff]
    %v12346 = vld [vmem:[#allocation12 + $0x380] sm:$0xff]
    %v12347 = vld [vmem:[#allocation12 + $0x388] sm:$0xff]
    %v12348 = vld [vmem:[#allocation12 + $0x390] sm:$0xff]
    %v12349 = vld [vmem:[#allocation12 + $0x398] sm:$0xff]
    %v12350 = vld [vmem:[#allocation12 + $0x3a0] sm:$0xff]
    %v12351 = vld [vmem:[#allocation12 + $0x3a8] sm:$0xff]
    %v12352 = vld [vmem:[#allocation12 + $0x3b0] sm:$0xff]
    %v12353 = vld [vmem:[#allocation12 + $0x3b8] sm:$0xff]
    %v12354 = vld [vmem:[#allocation12 + $0x3c0] sm:$0xff]
    %v12355 = vld [vmem:[#allocation12 + $0x3c8] sm:$0xff]
    %v12356 = vld [vmem:[#allocation12 + $0x3d0] sm:$0xff]
    %v12357 = vld [vmem:[#allocation12 + $0x3d8] sm:$0xff]
    %v12358 = vld [vmem:[#allocation12 + $0x3e0] sm:$0xff]
    %v12359 = vld [vmem:[#allocation12 + $0x3e8] sm:$0xff]
    %v12360 = vld [vmem:[#allocation12 + $0x3f0] sm:$0xff]
    %v12361 = vld [vmem:[#allocation12 + $0x3f8] sm:$0xff]
    %v12362 = vld [vmem:[#allocation13] sm:$0x3]
    %v12364 = vperm.slane %v12362, 0
    %v12365 = vperm.slane %v12362, 1
    %v12496 = vunpack.c.l.b16 %v12234
    %v12497 = vunpack.c.h.b16 %v12234
    %v12498 = vunpack.c.l.b16 %v12235
    %v12499 = vunpack.c.h.b16 %v12235
    %v12500 = vunpack.c.l.b16 %v12236
    %v12501 = vunpack.c.h.b16 %v12236
    %v12502 = vunpack.c.l.b16 %v12237
    %v12503 = vunpack.c.h.b16 %v12237
    %v12504 = vunpack.c.l.b16 %v12238
    %v12505 = vunpack.c.h.b16 %v12238
    %v12506 = vunpack.c.l.b16 %v12239
    %v12507 = vunpack.c.h.b16 %v12239
    %v12508 = vunpack.c.l.b16 %v12240
    %v12509 = vunpack.c.h.b16 %v12240
    %v12510 = vunpack.c.l.b16 %v12241
    %v12511 = vunpack.c.h.b16 %v12241
    %v12512 = vunpack.c.l.b16 %v12242
    %v12513 = vunpack.c.h.b16 %v12242
    %v12514 = vunpack.c.l.b16 %v12243
    %v12515 = vunpack.c.h.b16 %v12243
    %v12516 = vunpack.c.l.b16 %v12244
    %v12517 = vunpack.c.h.b16 %v12244
    %v12518 = vunpack.c.l.b16 %v12245
    %v12519 = vunpack.c.h.b16 %v12245
    %v12520 = vunpack.c.l.b16 %v12246
    %v12521 = vunpack.c.h.b16 %v12246
    %v12522 = vunpack.c.l.b16 %v12247
    %v12523 = vunpack.c.h.b16 %v12247
    %v12524 = vunpack.c.l.b16 %v12248
    %v12525 = vunpack.c.h.b16 %v12248
    %v12526 = vunpack.c.l.b16 %v12249
    %v12527 = vunpack.c.h.b16 %v12249
    %v12528 = vunpack.c.l.b16 %v12250
    %v12529 = vunpack.c.h.b16 %v12250
    %v12530 = vunpack.c.l.b16 %v12251
    %v12531 = vunpack.c.h.b16 %v12251
    %v12532 = vunpack.c.l.b16 %v12252
    %v12533 = vunpack.c.h.b16 %v12252
    %v12534 = vunpack.c.l.b16 %v12253
    %v12535 = vunpack.c.h.b16 %v12253
    %v12536 = vunpack.c.l.b16 %v12254
    %v12537 = vunpack.c.h.b16 %v12254
    %v12538 = vunpack.c.l.b16 %v12255
    %v12539 = vunpack.c.h.b16 %v12255
    %v12540 = vunpack.c.l.b16 %v12256
    %v12541 = vunpack.c.h.b16 %v12256
    %v12542 = vunpack.c.l.b16 %v12257
    %v12543 = vunpack.c.h.b16 %v12257
    %v12544 = vunpack.c.l.b16 %v12258
    %v12545 = vunpack.c.h.b16 %v12258
    %v12546 = vunpack.c.l.b16 %v12259
    %v12547 = vunpack.c.h.b16 %v12259
    %v12548 = vunpack.c.l.b16 %v12260
    %v12549 = vunpack.c.h.b16 %v12260
    %v12550 = vunpack.c.l.b16 %v12261
    %v12551 = vunpack.c.h.b16 %v12261
    %v12552 = vunpack.c.l.b16 %v12262
    %v12553 = vunpack.c.h.b16 %v12262
    %v12554 = vunpack.c.l.b16 %v12263
    %v12555 = vunpack.c.h.b16 %v12263
    %v12556 = vunpack.c.l.b16 %v12264
    %v12557 = vunpack.c.h.b16 %v12264
    %v12558 = vunpack.c.l.b16 %v12265
    %v12559 = vunpack.c.h.b16 %v12265
    %v12560 = vunpack.c.l.b16 %v12266
    %v12561 = vunpack.c.h.b16 %v12266
    %v12562 = vunpack.c.l.b16 %v12267
    %v12563 = vunpack.c.h.b16 %v12267
    %v12564 = vunpack.c.l.b16 %v12268
    %v12565 = vunpack.c.h.b16 %v12268
    %v12566 = vunpack.c.l.b16 %v12269
    %v12567 = vunpack.c.h.b16 %v12269
    %v12568 = vunpack.c.l.b16 %v12270
    %v12569 = vunpack.c.h.b16 %v12270
    %v12570 = vunpack.c.l.b16 %v12271
    %v12571 = vunpack.c.h.b16 %v12271
    %v12572 = vunpack.c.l.b16 %v12272
    %v12573 = vunpack.c.h.b16 %v12272
    %v12574 = vunpack.c.l.b16 %v12273
    %v12575 = vunpack.c.h.b16 %v12273
    %v12576 = vunpack.c.l.b16 %v12274
    %v12577 = vunpack.c.h.b16 %v12274
    %v12578 = vunpack.c.l.b16 %v12275
    %v12579 = vunpack.c.h.b16 %v12275
    %v12580 = vunpack.c.l.b16 %v12276
    %v12581 = vunpack.c.h.b16 %v12276
    %v12582 = vunpack.c.l.b16 %v12277
    %v12583 = vunpack.c.h.b16 %v12277
    %v12584 = vunpack.c.l.b16 %v12278
    %v12585 = vunpack.c.h.b16 %v12278
    %v12586 = vunpack.c.l.b16 %v12279
    %v12587 = vunpack.c.h.b16 %v12279
    %v12588 = vunpack.c.l.b16 %v12280
    %v12589 = vunpack.c.h.b16 %v12280
    %v12590 = vunpack.c.l.b16 %v12281
    %v12591 = vunpack.c.h.b16 %v12281
    %v12592 = vunpack.c.l.b16 %v12282
    %v12593 = vunpack.c.h.b16 %v12282
    %v12594 = vunpack.c.l.b16 %v12283
    %v12595 = vunpack.c.h.b16 %v12283
    %v12596 = vunpack.c.l.b16 %v12284
    %v12597 = vunpack.c.h.b16 %v12284
    %v12598 = vunpack.c.l.b16 %v12285
    %v12599 = vunpack.c.h.b16 %v12285
    %v12600 = vunpack.c.l.b16 %v12286
    %v12601 = vunpack.c.h.b16 %v12286
    %v12602 = vunpack.c.l.b16 %v12287
    %v12603 = vunpack.c.h.b16 %v12287
    %v12604 = vunpack.c.l.b16 %v12288
    %v12605 = vunpack.c.h.b16 %v12288
    %v12606 = vunpack.c.l.b16 %v12289
    %v12607 = vunpack.c.h.b16 %v12289
    %v12608 = vunpack.c.l.b16 %v12290
    %v12609 = vunpack.c.h.b16 %v12290
    %v12610 = vunpack.c.l.b16 %v12291
    %v12611 = vunpack.c.h.b16 %v12291
    %v12612 = vunpack.c.l.b16 %v12292
    %v12613 = vunpack.c.h.b16 %v12292
    %v12614 = vunpack.c.l.b16 %v12293
    %v12615 = vunpack.c.h.b16 %v12293
    %v12616 = vunpack.c.l.b16 %v12294
    %v12617 = vunpack.c.h.b16 %v12294
    %v12618 = vunpack.c.l.b16 %v12295
    %v12619 = vunpack.c.h.b16 %v12295
    %v12620 = vunpack.c.l.b16 %v12296
    %v12621 = vunpack.c.h.b16 %v12296
    %v12622 = vunpack.c.l.b16 %v12297
    %v12623 = vunpack.c.h.b16 %v12297
    %v12624 = vunpack.c.l.b16 %v12298
    %v12625 = vunpack.c.h.b16 %v12298
    %v12626 = vunpack.c.l.b16 %v12299
    %v12627 = vunpack.c.h.b16 %v12299
    %v12628 = vunpack.c.l.b16 %v12300
    %v12629 = vunpack.c.h.b16 %v12300
    %v12630 = vunpack.c.l.b16 %v12301
    %v12631 = vunpack.c.h.b16 %v12301
    %v12632 = vunpack.c.l.b16 %v12302
    %v12633 = vunpack.c.h.b16 %v12302
    %v12634 = vunpack.c.l.b16 %v12303
    %v12635 = vunpack.c.h.b16 %v12303
    %v12636 = vunpack.c.l.b16 %v12304
    %v12637 = vunpack.c.h.b16 %v12304
    %v12638 = vunpack.c.l.b16 %v12305
    %v12639 = vunpack.c.h.b16 %v12305
    %v12640 = vunpack.c.l.b16 %v12306
    %v12641 = vunpack.c.h.b16 %v12306
    %v12642 = vunpack.c.l.b16 %v12307
    %v12643 = vunpack.c.h.b16 %v12307
    %v12644 = vunpack.c.l.b16 %v12308
    %v12645 = vunpack.c.h.b16 %v12308
    %v12646 = vunpack.c.l.b16 %v12309
    %v12647 = vunpack.c.h.b16 %v12309
    %v12648 = vunpack.c.l.b16 %v12310
    %v12649 = vunpack.c.h.b16 %v12310
    %v12650 = vunpack.c.l.b16 %v12311
    %v12651 = vunpack.c.h.b16 %v12311
    %v12652 = vunpack.c.l.b16 %v12312
    %v12653 = vunpack.c.h.b16 %v12312
    %v12654 = vunpack.c.l.b16 %v12313
    %v12655 = vunpack.c.h.b16 %v12313
    %v12656 = vunpack.c.l.b16 %v12314
    %v12657 = vunpack.c.h.b16 %v12314
    %v12658 = vunpack.c.l.b16 %v12315
    %v12659 = vunpack.c.h.b16 %v12315
    %v12660 = vunpack.c.l.b16 %v12316
    %v12661 = vunpack.c.h.b16 %v12316
    %v12662 = vunpack.c.l.b16 %v12317
    %v12663 = vunpack.c.h.b16 %v12317
    %v12664 = vunpack.c.l.b16 %v12318
    %v12665 = vunpack.c.h.b16 %v12318
    %v12666 = vunpack.c.l.b16 %v12319
    %v12667 = vunpack.c.h.b16 %v12319
    %v12668 = vunpack.c.l.b16 %v12320
    %v12669 = vunpack.c.h.b16 %v12320
    %v12670 = vunpack.c.l.b16 %v12321
    %v12671 = vunpack.c.h.b16 %v12321
    %v12672 = vunpack.c.l.b16 %v12322
    %v12673 = vunpack.c.h.b16 %v12322
    %v12674 = vunpack.c.l.b16 %v12323
    %v12675 = vunpack.c.h.b16 %v12323
    %v12676 = vunpack.c.l.b16 %v12324
    %v12677 = vunpack.c.h.b16 %v12324
    %v12678 = vunpack.c.l.b16 %v12325
    %v12679 = vunpack.c.h.b16 %v12325
    %v12680 = vunpack.c.l.b16 %v12326
    %v12681 = vunpack.c.h.b16 %v12326
    %v12682 = vunpack.c.l.b16 %v12327
    %v12683 = vunpack.c.h.b16 %v12327
    %v12684 = vunpack.c.l.b16 %v12328
    %v12685 = vunpack.c.h.b16 %v12328
    %v12686 = vunpack.c.l.b16 %v12329
    %v12687 = vunpack.c.h.b16 %v12329
    %v12688 = vunpack.c.l.b16 %v12330
    %v12689 = vunpack.c.h.b16 %v12330
    %v12690 = vunpack.c.l.b16 %v12331
    %v12691 = vunpack.c.h.b16 %v12331
    %v12692 = vunpack.c.l.b16 %v12332
    %v12693 = vunpack.c.h.b16 %v12332
    %v12694 = vunpack.c.l.b16 %v12333
    %v12695 = vunpack.c.h.b16 %v12333
    %v12696 = vunpack.c.l.b16 %v12334
    %v12697 = vunpack.c.h.b16 %v12334
    %v12698 = vunpack.c.l.b16 %v12335
    %v12699 = vunpack.c.h.b16 %v12335
    %v12700 = vunpack.c.l.b16 %v12336
    %v12701 = vunpack.c.h.b16 %v12336
    %v12702 = vunpack.c.l.b16 %v12337
    %v12703 = vunpack.c.h.b16 %v12337
    %v12704 = vunpack.c.l.b16 %v12338
    %v12705 = vunpack.c.h.b16 %v12338
    %v12706 = vunpack.c.l.b16 %v12339
    %v12707 = vunpack.c.h.b16 %v12339
    %v12708 = vunpack.c.l.b16 %v12340
    %v12709 = vunpack.c.h.b16 %v12340
    %v12710 = vunpack.c.l.b16 %v12341
    %v12711 = vunpack.c.h.b16 %v12341
    %v12712 = vunpack.c.l.b16 %v12342
    %v12713 = vunpack.c.h.b16 %v12342
    %v12714 = vunpack.c.l.b16 %v12343
    %v12715 = vunpack.c.h.b16 %v12343
    %v12716 = vunpack.c.l.b16 %v12344
    %v12717 = vunpack.c.h.b16 %v12344
    %v12718 = vunpack.c.l.b16 %v12345
    %v12719 = vunpack.c.h.b16 %v12345
    %v12720 = vunpack.c.l.b16 %v12346
    %v12721 = vunpack.c.h.b16 %v12346
    %v12722 = vunpack.c.l.b16 %v12347
    %v12723 = vunpack.c.h.b16 %v12347
    %v12724 = vunpack.c.l.b16 %v12348
    %v12725 = vunpack.c.h.b16 %v12348
    %v12726 = vunpack.c.l.b16 %v12349
    %v12727 = vunpack.c.h.b16 %v12349
    %v12728 = vunpack.c.l.b16 %v12350
    %v12729 = vunpack.c.h.b16 %v12350
    %v12730 = vunpack.c.l.b16 %v12351
    %v12731 = vunpack.c.h.b16 %v12351
    %v12732 = vunpack.c.l.b16 %v12352
    %v12733 = vunpack.c.h.b16 %v12352
    %v12734 = vunpack.c.l.b16 %v12353
    %v12735 = vunpack.c.h.b16 %v12353
    %v12736 = vunpack.c.l.b16 %v12354
    %v12737 = vunpack.c.h.b16 %v12354
    %v12738 = vunpack.c.l.b16 %v12355
    %v12739 = vunpack.c.h.b16 %v12355
    %v12740 = vunpack.c.l.b16 %v12356
    %v12741 = vunpack.c.h.b16 %v12356
    %v12742 = vunpack.c.l.b16 %v12357
    %v12743 = vunpack.c.h.b16 %v12357
    %v12744 = vunpack.c.l.b16 %v12358
    %v12745 = vunpack.c.h.b16 %v12358
    %v12746 = vunpack.c.l.b16 %v12359
    %v12747 = vunpack.c.h.b16 %v12359
    %v12748 = vunpack.c.l.b16 %v12360
    %v12749 = vunpack.c.h.b16 %v12360
    %v12750 = vunpack.c.l.b16 %v12361
    %v12751 = vunpack.c.h.b16 %v12361
    %v12752 = vpack.c.b16 %v12498, %v12496
    %v12753 = vpack.c.b16 %v12499, %v12497
    %v12754 = vpack.c.b16 %v12502, %v12500
    %v12755 = vpack.c.b16 %v12503, %v12501
    %v12756 = vpack.c.b16 %v12506, %v12504
    %v12757 = vpack.c.b16 %v12507, %v12505
    %v12758 = vpack.c.b16 %v12510, %v12508
    %v12759 = vpack.c.b16 %v12511, %v12509
    %v12760 = vpack.c.b16 %v12514, %v12512
    %v12761 = vpack.c.b16 %v12515, %v12513
    %v12762 = vpack.c.b16 %v12518, %v12516
    %v12763 = vpack.c.b16 %v12519, %v12517
    %v12764 = vpack.c.b16 %v12522, %v12520
    %v12765 = vpack.c.b16 %v12523, %v12521
    %v12766 = vpack.c.b16 %v12526, %v12524
    %v12767 = vpack.c.b16 %v12527, %v12525
    %v12768 = vpack.c.b16 %v12530, %v12528
    %v12769 = vpack.c.b16 %v12531, %v12529
    %v12770 = vpack.c.b16 %v12534, %v12532
    %v12771 = vpack.c.b16 %v12535, %v12533
    %v12772 = vpack.c.b16 %v12538, %v12536
    %v12773 = vpack.c.b16 %v12539, %v12537
    %v12774 = vpack.c.b16 %v12542, %v12540
    %v12775 = vpack.c.b16 %v12543, %v12541
    %v12776 = vpack.c.b16 %v12546, %v12544
    %v12777 = vpack.c.b16 %v12547, %v12545
    %v12778 = vpack.c.b16 %v12550, %v12548
    %v12779 = vpack.c.b16 %v12551, %v12549
    %v12780 = vpack.c.b16 %v12554, %v12552
    %v12781 = vpack.c.b16 %v12555, %v12553
    %v12782 = vpack.c.b16 %v12558, %v12556
    %v12783 = vpack.c.b16 %v12559, %v12557
    %v12784 = vpack.c.b16 %v12562, %v12560
    %v12785 = vpack.c.b16 %v12563, %v12561
    %v12786 = vpack.c.b16 %v12566, %v12564
    %v12787 = vpack.c.b16 %v12567, %v12565
    %v12788 = vpack.c.b16 %v12570, %v12568
    %v12789 = vpack.c.b16 %v12571, %v12569
    %v12790 = vpack.c.b16 %v12574, %v12572
    %v12791 = vpack.c.b16 %v12575, %v12573
    %v12792 = vpack.c.b16 %v12578, %v12576
    %v12793 = vpack.c.b16 %v12579, %v12577
    %v12794 = vpack.c.b16 %v12582, %v12580
    %v12795 = vpack.c.b16 %v12583, %v12581
    %v12796 = vpack.c.b16 %v12586, %v12584
    %v12797 = vpack.c.b16 %v12587, %v12585
    %v12798 = vpack.c.b16 %v12590, %v12588
    %v12799 = vpack.c.b16 %v12591, %v12589
    %v12800 = vpack.c.b16 %v12594, %v12592
    %v12801 = vpack.c.b16 %v12595, %v12593
    %v12802 = vpack.c.b16 %v12598, %v12596
    %v12803 = vpack.c.b16 %v12599, %v12597
    %v12804 = vpack.c.b16 %v12602, %v12600
    %v12805 = vpack.c.b16 %v12603, %v12601
    %v12806 = vpack.c.b16 %v12606, %v12604
    %v12807 = vpack.c.b16 %v12607, %v12605
    %v12808 = vpack.c.b16 %v12610, %v12608
    %v12809 = vpack.c.b16 %v12611, %v12609
    %v12810 = vpack.c.b16 %v12614, %v12612
    %v12811 = vpack.c.b16 %v12615, %v12613
    %v12812 = vpack.c.b16 %v12618, %v12616
    %v12813 = vpack.c.b16 %v12619, %v12617
    %v12814 = vpack.c.b16 %v12622, %v12620
    %v12815 = vpack.c.b16 %v12623, %v12621
    %v12816 = vpack.c.b16 %v12626, %v12624
    %v12817 = vpack.c.b16 %v12627, %v12625
    %v12818 = vpack.c.b16 %v12630, %v12628
    %v12819 = vpack.c.b16 %v12631, %v12629
    %v12820 = vpack.c.b16 %v12634, %v12632
    %v12821 = vpack.c.b16 %v12635, %v12633
    %v12822 = vpack.c.b16 %v12638, %v12636
    %v12823 = vpack.c.b16 %v12639, %v12637
    %v12824 = vpack.c.b16 %v12642, %v12640
    %v12825 = vpack.c.b16 %v12643, %v12641
    %v12826 = vpack.c.b16 %v12646, %v12644
    %v12827 = vpack.c.b16 %v12647, %v12645
    %v12828 = vpack.c.b16 %v12650, %v12648
    %v12829 = vpack.c.b16 %v12651, %v12649
    %v12830 = vpack.c.b16 %v12654, %v12652
    %v12831 = vpack.c.b16 %v12655, %v12653
    %v12832 = vpack.c.b16 %v12658, %v12656
    %v12833 = vpack.c.b16 %v12659, %v12657
    %v12834 = vpack.c.b16 %v12662, %v12660
    %v12835 = vpack.c.b16 %v12663, %v12661
    %v12836 = vpack.c.b16 %v12666, %v12664
    %v12837 = vpack.c.b16 %v12667, %v12665
    %v12838 = vpack.c.b16 %v12670, %v12668
    %v12839 = vpack.c.b16 %v12671, %v12669
    %v12840 = vpack.c.b16 %v12674, %v12672
    %v12841 = vpack.c.b16 %v12675, %v12673
    %v12842 = vpack.c.b16 %v12678, %v12676
    %v12843 = vpack.c.b16 %v12679, %v12677
    %v12844 = vpack.c.b16 %v12682, %v12680
    %v12845 = vpack.c.b16 %v12683, %v12681
    %v12846 = vpack.c.b16 %v12686, %v12684
    %v12847 = vpack.c.b16 %v12687, %v12685
    %v12848 = vpack.c.b16 %v12690, %v12688
    %v12849 = vpack.c.b16 %v12691, %v12689
    %v12850 = vpack.c.b16 %v12694, %v12692
    %v12851 = vpack.c.b16 %v12695, %v12693
    %v12852 = vpack.c.b16 %v12698, %v12696
    %v12853 = vpack.c.b16 %v12699, %v12697
    %v12854 = vpack.c.b16 %v12702, %v12700
    %v12855 = vpack.c.b16 %v12703, %v12701
    %v12856 = vpack.c.b16 %v12706, %v12704
    %v12857 = vpack.c.b16 %v12707, %v12705
    %v12858 = vpack.c.b16 %v12710, %v12708
    %v12859 = vpack.c.b16 %v12711, %v12709
    %v12860 = vpack.c.b16 %v12714, %v12712
    %v12861 = vpack.c.b16 %v12715, %v12713
    %v12862 = vpack.c.b16 %v12718, %v12716
    %v12863 = vpack.c.b16 %v12719, %v12717
    %v12864 = vpack.c.b16 %v12722, %v12720
    %v12865 = vpack.c.b16 %v12723, %v12721
    %v12866 = vpack.c.b16 %v12726, %v12724
    %v12867 = vpack.c.b16 %v12727, %v12725
    %v12868 = vpack.c.b16 %v12730, %v12728
    %v12869 = vpack.c.b16 %v12731, %v12729
    %v12870 = vpack.c.b16 %v12734, %v12732
    %v12871 = vpack.c.b16 %v12735, %v12733
    %v12872 = vpack.c.b16 %v12738, %v12736
    %v12873 = vpack.c.b16 %v12739, %v12737
    %v12874 = vpack.c.b16 %v12742, %v12740
    %v12875 = vpack.c.b16 %v12743, %v12741
    %v12876 = vpack.c.b16 %v12746, %v12744
    %v12877 = vpack.c.b16 %v12747, %v12745
    %v12878 = vpack.c.b16 %v12750, %v12748
    %v12879 = vpack.c.b16 %v12751, %v12749
    %13008 = vmatpush.bf16.msra.mxu0 %v12766
    %13009 = vmatpush.bf16.msra.mxu0 %v12764
    %13010 = vmatpush.bf16.msra.mxu0 %v12762
    %13011 = vmatpush.bf16.msra.mxu0 %v12760
    %13012 = vmatpush.bf16.msra.mxu0 %v12758
    %13013 = vmatpush.bf16.msra.mxu0 %v12756
    %13014 = vmatpush.bf16.msra.mxu0 %v12754
    %13015 = vmatpush.bf16.msra.mxu0 %v12752
    %13016 = vmatmul.bf16.gmra.mxu0 %v12226
    %v13017 = vpop.f32.mrf.mxu0
    %v13018 = vadd.f32 %v12364, %v13017
    %v13019 = vpop.f32.mrf.mxu0
    %v13020 = vadd.f32 %v12364, %v13019
    %13021 = vdwg.mxu0
    %13022 = vmatpush.bf16.msra.mxu0 %v12782
    %13023 = vmatpush.bf16.msra.mxu0 %v12780
    %13024 = vmatpush.bf16.msra.mxu0 %v12778
    %13025 = vmatpush.bf16.msra.mxu0 %v12776
    %13026 = vmatpush.bf16.msra.mxu0 %v12774
    %13027 = vmatpush.bf16.msra.mxu0 %v12772
    %13028 = vmatpush.bf16.msra.mxu0 %v12770
    %13029 = vmatpush.bf16.msra.mxu0 %v12768
    %13030 = vmatmul.bf16.gmra.mxu0 %v12227
    %v13031 = vpop.f32.mrf.mxu0
    %v13032 = vadd.f32 %v13018, %v13031
    %v13033 = vpop.f32.mrf.mxu0
    %v13034 = vadd.f32 %v13020, %v13033
    %13035 = vdwg.mxu0
    %13036 = vmatpush.bf16.msra.mxu0 %v12798
    %13037 = vmatpush.bf16.msra.mxu0 %v12796
    %13038 = vmatpush.bf16.msra.mxu0 %v12794
    %13039 = vmatpush.bf16.msra.mxu0 %v12792
    %13040 = vmatpush.bf16.msra.mxu0 %v12790
    %13041 = vmatpush.bf16.msra.mxu0 %v12788
    %13042 = vmatpush.bf16.msra.mxu0 %v12786
    %13043 = vmatpush.bf16.msra.mxu0 %v12784
    %13044 = vmatmul.bf16.gmra.mxu0 %v12228
    %v13045 = vpop.f32.mrf.mxu0
    %v13046 = vadd.f32 %v13032, %v13045
    %v13047 = vpop.f32.mrf.mxu0
    %v13048 = vadd.f32 %v13034, %v13047
    %13049 = vdwg.mxu0
    %13050 = vmatpush.bf16.msra.mxu0 %v12814
    %13051 = vmatpush.bf16.msra.mxu0 %v12812
    %13052 = vmatpush.bf16.msra.mxu0 %v12810
    %13053 = vmatpush.bf16.msra.mxu0 %v12808
    %13054 = vmatpush.bf16.msra.mxu0 %v12806
    %13055 = vmatpush.bf16.msra.mxu0 %v12804
    %13056 = vmatpush.bf16.msra.mxu0 %v12802
    %13057 = vmatpush.bf16.msra.mxu0 %v12800
    %13058 = vmatmul.bf16.gmra.mxu0 %v12229
    %v13059 = vpop.f32.mrf.mxu0
    %v13060 = vadd.f32 %v13046, %v13059
    %v13061 = vpop.f32.mrf.mxu0
    %v13062 = vadd.f32 %v13048, %v13061
    %13063 = vdwg.mxu0
    %13064 = vmatpush.bf16.msra.mxu0 %v12830
    %13065 = vmatpush.bf16.msra.mxu0 %v12828
    %13066 = vmatpush.bf16.msra.mxu0 %v12826
    %13067 = vmatpush.bf16.msra.mxu0 %v12824
    %13068 = vmatpush.bf16.msra.mxu0 %v12822
    %13069 = vmatpush.bf16.msra.mxu0 %v12820
    %13070 = vmatpush.bf16.msra.mxu0 %v12818
    %13071 = vmatpush.bf16.msra.mxu0 %v12816
    %13072 = vmatmul.bf16.gmra.mxu0 %v12230
    %v13073 = vpop.f32.mrf.mxu0
    %v13074 = vadd.f32 %v13060, %v13073
    %v13075 = vpop.f32.mrf.mxu0
    %v13076 = vadd.f32 %v13062, %v13075
    %13077 = vdwg.mxu0
    %13078 = vmatpush.bf16.msra.mxu0 %v12846
    %13079 = vmatpush.bf16.msra.mxu0 %v12844
    %13080 = vmatpush.bf16.msra.mxu0 %v12842
    %13081 = vmatpush.bf16.msra.mxu0 %v12840
    %13082 = vmatpush.bf16.msra.mxu0 %v12838
    %13083 = vmatpush.bf16.msra.mxu0 %v12836
    %13084 = vmatpush.bf16.msra.mxu0 %v12834
    %13085 = vmatpush.bf16.msra.mxu0 %v12832
    %13086 = vmatmul.bf16.gmra.mxu0 %v12231
    %v13087 = vpop.f32.mrf.mxu0
    %v13088 = vadd.f32 %v13074, %v13087
    %v13089 = vpop.f32.mrf.mxu0
    %v13090 = vadd.f32 %v13076, %v13089
    %13091 = vdwg.mxu0
    %13092 = vmatpush.bf16.msra.mxu0 %v12862
    %13093 = vmatpush.bf16.msra.mxu0 %v12860
    %13094 = vmatpush.bf16.msra.mxu0 %v12858
    %13095 = vmatpush.bf16.msra.mxu0 %v12856
    %13096 = vmatpush.bf16.msra.mxu0 %v12854
    %13097 = vmatpush.bf16.msra.mxu0 %v12852
    %13098 = vmatpush.bf16.msra.mxu0 %v12850
    %13099 = vmatpush.bf16.msra.mxu0 %v12848
    %13100 = vmatmul.bf16.gmra.mxu0 %v12232
    %v13101 = vpop.f32.mrf.mxu0
    %v13102 = vadd.f32 %v13088, %v13101
    %v13103 = vpop.f32.mrf.mxu0
    %v13104 = vadd.f32 %v13090, %v13103
    %13105 = vdwg.mxu0
    %13106 = vmatpush.bf16.msra.mxu0 %v12878
    %13107 = vmatpush.bf16.msra.mxu0 %v12876
    %13108 = vmatpush.bf16.msra.mxu0 %v12874
    %13109 = vmatpush.bf16.msra.mxu0 %v12872
    %13110 = vmatpush.bf16.msra.mxu0 %v12870
    %13111 = vmatpush.bf16.msra.mxu0 %v12868
    %13112 = vmatpush.bf16.msra.mxu0 %v12866
    %13113 = vmatpush.bf16.msra.mxu0 %v12864
    %13114 = vmatmul.bf16.gmra.mxu0 %v12233
    %v13115 = vpop.f32.mrf.mxu0
    %v13116 = vadd.f32 %v13102, %v13115
    %v13117 = vpop.f32.mrf.mxu0
    %v13118 = vadd.f32 %v13104, %v13117
    %13119 = vdwg.mxu0
    %13120 = vmatpush.bf16.msra.mxu0 %v12767
    %13121 = vmatpush.bf16.msra.mxu0 %v12765
    %13122 = vmatpush.bf16.msra.mxu0 %v12763
    %13123 = vmatpush.bf16.msra.mxu0 %v12761
    %13124 = vmatpush.bf16.msra.mxu0 %v12759
    %13125 = vmatpush.bf16.msra.mxu0 %v12757
    %13126 = vmatpush.bf16.msra.mxu0 %v12755
    %13127 = vmatpush.bf16.msra.mxu0 %v12753
    %13128 = vmatmul.bf16.gmra.mxu0 %v12226
    %v13129 = vpop.f32.mrf.mxu0
    %v13130 = vadd.f32 %v12365, %v13129
    %v13131 = vpop.f32.mrf.mxu0
    %v13132 = vadd.f32 %v12365, %v13131
    %13133 = vdwg.mxu0
    %13134 = vmatpush.bf16.msra.mxu0 %v12783
    %13135 = vmatpush.bf16.msra.mxu0 %v12781
    %13136 = vmatpush.bf16.msra.mxu0 %v12779
    %13137 = vmatpush.bf16.msra.mxu0 %v12777
    %13138 = vmatpush.bf16.msra.mxu0 %v12775
    %13139 = vmatpush.bf16.msra.mxu0 %v12773
    %13140 = vmatpush.bf16.msra.mxu0 %v12771
    %13141 = vmatpush.bf16.msra.mxu0 %v12769
    %13142 = vmatmul.bf16.gmra.mxu0 %v12227
    %v13143 = vpop.f32.mrf.mxu0
    %v13144 = vadd.f32 %v13130, %v13143
    %v13145 = vpop.f32.mrf.mxu0
    %v13146 = vadd.f32 %v13132, %v13145
    %13147 = vdwg.mxu0
    %13148 = vmatpush.bf16.msra.mxu0 %v12799
    %13149 = vmatpush.bf16.msra.mxu0 %v12797
    %13150 = vmatpush.bf16.msra.mxu0 %v12795
    %13151 = vmatpush.bf16.msra.mxu0 %v12793
    %13152 = vmatpush.bf16.msra.mxu0 %v12791
    %13153 = vmatpush.bf16.msra.mxu0 %v12789
    %13154 = vmatpush.bf16.msra.mxu0 %v12787
    %13155 = vmatpush.bf16.msra.mxu0 %v12785
    %13156 = vmatmul.bf16.gmra.mxu0 %v12228
    %v13157 = vpop.f32.mrf.mxu0
    %v13158 = vadd.f32 %v13144, %v13157
    %v13159 = vpop.f32.mrf.mxu0
    %v13160 = vadd.f32 %v13146, %v13159
    %13161 = vdwg.mxu0
    %13162 = vmatpush.bf16.msra.mxu0 %v12815
    %13163 = vmatpush.bf16.msra.mxu0 %v12813
    %13164 = vmatpush.bf16.msra.mxu0 %v12811
    %13165 = vmatpush.bf16.msra.mxu0 %v12809
    %13166 = vmatpush.bf16.msra.mxu0 %v12807
    %13167 = vmatpush.bf16.msra.mxu0 %v12805
    %13168 = vmatpush.bf16.msra.mxu0 %v12803
    %13169 = vmatpush.bf16.msra.mxu0 %v12801
    %13170 = vmatmul.bf16.gmra.mxu0 %v12229
    %v13171 = vpop.f32.mrf.mxu0
    %v13172 = vadd.f32 %v13158, %v13171
    %v13173 = vpop.f32.mrf.mxu0
    %v13174 = vadd.f32 %v13160, %v13173
    %13175 = vdwg.mxu0
    %13176 = vmatpush.bf16.msra.mxu0 %v12831
    %13177 = vmatpush.bf16.msra.mxu0 %v12829
    %13178 = vmatpush.bf16.msra.mxu0 %v12827
    %13179 = vmatpush.bf16.msra.mxu0 %v12825
    %13180 = vmatpush.bf16.msra.mxu0 %v12823
    %13181 = vmatpush.bf16.msra.mxu0 %v12821
    %13182 = vmatpush.bf16.msra.mxu0 %v12819
    %13183 = vmatpush.bf16.msra.mxu0 %v12817
    %13184 = vmatmul.bf16.gmra.mxu0 %v12230
    %v13185 = vpop.f32.mrf.mxu0
    %v13186 = vadd.f32 %v13172, %v13185
    %v13187 = vpop.f32.mrf.mxu0
    %v13188 = vadd.f32 %v13174, %v13187
    %13189 = vdwg.mxu0
    %13190 = vmatpush.bf16.msra.mxu0 %v12847
    %13191 = vmatpush.bf16.msra.mxu0 %v12845
    %13192 = vmatpush.bf16.msra.mxu0 %v12843
    %13193 = vmatpush.bf16.msra.mxu0 %v12841
    %13194 = vmatpush.bf16.msra.mxu0 %v12839
    %13195 = vmatpush.bf16.msra.mxu0 %v12837
    %13196 = vmatpush.bf16.msra.mxu0 %v12835
    %13197 = vmatpush.bf16.msra.mxu0 %v12833
    %13198 = vmatmul.bf16.gmra.mxu0 %v12231
    %v13199 = vpop.f32.mrf.mxu0
    %v13200 = vadd.f32 %v13186, %v13199
    %v13201 = vpop.f32.mrf.mxu0
    %v13202 = vadd.f32 %v13188, %v13201
    %13203 = vdwg.mxu0
    %13204 = vmatpush.bf16.msra.mxu0 %v12863
    %13205 = vmatpush.bf16.msra.mxu0 %v12861
    %13206 = vmatpush.bf16.msra.mxu0 %v12859
    %13207 = vmatpush.bf16.msra.mxu0 %v12857
    %13208 = vmatpush.bf16.msra.mxu0 %v12855
    %13209 = vmatpush.bf16.msra.mxu0 %v12853
    %13210 = vmatpush.bf16.msra.mxu0 %v12851
    %13211 = vmatpush.bf16.msra.mxu0 %v12849
    %13212 = vmatmul.bf16.gmra.mxu0 %v12232
    %v13213 = vpop.f32.mrf.mxu0
    %v13214 = vadd.f32 %v13200, %v13213
    %v13215 = vpop.f32.mrf.mxu0
    %v13216 = vadd.f32 %v13202, %v13215
    %13217 = vdwg.mxu0
    %13218 = vmatpush.bf16.msra.mxu0 %v12879
    %13219 = vmatpush.bf16.msra.mxu0 %v12877
    %13220 = vmatpush.bf16.msra.mxu0 %v12875
    %13221 = vmatpush.bf16.msra.mxu0 %v12873
    %13222 = vmatpush.bf16.msra.mxu0 %v12871
    %13223 = vmatpush.bf16.msra.mxu0 %v12869
    %13224 = vmatpush.bf16.msra.mxu0 %v12867
    %13225 = vmatpush.bf16.msra.mxu0 %v12865
    %13226 = vmatmul.bf16.gmra.mxu0 %v12233
    %v13227 = vpop.f32.mrf.mxu0
    %v13228 = vadd.f32 %v13214, %v13227
    %v13229 = vpop.f32.mrf.mxu0
    %v13230 = vadd.f32 %v13216, %v13229
    %13231 = vdwg.mxu0
    %v13232 = vmax.f32 %v13116, 0.0
    %v13233 = vmax.f32 %v13228, 0.0
    %v13234 = vmax.f32 %v13118, 0.0
    %v13235 = vmax.f32 %v13230, 0.0
    %v13236 = vpack.c.bf16 %v13234, %v13232
    %v13237 = vpack.c.bf16 %v13235, %v13233
    %v13238 = vld [vmem:[#allocation15] sm:$0xf]
    %v13239 = vld [vmem:[#allocation15 + $0x4] sm:$0xf]
    %v13240 = vld [vmem:[#allocation15 + $0x8] sm:$0xf]
    %v13241 = vld [vmem:[#allocation15 + $0xc] sm:$0xf]
    %v13242 = vld [vmem:[#allocation15 + $0x10] sm:$0xf]
    %v13243 = vld [vmem:[#allocation15 + $0x14] sm:$0xf]
    %v13244 = vld [vmem:[#allocation15 + $0x18] sm:$0xf]
    %v13245 = vld [vmem:[#allocation15 + $0x1c] sm:$0xf]
    %v13246 = vld [vmem:[#allocation15 + $0x20] sm:$0xf]
    %v13247 = vld [vmem:[#allocation15 + $0x24] sm:$0xf]
    %v13248 = vld [vmem:[#allocation15 + $0x28] sm:$0xf]
    %v13249 = vld [vmem:[#allocation15 + $0x2c] sm:$0xf]
    %v13250 = vld [vmem:[#allocation15 + $0x30] sm:$0xf]
    %v13251 = vld [vmem:[#allocation15 + $0x34] sm:$0xf]
    %v13252 = vld [vmem:[#allocation15 + $0x38] sm:$0xf]
    %v13253 = vld [vmem:[#allocation15 + $0x3c] sm:$0xf]
    %v13254 = vld [vmem:[#allocation15 + $0x40] sm:$0xf]
    %v13255 = vld [vmem:[#allocation15 + $0x44] sm:$0xf]
    %v13256 = vld [vmem:[#allocation15 + $0x48] sm:$0xf]
    %v13257 = vld [vmem:[#allocation15 + $0x4c] sm:$0xf]
    %v13258 = vld [vmem:[#allocation15 + $0x50] sm:$0xf]
    %v13259 = vld [vmem:[#allocation15 + $0x54] sm:$0xf]
    %v13260 = vld [vmem:[#allocation15 + $0x58] sm:$0xf]
    %v13261 = vld [vmem:[#allocation15 + $0x5c] sm:$0xf]
    %v13262 = vld [vmem:[#allocation15 + $0x60] sm:$0xf]
    %v13263 = vld [vmem:[#allocation15 + $0x64] sm:$0xf]
    %v13264 = vld [vmem:[#allocation15 + $0x68] sm:$0xf]
    %v13265 = vld [vmem:[#allocation15 + $0x6c] sm:$0xf]
    %v13266 = vld [vmem:[#allocation15 + $0x70] sm:$0xf]
    %v13267 = vld [vmem:[#allocation15 + $0x74] sm:$0xf]
    %v13268 = vld [vmem:[#allocation15 + $0x78] sm:$0xf]
    %v13269 = vld [vmem:[#allocation15 + $0x7c] sm:$0xf]
    %v13270 = vld [vmem:[#allocation16] sm:$0x1]
    %v13272 = vperm.slane %v13270, 0
    %v13306 = vunpack.c.l.b16 %v13238
    %v13307 = vunpack.c.l.b16 %v13239
    %v13308 = vunpack.c.l.b16 %v13240
    %v13309 = vunpack.c.l.b16 %v13241
    %v13310 = vunpack.c.l.b16 %v13242
    %v13311 = vunpack.c.l.b16 %v13243
    %v13312 = vunpack.c.l.b16 %v13244
    %v13313 = vunpack.c.l.b16 %v13245
    %v13314 = vunpack.c.l.b16 %v13246
    %v13315 = vunpack.c.l.b16 %v13247
    %v13316 = vunpack.c.l.b16 %v13248
    %v13317 = vunpack.c.l.b16 %v13249
    %v13318 = vunpack.c.l.b16 %v13250
    %v13319 = vunpack.c.l.b16 %v13251
    %v13320 = vunpack.c.l.b16 %v13252
    %v13321 = vunpack.c.l.b16 %v13253
    %v13322 = vunpack.c.l.b16 %v13254
    %v13323 = vunpack.c.l.b16 %v13255
    %v13324 = vunpack.c.l.b16 %v13256
    %v13325 = vunpack.c.l.b16 %v13257
    %v13326 = vunpack.c.l.b16 %v13258
    %v13327 = vunpack.c.l.b16 %v13259
    %v13328 = vunpack.c.l.b16 %v13260
    %v13329 = vunpack.c.l.b16 %v13261
    %v13330 = vunpack.c.l.b16 %v13262
    %v13331 = vunpack.c.l.b16 %v13263
    %v13332 = vunpack.c.l.b16 %v13264
    %v13333 = vunpack.c.l.b16 %v13265
    %v13334 = vunpack.c.l.b16 %v13266
    %v13335 = vunpack.c.l.b16 %v13267
    %v13336 = vunpack.c.l.b16 %v13268
    %v13337 = vunpack.c.l.b16 %v13269
    %v13338 = vpack.c.b16 %v13307, %v13306
    %v13339 = vpack.c.b16 %v13309, %v13308
    %v13340 = vpack.c.b16 %v13311, %v13310
    %v13341 = vpack.c.b16 %v13313, %v13312
    %v13342 = vpack.c.b16 %v13315, %v13314
    %v13343 = vpack.c.b16 %v13317, %v13316
    %v13344 = vpack.c.b16 %v13319, %v13318
    %v13345 = vpack.c.b16 %v13321, %v13320
    %v13346 = vpack.c.b16 %v13323, %v13322
    %v13347 = vpack.c.b16 %v13325, %v13324
    %v13348 = vpack.c.b16 %v13327, %v13326
    %v13349 = vpack.c.b16 %v13329, %v13328
    %v13350 = vpack.c.b16 %v13331, %v13330
    %v13351 = vpack.c.b16 %v13333, %v13332
    %v13352 = vpack.c.b16 %v13335, %v13334
    %v13353 = vpack.c.b16 %v13337, %v13336
    %13370 = vmatpush.bf16.msra.mxu0 %v13345
    %13371 = vmatpush.bf16.msra.mxu0 %v13344
    %13372 = vmatpush.bf16.msra.mxu0 %v13343
    %13373 = vmatpush.bf16.msra.mxu0 %v13342
    %13374 = vmatpush.bf16.msra.mxu0 %v13341
    %13375 = vmatpush.bf16.msra.mxu0 %v13340
    %13376 = vmatpush.bf16.msra.mxu0 %v13339
    %13377 = vmatpush.bf16.msra.mxu0 %v13338
    %13378 = vmatmul.bf16.gmra.mxu0 %v13236
    %v13379 = vpop.f32.mrf.mxu0
    %v13380 = vadd.f32 %v13272, %v13379
    %v13381 = vpop.f32.mrf.mxu0
    %v13382 = vadd.f32 %v13272, %v13381
    %13383 = vdwg.mxu0
    %13384 = vmatpush.bf16.msra.mxu0 %v13353
    %13385 = vmatpush.bf16.msra.mxu0 %v13352
    %13386 = vmatpush.bf16.msra.mxu0 %v13351
    %13387 = vmatpush.bf16.msra.mxu0 %v13350
    %13388 = vmatpush.bf16.msra.mxu0 %v13349
    %13389 = vmatpush.bf16.msra.mxu0 %v13348
    %13390 = vmatpush.bf16.msra.mxu0 %v13347
    %13391 = vmatpush.bf16.msra.mxu0 %v13346
    %13392 = vmatmul.bf16.gmra.mxu0 %v13237
    %v13393 = vpop.f32.mrf.mxu0
    %v13394 = vadd.f32 %v13380, %v13393
    %v13395 = vpop.f32.mrf.mxu0
    %v13396 = vadd.f32 %v13382, %v13395
    %13397 = vdwg.mxu0
    %13398 = vst [vmem:[%s11] sm:$0xff] %v13394
    %13399 = vst [vmem:[%s11 + $0x8] sm:$0xff] %v13396
    // Predicated region
    $region86: #{value_net_forward.1} parent=1 // pred_check
      _
    $region87: #{value_net_forward.1} parent=1 // pred_check_branch
      %13401 = sbr.rel (0) target = $region89
    $region88: #{value_net_forward.1} parent=1 // pred_region
      _
    $region89: #{value_net_forward.1} parent=1 // pred_fallthru
      _
    // Predicated region
    $region90: #{value_net_forward.1} parent=1 // pred_check
      _
    $region91: #{value_net_forward.1} parent=1 // pred_check_branch
      %13403 = sbr.rel (0) target = $region93
    $region92: #{value_net_forward.1} parent=1 // pred_region
      _
    $region93: #{value_net_forward.1} parent=1 // pred_fallthru
      _
    %13404 = vsyncpa [#allocation3], 1
    %13405 = vsyncpa [#allocation5], 1
    %13406 = vsyncpa [#allocation8], 1
    %13407 = vsyncpa [#allocation11], 1
    %13408 = vsyncpa [#allocation14], 1
    %13409 = vsyncpa [#allocation17], 1

</llo_original>
